<compile_context>
chip_gen: v6e
topology: v6e:2x2x1
jax: 0.10.0
libtpu: 0.0.40
codegen_flags: <defaults>
</compile_context>

<pallas_src>
import functools

import jax
import jax.numpy as jnp
from jax.experimental import pallas as pl
from jax.experimental.pallas import tpu as pltpu


# ----------------------------------------------------------------------------- activations
_ERF_A = (0.254829592, -0.284496736, 1.421413741, -1.453152027, 1.061405429)
_ERF_P = 0.3275911
_INV_SQRT2 = 0.7071067811865476


def _erf(x):
    # Abramowitz-Stegun 7.1.26, |err| < 1.5e-7 (~f32 eps); matches torch.nn.GELU (exact erf).
    s = jnp.where(x >= 0.0, 1.0, -1.0)
    a = jnp.abs(x)
    t = 1.0 / (1.0 + _ERF_P * a)
    a1, a2, a3, a4, a5 = _ERF_A
    poly = ((((a5 * t + a4) * t + a3) * t + a2) * t + a1) * t
    return s * (1.0 - poly * jnp.exp(-a * a))


def _gelu(x):
    return 0.5 * x * (1.0 + _erf(x * _INV_SQRT2))


def _sigmoid(x):
    # numerically stable logistic (no inf intermediates for large |x|)
    z = jnp.exp(-jnp.abs(x))
    return jnp.where(x >= 0.0, 1.0 / (1.0 + z), z / (1.0 + z))


def _layernorm_cf(x, w, b, eps):
    # channels_first LayerNorm: per-pixel stats over the channel (sublane) axis of (C, H*W).
    u = jnp.mean(x, axis=0, keepdims=True)
    xc = x - u
    s = jnp.mean(xc * xc, axis=0, keepdims=True)
    return xc * jax.lax.rsqrt(s + eps) * w + b          # w, b: (C, 1)


# ----------------------------------------------------------------------------- shift helpers
def _shift_pix(y, s):
    """out[:, p] = y[:, p + s] with zero fill outside [0, P).  Lane-axis shift of (C, H*W)."""
    c, p = y.shape
    if s == 0:
        return y
    if abs(s) >= p:
        return jnp.zeros_like(y)
    z = jnp.zeros((c, abs(s)), y.dtype)
    if s > 0:
        return jnp.concatenate([y[:, s:], z], axis=1)
    return jnp.concatenate([z, y[:, :p + s]], axis=1)


def _dw_conv_cf(x, w_ref, b_ref, K, dil, W, w_pos):
    """Depthwise KxK conv, stride 1, dilation `dil`, 'same' zero padding, on (C, H*W).

    w_ref: (C, K*K) per-channel taps (column index ky*K + kx); b_ref: (C, 1).
    Row (H) boundary is handled exactly by the zero-fill shifts; the column (W) boundary
    mask depends only on dx so it is applied once per kx (K selects total, not K*K).
    """
    f32 = jnp.float32
    pad = dil * (K - 1) // 2
    out = jnp.zeros_like(x)
    for kx in range(K):
        dx = kx * dil - pad
        acc = jnp.zeros_like(x)
        for ky in range(K):
            dy = ky * dil - pad
            t = ky * K + kx
            acc = acc + _shift_pix(x, dy * W + dx) * w_ref[:, t:t + 1].astype(f32)
        valid = (w_pos + dx >= 0) & (w_pos + dx < W)
        out = out + jnp.where(valid, acc, 0.0)
    return out + b_ref[...].astype(f32)


def _mxu(w, x):
    # bf16 operands, f32 accumulation (bf16-native MXU on v5e/v6e/v7x).
    return jnp.dot(w.astype(jnp.bfloat16), x.astype(jnp.bfloat16),
                   preferred_element_type=jnp.float32)


# ----------------------------------------------------------------------------- fused MAB kernel
def _mab_kernel(x_ref,
                anw_ref, anb_ref, p1w_ref, p1b_ref,
                c0w_ref, c0b_ref, cspw_ref, cspb_ref,
                c1w_ref, c1b_ref, c2w_ref, c2b_ref,
                sqw_ref, sqb_ref, cw_ref, cb_ref,
                p2w_ref, p2b_ref, asc_ref,
                mnw_ref, mnb_ref, w11_ref, b11_ref, w12_ref, b12_ref,
                w2_ref, b2_ref, msc_ref,
                o_ref,
                *, H, W, F, eps):
    f32 = jnp.float32
    HW = H * W

    x = x_ref[0].astype(f32)                                        # (F, H*W), lane-dense
    w_pos = jax.lax.broadcasted_iota(jnp.int32, (1, HW), 1) % W     # column index per pixel

    # ===================== Attention =====================
    xn = _layernorm_cf(x, anw_ref[...].astype(f32), anb_ref[...].astype(f32), eps)
    g0 = _gelu(_mxu(p1w_ref[...], xn) + p1b_ref[...].astype(f32))   # proj_1 + GELU

    attn1 = _dw_conv_cf(g0, c0w_ref, c0b_ref, 5, 1, W, w_pos)        # depthwise 5x5, pad 2
    a1 = _mxu(c1w_ref[...], attn1) + c1b_ref[...].astype(f32)        # conv1 (issued early)
    attn2 = _dw_conv_cf(attn1, cspw_ref, cspb_ref, 7, 3, W, w_pos)   # depthwise 7x7, dil 3, pad 9
    a2 = _mxu(c2w_ref[...], attn2) + c2b_ref[...].astype(f32)        # conv2

    # channel mean / max over cat([a1, a2]) -> (1, H*W) planes (lane-dense)
    mean_p = (jnp.sum(a1, axis=0, keepdims=True)
              + jnp.sum(a2, axis=0, keepdims=True)) * (1.0 / F)
    max_p = jnp.maximum(jnp.max(a1, axis=0, keepdims=True),
                        jnp.max(a2, axis=0, keepdims=True))

    # conv_squeeze 7x7 (cin=2, cout=2): shift-and-accumulate, scalar weights from SMEM.
    pre0 = jnp.zeros((1, HW), f32)
    pre1 = jnp.zeros((1, HW), f32)
    for kx in range(7):
        dx = kx - 3
        acc0 = jnp.zeros((1, HW), f32)
        acc1 = jnp.zeros((1, HW), f32)
        for ky in range(7):
            dy = ky - 3
            s = dy * W + dx
            tm = _shift_pix(mean_p, s)
            tx = _shift_pix(max_p, s)
            base = (ky * 7 + kx) * 4                 # flat (ky, kx, ci, co) layout
            acc0 = acc0 + tm * sqw_ref[base + 0] + tx * sqw_ref[base + 2]
            acc1 = acc1 + tm * sqw_ref[base + 1] + tx * sqw_ref[base + 3]
        valid = (w_pos + dx >= 0) & (w_pos + dx < W)
        pre0 = pre0 + jnp.where(valid, acc0, 0.0)
        pre1 = pre1 + jnp.where(valid, acc1, 0.0)
    sig0 = _sigmoid(pre0 + sqb_ref[0])
    sig1 = _sigmoid(pre1 + sqb_ref[1])

    # TODO(synk): reference LKA.forward literally returns attn2 (F//2 ch), which would crash
    # proj_2 in PyTorch; we follow the evident LSKNet intent (gate a1/a2, final 1x1 conv).
    gated = a1 * sig0 + a2 * sig1
    lka = _mxu(cw_ref[...], gated) + cb_ref[...].astype(f32)
    ya = _mxu(p2w_ref[...], lka) + p2b_ref[...].astype(f32)
    ya = ya * asc_ref[...].astype(f32) + x                           # proj_2 * scale + shortcut

    # ===================== MLP =====================
    mn = _layernorm_cf(ya, mnw_ref[...].astype(f32), mnb_ref[...].astype(f32), eps)

    # fc11 (1,3): 3 matmuls + lane shifts (+/-1) with column-edge masks.
    y0 = _mxu(w11_ref[0], mn)
    y1 = _mxu(w11_ref[1], mn)
    y2 = _mxu(w11_ref[2], mn)
    h1 = (y1
          + jnp.where(w_pos >= 1, _shift_pix(y0, -1), 0.0)
          + jnp.where(w_pos <= W - 2, _shift_pix(y2, 1), 0.0)
          + b11_ref[...].astype(f32))

    # fc12 (3,1): 3 matmuls + lane shifts by +/-W (zero fill handles the row edges exactly).
    z0 = _mxu(w12_ref[0], h1)
    z1 = _mxu(w12_ref[1], h1)
    z2 = _mxu(w12_ref[2], h1)
    h2 = _gelu(z1 + _shift_pix(z0, -W) + _shift_pix(z2, W) + b12_ref[...].astype(f32))

    ym = _mxu(w2_ref[...], h2) + b2_ref[...].astype(f32)             # fc2
    ym = ym * msc_ref[...].astype(f32) + ya                          # * scale + shortcut

    o_ref[0] = ym.astype(o_ref.dtype)


# ----------------------------------------------------------------------------- wrappers
@functools.lru_cache(maxsize=1)
def _vmem_limit_bytes():
    # Per-generation scoped-VMEM budget: ~3/4 of physical (~96 MiB on v5e/v6e, ~48 MiB on v7x).
    try:
        cap = int(pltpu.get_tpu_info().vmem_capacity_bytes)
    except Exception:
        cap = 64 * 1024 * 1024
    return (cap * 3) // 4


def mab_forward(x, attn_p, mlp_p, *, H, W):
    """One fused MAB (Attention + MLP). x: (N, C, H*W) channels-first, pixels on lanes."""
    N, F, HW = x.shape
    l = attn_p["lka"]

    def vspec(a):
        nd = a.ndim
        return pl.BlockSpec(a.shape, lambda *_: (0,) * nd)

    smem_spec = pl.BlockSpec(memory_space=pltpu.MemorySpace.SMEM)

    weights = (
        attn_p["norm_w"], attn_p["norm_b"], attn_p["proj1_w"], attn_p["proj1_b"],
        l["conv0_w"], l["conv0_b"], l["convsp_w"], l["convsp_b"],
        l["conv1_w"], l["conv1_b"], l["conv2_w"], l["conv2_b"],
        l["convsq_w"], l["convsq_b"], l["conv_w"], l["conv_b"],
        attn_p["proj2_w"], attn_p["proj2_b"], attn_p["scale"],
        mlp_p["norm_w"], mlp_p["norm_b"], mlp_p["fc11_w"], mlp_p["fc11_b"],
        mlp_p["fc12_w"], mlp_p["fc12_b"], mlp_p["fc2_w"], mlp_p["fc2_b"], mlp_p["scale"],
    )
    smem_idx = {12, 13}        # convsq_w (196,), convsq_b (2,) -> SMEM scalar tables
    wspecs = [smem_spec if i in smem_idx else vspec(w) for i, w in enumerate(weights)]

    return pl.pallas_call(
        functools.partial(_mab_kernel, H=H, W=W, F=F, eps=1e-6),
        out_shape=jax.ShapeDtypeStruct((N, F, HW), x.dtype),
        grid=(N,),
        in_specs=[pl.BlockSpec((1, F, HW), lambda n: (n, 0, 0))] + wspecs,
        out_specs=pl.BlockSpec((1, F, HW), lambda n: (n, 0, 0)),
        compiler_params=pltpu.CompilerParams(
            dimension_semantics=("parallel",),
            vmem_limit_bytes=_vmem_limit_bytes()),
    )(x, *weights)


def resgroup_forward(x_nchw, params):
    # NCHW in/out (PyTorch layout).  (N,C,H,W) -> (N,C,H*W) is a free reshape; channels-first
    # is the kernel's native layout so there are no boundary transposes at all.
    N, F, H, W = x_nchw.shape
    x = x_nchw.reshape(N, F, H * W)
    res = x
    for blk in params["blocks"]:
        res = mab_forward(res, blk["attn"], blk["mlp"], H=H, W=W)
    return (res + x).reshape(N, F, H, W)


# ----------------------------------------------------------------------------- params
def init_params(key, n_resblocks, n_feats, dtype=jnp.float32):
    """Parameter layouts (mapping from the torch module):
      1x1 conv:          w[co, ci]                 = torch_w[co, ci, 0, 0]   -> (Cout, Cin)
      depthwise KxK:     w[c, ky*K + kx]           = torch_w[c, 0, ky, kx]   -> (C, K*K)
      conv_squeeze 7x7:  flat[(ky*7+kx)*4+ci*2+co] = torch_w[co, ci, ky, kx] -> (196,) in SMEM
      fc11 (1,3):        w[kx, co, ci]             = torch_w[co, ci, 0, kx]  -> (3, C, C)
      fc12 (3,1):        w[ky, co, ci]             = torch_w[co, ci, ky, 0]  -> (3, 2C, C)
      LN / biases / scale: (C, 1) column vectors (channels-first broadcast).
    """
    F = n_feats
    Fh = F // 2
    keys = iter(jax.random.split(key, 64 * n_resblocks + 8))

    def nrm(shape, s=0.05):
        return (jax.random.normal(next(keys), shape, jnp.float32) * s).astype(dtype)

    blocks = []
    for _ in range(n_resblocks):
        attn = dict(
            norm_w=jnp.ones((F, 1), dtype), norm_b=jnp.zeros((F, 1), dtype),
            scale=nrm((F, 1), 0.1),   # torch inits to 0; nonzero so the branch is exercised
            proj1_w=nrm((F, F)), proj1_b=nrm((F, 1)),
            proj2_w=nrm((F, F)), proj2_b=nrm((F, 1)),
            lka=dict(
                conv0_w=nrm((F, 25)), conv0_b=nrm((F, 1)),
                convsp_w=nrm((F, 49)), convsp_b=nrm((F, 1)),
                conv1_w=nrm((Fh, F)), conv1_b=nrm((Fh, 1)),
                conv2_w=nrm((Fh, F)), conv2_b=nrm((Fh, 1)),
                convsq_w=nrm((7 * 7 * 2 * 2,)), convsq_b=nrm((2,)),
                conv_w=nrm((F, Fh)), conv_b=nrm((F, 1)),
            ),
        )
        mlp = dict(
            norm_w=jnp.ones((F, 1), dtype), norm_b=jnp.zeros((F, 1), dtype),
            scale=nrm((F, 1), 0.1),
            fc11_w=nrm((3, F, F)), fc11_b=nrm((F, 1)),
            fc12_w=nrm((3, 2 * F, F)), fc12_b=nrm((2 * F, 1)),
            fc2_w=nrm((F, 2 * F)), fc2_b=nrm((F, 1)),
        )
        blocks.append(dict(attn=attn, mlp=mlp))
    return dict(blocks=blocks)


# ----------------------------------------------------------------------------- main
if __name__ == "__main__":
    n_resblocks, n_feats = 2, 8
    N, H, W = 2, 16, 16

    key = jax.random.PRNGKey(0)
    pkey, xkey = jax.random.split(key)
    params = init_params(pkey, n_resblocks, n_feats)
    x = jax.random.normal(xkey, (N, n_feats, H, W), jnp.float32)   # NCHW, like the PyTorch module

    fwd = jax.jit(resgroup_forward)
    out = fwd(x, params)
    jax.block_until_ready(out)
    assert out.shape == x.shape and out.dtype == x.dtype
    print("KERNEL_OK")
</pallas_src>

<mosaic_0001>
module attributes {stable_mosaic.version = 11 : i64} {
  func.func @_mab_kernel(%arg0: i32, %arg1: memref<1x8x256xf32, #tpu.memory_space<vmem>>, %arg2: memref<8x1xf32, #tpu.memory_space<vmem>>, %arg3: memref<8x1xf32, #tpu.memory_space<vmem>>, %arg4: memref<8x8xf32, #tpu.memory_space<vmem>>, %arg5: memref<8x1xf32, #tpu.memory_space<vmem>>, %arg6: memref<8x25xf32, #tpu.memory_space<vmem>>, %arg7: memref<8x1xf32, #tpu.memory_space<vmem>>, %arg8: memref<8x49xf32, #tpu.memory_space<vmem>>, %arg9: memref<8x1xf32, #tpu.memory_space<vmem>>, %arg10: memref<4x8xf32, #tpu.memory_space<vmem>>, %arg11: memref<4x1xf32, #tpu.memory_space<vmem>>, %arg12: memref<4x8xf32, #tpu.memory_space<vmem>>, %arg13: memref<4x1xf32, #tpu.memory_space<vmem>>, %arg14: memref<196xf32, #tpu.memory_space<smem>>, %arg15: memref<2xf32, #tpu.memory_space<smem>>, %arg16: memref<8x4xf32, #tpu.memory_space<vmem>>, %arg17: memref<8x1xf32, #tpu.memory_space<vmem>>, %arg18: memref<8x8xf32, #tpu.memory_space<vmem>>, %arg19: memref<8x1xf32, #tpu.memory_space<vmem>>, %arg20: memref<8x1xf32, #tpu.memory_space<vmem>>, %arg21: memref<8x1xf32, #tpu.memory_space<vmem>>, %arg22: memref<8x1xf32, #tpu.memory_space<vmem>>, %arg23: memref<3x8x8xf32, #tpu.memory_space<vmem>>, %arg24: memref<8x1xf32, #tpu.memory_space<vmem>>, %arg25: memref<3x16x8xf32, #tpu.memory_space<vmem>>, %arg26: memref<16x1xf32, #tpu.memory_space<vmem>>, %arg27: memref<8x16xf32, #tpu.memory_space<vmem>>, %arg28: memref<8x1xf32, #tpu.memory_space<vmem>>, %arg29: memref<8x1xf32, #tpu.memory_space<vmem>>, %arg30: memref<1x8x256xf32, #tpu.memory_space<vmem>>) attributes {dimension_semantics = [#tpu.dimension_semantics<parallel>], iteration_bounds = array<i64: 2>, scalar_prefetch = 0 : i64, scratch_operands = 0 : i64, tpu.core_type = #tpu.core_type<tc>, window_params = [{transform_indices = @transform_0, window_bounds = array<i64: 1, 8, 256>}, {pipeline_mode = #tpu.pipeline_mode<synchronous>, transform_indices = @transform_1, window_bounds = array<i64: 8, 1>}, {pipeline_mode = #tpu.pipeline_mode<synchronous>, transform_indices = @transform_2, window_bounds = array<i64: 8, 1>}, {pipeline_mode = #tpu.pipeline_mode<synchronous>, transform_indices = @transform_3, window_bounds = array<i64: 8, 8>}, {pipeline_mode = #tpu.pipeline_mode<synchronous>, transform_indices = @transform_4, window_bounds = array<i64: 8, 1>}, {pipeline_mode = #tpu.pipeline_mode<synchronous>, transform_indices = @transform_5, window_bounds = array<i64: 8, 25>}, {pipeline_mode = #tpu.pipeline_mode<synchronous>, transform_indices = @transform_6, window_bounds = array<i64: 8, 1>}, {pipeline_mode = #tpu.pipeline_mode<synchronous>, transform_indices = @transform_7, window_bounds = array<i64: 8, 49>}, {pipeline_mode = #tpu.pipeline_mode<synchronous>, transform_indices = @transform_8, window_bounds = array<i64: 8, 1>}, {pipeline_mode = #tpu.pipeline_mode<synchronous>, transform_indices = @transform_9, window_bounds = array<i64: 4, 8>}, {pipeline_mode = #tpu.pipeline_mode<synchronous>, transform_indices = @transform_10, window_bounds = array<i64: 4, 1>}, {pipeline_mode = #tpu.pipeline_mode<synchronous>, transform_indices = @transform_11, window_bounds = array<i64: 4, 8>}, {pipeline_mode = #tpu.pipeline_mode<synchronous>, transform_indices = @transform_12, window_bounds = array<i64: 4, 1>}, {transform_indices = @transform_13, window_bounds = array<i64: 196>}, {transform_indices = @transform_14, window_bounds = array<i64: 2>}, {pipeline_mode = #tpu.pipeline_mode<synchronous>, transform_indices = @transform_15, window_bounds = array<i64: 8, 4>}, {pipeline_mode = #tpu.pipeline_mode<synchronous>, transform_indices = @transform_16, window_bounds = array<i64: 8, 1>}, {pipeline_mode = #tpu.pipeline_mode<synchronous>, transform_indices = @transform_17, window_bounds = array<i64: 8, 8>}, {pipeline_mode = #tpu.pipeline_mode<synchronous>, transform_indices = @transform_18, window_bounds = array<i64: 8, 1>}, {pipeline_mode = #tpu.pipeline_mode<synchronous>, transform_indices = @transform_19, window_bounds = array<i64: 8, 1>}, {pipeline_mode = #tpu.pipeline_mode<synchronous>, transform_indices = @transform_20, window_bounds = array<i64: 8, 1>}, {pipeline_mode = #tpu.pipeline_mode<synchronous>, transform_indices = @transform_21, window_bounds = array<i64: 8, 1>}, {pipeline_mode = #tpu.pipeline_mode<synchronous>, transform_indices = @transform_22, window_bounds = array<i64: 3, 8, 8>}, {pipeline_mode = #tpu.pipeline_mode<synchronous>, transform_indices = @transform_23, window_bounds = array<i64: 8, 1>}, {pipeline_mode = #tpu.pipeline_mode<synchronous>, transform_indices = @transform_24, window_bounds = array<i64: 3, 16, 8>}, {pipeline_mode = #tpu.pipeline_mode<synchronous>, transform_indices = @transform_25, window_bounds = array<i64: 16, 1>}, {pipeline_mode = #tpu.pipeline_mode<synchronous>, transform_indices = @transform_26, window_bounds = array<i64: 8, 16>}, {pipeline_mode = #tpu.pipeline_mode<synchronous>, transform_indices = @transform_27, window_bounds = array<i64: 8, 1>}, {pipeline_mode = #tpu.pipeline_mode<synchronous>, transform_indices = @transform_28, window_bounds = array<i64: 8, 1>}, {transform_indices = @transform_29, window_bounds = array<i64: 1, 8, 256>}]} {
    %c0 = arith.constant 0 : index
    %c0_0 = arith.constant 0 : index
    %c0_1 = arith.constant 0 : index
    %0 = vector.load %arg1[%c0, %c0_0, %c0_1] : memref<1x8x256xf32, #tpu.memory_space<vmem>>, vector<1x8x256xf32>
    %1 = vector.shape_cast %0 : vector<1x8x256xf32> to vector<8x256xf32>
    %2 = tpu.iota {dimensions = array<i32: 1>} : vector<1x256xi32>
    %c16_i32 = arith.constant 16 : i32
    %c0_i32 = arith.constant 0 : i32
    %3 = arith.cmpi eq, %c16_i32, %c0_i32 : i32
    %c1_i32 = arith.constant 1 : i32
    %4 = arith.select %3, %c1_i32, %c16_i32 : i32
    %5 = vector.broadcast %4 : i32 to vector<1x256xi32>
    %6 = arith.remsi %2, %5 : vector<1x256xi32>
    %c0_i32_2 = arith.constant 0 : i32
    %7 = vector.broadcast %c0_i32_2 : i32 to vector<1x256xi32>
    %8 = arith.cmpi ne, %6, %7 : vector<1x256xi32>
    %c0_i32_3 = arith.constant 0 : i32
    %9 = vector.broadcast %c0_i32_3 : i32 to vector<1x256xi32>
    %10 = arith.cmpi slt, %6, %9 : vector<1x256xi32>
    %c0_i32_4 = arith.constant 0 : i32
    %11 = arith.cmpi slt, %4, %c0_i32_4 : i32
    %12 = vector.broadcast %11 : i1 to vector<1x256xi1>
    %13 = vector.broadcast %12 : vector<1x256xi1> to vector<1x256xi1>
    %14 = arith.xori %10, %13 : vector<1x256xi1>
    %15 = arith.andi %14, %8 : vector<1x256xi1>
    %16 = vector.broadcast %4 : i32 to vector<1x256xi32>
    %17 = arith.addi %6, %16 : vector<1x256xi32>
    %18 = arith.select %15, %17, %6 : vector<1x256xi1>, vector<1x256xi32>
    %c0_5 = arith.constant 0 : index
    %c0_6 = arith.constant 0 : index
    %19 = vector.load %arg2[%c0_5, %c0_6] : memref<8x1xf32, #tpu.memory_space<vmem>>, vector<8x1xf32>
    %c0_7 = arith.constant 0 : index
    %c0_8 = arith.constant 0 : index
    %20 = vector.load %arg3[%c0_7, %c0_8] : memref<8x1xf32, #tpu.memory_space<vmem>>, vector<8x1xf32>
    %cst = arith.constant dense<0.000000e+00> : vector<256xf32>
    %21 = vector.multi_reduction <add>, %1, %cst [0] : vector<8x256xf32> to vector<256xf32>
    %22 = vector.shape_cast %21 : vector<256xf32> to vector<1x256xf32>
    %cst_9 = arith.constant 8.000000e+00 : f32
    %23 = vector.broadcast %cst_9 : f32 to vector<1x256xf32>
    %24 = arith.divf %22, %23 : vector<1x256xf32>
    %25 = vector.broadcast %24 : vector<1x256xf32> to vector<8x256xf32>
    %26 = arith.subf %1, %25 : vector<8x256xf32>
    %27 = arith.mulf %26, %26 : vector<8x256xf32>
    %cst_10 = arith.constant dense<0.000000e+00> : vector<256xf32>
    %28 = vector.multi_reduction <add>, %27, %cst_10 [0] : vector<8x256xf32> to vector<256xf32>
    %29 = vector.shape_cast %28 : vector<256xf32> to vector<1x256xf32>
    %cst_11 = arith.constant 8.000000e+00 : f32
    %30 = vector.broadcast %cst_11 : f32 to vector<1x256xf32>
    %31 = arith.divf %29, %30 : vector<1x256xf32>
    %cst_12 = arith.constant 9.99999997E-7 : f32
    %32 = vector.broadcast %cst_12 : f32 to vector<1x256xf32>
    %33 = arith.addf %31, %32 : vector<1x256xf32>
    %34 = math.rsqrt %33 : vector<1x256xf32>
    %35 = vector.broadcast %34 : vector<1x256xf32> to vector<8x256xf32>
    %36 = arith.mulf %26, %35 : vector<8x256xf32>
    %37 = vector.broadcast %19 : vector<8x1xf32> to vector<8x256xf32>
    %38 = arith.mulf %36, %37 : vector<8x256xf32>
    %39 = vector.broadcast %20 : vector<8x1xf32> to vector<8x256xf32>
    %40 = arith.addf %38, %39 : vector<8x256xf32>
    %c0_13 = arith.constant 0 : index
    %c0_14 = arith.constant 0 : index
    %41 = vector.load %arg4[%c0_13, %c0_14] : memref<8x8xf32, #tpu.memory_space<vmem>>, vector<8x8xf32>
    %42 = arith.truncf %41 : vector<8x8xf32> to vector<8x8xbf16>
    %43 = arith.truncf %40 : vector<8x256xf32> to vector<8x256xbf16>
    %cst_15 = arith.constant dense<0.000000e+00> : vector<8x256xf32>
    %44 = tpu.matmul %42, %43, %cst_15 {dimension_numbers = #tpu.dot_dimension_numbers<[1], [0], [0], [1], [0, 0, 1, 1], [], []>} : vector<8x8xbf16>, vector<8x256xbf16>, vector<8x256xf32> -> vector<8x256xf32>
    %c0_16 = arith.constant 0 : index
    %c0_17 = arith.constant 0 : index
    %45 = vector.load %arg5[%c0_16, %c0_17] : memref<8x1xf32, #tpu.memory_space<vmem>>, vector<8x1xf32>
    %46 = vector.broadcast %45 : vector<8x1xf32> to vector<8x256xf32>
    %47 = arith.addf %44, %46 : vector<8x256xf32>
    %cst_18 = arith.constant 5.000000e-01 : f32
    %48 = vector.broadcast %cst_18 : f32 to vector<8x256xf32>
    %49 = arith.mulf %48, %47 : vector<8x256xf32>
    %cst_19 = arith.constant 0.707106769 : f32
    %50 = vector.broadcast %cst_19 : f32 to vector<8x256xf32>
    %51 = arith.mulf %47, %50 : vector<8x256xf32>
    %cst_20 = arith.constant 0.000000e+00 : f32
    %52 = vector.broadcast %cst_20 : f32 to vector<8x256xf32>
    %53 = arith.cmpf oge, %51, %52 : vector<8x256xf32>
    %cst_21 = arith.constant 1.000000e+00 : f32
    %cst_22 = arith.constant -1.000000e+00 : f32
    %54 = vector.broadcast %cst_21 : f32 to vector<8x256xf32>
    %55 = vector.broadcast %cst_22 : f32 to vector<8x256xf32>
    %56 = arith.select %53, %54, %55 : vector<8x256xi1>, vector<8x256xf32>
    %57 = math.absf %51 : vector<8x256xf32>
    %cst_23 = arith.constant 0.327591091 : f32
    %58 = vector.broadcast %cst_23 : f32 to vector<8x256xf32>
    %59 = arith.mulf %58, %57 : vector<8x256xf32>
    %cst_24 = arith.constant 1.000000e+00 : f32
    %60 = vector.broadcast %cst_24 : f32 to vector<8x256xf32>
    %61 = arith.addf %60, %59 : vector<8x256xf32>
    %cst_25 = arith.constant 1.000000e+00 : f32
    %62 = vector.broadcast %cst_25 : f32 to vector<8x256xf32>
    %63 = arith.divf %62, %61 : vector<8x256xf32>
    %cst_26 = arith.constant 1.06140542 : f32
    %64 = vector.broadcast %cst_26 : f32 to vector<8x256xf32>
    %65 = arith.mulf %64, %63 : vector<8x256xf32>
    %cst_27 = arith.constant -1.45315206 : f32
    %66 = vector.broadcast %cst_27 : f32 to vector<8x256xf32>
    %67 = arith.addf %65, %66 : vector<8x256xf32>
    %68 = arith.mulf %67, %63 : vector<8x256xf32>
    %cst_28 = arith.constant 1.42141378 : f32
    %69 = vector.broadcast %cst_28 : f32 to vector<8x256xf32>
    %70 = arith.addf %68, %69 : vector<8x256xf32>
    %71 = arith.mulf %70, %63 : vector<8x256xf32>
    %cst_29 = arith.constant -0.284496725 : f32
    %72 = vector.broadcast %cst_29 : f32 to vector<8x256xf32>
    %73 = arith.addf %71, %72 : vector<8x256xf32>
    %74 = arith.mulf %73, %63 : vector<8x256xf32>
    %cst_30 = arith.constant 0.254829586 : f32
    %75 = vector.broadcast %cst_30 : f32 to vector<8x256xf32>
    %76 = arith.addf %74, %75 : vector<8x256xf32>
    %77 = arith.mulf %76, %63 : vector<8x256xf32>
    %cst_31 = arith.constant 0.000000e+00 : f32
    %78 = vector.broadcast %cst_31 : f32 to vector<8x256xf32>
    %79 = arith.subf %78, %57 : vector<8x256xf32>
    %80 = arith.mulf %79, %57 : vector<8x256xf32>
    %81 = math.exp %80 : vector<8x256xf32>
    %82 = arith.mulf %77, %81 : vector<8x256xf32>
    %cst_32 = arith.constant 1.000000e+00 : f32
    %83 = vector.broadcast %cst_32 : f32 to vector<8x256xf32>
    %84 = arith.subf %83, %82 : vector<8x256xf32>
    %85 = arith.mulf %56, %84 : vector<8x256xf32>
    %cst_33 = arith.constant 1.000000e+00 : f32
    %86 = vector.broadcast %cst_33 : f32 to vector<8x256xf32>
    %87 = arith.addf %86, %85 : vector<8x256xf32>
    %88 = arith.mulf %49, %87 : vector<8x256xf32>
    %cst_34 = arith.constant 0.000000e+00 : f32
    %89 = vector.broadcast %cst_34 : f32 to vector<8x256xf32>
    %cst_35 = arith.constant 0.000000e+00 : f32
    %90 = vector.broadcast %cst_35 : f32 to vector<8x256xf32>
    %cst_36 = arith.constant 0.000000e+00 : f32
    %91 = vector.broadcast %cst_36 : f32 to vector<8x34xf32>
    %92 = vector.extract_strided_slice %88 {offsets = [0, 0], sizes = [8, 222], strides = [1, 1]} : vector<8x256xf32> to vector<8x222xf32>
    %93 = tpu.concatenate %91, %92 in 1 : vector<8x34xf32>, vector<8x222xf32> -> vector<8x256xf32>
    %c0_37 = arith.constant 0 : index
    %c0_38 = arith.constant 0 : index
    %94 = vector.load %arg6[%c0_37, %c0_38] : memref<8x25xf32, #tpu.memory_space<vmem>>, vector<8x1xf32>
    %95 = vector.broadcast %94 : vector<8x1xf32> to vector<8x256xf32>
    %96 = arith.mulf %93, %95 : vector<8x256xf32>
    %97 = arith.addf %90, %96 : vector<8x256xf32>
    %cst_39 = arith.constant 0.000000e+00 : f32
    %98 = vector.broadcast %cst_39 : f32 to vector<8x18xf32>
    %99 = vector.extract_strided_slice %88 {offsets = [0, 0], sizes = [8, 238], strides = [1, 1]} : vector<8x256xf32> to vector<8x238xf32>
    %100 = tpu.concatenate %98, %99 in 1 : vector<8x18xf32>, vector<8x238xf32> -> vector<8x256xf32>
    %c0_40 = arith.constant 0 : index
    %c5 = arith.constant 5 : index
    %101 = vector.load %arg6[%c0_40, %c5] : memref<8x25xf32, #tpu.memory_space<vmem>>, vector<8x1xf32>
    %102 = vector.broadcast %101 : vector<8x1xf32> to vector<8x256xf32>
    %103 = arith.mulf %100, %102 : vector<8x256xf32>
    %104 = arith.addf %97, %103 : vector<8x256xf32>
    %cst_41 = arith.constant 0.000000e+00 : f32
    %105 = vector.broadcast %cst_41 : f32 to vector<8x2xf32>
    %106 = vector.extract_strided_slice %88 {offsets = [0, 0], sizes = [8, 254], strides = [1, 1]} : vector<8x256xf32> to vector<8x254xf32>
    %107 = tpu.concatenate %105, %106 in 1 : vector<8x2xf32>, vector<8x254xf32> -> vector<8x256xf32>
    %c0_42 = arith.constant 0 : index
    %c10 = arith.constant 10 : index
    %108 = vector.load %arg6[%c0_42, %c10] : memref<8x25xf32, #tpu.memory_space<vmem>>, vector<8x1xf32>
    %109 = vector.broadcast %108 : vector<8x1xf32> to vector<8x256xf32>
    %110 = arith.mulf %107, %109 : vector<8x256xf32>
    %111 = arith.addf %104, %110 : vector<8x256xf32>
    %cst_43 = arith.constant 0.000000e+00 : f32
    %112 = vector.broadcast %cst_43 : f32 to vector<8x14xf32>
    %113 = vector.extract_strided_slice %88 {offsets = [0, 14], sizes = [8, 242], strides = [1, 1]} : vector<8x256xf32> to vector<8x242xf32>
    %114 = tpu.concatenate %113, %112 in 1 : vector<8x242xf32>, vector<8x14xf32> -> vector<8x256xf32>
    %c0_44 = arith.constant 0 : index
    %c15 = arith.constant 15 : index
    %115 = vector.load %arg6[%c0_44, %c15] : memref<8x25xf32, #tpu.memory_space<vmem>>, vector<8x1xf32>
    %116 = vector.broadcast %115 : vector<8x1xf32> to vector<8x256xf32>
    %117 = arith.mulf %114, %116 : vector<8x256xf32>
    %118 = arith.addf %111, %117 : vector<8x256xf32>
    %cst_45 = arith.constant 0.000000e+00 : f32
    %119 = vector.broadcast %cst_45 : f32 to vector<8x30xf32>
    %120 = vector.extract_strided_slice %88 {offsets = [0, 30], sizes = [8, 226], strides = [1, 1]} : vector<8x256xf32> to vector<8x226xf32>
    %121 = tpu.concatenate %120, %119 in 1 : vector<8x226xf32>, vector<8x30xf32> -> vector<8x256xf32>
    %c0_46 = arith.constant 0 : index
    %c20 = arith.constant 20 : index
    %122 = vector.load %arg6[%c0_46, %c20] : memref<8x25xf32, #tpu.memory_space<vmem>>, vector<8x1xf32>
    %123 = vector.broadcast %122 : vector<8x1xf32> to vector<8x256xf32>
    %124 = arith.mulf %121, %123 : vector<8x256xf32>
    %125 = arith.addf %118, %124 : vector<8x256xf32>
    %c-2_i32 = arith.constant -2 : i32
    %126 = vector.broadcast %c-2_i32 : i32 to vector<1x256xi32>
    %127 = arith.addi %18, %126 : vector<1x256xi32>
    %c0_i32_47 = arith.constant 0 : i32
    %128 = vector.broadcast %c0_i32_47 : i32 to vector<1x256xi32>
    %129 = arith.cmpi sge, %127, %128 : vector<1x256xi32>
    %c-2_i32_48 = arith.constant -2 : i32
    %130 = vector.broadcast %c-2_i32_48 : i32 to vector<1x256xi32>
    %131 = arith.addi %18, %130 : vector<1x256xi32>
    %c16_i32_49 = arith.constant 16 : i32
    %132 = vector.broadcast %c16_i32_49 : i32 to vector<1x256xi32>
    %133 = arith.cmpi slt, %131, %132 : vector<1x256xi32>
    %134 = arith.andi %129, %133 : vector<1x256xi1>
    %cst_50 = arith.constant 0.000000e+00 : f32
    %135 = vector.shape_cast %134 : vector<1x256xi1> to vector<1x256xi1>
    %136 = vector.broadcast %135 : vector<1x256xi1> to vector<8x256xi1>
    %137 = vector.broadcast %cst_50 : f32 to vector<8x256xf32>
    %138 = arith.select %136, %125, %137 : vector<8x256xi1>, vector<8x256xf32>
    %139 = arith.addf %89, %138 : vector<8x256xf32>
    %cst_51 = arith.constant 0.000000e+00 : f32
    %140 = vector.broadcast %cst_51 : f32 to vector<8x256xf32>
    %cst_52 = arith.constant 0.000000e+00 : f32
    %141 = vector.broadcast %cst_52 : f32 to vector<8x33xf32>
    %142 = vector.extract_strided_slice %88 {offsets = [0, 0], sizes = [8, 223], strides = [1, 1]} : vector<8x256xf32> to vector<8x223xf32>
    %143 = tpu.concatenate %141, %142 in 1 : vector<8x33xf32>, vector<8x223xf32> -> vector<8x256xf32>
    %c0_53 = arith.constant 0 : index
    %c1 = arith.constant 1 : index
    %144 = vector.load %arg6[%c0_53, %c1] : memref<8x25xf32, #tpu.memory_space<vmem>>, vector<8x1xf32>
    %145 = vector.broadcast %144 : vector<8x1xf32> to vector<8x256xf32>
    %146 = arith.mulf %143, %145 : vector<8x256xf32>
    %147 = arith.addf %140, %146 : vector<8x256xf32>
    %cst_54 = arith.constant 0.000000e+00 : f32
    %148 = vector.broadcast %cst_54 : f32 to vector<8x17xf32>
    %149 = vector.extract_strided_slice %88 {offsets = [0, 0], sizes = [8, 239], strides = [1, 1]} : vector<8x256xf32> to vector<8x239xf32>
    %150 = tpu.concatenate %148, %149 in 1 : vector<8x17xf32>, vector<8x239xf32> -> vector<8x256xf32>
    %c0_55 = arith.constant 0 : index
    %c6 = arith.constant 6 : index
    %151 = vector.load %arg6[%c0_55, %c6] : memref<8x25xf32, #tpu.memory_space<vmem>>, vector<8x1xf32>
    %152 = vector.broadcast %151 : vector<8x1xf32> to vector<8x256xf32>
    %153 = arith.mulf %150, %152 : vector<8x256xf32>
    %154 = arith.addf %147, %153 : vector<8x256xf32>
    %cst_56 = arith.constant 0.000000e+00 : f32
    %155 = vector.broadcast %cst_56 : f32 to vector<8x1xf32>
    %156 = vector.extract_strided_slice %88 {offsets = [0, 0], sizes = [8, 255], strides = [1, 1]} : vector<8x256xf32> to vector<8x255xf32>
    %157 = tpu.concatenate %155, %156 in 1 : vector<8x1xf32>, vector<8x255xf32> -> vector<8x256xf32>
    %c0_57 = arith.constant 0 : index
    %c11 = arith.constant 11 : index
    %158 = vector.load %arg6[%c0_57, %c11] : memref<8x25xf32, #tpu.memory_space<vmem>>, vector<8x1xf32>
    %159 = vector.broadcast %158 : vector<8x1xf32> to vector<8x256xf32>
    %160 = arith.mulf %157, %159 : vector<8x256xf32>
    %161 = arith.addf %154, %160 : vector<8x256xf32>
    %cst_58 = arith.constant 0.000000e+00 : f32
    %162 = vector.broadcast %cst_58 : f32 to vector<8x15xf32>
    %163 = vector.extract_strided_slice %88 {offsets = [0, 15], sizes = [8, 241], strides = [1, 1]} : vector<8x256xf32> to vector<8x241xf32>
    %164 = tpu.concatenate %163, %162 in 1 : vector<8x241xf32>, vector<8x15xf32> -> vector<8x256xf32>
    %c0_59 = arith.constant 0 : index
    %c16 = arith.constant 16 : index
    %165 = vector.load %arg6[%c0_59, %c16] : memref<8x25xf32, #tpu.memory_space<vmem>>, vector<8x1xf32>
    %166 = vector.broadcast %165 : vector<8x1xf32> to vector<8x256xf32>
    %167 = arith.mulf %164, %166 : vector<8x256xf32>
    %168 = arith.addf %161, %167 : vector<8x256xf32>
    %cst_60 = arith.constant 0.000000e+00 : f32
    %169 = vector.broadcast %cst_60 : f32 to vector<8x31xf32>
    %170 = vector.extract_strided_slice %88 {offsets = [0, 31], sizes = [8, 225], strides = [1, 1]} : vector<8x256xf32> to vector<8x225xf32>
    %171 = tpu.concatenate %170, %169 in 1 : vector<8x225xf32>, vector<8x31xf32> -> vector<8x256xf32>
    %c0_61 = arith.constant 0 : index
    %c21 = arith.constant 21 : index
    %172 = vector.load %arg6[%c0_61, %c21] : memref<8x25xf32, #tpu.memory_space<vmem>>, vector<8x1xf32>
    %173 = vector.broadcast %172 : vector<8x1xf32> to vector<8x256xf32>
    %174 = arith.mulf %171, %173 : vector<8x256xf32>
    %175 = arith.addf %168, %174 : vector<8x256xf32>
    %c-1_i32 = arith.constant -1 : i32
    %176 = vector.broadcast %c-1_i32 : i32 to vector<1x256xi32>
    %177 = arith.addi %18, %176 : vector<1x256xi32>
    %c0_i32_62 = arith.constant 0 : i32
    %178 = vector.broadcast %c0_i32_62 : i32 to vector<1x256xi32>
    %179 = arith.cmpi sge, %177, %178 : vector<1x256xi32>
    %c-1_i32_63 = arith.constant -1 : i32
    %180 = vector.broadcast %c-1_i32_63 : i32 to vector<1x256xi32>
    %181 = arith.addi %18, %180 : vector<1x256xi32>
    %c16_i32_64 = arith.constant 16 : i32
    %182 = vector.broadcast %c16_i32_64 : i32 to vector<1x256xi32>
    %183 = arith.cmpi slt, %181, %182 : vector<1x256xi32>
    %184 = arith.andi %179, %183 : vector<1x256xi1>
    %cst_65 = arith.constant 0.000000e+00 : f32
    %185 = vector.shape_cast %184 : vector<1x256xi1> to vector<1x256xi1>
    %186 = vector.broadcast %185 : vector<1x256xi1> to vector<8x256xi1>
    %187 = vector.broadcast %cst_65 : f32 to vector<8x256xf32>
    %188 = arith.select %186, %175, %187 : vector<8x256xi1>, vector<8x256xf32>
    %189 = arith.addf %139, %188 : vector<8x256xf32>
    %cst_66 = arith.constant 0.000000e+00 : f32
    %190 = vector.broadcast %cst_66 : f32 to vector<8x256xf32>
    %cst_67 = arith.constant 0.000000e+00 : f32
    %191 = vector.broadcast %cst_67 : f32 to vector<8x32xf32>
    %192 = vector.extract_strided_slice %88 {offsets = [0, 0], sizes = [8, 224], strides = [1, 1]} : vector<8x256xf32> to vector<8x224xf32>
    %193 = tpu.concatenate %191, %192 in 1 : vector<8x32xf32>, vector<8x224xf32> -> vector<8x256xf32>
    %c0_68 = arith.constant 0 : index
    %c2 = arith.constant 2 : index
    %194 = vector.load %arg6[%c0_68, %c2] : memref<8x25xf32, #tpu.memory_space<vmem>>, vector<8x1xf32>
    %195 = vector.broadcast %194 : vector<8x1xf32> to vector<8x256xf32>
    %196 = arith.mulf %193, %195 : vector<8x256xf32>
    %197 = arith.addf %190, %196 : vector<8x256xf32>
    %cst_69 = arith.constant 0.000000e+00 : f32
    %198 = vector.broadcast %cst_69 : f32 to vector<8x16xf32>
    %199 = vector.extract_strided_slice %88 {offsets = [0, 0], sizes = [8, 240], strides = [1, 1]} : vector<8x256xf32> to vector<8x240xf32>
    %200 = tpu.concatenate %198, %199 in 1 : vector<8x16xf32>, vector<8x240xf32> -> vector<8x256xf32>
    %c0_70 = arith.constant 0 : index
    %c7 = arith.constant 7 : index
    %201 = vector.load %arg6[%c0_70, %c7] : memref<8x25xf32, #tpu.memory_space<vmem>>, vector<8x1xf32>
    %202 = vector.broadcast %201 : vector<8x1xf32> to vector<8x256xf32>
    %203 = arith.mulf %200, %202 : vector<8x256xf32>
    %204 = arith.addf %197, %203 : vector<8x256xf32>
    %c0_71 = arith.constant 0 : index
    %c12 = arith.constant 12 : index
    %205 = vector.load %arg6[%c0_71, %c12] : memref<8x25xf32, #tpu.memory_space<vmem>>, vector<8x1xf32>
    %206 = vector.broadcast %205 : vector<8x1xf32> to vector<8x256xf32>
    %207 = arith.mulf %88, %206 : vector<8x256xf32>
    %208 = arith.addf %204, %207 : vector<8x256xf32>
    %cst_72 = arith.constant 0.000000e+00 : f32
    %209 = vector.broadcast %cst_72 : f32 to vector<8x16xf32>
    %210 = vector.extract_strided_slice %88 {offsets = [0, 16], sizes = [8, 240], strides = [1, 1]} : vector<8x256xf32> to vector<8x240xf32>
    %211 = tpu.concatenate %210, %209 in 1 : vector<8x240xf32>, vector<8x16xf32> -> vector<8x256xf32>
    %c0_73 = arith.constant 0 : index
    %c17 = arith.constant 17 : index
    %212 = vector.load %arg6[%c0_73, %c17] : memref<8x25xf32, #tpu.memory_space<vmem>>, vector<8x1xf32>
    %213 = vector.broadcast %212 : vector<8x1xf32> to vector<8x256xf32>
    %214 = arith.mulf %211, %213 : vector<8x256xf32>
    %215 = arith.addf %208, %214 : vector<8x256xf32>
    %cst_74 = arith.constant 0.000000e+00 : f32
    %216 = vector.broadcast %cst_74 : f32 to vector<8x32xf32>
    %217 = vector.extract_strided_slice %88 {offsets = [0, 32], sizes = [8, 224], strides = [1, 1]} : vector<8x256xf32> to vector<8x224xf32>
    %218 = tpu.concatenate %217, %216 in 1 : vector<8x224xf32>, vector<8x32xf32> -> vector<8x256xf32>
    %c0_75 = arith.constant 0 : index
    %c22 = arith.constant 22 : index
    %219 = vector.load %arg6[%c0_75, %c22] : memref<8x25xf32, #tpu.memory_space<vmem>>, vector<8x1xf32>
    %220 = vector.broadcast %219 : vector<8x1xf32> to vector<8x256xf32>
    %221 = arith.mulf %218, %220 : vector<8x256xf32>
    %222 = arith.addf %215, %221 : vector<8x256xf32>
    %c0_i32_76 = arith.constant 0 : i32
    %223 = vector.broadcast %c0_i32_76 : i32 to vector<1x256xi32>
    %224 = arith.addi %18, %223 : vector<1x256xi32>
    %c0_i32_77 = arith.constant 0 : i32
    %225 = vector.broadcast %c0_i32_77 : i32 to vector<1x256xi32>
    %226 = arith.cmpi sge, %224, %225 : vector<1x256xi32>
    %c0_i32_78 = arith.constant 0 : i32
    %227 = vector.broadcast %c0_i32_78 : i32 to vector<1x256xi32>
    %228 = arith.addi %18, %227 : vector<1x256xi32>
    %c16_i32_79 = arith.constant 16 : i32
    %229 = vector.broadcast %c16_i32_79 : i32 to vector<1x256xi32>
    %230 = arith.cmpi slt, %228, %229 : vector<1x256xi32>
    %231 = arith.andi %226, %230 : vector<1x256xi1>
    %cst_80 = arith.constant 0.000000e+00 : f32
    %232 = vector.shape_cast %231 : vector<1x256xi1> to vector<1x256xi1>
    %233 = vector.broadcast %232 : vector<1x256xi1> to vector<8x256xi1>
    %234 = vector.broadcast %cst_80 : f32 to vector<8x256xf32>
    %235 = arith.select %233, %222, %234 : vector<8x256xi1>, vector<8x256xf32>
    %236 = arith.addf %189, %235 : vector<8x256xf32>
    %cst_81 = arith.constant 0.000000e+00 : f32
    %237 = vector.broadcast %cst_81 : f32 to vector<8x256xf32>
    %cst_82 = arith.constant 0.000000e+00 : f32
    %238 = vector.broadcast %cst_82 : f32 to vector<8x31xf32>
    %239 = vector.extract_strided_slice %88 {offsets = [0, 0], sizes = [8, 225], strides = [1, 1]} : vector<8x256xf32> to vector<8x225xf32>
    %240 = tpu.concatenate %238, %239 in 1 : vector<8x31xf32>, vector<8x225xf32> -> vector<8x256xf32>
    %c0_83 = arith.constant 0 : index
    %c3 = arith.constant 3 : index
    %241 = vector.load %arg6[%c0_83, %c3] : memref<8x25xf32, #tpu.memory_space<vmem>>, vector<8x1xf32>
    %242 = vector.broadcast %241 : vector<8x1xf32> to vector<8x256xf32>
    %243 = arith.mulf %240, %242 : vector<8x256xf32>
    %244 = arith.addf %237, %243 : vector<8x256xf32>
    %cst_84 = arith.constant 0.000000e+00 : f32
    %245 = vector.broadcast %cst_84 : f32 to vector<8x15xf32>
    %246 = vector.extract_strided_slice %88 {offsets = [0, 0], sizes = [8, 241], strides = [1, 1]} : vector<8x256xf32> to vector<8x241xf32>
    %247 = tpu.concatenate %245, %246 in 1 : vector<8x15xf32>, vector<8x241xf32> -> vector<8x256xf32>
    %c0_85 = arith.constant 0 : index
    %c8 = arith.constant 8 : index
    %248 = vector.load %arg6[%c0_85, %c8] : memref<8x25xf32, #tpu.memory_space<vmem>>, vector<8x1xf32>
    %249 = vector.broadcast %248 : vector<8x1xf32> to vector<8x256xf32>
    %250 = arith.mulf %247, %249 : vector<8x256xf32>
    %251 = arith.addf %244, %250 : vector<8x256xf32>
    %cst_86 = arith.constant 0.000000e+00 : f32
    %252 = vector.broadcast %cst_86 : f32 to vector<8x1xf32>
    %253 = vector.extract_strided_slice %88 {offsets = [0, 1], sizes = [8, 255], strides = [1, 1]} : vector<8x256xf32> to vector<8x255xf32>
    %254 = tpu.concatenate %253, %252 in 1 : vector<8x255xf32>, vector<8x1xf32> -> vector<8x256xf32>
    %c0_87 = arith.constant 0 : index
    %c13 = arith.constant 13 : index
    %255 = vector.load %arg6[%c0_87, %c13] : memref<8x25xf32, #tpu.memory_space<vmem>>, vector<8x1xf32>
    %256 = vector.broadcast %255 : vector<8x1xf32> to vector<8x256xf32>
    %257 = arith.mulf %254, %256 : vector<8x256xf32>
    %258 = arith.addf %251, %257 : vector<8x256xf32>
    %cst_88 = arith.constant 0.000000e+00 : f32
    %259 = vector.broadcast %cst_88 : f32 to vector<8x17xf32>
    %260 = vector.extract_strided_slice %88 {offsets = [0, 17], sizes = [8, 239], strides = [1, 1]} : vector<8x256xf32> to vector<8x239xf32>
    %261 = tpu.concatenate %260, %259 in 1 : vector<8x239xf32>, vector<8x17xf32> -> vector<8x256xf32>
    %c0_89 = arith.constant 0 : index
    %c18 = arith.constant 18 : index
    %262 = vector.load %arg6[%c0_89, %c18] : memref<8x25xf32, #tpu.memory_space<vmem>>, vector<8x1xf32>
    %263 = vector.broadcast %262 : vector<8x1xf32> to vector<8x256xf32>
    %264 = arith.mulf %261, %263 : vector<8x256xf32>
    %265 = arith.addf %258, %264 : vector<8x256xf32>
    %cst_90 = arith.constant 0.000000e+00 : f32
    %266 = vector.broadcast %cst_90 : f32 to vector<8x33xf32>
    %267 = vector.extract_strided_slice %88 {offsets = [0, 33], sizes = [8, 223], strides = [1, 1]} : vector<8x256xf32> to vector<8x223xf32>
    %268 = tpu.concatenate %267, %266 in 1 : vector<8x223xf32>, vector<8x33xf32> -> vector<8x256xf32>
    %c0_91 = arith.constant 0 : index
    %c23 = arith.constant 23 : index
    %269 = vector.load %arg6[%c0_91, %c23] : memref<8x25xf32, #tpu.memory_space<vmem>>, vector<8x1xf32>
    %270 = vector.broadcast %269 : vector<8x1xf32> to vector<8x256xf32>
    %271 = arith.mulf %268, %270 : vector<8x256xf32>
    %272 = arith.addf %265, %271 : vector<8x256xf32>
    %c1_i32_92 = arith.constant 1 : i32
    %273 = vector.broadcast %c1_i32_92 : i32 to vector<1x256xi32>
    %274 = arith.addi %18, %273 : vector<1x256xi32>
    %c0_i32_93 = arith.constant 0 : i32
    %275 = vector.broadcast %c0_i32_93 : i32 to vector<1x256xi32>
    %276 = arith.cmpi sge, %274, %275 : vector<1x256xi32>
    %c1_i32_94 = arith.constant 1 : i32
    %277 = vector.broadcast %c1_i32_94 : i32 to vector<1x256xi32>
    %278 = arith.addi %18, %277 : vector<1x256xi32>
    %c16_i32_95 = arith.constant 16 : i32
    %279 = vector.broadcast %c16_i32_95 : i32 to vector<1x256xi32>
    %280 = arith.cmpi slt, %278, %279 : vector<1x256xi32>
    %281 = arith.andi %276, %280 : vector<1x256xi1>
    %cst_96 = arith.constant 0.000000e+00 : f32
    %282 = vector.shape_cast %281 : vector<1x256xi1> to vector<1x256xi1>
    %283 = vector.broadcast %282 : vector<1x256xi1> to vector<8x256xi1>
    %284 = vector.broadcast %cst_96 : f32 to vector<8x256xf32>
    %285 = arith.select %283, %272, %284 : vector<8x256xi1>, vector<8x256xf32>
    %286 = arith.addf %236, %285 : vector<8x256xf32>
    %cst_97 = arith.constant 0.000000e+00 : f32
    %287 = vector.broadcast %cst_97 : f32 to vector<8x256xf32>
    %cst_98 = arith.constant 0.000000e+00 : f32
    %288 = vector.broadcast %cst_98 : f32 to vector<8x30xf32>
    %289 = vector.extract_strided_slice %88 {offsets = [0, 0], sizes = [8, 226], strides = [1, 1]} : vector<8x256xf32> to vector<8x226xf32>
    %290 = tpu.concatenate %288, %289 in 1 : vector<8x30xf32>, vector<8x226xf32> -> vector<8x256xf32>
    %c0_99 = arith.constant 0 : index
    %c4 = arith.constant 4 : index
    %291 = vector.load %arg6[%c0_99, %c4] : memref<8x25xf32, #tpu.memory_space<vmem>>, vector<8x1xf32>
    %292 = vector.broadcast %291 : vector<8x1xf32> to vector<8x256xf32>
    %293 = arith.mulf %290, %292 : vector<8x256xf32>
    %294 = arith.addf %287, %293 : vector<8x256xf32>
    %cst_100 = arith.constant 0.000000e+00 : f32
    %295 = vector.broadcast %cst_100 : f32 to vector<8x14xf32>
    %296 = vector.extract_strided_slice %88 {offsets = [0, 0], sizes = [8, 242], strides = [1, 1]} : vector<8x256xf32> to vector<8x242xf32>
    %297 = tpu.concatenate %295, %296 in 1 : vector<8x14xf32>, vector<8x242xf32> -> vector<8x256xf32>
    %c0_101 = arith.constant 0 : index
    %c9 = arith.constant 9 : index
    %298 = vector.load %arg6[%c0_101, %c9] : memref<8x25xf32, #tpu.memory_space<vmem>>, vector<8x1xf32>
    %299 = vector.broadcast %298 : vector<8x1xf32> to vector<8x256xf32>
    %300 = arith.mulf %297, %299 : vector<8x256xf32>
    %301 = arith.addf %294, %300 : vector<8x256xf32>
    %cst_102 = arith.constant 0.000000e+00 : f32
    %302 = vector.broadcast %cst_102 : f32 to vector<8x2xf32>
    %303 = vector.extract_strided_slice %88 {offsets = [0, 2], sizes = [8, 254], strides = [1, 1]} : vector<8x256xf32> to vector<8x254xf32>
    %304 = tpu.concatenate %303, %302 in 1 : vector<8x254xf32>, vector<8x2xf32> -> vector<8x256xf32>
    %c0_103 = arith.constant 0 : index
    %c14 = arith.constant 14 : index
    %305 = vector.load %arg6[%c0_103, %c14] : memref<8x25xf32, #tpu.memory_space<vmem>>, vector<8x1xf32>
    %306 = vector.broadcast %305 : vector<8x1xf32> to vector<8x256xf32>
    %307 = arith.mulf %304, %306 : vector<8x256xf32>
    %308 = arith.addf %301, %307 : vector<8x256xf32>
    %cst_104 = arith.constant 0.000000e+00 : f32
    %309 = vector.broadcast %cst_104 : f32 to vector<8x18xf32>
    %310 = vector.extract_strided_slice %88 {offsets = [0, 18], sizes = [8, 238], strides = [1, 1]} : vector<8x256xf32> to vector<8x238xf32>
    %311 = tpu.concatenate %310, %309 in 1 : vector<8x238xf32>, vector<8x18xf32> -> vector<8x256xf32>
    %c0_105 = arith.constant 0 : index
    %c19 = arith.constant 19 : index
    %312 = vector.load %arg6[%c0_105, %c19] : memref<8x25xf32, #tpu.memory_space<vmem>>, vector<8x1xf32>
    %313 = vector.broadcast %312 : vector<8x1xf32> to vector<8x256xf32>
    %314 = arith.mulf %311, %313 : vector<8x256xf32>
    %315 = arith.addf %308, %314 : vector<8x256xf32>
    %cst_106 = arith.constant 0.000000e+00 : f32
    %316 = vector.broadcast %cst_106 : f32 to vector<8x34xf32>
    %317 = vector.extract_strided_slice %88 {offsets = [0, 34], sizes = [8, 222], strides = [1, 1]} : vector<8x256xf32> to vector<8x222xf32>
    %318 = tpu.concatenate %317, %316 in 1 : vector<8x222xf32>, vector<8x34xf32> -> vector<8x256xf32>
    %c0_107 = arith.constant 0 : index
    %c24 = arith.constant 24 : index
    %319 = vector.load %arg6[%c0_107, %c24] : memref<8x25xf32, #tpu.memory_space<vmem>>, vector<8x1xf32>
    %320 = vector.broadcast %319 : vector<8x1xf32> to vector<8x256xf32>
    %321 = arith.mulf %318, %320 : vector<8x256xf32>
    %322 = arith.addf %315, %321 : vector<8x256xf32>
    %c2_i32 = arith.constant 2 : i32
    %323 = vector.broadcast %c2_i32 : i32 to vector<1x256xi32>
    %324 = arith.addi %18, %323 : vector<1x256xi32>
    %c0_i32_108 = arith.constant 0 : i32
    %325 = vector.broadcast %c0_i32_108 : i32 to vector<1x256xi32>
    %326 = arith.cmpi sge, %324, %325 : vector<1x256xi32>
    %c2_i32_109 = arith.constant 2 : i32
    %327 = vector.broadcast %c2_i32_109 : i32 to vector<1x256xi32>
    %328 = arith.addi %18, %327 : vector<1x256xi32>
    %c16_i32_110 = arith.constant 16 : i32
    %329 = vector.broadcast %c16_i32_110 : i32 to vector<1x256xi32>
    %330 = arith.cmpi slt, %328, %329 : vector<1x256xi32>
    %331 = arith.andi %326, %330 : vector<1x256xi1>
    %cst_111 = arith.constant 0.000000e+00 : f32
    %332 = vector.shape_cast %331 : vector<1x256xi1> to vector<1x256xi1>
    %333 = vector.broadcast %332 : vector<1x256xi1> to vector<8x256xi1>
    %334 = vector.broadcast %cst_111 : f32 to vector<8x256xf32>
    %335 = arith.select %333, %322, %334 : vector<8x256xi1>, vector<8x256xf32>
    %336 = arith.addf %286, %335 : vector<8x256xf32>
    %c0_112 = arith.constant 0 : index
    %c0_113 = arith.constant 0 : index
    %337 = vector.load %arg7[%c0_112, %c0_113] : memref<8x1xf32, #tpu.memory_space<vmem>>, vector<8x1xf32>
    %338 = vector.broadcast %337 : vector<8x1xf32> to vector<8x256xf32>
    %339 = arith.addf %336, %338 : vector<8x256xf32>
    %c0_114 = arith.constant 0 : index
    %c0_115 = arith.constant 0 : index
    %340 = vector.load %arg10[%c0_114, %c0_115] : memref<4x8xf32, #tpu.memory_space<vmem>>, vector<4x8xf32>
    %341 = arith.truncf %340 : vector<4x8xf32> to vector<4x8xbf16>
    %342 = arith.truncf %339 : vector<8x256xf32> to vector<8x256xbf16>
    %cst_116 = arith.constant dense<0.000000e+00> : vector<4x256xf32>
    %343 = tpu.matmul %341, %342, %cst_116 {dimension_numbers = #tpu.dot_dimension_numbers<[1], [0], [0], [1], [0, 0, 1, 1], [], []>} : vector<4x8xbf16>, vector<8x256xbf16>, vector<4x256xf32> -> vector<4x256xf32>
    %c0_117 = arith.constant 0 : index
    %c0_118 = arith.constant 0 : index
    %344 = vector.load %arg11[%c0_117, %c0_118] : memref<4x1xf32, #tpu.memory_space<vmem>>, vector<4x1xf32>
    %345 = vector.broadcast %344 : vector<4x1xf32> to vector<4x256xf32>
    %346 = arith.addf %343, %345 : vector<4x256xf32>
    %cst_119 = arith.constant 0.000000e+00 : f32
    %347 = vector.broadcast %cst_119 : f32 to vector<8x256xf32>
    %cst_120 = arith.constant 0.000000e+00 : f32
    %348 = vector.broadcast %cst_120 : f32 to vector<8x256xf32>
    %cst_121 = arith.constant 0.000000e+00 : f32
    %349 = vector.broadcast %cst_121 : f32 to vector<8x153xf32>
    %350 = vector.extract_strided_slice %339 {offsets = [0, 0], sizes = [8, 103], strides = [1, 1]} : vector<8x256xf32> to vector<8x103xf32>
    %351 = tpu.concatenate %349, %350 in 1 : vector<8x153xf32>, vector<8x103xf32> -> vector<8x256xf32>
    %c0_122 = arith.constant 0 : index
    %c0_123 = arith.constant 0 : index
    %352 = vector.load %arg8[%c0_122, %c0_123] : memref<8x49xf32, #tpu.memory_space<vmem>>, vector<8x1xf32>
    %353 = vector.broadcast %352 : vector<8x1xf32> to vector<8x256xf32>
    %354 = arith.mulf %351, %353 : vector<8x256xf32>
    %355 = arith.addf %348, %354 : vector<8x256xf32>
    %cst_124 = arith.constant 0.000000e+00 : f32
    %356 = vector.broadcast %cst_124 : f32 to vector<8x105xf32>
    %357 = vector.extract_strided_slice %339 {offsets = [0, 0], sizes = [8, 151], strides = [1, 1]} : vector<8x256xf32> to vector<8x151xf32>
    %358 = tpu.concatenate %356, %357 in 1 : vector<8x105xf32>, vector<8x151xf32> -> vector<8x256xf32>
    %c0_125 = arith.constant 0 : index
    %c7_126 = arith.constant 7 : index
    %359 = vector.load %arg8[%c0_125, %c7_126] : memref<8x49xf32, #tpu.memory_space<vmem>>, vector<8x1xf32>
    %360 = vector.broadcast %359 : vector<8x1xf32> to vector<8x256xf32>
    %361 = arith.mulf %358, %360 : vector<8x256xf32>
    %362 = arith.addf %355, %361 : vector<8x256xf32>
    %cst_127 = arith.constant 0.000000e+00 : f32
    %363 = vector.broadcast %cst_127 : f32 to vector<8x57xf32>
    %364 = vector.extract_strided_slice %339 {offsets = [0, 0], sizes = [8, 199], strides = [1, 1]} : vector<8x256xf32> to vector<8x199xf32>
    %365 = tpu.concatenate %363, %364 in 1 : vector<8x57xf32>, vector<8x199xf32> -> vector<8x256xf32>
    %c0_128 = arith.constant 0 : index
    %c14_129 = arith.constant 14 : index
    %366 = vector.load %arg8[%c0_128, %c14_129] : memref<8x49xf32, #tpu.memory_space<vmem>>, vector<8x1xf32>
    %367 = vector.broadcast %366 : vector<8x1xf32> to vector<8x256xf32>
    %368 = arith.mulf %365, %367 : vector<8x256xf32>
    %369 = arith.addf %362, %368 : vector<8x256xf32>
    %cst_130 = arith.constant 0.000000e+00 : f32
    %370 = vector.broadcast %cst_130 : f32 to vector<8x9xf32>
    %371 = vector.extract_strided_slice %339 {offsets = [0, 0], sizes = [8, 247], strides = [1, 1]} : vector<8x256xf32> to vector<8x247xf32>
    %372 = tpu.concatenate %370, %371 in 1 : vector<8x9xf32>, vector<8x247xf32> -> vector<8x256xf32>
    %c0_131 = arith.constant 0 : index
    %c21_132 = arith.constant 21 : index
    %373 = vector.load %arg8[%c0_131, %c21_132] : memref<8x49xf32, #tpu.memory_space<vmem>>, vector<8x1xf32>
    %374 = vector.broadcast %373 : vector<8x1xf32> to vector<8x256xf32>
    %375 = arith.mulf %372, %374 : vector<8x256xf32>
    %376 = arith.addf %369, %375 : vector<8x256xf32>
    %cst_133 = arith.constant 0.000000e+00 : f32
    %377 = vector.broadcast %cst_133 : f32 to vector<8x39xf32>
    %378 = vector.extract_strided_slice %339 {offsets = [0, 39], sizes = [8, 217], strides = [1, 1]} : vector<8x256xf32> to vector<8x217xf32>
    %379 = tpu.concatenate %378, %377 in 1 : vector<8x217xf32>, vector<8x39xf32> -> vector<8x256xf32>
    %c0_134 = arith.constant 0 : index
    %c28 = arith.constant 28 : index
    %380 = vector.load %arg8[%c0_134, %c28] : memref<8x49xf32, #tpu.memory_space<vmem>>, vector<8x1xf32>
    %381 = vector.broadcast %380 : vector<8x1xf32> to vector<8x256xf32>
    %382 = arith.mulf %379, %381 : vector<8x256xf32>
    %383 = arith.addf %376, %382 : vector<8x256xf32>
    %cst_135 = arith.constant 0.000000e+00 : f32
    %384 = vector.broadcast %cst_135 : f32 to vector<8x87xf32>
    %385 = vector.extract_strided_slice %339 {offsets = [0, 87], sizes = [8, 169], strides = [1, 1]} : vector<8x256xf32> to vector<8x169xf32>
    %386 = tpu.concatenate %385, %384 in 1 : vector<8x169xf32>, vector<8x87xf32> -> vector<8x256xf32>
    %c0_136 = arith.constant 0 : index
    %c35 = arith.constant 35 : index
    %387 = vector.load %arg8[%c0_136, %c35] : memref<8x49xf32, #tpu.memory_space<vmem>>, vector<8x1xf32>
    %388 = vector.broadcast %387 : vector<8x1xf32> to vector<8x256xf32>
    %389 = arith.mulf %386, %388 : vector<8x256xf32>
    %390 = arith.addf %383, %389 : vector<8x256xf32>
    %cst_137 = arith.constant 0.000000e+00 : f32
    %391 = vector.broadcast %cst_137 : f32 to vector<8x135xf32>
    %392 = vector.extract_strided_slice %339 {offsets = [0, 135], sizes = [8, 121], strides = [1, 1]} : vector<8x256xf32> to vector<8x121xf32>
    %393 = tpu.concatenate %392, %391 in 1 : vector<8x121xf32>, vector<8x135xf32> -> vector<8x256xf32>
    %c0_138 = arith.constant 0 : index
    %c42 = arith.constant 42 : index
    %394 = vector.load %arg8[%c0_138, %c42] : memref<8x49xf32, #tpu.memory_space<vmem>>, vector<8x1xf32>
    %395 = vector.broadcast %394 : vector<8x1xf32> to vector<8x256xf32>
    %396 = arith.mulf %393, %395 : vector<8x256xf32>
    %397 = arith.addf %390, %396 : vector<8x256xf32>
    %c-9_i32 = arith.constant -9 : i32
    %398 = vector.broadcast %c-9_i32 : i32 to vector<1x256xi32>
    %399 = arith.addi %18, %398 : vector<1x256xi32>
    %c0_i32_139 = arith.constant 0 : i32
    %400 = vector.broadcast %c0_i32_139 : i32 to vector<1x256xi32>
    %401 = arith.cmpi sge, %399, %400 : vector<1x256xi32>
    %c-9_i32_140 = arith.constant -9 : i32
    %402 = vector.broadcast %c-9_i32_140 : i32 to vector<1x256xi32>
    %403 = arith.addi %18, %402 : vector<1x256xi32>
    %c16_i32_141 = arith.constant 16 : i32
    %404 = vector.broadcast %c16_i32_141 : i32 to vector<1x256xi32>
    %405 = arith.cmpi slt, %403, %404 : vector<1x256xi32>
    %406 = arith.andi %401, %405 : vector<1x256xi1>
    %cst_142 = arith.constant 0.000000e+00 : f32
    %407 = vector.shape_cast %406 : vector<1x256xi1> to vector<1x256xi1>
    %408 = vector.broadcast %407 : vector<1x256xi1> to vector<8x256xi1>
    %409 = vector.broadcast %cst_142 : f32 to vector<8x256xf32>
    %410 = arith.select %408, %397, %409 : vector<8x256xi1>, vector<8x256xf32>
    %411 = arith.addf %347, %410 : vector<8x256xf32>
    %cst_143 = arith.constant 0.000000e+00 : f32
    %412 = vector.broadcast %cst_143 : f32 to vector<8x256xf32>
    %cst_144 = arith.constant 0.000000e+00 : f32
    %413 = vector.broadcast %cst_144 : f32 to vector<8x150xf32>
    %414 = vector.extract_strided_slice %339 {offsets = [0, 0], sizes = [8, 106], strides = [1, 1]} : vector<8x256xf32> to vector<8x106xf32>
    %415 = tpu.concatenate %413, %414 in 1 : vector<8x150xf32>, vector<8x106xf32> -> vector<8x256xf32>
    %c0_145 = arith.constant 0 : index
    %c1_146 = arith.constant 1 : index
    %416 = vector.load %arg8[%c0_145, %c1_146] : memref<8x49xf32, #tpu.memory_space<vmem>>, vector<8x1xf32>
    %417 = vector.broadcast %416 : vector<8x1xf32> to vector<8x256xf32>
    %418 = arith.mulf %415, %417 : vector<8x256xf32>
    %419 = arith.addf %412, %418 : vector<8x256xf32>
    %cst_147 = arith.constant 0.000000e+00 : f32
    %420 = vector.broadcast %cst_147 : f32 to vector<8x102xf32>
    %421 = vector.extract_strided_slice %339 {offsets = [0, 0], sizes = [8, 154], strides = [1, 1]} : vector<8x256xf32> to vector<8x154xf32>
    %422 = tpu.concatenate %420, %421 in 1 : vector<8x102xf32>, vector<8x154xf32> -> vector<8x256xf32>
    %c0_148 = arith.constant 0 : index
    %c8_149 = arith.constant 8 : index
    %423 = vector.load %arg8[%c0_148, %c8_149] : memref<8x49xf32, #tpu.memory_space<vmem>>, vector<8x1xf32>
    %424 = vector.broadcast %423 : vector<8x1xf32> to vector<8x256xf32>
    %425 = arith.mulf %422, %424 : vector<8x256xf32>
    %426 = arith.addf %419, %425 : vector<8x256xf32>
    %cst_150 = arith.constant 0.000000e+00 : f32
    %427 = vector.broadcast %cst_150 : f32 to vector<8x54xf32>
    %428 = vector.extract_strided_slice %339 {offsets = [0, 0], sizes = [8, 202], strides = [1, 1]} : vector<8x256xf32> to vector<8x202xf32>
    %429 = tpu.concatenate %427, %428 in 1 : vector<8x54xf32>, vector<8x202xf32> -> vector<8x256xf32>
    %c0_151 = arith.constant 0 : index
    %c15_152 = arith.constant 15 : index
    %430 = vector.load %arg8[%c0_151, %c15_152] : memref<8x49xf32, #tpu.memory_space<vmem>>, vector<8x1xf32>
    %431 = vector.broadcast %430 : vector<8x1xf32> to vector<8x256xf32>
    %432 = arith.mulf %429, %431 : vector<8x256xf32>
    %433 = arith.addf %426, %432 : vector<8x256xf32>
    %cst_153 = arith.constant 0.000000e+00 : f32
    %434 = vector.broadcast %cst_153 : f32 to vector<8x6xf32>
    %435 = vector.extract_strided_slice %339 {offsets = [0, 0], sizes = [8, 250], strides = [1, 1]} : vector<8x256xf32> to vector<8x250xf32>
    %436 = tpu.concatenate %434, %435 in 1 : vector<8x6xf32>, vector<8x250xf32> -> vector<8x256xf32>
    %c0_154 = arith.constant 0 : index
    %c22_155 = arith.constant 22 : index
    %437 = vector.load %arg8[%c0_154, %c22_155] : memref<8x49xf32, #tpu.memory_space<vmem>>, vector<8x1xf32>
    %438 = vector.broadcast %437 : vector<8x1xf32> to vector<8x256xf32>
    %439 = arith.mulf %436, %438 : vector<8x256xf32>
    %440 = arith.addf %433, %439 : vector<8x256xf32>
    %cst_156 = arith.constant 0.000000e+00 : f32
    %441 = vector.broadcast %cst_156 : f32 to vector<8x42xf32>
    %442 = vector.extract_strided_slice %339 {offsets = [0, 42], sizes = [8, 214], strides = [1, 1]} : vector<8x256xf32> to vector<8x214xf32>
    %443 = tpu.concatenate %442, %441 in 1 : vector<8x214xf32>, vector<8x42xf32> -> vector<8x256xf32>
    %c0_157 = arith.constant 0 : index
    %c29 = arith.constant 29 : index
    %444 = vector.load %arg8[%c0_157, %c29] : memref<8x49xf32, #tpu.memory_space<vmem>>, vector<8x1xf32>
    %445 = vector.broadcast %444 : vector<8x1xf32> to vector<8x256xf32>
    %446 = arith.mulf %443, %445 : vector<8x256xf32>
    %447 = arith.addf %440, %446 : vector<8x256xf32>
    %cst_158 = arith.constant 0.000000e+00 : f32
    %448 = vector.broadcast %cst_158 : f32 to vector<8x90xf32>
    %449 = vector.extract_strided_slice %339 {offsets = [0, 90], sizes = [8, 166], strides = [1, 1]} : vector<8x256xf32> to vector<8x166xf32>
    %450 = tpu.concatenate %449, %448 in 1 : vector<8x166xf32>, vector<8x90xf32> -> vector<8x256xf32>
    %c0_159 = arith.constant 0 : index
    %c36 = arith.constant 36 : index
    %451 = vector.load %arg8[%c0_159, %c36] : memref<8x49xf32, #tpu.memory_space<vmem>>, vector<8x1xf32>
    %452 = vector.broadcast %451 : vector<8x1xf32> to vector<8x256xf32>
    %453 = arith.mulf %450, %452 : vector<8x256xf32>
    %454 = arith.addf %447, %453 : vector<8x256xf32>
    %cst_160 = arith.constant 0.000000e+00 : f32
    %455 = vector.broadcast %cst_160 : f32 to vector<8x138xf32>
    %456 = vector.extract_strided_slice %339 {offsets = [0, 138], sizes = [8, 118], strides = [1, 1]} : vector<8x256xf32> to vector<8x118xf32>
    %457 = tpu.concatenate %456, %455 in 1 : vector<8x118xf32>, vector<8x138xf32> -> vector<8x256xf32>
    %c0_161 = arith.constant 0 : index
    %c43 = arith.constant 43 : index
    %458 = vector.load %arg8[%c0_161, %c43] : memref<8x49xf32, #tpu.memory_space<vmem>>, vector<8x1xf32>
    %459 = vector.broadcast %458 : vector<8x1xf32> to vector<8x256xf32>
    %460 = arith.mulf %457, %459 : vector<8x256xf32>
    %461 = arith.addf %454, %460 : vector<8x256xf32>
    %c-6_i32 = arith.constant -6 : i32
    %462 = vector.broadcast %c-6_i32 : i32 to vector<1x256xi32>
    %463 = arith.addi %18, %462 : vector<1x256xi32>
    %c0_i32_162 = arith.constant 0 : i32
    %464 = vector.broadcast %c0_i32_162 : i32 to vector<1x256xi32>
    %465 = arith.cmpi sge, %463, %464 : vector<1x256xi32>
    %c-6_i32_163 = arith.constant -6 : i32
    %466 = vector.broadcast %c-6_i32_163 : i32 to vector<1x256xi32>
    %467 = arith.addi %18, %466 : vector<1x256xi32>
    %c16_i32_164 = arith.constant 16 : i32
    %468 = vector.broadcast %c16_i32_164 : i32 to vector<1x256xi32>
    %469 = arith.cmpi slt, %467, %468 : vector<1x256xi32>
    %470 = arith.andi %465, %469 : vector<1x256xi1>
    %cst_165 = arith.constant 0.000000e+00 : f32
    %471 = vector.shape_cast %470 : vector<1x256xi1> to vector<1x256xi1>
    %472 = vector.broadcast %471 : vector<1x256xi1> to vector<8x256xi1>
    %473 = vector.broadcast %cst_165 : f32 to vector<8x256xf32>
    %474 = arith.select %472, %461, %473 : vector<8x256xi1>, vector<8x256xf32>
    %475 = arith.addf %411, %474 : vector<8x256xf32>
    %cst_166 = arith.constant 0.000000e+00 : f32
    %476 = vector.broadcast %cst_166 : f32 to vector<8x256xf32>
    %cst_167 = arith.constant 0.000000e+00 : f32
    %477 = vector.broadcast %cst_167 : f32 to vector<8x147xf32>
    %478 = vector.extract_strided_slice %339 {offsets = [0, 0], sizes = [8, 109], strides = [1, 1]} : vector<8x256xf32> to vector<8x109xf32>
    %479 = tpu.concatenate %477, %478 in 1 : vector<8x147xf32>, vector<8x109xf32> -> vector<8x256xf32>
    %c0_168 = arith.constant 0 : index
    %c2_169 = arith.constant 2 : index
    %480 = vector.load %arg8[%c0_168, %c2_169] : memref<8x49xf32, #tpu.memory_space<vmem>>, vector<8x1xf32>
    %481 = vector.broadcast %480 : vector<8x1xf32> to vector<8x256xf32>
    %482 = arith.mulf %479, %481 : vector<8x256xf32>
    %483 = arith.addf %476, %482 : vector<8x256xf32>
    %cst_170 = arith.constant 0.000000e+00 : f32
    %484 = vector.broadcast %cst_170 : f32 to vector<8x99xf32>
    %485 = vector.extract_strided_slice %339 {offsets = [0, 0], sizes = [8, 157], strides = [1, 1]} : vector<8x256xf32> to vector<8x157xf32>
    %486 = tpu.concatenate %484, %485 in 1 : vector<8x99xf32>, vector<8x157xf32> -> vector<8x256xf32>
    %c0_171 = arith.constant 0 : index
    %c9_172 = arith.constant 9 : index
    %487 = vector.load %arg8[%c0_171, %c9_172] : memref<8x49xf32, #tpu.memory_space<vmem>>, vector<8x1xf32>
    %488 = vector.broadcast %487 : vector<8x1xf32> to vector<8x256xf32>
    %489 = arith.mulf %486, %488 : vector<8x256xf32>
    %490 = arith.addf %483, %489 : vector<8x256xf32>
    %cst_173 = arith.constant 0.000000e+00 : f32
    %491 = vector.broadcast %cst_173 : f32 to vector<8x51xf32>
    %492 = vector.extract_strided_slice %339 {offsets = [0, 0], sizes = [8, 205], strides = [1, 1]} : vector<8x256xf32> to vector<8x205xf32>
    %493 = tpu.concatenate %491, %492 in 1 : vector<8x51xf32>, vector<8x205xf32> -> vector<8x256xf32>
    %c0_174 = arith.constant 0 : index
    %c16_175 = arith.constant 16 : index
    %494 = vector.load %arg8[%c0_174, %c16_175] : memref<8x49xf32, #tpu.memory_space<vmem>>, vector<8x1xf32>
    %495 = vector.broadcast %494 : vector<8x1xf32> to vector<8x256xf32>
    %496 = arith.mulf %493, %495 : vector<8x256xf32>
    %497 = arith.addf %490, %496 : vector<8x256xf32>
    %cst_176 = arith.constant 0.000000e+00 : f32
    %498 = vector.broadcast %cst_176 : f32 to vector<8x3xf32>
    %499 = vector.extract_strided_slice %339 {offsets = [0, 0], sizes = [8, 253], strides = [1, 1]} : vector<8x256xf32> to vector<8x253xf32>
    %500 = tpu.concatenate %498, %499 in 1 : vector<8x3xf32>, vector<8x253xf32> -> vector<8x256xf32>
    %c0_177 = arith.constant 0 : index
    %c23_178 = arith.constant 23 : index
    %501 = vector.load %arg8[%c0_177, %c23_178] : memref<8x49xf32, #tpu.memory_space<vmem>>, vector<8x1xf32>
    %502 = vector.broadcast %501 : vector<8x1xf32> to vector<8x256xf32>
    %503 = arith.mulf %500, %502 : vector<8x256xf32>
    %504 = arith.addf %497, %503 : vector<8x256xf32>
    %cst_179 = arith.constant 0.000000e+00 : f32
    %505 = vector.broadcast %cst_179 : f32 to vector<8x45xf32>
    %506 = vector.extract_strided_slice %339 {offsets = [0, 45], sizes = [8, 211], strides = [1, 1]} : vector<8x256xf32> to vector<8x211xf32>
    %507 = tpu.concatenate %506, %505 in 1 : vector<8x211xf32>, vector<8x45xf32> -> vector<8x256xf32>
    %c0_180 = arith.constant 0 : index
    %c30 = arith.constant 30 : index
    %508 = vector.load %arg8[%c0_180, %c30] : memref<8x49xf32, #tpu.memory_space<vmem>>, vector<8x1xf32>
    %509 = vector.broadcast %508 : vector<8x1xf32> to vector<8x256xf32>
    %510 = arith.mulf %507, %509 : vector<8x256xf32>
    %511 = arith.addf %504, %510 : vector<8x256xf32>
    %cst_181 = arith.constant 0.000000e+00 : f32
    %512 = vector.broadcast %cst_181 : f32 to vector<8x93xf32>
    %513 = vector.extract_strided_slice %339 {offsets = [0, 93], sizes = [8, 163], strides = [1, 1]} : vector<8x256xf32> to vector<8x163xf32>
    %514 = tpu.concatenate %513, %512 in 1 : vector<8x163xf32>, vector<8x93xf32> -> vector<8x256xf32>
    %c0_182 = arith.constant 0 : index
    %c37 = arith.constant 37 : index
    %515 = vector.load %arg8[%c0_182, %c37] : memref<8x49xf32, #tpu.memory_space<vmem>>, vector<8x1xf32>
    %516 = vector.broadcast %515 : vector<8x1xf32> to vector<8x256xf32>
    %517 = arith.mulf %514, %516 : vector<8x256xf32>
    %518 = arith.addf %511, %517 : vector<8x256xf32>
    %cst_183 = arith.constant 0.000000e+00 : f32
    %519 = vector.broadcast %cst_183 : f32 to vector<8x141xf32>
    %520 = vector.extract_strided_slice %339 {offsets = [0, 141], sizes = [8, 115], strides = [1, 1]} : vector<8x256xf32> to vector<8x115xf32>
    %521 = tpu.concatenate %520, %519 in 1 : vector<8x115xf32>, vector<8x141xf32> -> vector<8x256xf32>
    %c0_184 = arith.constant 0 : index
    %c44 = arith.constant 44 : index
    %522 = vector.load %arg8[%c0_184, %c44] : memref<8x49xf32, #tpu.memory_space<vmem>>, vector<8x1xf32>
    %523 = vector.broadcast %522 : vector<8x1xf32> to vector<8x256xf32>
    %524 = arith.mulf %521, %523 : vector<8x256xf32>
    %525 = arith.addf %518, %524 : vector<8x256xf32>
    %c-3_i32 = arith.constant -3 : i32
    %526 = vector.broadcast %c-3_i32 : i32 to vector<1x256xi32>
    %527 = arith.addi %18, %526 : vector<1x256xi32>
    %c0_i32_185 = arith.constant 0 : i32
    %528 = vector.broadcast %c0_i32_185 : i32 to vector<1x256xi32>
    %529 = arith.cmpi sge, %527, %528 : vector<1x256xi32>
    %c-3_i32_186 = arith.constant -3 : i32
    %530 = vector.broadcast %c-3_i32_186 : i32 to vector<1x256xi32>
    %531 = arith.addi %18, %530 : vector<1x256xi32>
    %c16_i32_187 = arith.constant 16 : i32
    %532 = vector.broadcast %c16_i32_187 : i32 to vector<1x256xi32>
    %533 = arith.cmpi slt, %531, %532 : vector<1x256xi32>
    %534 = arith.andi %529, %533 : vector<1x256xi1>
    %cst_188 = arith.constant 0.000000e+00 : f32
    %535 = vector.shape_cast %534 : vector<1x256xi1> to vector<1x256xi1>
    %536 = vector.broadcast %535 : vector<1x256xi1> to vector<8x256xi1>
    %537 = vector.broadcast %cst_188 : f32 to vector<8x256xf32>
    %538 = arith.select %536, %525, %537 : vector<8x256xi1>, vector<8x256xf32>
    %539 = arith.addf %475, %538 : vector<8x256xf32>
    %cst_189 = arith.constant 0.000000e+00 : f32
    %540 = vector.broadcast %cst_189 : f32 to vector<8x256xf32>
    %cst_190 = arith.constant 0.000000e+00 : f32
    %541 = vector.broadcast %cst_190 : f32 to vector<8x144xf32>
    %542 = vector.extract_strided_slice %339 {offsets = [0, 0], sizes = [8, 112], strides = [1, 1]} : vector<8x256xf32> to vector<8x112xf32>
    %543 = tpu.concatenate %541, %542 in 1 : vector<8x144xf32>, vector<8x112xf32> -> vector<8x256xf32>
    %c0_191 = arith.constant 0 : index
    %c3_192 = arith.constant 3 : index
    %544 = vector.load %arg8[%c0_191, %c3_192] : memref<8x49xf32, #tpu.memory_space<vmem>>, vector<8x1xf32>
    %545 = vector.broadcast %544 : vector<8x1xf32> to vector<8x256xf32>
    %546 = arith.mulf %543, %545 : vector<8x256xf32>
    %547 = arith.addf %540, %546 : vector<8x256xf32>
    %cst_193 = arith.constant 0.000000e+00 : f32
    %548 = vector.broadcast %cst_193 : f32 to vector<8x96xf32>
    %549 = vector.extract_strided_slice %339 {offsets = [0, 0], sizes = [8, 160], strides = [1, 1]} : vector<8x256xf32> to vector<8x160xf32>
    %550 = tpu.concatenate %548, %549 in 1 : vector<8x96xf32>, vector<8x160xf32> -> vector<8x256xf32>
    %c0_194 = arith.constant 0 : index
    %c10_195 = arith.constant 10 : index
    %551 = vector.load %arg8[%c0_194, %c10_195] : memref<8x49xf32, #tpu.memory_space<vmem>>, vector<8x1xf32>
    %552 = vector.broadcast %551 : vector<8x1xf32> to vector<8x256xf32>
    %553 = arith.mulf %550, %552 : vector<8x256xf32>
    %554 = arith.addf %547, %553 : vector<8x256xf32>
    %cst_196 = arith.constant 0.000000e+00 : f32
    %555 = vector.broadcast %cst_196 : f32 to vector<8x48xf32>
    %556 = vector.extract_strided_slice %339 {offsets = [0, 0], sizes = [8, 208], strides = [1, 1]} : vector<8x256xf32> to vector<8x208xf32>
    %557 = tpu.concatenate %555, %556 in 1 : vector<8x48xf32>, vector<8x208xf32> -> vector<8x256xf32>
    %c0_197 = arith.constant 0 : index
    %c17_198 = arith.constant 17 : index
    %558 = vector.load %arg8[%c0_197, %c17_198] : memref<8x49xf32, #tpu.memory_space<vmem>>, vector<8x1xf32>
    %559 = vector.broadcast %558 : vector<8x1xf32> to vector<8x256xf32>
    %560 = arith.mulf %557, %559 : vector<8x256xf32>
    %561 = arith.addf %554, %560 : vector<8x256xf32>
    %c0_199 = arith.constant 0 : index
    %c24_200 = arith.constant 24 : index
    %562 = vector.load %arg8[%c0_199, %c24_200] : memref<8x49xf32, #tpu.memory_space<vmem>>, vector<8x1xf32>
    %563 = vector.broadcast %562 : vector<8x1xf32> to vector<8x256xf32>
    %564 = arith.mulf %339, %563 : vector<8x256xf32>
    %565 = arith.addf %561, %564 : vector<8x256xf32>
    %cst_201 = arith.constant 0.000000e+00 : f32
    %566 = vector.broadcast %cst_201 : f32 to vector<8x48xf32>
    %567 = vector.extract_strided_slice %339 {offsets = [0, 48], sizes = [8, 208], strides = [1, 1]} : vector<8x256xf32> to vector<8x208xf32>
    %568 = tpu.concatenate %567, %566 in 1 : vector<8x208xf32>, vector<8x48xf32> -> vector<8x256xf32>
    %c0_202 = arith.constant 0 : index
    %c31 = arith.constant 31 : index
    %569 = vector.load %arg8[%c0_202, %c31] : memref<8x49xf32, #tpu.memory_space<vmem>>, vector<8x1xf32>
    %570 = vector.broadcast %569 : vector<8x1xf32> to vector<8x256xf32>
    %571 = arith.mulf %568, %570 : vector<8x256xf32>
    %572 = arith.addf %565, %571 : vector<8x256xf32>
    %cst_203 = arith.constant 0.000000e+00 : f32
    %573 = vector.broadcast %cst_203 : f32 to vector<8x96xf32>
    %574 = vector.extract_strided_slice %339 {offsets = [0, 96], sizes = [8, 160], strides = [1, 1]} : vector<8x256xf32> to vector<8x160xf32>
    %575 = tpu.concatenate %574, %573 in 1 : vector<8x160xf32>, vector<8x96xf32> -> vector<8x256xf32>
    %c0_204 = arith.constant 0 : index
    %c38 = arith.constant 38 : index
    %576 = vector.load %arg8[%c0_204, %c38] : memref<8x49xf32, #tpu.memory_space<vmem>>, vector<8x1xf32>
    %577 = vector.broadcast %576 : vector<8x1xf32> to vector<8x256xf32>
    %578 = arith.mulf %575, %577 : vector<8x256xf32>
    %579 = arith.addf %572, %578 : vector<8x256xf32>
    %cst_205 = arith.constant 0.000000e+00 : f32
    %580 = vector.broadcast %cst_205 : f32 to vector<8x144xf32>
    %581 = vector.extract_strided_slice %339 {offsets = [0, 144], sizes = [8, 112], strides = [1, 1]} : vector<8x256xf32> to vector<8x112xf32>
    %582 = tpu.concatenate %581, %580 in 1 : vector<8x112xf32>, vector<8x144xf32> -> vector<8x256xf32>
    %c0_206 = arith.constant 0 : index
    %c45 = arith.constant 45 : index
    %583 = vector.load %arg8[%c0_206, %c45] : memref<8x49xf32, #tpu.memory_space<vmem>>, vector<8x1xf32>
    %584 = vector.broadcast %583 : vector<8x1xf32> to vector<8x256xf32>
    %585 = arith.mulf %582, %584 : vector<8x256xf32>
    %586 = arith.addf %579, %585 : vector<8x256xf32>
    %c0_i32_207 = arith.constant 0 : i32
    %587 = vector.broadcast %c0_i32_207 : i32 to vector<1x256xi32>
    %588 = arith.addi %18, %587 : vector<1x256xi32>
    %c0_i32_208 = arith.constant 0 : i32
    %589 = vector.broadcast %c0_i32_208 : i32 to vector<1x256xi32>
    %590 = arith.cmpi sge, %588, %589 : vector<1x256xi32>
    %c0_i32_209 = arith.constant 0 : i32
    %591 = vector.broadcast %c0_i32_209 : i32 to vector<1x256xi32>
    %592 = arith.addi %18, %591 : vector<1x256xi32>
    %c16_i32_210 = arith.constant 16 : i32
    %593 = vector.broadcast %c16_i32_210 : i32 to vector<1x256xi32>
    %594 = arith.cmpi slt, %592, %593 : vector<1x256xi32>
    %595 = arith.andi %590, %594 : vector<1x256xi1>
    %cst_211 = arith.constant 0.000000e+00 : f32
    %596 = vector.shape_cast %595 : vector<1x256xi1> to vector<1x256xi1>
    %597 = vector.broadcast %596 : vector<1x256xi1> to vector<8x256xi1>
    %598 = vector.broadcast %cst_211 : f32 to vector<8x256xf32>
    %599 = arith.select %597, %586, %598 : vector<8x256xi1>, vector<8x256xf32>
    %600 = arith.addf %539, %599 : vector<8x256xf32>
    %cst_212 = arith.constant 0.000000e+00 : f32
    %601 = vector.broadcast %cst_212 : f32 to vector<8x256xf32>
    %cst_213 = arith.constant 0.000000e+00 : f32
    %602 = vector.broadcast %cst_213 : f32 to vector<8x141xf32>
    %603 = vector.extract_strided_slice %339 {offsets = [0, 0], sizes = [8, 115], strides = [1, 1]} : vector<8x256xf32> to vector<8x115xf32>
    %604 = tpu.concatenate %602, %603 in 1 : vector<8x141xf32>, vector<8x115xf32> -> vector<8x256xf32>
    %c0_214 = arith.constant 0 : index
    %c4_215 = arith.constant 4 : index
    %605 = vector.load %arg8[%c0_214, %c4_215] : memref<8x49xf32, #tpu.memory_space<vmem>>, vector<8x1xf32>
    %606 = vector.broadcast %605 : vector<8x1xf32> to vector<8x256xf32>
    %607 = arith.mulf %604, %606 : vector<8x256xf32>
    %608 = arith.addf %601, %607 : vector<8x256xf32>
    %cst_216 = arith.constant 0.000000e+00 : f32
    %609 = vector.broadcast %cst_216 : f32 to vector<8x93xf32>
    %610 = vector.extract_strided_slice %339 {offsets = [0, 0], sizes = [8, 163], strides = [1, 1]} : vector<8x256xf32> to vector<8x163xf32>
    %611 = tpu.concatenate %609, %610 in 1 : vector<8x93xf32>, vector<8x163xf32> -> vector<8x256xf32>
    %c0_217 = arith.constant 0 : index
    %c11_218 = arith.constant 11 : index
    %612 = vector.load %arg8[%c0_217, %c11_218] : memref<8x49xf32, #tpu.memory_space<vmem>>, vector<8x1xf32>
    %613 = vector.broadcast %612 : vector<8x1xf32> to vector<8x256xf32>
    %614 = arith.mulf %611, %613 : vector<8x256xf32>
    %615 = arith.addf %608, %614 : vector<8x256xf32>
    %cst_219 = arith.constant 0.000000e+00 : f32
    %616 = vector.broadcast %cst_219 : f32 to vector<8x45xf32>
    %617 = vector.extract_strided_slice %339 {offsets = [0, 0], sizes = [8, 211], strides = [1, 1]} : vector<8x256xf32> to vector<8x211xf32>
    %618 = tpu.concatenate %616, %617 in 1 : vector<8x45xf32>, vector<8x211xf32> -> vector<8x256xf32>
    %c0_220 = arith.constant 0 : index
    %c18_221 = arith.constant 18 : index
    %619 = vector.load %arg8[%c0_220, %c18_221] : memref<8x49xf32, #tpu.memory_space<vmem>>, vector<8x1xf32>
    %620 = vector.broadcast %619 : vector<8x1xf32> to vector<8x256xf32>
    %621 = arith.mulf %618, %620 : vector<8x256xf32>
    %622 = arith.addf %615, %621 : vector<8x256xf32>
    %cst_222 = arith.constant 0.000000e+00 : f32
    %623 = vector.broadcast %cst_222 : f32 to vector<8x3xf32>
    %624 = vector.extract_strided_slice %339 {offsets = [0, 3], sizes = [8, 253], strides = [1, 1]} : vector<8x256xf32> to vector<8x253xf32>
    %625 = tpu.concatenate %624, %623 in 1 : vector<8x253xf32>, vector<8x3xf32> -> vector<8x256xf32>
    %c0_223 = arith.constant 0 : index
    %c25 = arith.constant 25 : index
    %626 = vector.load %arg8[%c0_223, %c25] : memref<8x49xf32, #tpu.memory_space<vmem>>, vector<8x1xf32>
    %627 = vector.broadcast %626 : vector<8x1xf32> to vector<8x256xf32>
    %628 = arith.mulf %625, %627 : vector<8x256xf32>
    %629 = arith.addf %622, %628 : vector<8x256xf32>
    %cst_224 = arith.constant 0.000000e+00 : f32
    %630 = vector.broadcast %cst_224 : f32 to vector<8x51xf32>
    %631 = vector.extract_strided_slice %339 {offsets = [0, 51], sizes = [8, 205], strides = [1, 1]} : vector<8x256xf32> to vector<8x205xf32>
    %632 = tpu.concatenate %631, %630 in 1 : vector<8x205xf32>, vector<8x51xf32> -> vector<8x256xf32>
    %c0_225 = arith.constant 0 : index
    %c32 = arith.constant 32 : index
    %633 = vector.load %arg8[%c0_225, %c32] : memref<8x49xf32, #tpu.memory_space<vmem>>, vector<8x1xf32>
    %634 = vector.broadcast %633 : vector<8x1xf32> to vector<8x256xf32>
    %635 = arith.mulf %632, %634 : vector<8x256xf32>
    %636 = arith.addf %629, %635 : vector<8x256xf32>
    %cst_226 = arith.constant 0.000000e+00 : f32
    %637 = vector.broadcast %cst_226 : f32 to vector<8x99xf32>
    %638 = vector.extract_strided_slice %339 {offsets = [0, 99], sizes = [8, 157], strides = [1, 1]} : vector<8x256xf32> to vector<8x157xf32>
    %639 = tpu.concatenate %638, %637 in 1 : vector<8x157xf32>, vector<8x99xf32> -> vector<8x256xf32>
    %c0_227 = arith.constant 0 : index
    %c39 = arith.constant 39 : index
    %640 = vector.load %arg8[%c0_227, %c39] : memref<8x49xf32, #tpu.memory_space<vmem>>, vector<8x1xf32>
    %641 = vector.broadcast %640 : vector<8x1xf32> to vector<8x256xf32>
    %642 = arith.mulf %639, %641 : vector<8x256xf32>
    %643 = arith.addf %636, %642 : vector<8x256xf32>
    %cst_228 = arith.constant 0.000000e+00 : f32
    %644 = vector.broadcast %cst_228 : f32 to vector<8x147xf32>
    %645 = vector.extract_strided_slice %339 {offsets = [0, 147], sizes = [8, 109], strides = [1, 1]} : vector<8x256xf32> to vector<8x109xf32>
    %646 = tpu.concatenate %645, %644 in 1 : vector<8x109xf32>, vector<8x147xf32> -> vector<8x256xf32>
    %c0_229 = arith.constant 0 : index
    %c46 = arith.constant 46 : index
    %647 = vector.load %arg8[%c0_229, %c46] : memref<8x49xf32, #tpu.memory_space<vmem>>, vector<8x1xf32>
    %648 = vector.broadcast %647 : vector<8x1xf32> to vector<8x256xf32>
    %649 = arith.mulf %646, %648 : vector<8x256xf32>
    %650 = arith.addf %643, %649 : vector<8x256xf32>
    %c3_i32 = arith.constant 3 : i32
    %651 = vector.broadcast %c3_i32 : i32 to vector<1x256xi32>
    %652 = arith.addi %18, %651 : vector<1x256xi32>
    %c0_i32_230 = arith.constant 0 : i32
    %653 = vector.broadcast %c0_i32_230 : i32 to vector<1x256xi32>
    %654 = arith.cmpi sge, %652, %653 : vector<1x256xi32>
    %c3_i32_231 = arith.constant 3 : i32
    %655 = vector.broadcast %c3_i32_231 : i32 to vector<1x256xi32>
    %656 = arith.addi %18, %655 : vector<1x256xi32>
    %c16_i32_232 = arith.constant 16 : i32
    %657 = vector.broadcast %c16_i32_232 : i32 to vector<1x256xi32>
    %658 = arith.cmpi slt, %656, %657 : vector<1x256xi32>
    %659 = arith.andi %654, %658 : vector<1x256xi1>
    %cst_233 = arith.constant 0.000000e+00 : f32
    %660 = vector.shape_cast %659 : vector<1x256xi1> to vector<1x256xi1>
    %661 = vector.broadcast %660 : vector<1x256xi1> to vector<8x256xi1>
    %662 = vector.broadcast %cst_233 : f32 to vector<8x256xf32>
    %663 = arith.select %661, %650, %662 : vector<8x256xi1>, vector<8x256xf32>
    %664 = arith.addf %600, %663 : vector<8x256xf32>
    %cst_234 = arith.constant 0.000000e+00 : f32
    %665 = vector.broadcast %cst_234 : f32 to vector<8x256xf32>
    %cst_235 = arith.constant 0.000000e+00 : f32
    %666 = vector.broadcast %cst_235 : f32 to vector<8x138xf32>
    %667 = vector.extract_strided_slice %339 {offsets = [0, 0], sizes = [8, 118], strides = [1, 1]} : vector<8x256xf32> to vector<8x118xf32>
    %668 = tpu.concatenate %666, %667 in 1 : vector<8x138xf32>, vector<8x118xf32> -> vector<8x256xf32>
    %c0_236 = arith.constant 0 : index
    %c5_237 = arith.constant 5 : index
    %669 = vector.load %arg8[%c0_236, %c5_237] : memref<8x49xf32, #tpu.memory_space<vmem>>, vector<8x1xf32>
    %670 = vector.broadcast %669 : vector<8x1xf32> to vector<8x256xf32>
    %671 = arith.mulf %668, %670 : vector<8x256xf32>
    %672 = arith.addf %665, %671 : vector<8x256xf32>
    %cst_238 = arith.constant 0.000000e+00 : f32
    %673 = vector.broadcast %cst_238 : f32 to vector<8x90xf32>
    %674 = vector.extract_strided_slice %339 {offsets = [0, 0], sizes = [8, 166], strides = [1, 1]} : vector<8x256xf32> to vector<8x166xf32>
    %675 = tpu.concatenate %673, %674 in 1 : vector<8x90xf32>, vector<8x166xf32> -> vector<8x256xf32>
    %c0_239 = arith.constant 0 : index
    %c12_240 = arith.constant 12 : index
    %676 = vector.load %arg8[%c0_239, %c12_240] : memref<8x49xf32, #tpu.memory_space<vmem>>, vector<8x1xf32>
    %677 = vector.broadcast %676 : vector<8x1xf32> to vector<8x256xf32>
    %678 = arith.mulf %675, %677 : vector<8x256xf32>
    %679 = arith.addf %672, %678 : vector<8x256xf32>
    %cst_241 = arith.constant 0.000000e+00 : f32
    %680 = vector.broadcast %cst_241 : f32 to vector<8x42xf32>
    %681 = vector.extract_strided_slice %339 {offsets = [0, 0], sizes = [8, 214], strides = [1, 1]} : vector<8x256xf32> to vector<8x214xf32>
    %682 = tpu.concatenate %680, %681 in 1 : vector<8x42xf32>, vector<8x214xf32> -> vector<8x256xf32>
    %c0_242 = arith.constant 0 : index
    %c19_243 = arith.constant 19 : index
    %683 = vector.load %arg8[%c0_242, %c19_243] : memref<8x49xf32, #tpu.memory_space<vmem>>, vector<8x1xf32>
    %684 = vector.broadcast %683 : vector<8x1xf32> to vector<8x256xf32>
    %685 = arith.mulf %682, %684 : vector<8x256xf32>
    %686 = arith.addf %679, %685 : vector<8x256xf32>
    %cst_244 = arith.constant 0.000000e+00 : f32
    %687 = vector.broadcast %cst_244 : f32 to vector<8x6xf32>
    %688 = vector.extract_strided_slice %339 {offsets = [0, 6], sizes = [8, 250], strides = [1, 1]} : vector<8x256xf32> to vector<8x250xf32>
    %689 = tpu.concatenate %688, %687 in 1 : vector<8x250xf32>, vector<8x6xf32> -> vector<8x256xf32>
    %c0_245 = arith.constant 0 : index
    %c26 = arith.constant 26 : index
    %690 = vector.load %arg8[%c0_245, %c26] : memref<8x49xf32, #tpu.memory_space<vmem>>, vector<8x1xf32>
    %691 = vector.broadcast %690 : vector<8x1xf32> to vector<8x256xf32>
    %692 = arith.mulf %689, %691 : vector<8x256xf32>
    %693 = arith.addf %686, %692 : vector<8x256xf32>
    %cst_246 = arith.constant 0.000000e+00 : f32
    %694 = vector.broadcast %cst_246 : f32 to vector<8x54xf32>
    %695 = vector.extract_strided_slice %339 {offsets = [0, 54], sizes = [8, 202], strides = [1, 1]} : vector<8x256xf32> to vector<8x202xf32>
    %696 = tpu.concatenate %695, %694 in 1 : vector<8x202xf32>, vector<8x54xf32> -> vector<8x256xf32>
    %c0_247 = arith.constant 0 : index
    %c33 = arith.constant 33 : index
    %697 = vector.load %arg8[%c0_247, %c33] : memref<8x49xf32, #tpu.memory_space<vmem>>, vector<8x1xf32>
    %698 = vector.broadcast %697 : vector<8x1xf32> to vector<8x256xf32>
    %699 = arith.mulf %696, %698 : vector<8x256xf32>
    %700 = arith.addf %693, %699 : vector<8x256xf32>
    %cst_248 = arith.constant 0.000000e+00 : f32
    %701 = vector.broadcast %cst_248 : f32 to vector<8x102xf32>
    %702 = vector.extract_strided_slice %339 {offsets = [0, 102], sizes = [8, 154], strides = [1, 1]} : vector<8x256xf32> to vector<8x154xf32>
    %703 = tpu.concatenate %702, %701 in 1 : vector<8x154xf32>, vector<8x102xf32> -> vector<8x256xf32>
    %c0_249 = arith.constant 0 : index
    %c40 = arith.constant 40 : index
    %704 = vector.load %arg8[%c0_249, %c40] : memref<8x49xf32, #tpu.memory_space<vmem>>, vector<8x1xf32>
    %705 = vector.broadcast %704 : vector<8x1xf32> to vector<8x256xf32>
    %706 = arith.mulf %703, %705 : vector<8x256xf32>
    %707 = arith.addf %700, %706 : vector<8x256xf32>
    %cst_250 = arith.constant 0.000000e+00 : f32
    %708 = vector.broadcast %cst_250 : f32 to vector<8x150xf32>
    %709 = vector.extract_strided_slice %339 {offsets = [0, 150], sizes = [8, 106], strides = [1, 1]} : vector<8x256xf32> to vector<8x106xf32>
    %710 = tpu.concatenate %709, %708 in 1 : vector<8x106xf32>, vector<8x150xf32> -> vector<8x256xf32>
    %c0_251 = arith.constant 0 : index
    %c47 = arith.constant 47 : index
    %711 = vector.load %arg8[%c0_251, %c47] : memref<8x49xf32, #tpu.memory_space<vmem>>, vector<8x1xf32>
    %712 = vector.broadcast %711 : vector<8x1xf32> to vector<8x256xf32>
    %713 = arith.mulf %710, %712 : vector<8x256xf32>
    %714 = arith.addf %707, %713 : vector<8x256xf32>
    %c6_i32 = arith.constant 6 : i32
    %715 = vector.broadcast %c6_i32 : i32 to vector<1x256xi32>
    %716 = arith.addi %18, %715 : vector<1x256xi32>
    %c0_i32_252 = arith.constant 0 : i32
    %717 = vector.broadcast %c0_i32_252 : i32 to vector<1x256xi32>
    %718 = arith.cmpi sge, %716, %717 : vector<1x256xi32>
    %c6_i32_253 = arith.constant 6 : i32
    %719 = vector.broadcast %c6_i32_253 : i32 to vector<1x256xi32>
    %720 = arith.addi %18, %719 : vector<1x256xi32>
    %c16_i32_254 = arith.constant 16 : i32
    %721 = vector.broadcast %c16_i32_254 : i32 to vector<1x256xi32>
    %722 = arith.cmpi slt, %720, %721 : vector<1x256xi32>
    %723 = arith.andi %718, %722 : vector<1x256xi1>
    %cst_255 = arith.constant 0.000000e+00 : f32
    %724 = vector.shape_cast %723 : vector<1x256xi1> to vector<1x256xi1>
    %725 = vector.broadcast %724 : vector<1x256xi1> to vector<8x256xi1>
    %726 = vector.broadcast %cst_255 : f32 to vector<8x256xf32>
    %727 = arith.select %725, %714, %726 : vector<8x256xi1>, vector<8x256xf32>
    %728 = arith.addf %664, %727 : vector<8x256xf32>
    %cst_256 = arith.constant 0.000000e+00 : f32
    %729 = vector.broadcast %cst_256 : f32 to vector<8x256xf32>
    %cst_257 = arith.constant 0.000000e+00 : f32
    %730 = vector.broadcast %cst_257 : f32 to vector<8x135xf32>
    %731 = vector.extract_strided_slice %339 {offsets = [0, 0], sizes = [8, 121], strides = [1, 1]} : vector<8x256xf32> to vector<8x121xf32>
    %732 = tpu.concatenate %730, %731 in 1 : vector<8x135xf32>, vector<8x121xf32> -> vector<8x256xf32>
    %c0_258 = arith.constant 0 : index
    %c6_259 = arith.constant 6 : index
    %733 = vector.load %arg8[%c0_258, %c6_259] : memref<8x49xf32, #tpu.memory_space<vmem>>, vector<8x1xf32>
    %734 = vector.broadcast %733 : vector<8x1xf32> to vector<8x256xf32>
    %735 = arith.mulf %732, %734 : vector<8x256xf32>
    %736 = arith.addf %729, %735 : vector<8x256xf32>
    %cst_260 = arith.constant 0.000000e+00 : f32
    %737 = vector.broadcast %cst_260 : f32 to vector<8x87xf32>
    %738 = vector.extract_strided_slice %339 {offsets = [0, 0], sizes = [8, 169], strides = [1, 1]} : vector<8x256xf32> to vector<8x169xf32>
    %739 = tpu.concatenate %737, %738 in 1 : vector<8x87xf32>, vector<8x169xf32> -> vector<8x256xf32>
    %c0_261 = arith.constant 0 : index
    %c13_262 = arith.constant 13 : index
    %740 = vector.load %arg8[%c0_261, %c13_262] : memref<8x49xf32, #tpu.memory_space<vmem>>, vector<8x1xf32>
    %741 = vector.broadcast %740 : vector<8x1xf32> to vector<8x256xf32>
    %742 = arith.mulf %739, %741 : vector<8x256xf32>
    %743 = arith.addf %736, %742 : vector<8x256xf32>
    %cst_263 = arith.constant 0.000000e+00 : f32
    %744 = vector.broadcast %cst_263 : f32 to vector<8x39xf32>
    %745 = vector.extract_strided_slice %339 {offsets = [0, 0], sizes = [8, 217], strides = [1, 1]} : vector<8x256xf32> to vector<8x217xf32>
    %746 = tpu.concatenate %744, %745 in 1 : vector<8x39xf32>, vector<8x217xf32> -> vector<8x256xf32>
    %c0_264 = arith.constant 0 : index
    %c20_265 = arith.constant 20 : index
    %747 = vector.load %arg8[%c0_264, %c20_265] : memref<8x49xf32, #tpu.memory_space<vmem>>, vector<8x1xf32>
    %748 = vector.broadcast %747 : vector<8x1xf32> to vector<8x256xf32>
    %749 = arith.mulf %746, %748 : vector<8x256xf32>
    %750 = arith.addf %743, %749 : vector<8x256xf32>
    %cst_266 = arith.constant 0.000000e+00 : f32
    %751 = vector.broadcast %cst_266 : f32 to vector<8x9xf32>
    %752 = vector.extract_strided_slice %339 {offsets = [0, 9], sizes = [8, 247], strides = [1, 1]} : vector<8x256xf32> to vector<8x247xf32>
    %753 = tpu.concatenate %752, %751 in 1 : vector<8x247xf32>, vector<8x9xf32> -> vector<8x256xf32>
    %c0_267 = arith.constant 0 : index
    %c27 = arith.constant 27 : index
    %754 = vector.load %arg8[%c0_267, %c27] : memref<8x49xf32, #tpu.memory_space<vmem>>, vector<8x1xf32>
    %755 = vector.broadcast %754 : vector<8x1xf32> to vector<8x256xf32>
    %756 = arith.mulf %753, %755 : vector<8x256xf32>
    %757 = arith.addf %750, %756 : vector<8x256xf32>
    %cst_268 = arith.constant 0.000000e+00 : f32
    %758 = vector.broadcast %cst_268 : f32 to vector<8x57xf32>
    %759 = vector.extract_strided_slice %339 {offsets = [0, 57], sizes = [8, 199], strides = [1, 1]} : vector<8x256xf32> to vector<8x199xf32>
    %760 = tpu.concatenate %759, %758 in 1 : vector<8x199xf32>, vector<8x57xf32> -> vector<8x256xf32>
    %c0_269 = arith.constant 0 : index
    %c34 = arith.constant 34 : index
    %761 = vector.load %arg8[%c0_269, %c34] : memref<8x49xf32, #tpu.memory_space<vmem>>, vector<8x1xf32>
    %762 = vector.broadcast %761 : vector<8x1xf32> to vector<8x256xf32>
    %763 = arith.mulf %760, %762 : vector<8x256xf32>
    %764 = arith.addf %757, %763 : vector<8x256xf32>
    %cst_270 = arith.constant 0.000000e+00 : f32
    %765 = vector.broadcast %cst_270 : f32 to vector<8x105xf32>
    %766 = vector.extract_strided_slice %339 {offsets = [0, 105], sizes = [8, 151], strides = [1, 1]} : vector<8x256xf32> to vector<8x151xf32>
    %767 = tpu.concatenate %766, %765 in 1 : vector<8x151xf32>, vector<8x105xf32> -> vector<8x256xf32>
    %c0_271 = arith.constant 0 : index
    %c41 = arith.constant 41 : index
    %768 = vector.load %arg8[%c0_271, %c41] : memref<8x49xf32, #tpu.memory_space<vmem>>, vector<8x1xf32>
    %769 = vector.broadcast %768 : vector<8x1xf32> to vector<8x256xf32>
    %770 = arith.mulf %767, %769 : vector<8x256xf32>
    %771 = arith.addf %764, %770 : vector<8x256xf32>
    %cst_272 = arith.constant 0.000000e+00 : f32
    %772 = vector.broadcast %cst_272 : f32 to vector<8x153xf32>
    %773 = vector.extract_strided_slice %339 {offsets = [0, 153], sizes = [8, 103], strides = [1, 1]} : vector<8x256xf32> to vector<8x103xf32>
    %774 = tpu.concatenate %773, %772 in 1 : vector<8x103xf32>, vector<8x153xf32> -> vector<8x256xf32>
    %c0_273 = arith.constant 0 : index
    %c48 = arith.constant 48 : index
    %775 = vector.load %arg8[%c0_273, %c48] : memref<8x49xf32, #tpu.memory_space<vmem>>, vector<8x1xf32>
    %776 = vector.broadcast %775 : vector<8x1xf32> to vector<8x256xf32>
    %777 = arith.mulf %774, %776 : vector<8x256xf32>
    %778 = arith.addf %771, %777 : vector<8x256xf32>
    %c9_i32 = arith.constant 9 : i32
    %779 = vector.broadcast %c9_i32 : i32 to vector<1x256xi32>
    %780 = arith.addi %18, %779 : vector<1x256xi32>
    %c0_i32_274 = arith.constant 0 : i32
    %781 = vector.broadcast %c0_i32_274 : i32 to vector<1x256xi32>
    %782 = arith.cmpi sge, %780, %781 : vector<1x256xi32>
    %c9_i32_275 = arith.constant 9 : i32
    %783 = vector.broadcast %c9_i32_275 : i32 to vector<1x256xi32>
    %784 = arith.addi %18, %783 : vector<1x256xi32>
    %c16_i32_276 = arith.constant 16 : i32
    %785 = vector.broadcast %c16_i32_276 : i32 to vector<1x256xi32>
    %786 = arith.cmpi slt, %784, %785 : vector<1x256xi32>
    %787 = arith.andi %782, %786 : vector<1x256xi1>
    %cst_277 = arith.constant 0.000000e+00 : f32
    %788 = vector.shape_cast %787 : vector<1x256xi1> to vector<1x256xi1>
    %789 = vector.broadcast %788 : vector<1x256xi1> to vector<8x256xi1>
    %790 = vector.broadcast %cst_277 : f32 to vector<8x256xf32>
    %791 = arith.select %789, %778, %790 : vector<8x256xi1>, vector<8x256xf32>
    %792 = arith.addf %728, %791 : vector<8x256xf32>
    %c0_278 = arith.constant 0 : index
    %c0_279 = arith.constant 0 : index
    %793 = vector.load %arg9[%c0_278, %c0_279] : memref<8x1xf32, #tpu.memory_space<vmem>>, vector<8x1xf32>
    %794 = vector.broadcast %793 : vector<8x1xf32> to vector<8x256xf32>
    %795 = arith.addf %792, %794 : vector<8x256xf32>
    %c0_280 = arith.constant 0 : index
    %c0_281 = arith.constant 0 : index
    %796 = vector.load %arg12[%c0_280, %c0_281] : memref<4x8xf32, #tpu.memory_space<vmem>>, vector<4x8xf32>
    %797 = arith.truncf %796 : vector<4x8xf32> to vector<4x8xbf16>
    %798 = arith.truncf %795 : vector<8x256xf32> to vector<8x256xbf16>
    %cst_282 = arith.constant dense<0.000000e+00> : vector<4x256xf32>
    %799 = tpu.matmul %797, %798, %cst_282 {dimension_numbers = #tpu.dot_dimension_numbers<[1], [0], [0], [1], [0, 0, 1, 1], [], []>} : vector<4x8xbf16>, vector<8x256xbf16>, vector<4x256xf32> -> vector<4x256xf32>
    %c0_283 = arith.constant 0 : index
    %c0_284 = arith.constant 0 : index
    %800 = vector.load %arg13[%c0_283, %c0_284] : memref<4x1xf32, #tpu.memory_space<vmem>>, vector<4x1xf32>
    %801 = vector.broadcast %800 : vector<4x1xf32> to vector<4x256xf32>
    %802 = arith.addf %799, %801 : vector<4x256xf32>
    %cst_285 = arith.constant dense<0.000000e+00> : vector<256xf32>
    %803 = vector.multi_reduction <add>, %346, %cst_285 [0] : vector<4x256xf32> to vector<256xf32>
    %804 = vector.shape_cast %803 : vector<256xf32> to vector<1x256xf32>
    %cst_286 = arith.constant dense<0.000000e+00> : vector<256xf32>
    %805 = vector.multi_reduction <add>, %802, %cst_286 [0] : vector<4x256xf32> to vector<256xf32>
    %806 = vector.shape_cast %805 : vector<256xf32> to vector<1x256xf32>
    %807 = arith.addf %804, %806 : vector<1x256xf32>
    %cst_287 = arith.constant 1.250000e-01 : f32
    %808 = vector.broadcast %cst_287 : f32 to vector<1x256xf32>
    %809 = arith.mulf %807, %808 : vector<1x256xf32>
    %cst_288 = arith.constant dense<0xFF800000> : vector<256xf32>
    %810 = vector.multi_reduction <maximumf>, %346, %cst_288 [0] : vector<4x256xf32> to vector<256xf32>
    %811 = vector.shape_cast %810 : vector<256xf32> to vector<1x256xf32>
    %cst_289 = arith.constant dense<0xFF800000> : vector<256xf32>
    %812 = vector.multi_reduction <maximumf>, %802, %cst_289 [0] : vector<4x256xf32> to vector<256xf32>
    %813 = vector.shape_cast %812 : vector<256xf32> to vector<1x256xf32>
    %814 = arith.maximumf %811, %813 : vector<1x256xf32>
    %cst_290 = arith.constant 0.000000e+00 : f32
    %815 = vector.broadcast %cst_290 : f32 to vector<1x256xf32>
    %cst_291 = arith.constant 0.000000e+00 : f32
    %816 = vector.broadcast %cst_291 : f32 to vector<1x256xf32>
    %cst_292 = arith.constant 0.000000e+00 : f32
    %817 = vector.broadcast %cst_292 : f32 to vector<1x256xf32>
    %cst_293 = arith.constant 0.000000e+00 : f32
    %818 = vector.broadcast %cst_293 : f32 to vector<1x256xf32>
    %cst_294 = arith.constant 0.000000e+00 : f32
    %819 = vector.broadcast %cst_294 : f32 to vector<1x51xf32>
    %820 = vector.extract_strided_slice %809 {offsets = [0, 0], sizes = [1, 205], strides = [1, 1]} : vector<1x256xf32> to vector<1x205xf32>
    %821 = tpu.concatenate %819, %820 in 1 : vector<1x51xf32>, vector<1x205xf32> -> vector<1x256xf32>
    %cst_295 = arith.constant 0.000000e+00 : f32
    %822 = vector.broadcast %cst_295 : f32 to vector<1x51xf32>
    %823 = vector.extract_strided_slice %814 {offsets = [0, 0], sizes = [1, 205], strides = [1, 1]} : vector<1x256xf32> to vector<1x205xf32>
    %824 = tpu.concatenate %822, %823 in 1 : vector<1x51xf32>, vector<1x205xf32> -> vector<1x256xf32>
    %c0_296 = arith.constant 0 : index
    %825 = memref.load %arg14[%c0_296] : memref<196xf32, #tpu.memory_space<smem>>
    %826 = vector.broadcast %825 : f32 to vector<1x256xf32>
    %827 = arith.mulf %821, %826 : vector<1x256xf32>
    %828 = arith.addf %817, %827 : vector<1x256xf32>
    %c2_297 = arith.constant 2 : index
    %829 = memref.load %arg14[%c2_297] : memref<196xf32, #tpu.memory_space<smem>>
    %830 = vector.broadcast %829 : f32 to vector<1x256xf32>
    %831 = arith.mulf %824, %830 : vector<1x256xf32>
    %832 = arith.addf %828, %831 : vector<1x256xf32>
    %c1_298 = arith.constant 1 : index
    %833 = memref.load %arg14[%c1_298] : memref<196xf32, #tpu.memory_space<smem>>
    %834 = vector.broadcast %833 : f32 to vector<1x256xf32>
    %835 = arith.mulf %821, %834 : vector<1x256xf32>
    %836 = arith.addf %818, %835 : vector<1x256xf32>
    %c3_299 = arith.constant 3 : index
    %837 = memref.load %arg14[%c3_299] : memref<196xf32, #tpu.memory_space<smem>>
    %838 = vector.broadcast %837 : f32 to vector<1x256xf32>
    %839 = arith.mulf %824, %838 : vector<1x256xf32>
    %840 = arith.addf %836, %839 : vector<1x256xf32>
    %cst_300 = arith.constant 0.000000e+00 : f32
    %841 = vector.broadcast %cst_300 : f32 to vector<1x35xf32>
    %842 = vector.extract_strided_slice %809 {offsets = [0, 0], sizes = [1, 221], strides = [1, 1]} : vector<1x256xf32> to vector<1x221xf32>
    %843 = tpu.concatenate %841, %842 in 1 : vector<1x35xf32>, vector<1x221xf32> -> vector<1x256xf32>
    %cst_301 = arith.constant 0.000000e+00 : f32
    %844 = vector.broadcast %cst_301 : f32 to vector<1x35xf32>
    %845 = vector.extract_strided_slice %814 {offsets = [0, 0], sizes = [1, 221], strides = [1, 1]} : vector<1x256xf32> to vector<1x221xf32>
    %846 = tpu.concatenate %844, %845 in 1 : vector<1x35xf32>, vector<1x221xf32> -> vector<1x256xf32>
    %c28_302 = arith.constant 28 : index
    %847 = memref.load %arg14[%c28_302] : memref<196xf32, #tpu.memory_space<smem>>
    %848 = vector.broadcast %847 : f32 to vector<1x256xf32>
    %849 = arith.mulf %843, %848 : vector<1x256xf32>
    %850 = arith.addf %832, %849 : vector<1x256xf32>
    %c30_303 = arith.constant 30 : index
    %851 = memref.load %arg14[%c30_303] : memref<196xf32, #tpu.memory_space<smem>>
    %852 = vector.broadcast %851 : f32 to vector<1x256xf32>
    %853 = arith.mulf %846, %852 : vector<1x256xf32>
    %854 = arith.addf %850, %853 : vector<1x256xf32>
    %c29_304 = arith.constant 29 : index
    %855 = memref.load %arg14[%c29_304] : memref<196xf32, #tpu.memory_space<smem>>
    %856 = vector.broadcast %855 : f32 to vector<1x256xf32>
    %857 = arith.mulf %843, %856 : vector<1x256xf32>
    %858 = arith.addf %840, %857 : vector<1x256xf32>
    %c31_305 = arith.constant 31 : index
    %859 = memref.load %arg14[%c31_305] : memref<196xf32, #tpu.memory_space<smem>>
    %860 = vector.broadcast %859 : f32 to vector<1x256xf32>
    %861 = arith.mulf %846, %860 : vector<1x256xf32>
    %862 = arith.addf %858, %861 : vector<1x256xf32>
    %cst_306 = arith.constant 0.000000e+00 : f32
    %863 = vector.broadcast %cst_306 : f32 to vector<1x19xf32>
    %864 = vector.extract_strided_slice %809 {offsets = [0, 0], sizes = [1, 237], strides = [1, 1]} : vector<1x256xf32> to vector<1x237xf32>
    %865 = tpu.concatenate %863, %864 in 1 : vector<1x19xf32>, vector<1x237xf32> -> vector<1x256xf32>
    %cst_307 = arith.constant 0.000000e+00 : f32
    %866 = vector.broadcast %cst_307 : f32 to vector<1x19xf32>
    %867 = vector.extract_strided_slice %814 {offsets = [0, 0], sizes = [1, 237], strides = [1, 1]} : vector<1x256xf32> to vector<1x237xf32>
    %868 = tpu.concatenate %866, %867 in 1 : vector<1x19xf32>, vector<1x237xf32> -> vector<1x256xf32>
    %c56 = arith.constant 56 : index
    %869 = memref.load %arg14[%c56] : memref<196xf32, #tpu.memory_space<smem>>
    %870 = vector.broadcast %869 : f32 to vector<1x256xf32>
    %871 = arith.mulf %865, %870 : vector<1x256xf32>
    %872 = arith.addf %854, %871 : vector<1x256xf32>
    %c58 = arith.constant 58 : index
    %873 = memref.load %arg14[%c58] : memref<196xf32, #tpu.memory_space<smem>>
    %874 = vector.broadcast %873 : f32 to vector<1x256xf32>
    %875 = arith.mulf %868, %874 : vector<1x256xf32>
    %876 = arith.addf %872, %875 : vector<1x256xf32>
    %c57 = arith.constant 57 : index
    %877 = memref.load %arg14[%c57] : memref<196xf32, #tpu.memory_space<smem>>
    %878 = vector.broadcast %877 : f32 to vector<1x256xf32>
    %879 = arith.mulf %865, %878 : vector<1x256xf32>
    %880 = arith.addf %862, %879 : vector<1x256xf32>
    %c59 = arith.constant 59 : index
    %881 = memref.load %arg14[%c59] : memref<196xf32, #tpu.memory_space<smem>>
    %882 = vector.broadcast %881 : f32 to vector<1x256xf32>
    %883 = arith.mulf %868, %882 : vector<1x256xf32>
    %884 = arith.addf %880, %883 : vector<1x256xf32>
    %cst_308 = arith.constant 0.000000e+00 : f32
    %885 = vector.broadcast %cst_308 : f32 to vector<1x3xf32>
    %886 = vector.extract_strided_slice %809 {offsets = [0, 0], sizes = [1, 253], strides = [1, 1]} : vector<1x256xf32> to vector<1x253xf32>
    %887 = tpu.concatenate %885, %886 in 1 : vector<1x3xf32>, vector<1x253xf32> -> vector<1x256xf32>
    %cst_309 = arith.constant 0.000000e+00 : f32
    %888 = vector.broadcast %cst_309 : f32 to vector<1x3xf32>
    %889 = vector.extract_strided_slice %814 {offsets = [0, 0], sizes = [1, 253], strides = [1, 1]} : vector<1x256xf32> to vector<1x253xf32>
    %890 = tpu.concatenate %888, %889 in 1 : vector<1x3xf32>, vector<1x253xf32> -> vector<1x256xf32>
    %c84 = arith.constant 84 : index
    %891 = memref.load %arg14[%c84] : memref<196xf32, #tpu.memory_space<smem>>
    %892 = vector.broadcast %891 : f32 to vector<1x256xf32>
    %893 = arith.mulf %887, %892 : vector<1x256xf32>
    %894 = arith.addf %876, %893 : vector<1x256xf32>
    %c86 = arith.constant 86 : index
    %895 = memref.load %arg14[%c86] : memref<196xf32, #tpu.memory_space<smem>>
    %896 = vector.broadcast %895 : f32 to vector<1x256xf32>
    %897 = arith.mulf %890, %896 : vector<1x256xf32>
    %898 = arith.addf %894, %897 : vector<1x256xf32>
    %c85 = arith.constant 85 : index
    %899 = memref.load %arg14[%c85] : memref<196xf32, #tpu.memory_space<smem>>
    %900 = vector.broadcast %899 : f32 to vector<1x256xf32>
    %901 = arith.mulf %887, %900 : vector<1x256xf32>
    %902 = arith.addf %884, %901 : vector<1x256xf32>
    %c87 = arith.constant 87 : index
    %903 = memref.load %arg14[%c87] : memref<196xf32, #tpu.memory_space<smem>>
    %904 = vector.broadcast %903 : f32 to vector<1x256xf32>
    %905 = arith.mulf %890, %904 : vector<1x256xf32>
    %906 = arith.addf %902, %905 : vector<1x256xf32>
    %cst_310 = arith.constant 0.000000e+00 : f32
    %907 = vector.broadcast %cst_310 : f32 to vector<1x13xf32>
    %908 = vector.extract_strided_slice %809 {offsets = [0, 13], sizes = [1, 243], strides = [1, 1]} : vector<1x256xf32> to vector<1x243xf32>
    %909 = tpu.concatenate %908, %907 in 1 : vector<1x243xf32>, vector<1x13xf32> -> vector<1x256xf32>
    %cst_311 = arith.constant 0.000000e+00 : f32
    %910 = vector.broadcast %cst_311 : f32 to vector<1x13xf32>
    %911 = vector.extract_strided_slice %814 {offsets = [0, 13], sizes = [1, 243], strides = [1, 1]} : vector<1x256xf32> to vector<1x243xf32>
    %912 = tpu.concatenate %911, %910 in 1 : vector<1x243xf32>, vector<1x13xf32> -> vector<1x256xf32>
    %c112 = arith.constant 112 : index
    %913 = memref.load %arg14[%c112] : memref<196xf32, #tpu.memory_space<smem>>
    %914 = vector.broadcast %913 : f32 to vector<1x256xf32>
    %915 = arith.mulf %909, %914 : vector<1x256xf32>
    %916 = arith.addf %898, %915 : vector<1x256xf32>
    %c114 = arith.constant 114 : index
    %917 = memref.load %arg14[%c114] : memref<196xf32, #tpu.memory_space<smem>>
    %918 = vector.broadcast %917 : f32 to vector<1x256xf32>
    %919 = arith.mulf %912, %918 : vector<1x256xf32>
    %920 = arith.addf %916, %919 : vector<1x256xf32>
    %c113 = arith.constant 113 : index
    %921 = memref.load %arg14[%c113] : memref<196xf32, #tpu.memory_space<smem>>
    %922 = vector.broadcast %921 : f32 to vector<1x256xf32>
    %923 = arith.mulf %909, %922 : vector<1x256xf32>
    %924 = arith.addf %906, %923 : vector<1x256xf32>
    %c115 = arith.constant 115 : index
    %925 = memref.load %arg14[%c115] : memref<196xf32, #tpu.memory_space<smem>>
    %926 = vector.broadcast %925 : f32 to vector<1x256xf32>
    %927 = arith.mulf %912, %926 : vector<1x256xf32>
    %928 = arith.addf %924, %927 : vector<1x256xf32>
    %cst_312 = arith.constant 0.000000e+00 : f32
    %929 = vector.broadcast %cst_312 : f32 to vector<1x29xf32>
    %930 = vector.extract_strided_slice %809 {offsets = [0, 29], sizes = [1, 227], strides = [1, 1]} : vector<1x256xf32> to vector<1x227xf32>
    %931 = tpu.concatenate %930, %929 in 1 : vector<1x227xf32>, vector<1x29xf32> -> vector<1x256xf32>
    %cst_313 = arith.constant 0.000000e+00 : f32
    %932 = vector.broadcast %cst_313 : f32 to vector<1x29xf32>
    %933 = vector.extract_strided_slice %814 {offsets = [0, 29], sizes = [1, 227], strides = [1, 1]} : vector<1x256xf32> to vector<1x227xf32>
    %934 = tpu.concatenate %933, %932 in 1 : vector<1x227xf32>, vector<1x29xf32> -> vector<1x256xf32>
    %c140 = arith.constant 140 : index
    %935 = memref.load %arg14[%c140] : memref<196xf32, #tpu.memory_space<smem>>
    %936 = vector.broadcast %935 : f32 to vector<1x256xf32>
    %937 = arith.mulf %931, %936 : vector<1x256xf32>
    %938 = arith.addf %920, %937 : vector<1x256xf32>
    %c142 = arith.constant 142 : index
    %939 = memref.load %arg14[%c142] : memref<196xf32, #tpu.memory_space<smem>>
    %940 = vector.broadcast %939 : f32 to vector<1x256xf32>
    %941 = arith.mulf %934, %940 : vector<1x256xf32>
    %942 = arith.addf %938, %941 : vector<1x256xf32>
    %c141 = arith.constant 141 : index
    %943 = memref.load %arg14[%c141] : memref<196xf32, #tpu.memory_space<smem>>
    %944 = vector.broadcast %943 : f32 to vector<1x256xf32>
    %945 = arith.mulf %931, %944 : vector<1x256xf32>
    %946 = arith.addf %928, %945 : vector<1x256xf32>
    %c143 = arith.constant 143 : index
    %947 = memref.load %arg14[%c143] : memref<196xf32, #tpu.memory_space<smem>>
    %948 = vector.broadcast %947 : f32 to vector<1x256xf32>
    %949 = arith.mulf %934, %948 : vector<1x256xf32>
    %950 = arith.addf %946, %949 : vector<1x256xf32>
    %cst_314 = arith.constant 0.000000e+00 : f32
    %951 = vector.broadcast %cst_314 : f32 to vector<1x45xf32>
    %952 = vector.extract_strided_slice %809 {offsets = [0, 45], sizes = [1, 211], strides = [1, 1]} : vector<1x256xf32> to vector<1x211xf32>
    %953 = tpu.concatenate %952, %951 in 1 : vector<1x211xf32>, vector<1x45xf32> -> vector<1x256xf32>
    %cst_315 = arith.constant 0.000000e+00 : f32
    %954 = vector.broadcast %cst_315 : f32 to vector<1x45xf32>
    %955 = vector.extract_strided_slice %814 {offsets = [0, 45], sizes = [1, 211], strides = [1, 1]} : vector<1x256xf32> to vector<1x211xf32>
    %956 = tpu.concatenate %955, %954 in 1 : vector<1x211xf32>, vector<1x45xf32> -> vector<1x256xf32>
    %c168 = arith.constant 168 : index
    %957 = memref.load %arg14[%c168] : memref<196xf32, #tpu.memory_space<smem>>
    %958 = vector.broadcast %957 : f32 to vector<1x256xf32>
    %959 = arith.mulf %953, %958 : vector<1x256xf32>
    %960 = arith.addf %942, %959 : vector<1x256xf32>
    %c170 = arith.constant 170 : index
    %961 = memref.load %arg14[%c170] : memref<196xf32, #tpu.memory_space<smem>>
    %962 = vector.broadcast %961 : f32 to vector<1x256xf32>
    %963 = arith.mulf %956, %962 : vector<1x256xf32>
    %964 = arith.addf %960, %963 : vector<1x256xf32>
    %c169 = arith.constant 169 : index
    %965 = memref.load %arg14[%c169] : memref<196xf32, #tpu.memory_space<smem>>
    %966 = vector.broadcast %965 : f32 to vector<1x256xf32>
    %967 = arith.mulf %953, %966 : vector<1x256xf32>
    %968 = arith.addf %950, %967 : vector<1x256xf32>
    %c171 = arith.constant 171 : index
    %969 = memref.load %arg14[%c171] : memref<196xf32, #tpu.memory_space<smem>>
    %970 = vector.broadcast %969 : f32 to vector<1x256xf32>
    %971 = arith.mulf %956, %970 : vector<1x256xf32>
    %972 = arith.addf %968, %971 : vector<1x256xf32>
    %c-3_i32_316 = arith.constant -3 : i32
    %973 = vector.broadcast %c-3_i32_316 : i32 to vector<1x256xi32>
    %974 = arith.addi %18, %973 : vector<1x256xi32>
    %c0_i32_317 = arith.constant 0 : i32
    %975 = vector.broadcast %c0_i32_317 : i32 to vector<1x256xi32>
    %976 = arith.cmpi sge, %974, %975 : vector<1x256xi32>
    %c-3_i32_318 = arith.constant -3 : i32
    %977 = vector.broadcast %c-3_i32_318 : i32 to vector<1x256xi32>
    %978 = arith.addi %18, %977 : vector<1x256xi32>
    %c16_i32_319 = arith.constant 16 : i32
    %979 = vector.broadcast %c16_i32_319 : i32 to vector<1x256xi32>
    %980 = arith.cmpi slt, %978, %979 : vector<1x256xi32>
    %981 = arith.andi %976, %980 : vector<1x256xi1>
    %cst_320 = arith.constant 0.000000e+00 : f32
    %982 = vector.broadcast %cst_320 : f32 to vector<1x256xf32>
    %983 = arith.select %981, %964, %982 : vector<1x256xi1>, vector<1x256xf32>
    %984 = arith.addf %815, %983 : vector<1x256xf32>
    %cst_321 = arith.constant 0.000000e+00 : f32
    %985 = vector.broadcast %cst_321 : f32 to vector<1x256xf32>
    %986 = arith.select %981, %972, %985 : vector<1x256xi1>, vector<1x256xf32>
    %987 = arith.addf %816, %986 : vector<1x256xf32>
    %cst_322 = arith.constant 0.000000e+00 : f32
    %988 = vector.broadcast %cst_322 : f32 to vector<1x256xf32>
    %cst_323 = arith.constant 0.000000e+00 : f32
    %989 = vector.broadcast %cst_323 : f32 to vector<1x256xf32>
    %cst_324 = arith.constant 0.000000e+00 : f32
    %990 = vector.broadcast %cst_324 : f32 to vector<1x50xf32>
    %991 = vector.extract_strided_slice %809 {offsets = [0, 0], sizes = [1, 206], strides = [1, 1]} : vector<1x256xf32> to vector<1x206xf32>
    %992 = tpu.concatenate %990, %991 in 1 : vector<1x50xf32>, vector<1x206xf32> -> vector<1x256xf32>
    %cst_325 = arith.constant 0.000000e+00 : f32
    %993 = vector.broadcast %cst_325 : f32 to vector<1x50xf32>
    %994 = vector.extract_strided_slice %814 {offsets = [0, 0], sizes = [1, 206], strides = [1, 1]} : vector<1x256xf32> to vector<1x206xf32>
    %995 = tpu.concatenate %993, %994 in 1 : vector<1x50xf32>, vector<1x206xf32> -> vector<1x256xf32>
    %c4_326 = arith.constant 4 : index
    %996 = memref.load %arg14[%c4_326] : memref<196xf32, #tpu.memory_space<smem>>
    %997 = vector.broadcast %996 : f32 to vector<1x256xf32>
    %998 = arith.mulf %992, %997 : vector<1x256xf32>
    %999 = arith.addf %988, %998 : vector<1x256xf32>
    %c6_327 = arith.constant 6 : index
    %1000 = memref.load %arg14[%c6_327] : memref<196xf32, #tpu.memory_space<smem>>
    %1001 = vector.broadcast %1000 : f32 to vector<1x256xf32>
    %1002 = arith.mulf %995, %1001 : vector<1x256xf32>
    %1003 = arith.addf %999, %1002 : vector<1x256xf32>
    %c5_328 = arith.constant 5 : index
    %1004 = memref.load %arg14[%c5_328] : memref<196xf32, #tpu.memory_space<smem>>
    %1005 = vector.broadcast %1004 : f32 to vector<1x256xf32>
    %1006 = arith.mulf %992, %1005 : vector<1x256xf32>
    %1007 = arith.addf %989, %1006 : vector<1x256xf32>
    %c7_329 = arith.constant 7 : index
    %1008 = memref.load %arg14[%c7_329] : memref<196xf32, #tpu.memory_space<smem>>
    %1009 = vector.broadcast %1008 : f32 to vector<1x256xf32>
    %1010 = arith.mulf %995, %1009 : vector<1x256xf32>
    %1011 = arith.addf %1007, %1010 : vector<1x256xf32>
    %cst_330 = arith.constant 0.000000e+00 : f32
    %1012 = vector.broadcast %cst_330 : f32 to vector<1x34xf32>
    %1013 = vector.extract_strided_slice %809 {offsets = [0, 0], sizes = [1, 222], strides = [1, 1]} : vector<1x256xf32> to vector<1x222xf32>
    %1014 = tpu.concatenate %1012, %1013 in 1 : vector<1x34xf32>, vector<1x222xf32> -> vector<1x256xf32>
    %cst_331 = arith.constant 0.000000e+00 : f32
    %1015 = vector.broadcast %cst_331 : f32 to vector<1x34xf32>
    %1016 = vector.extract_strided_slice %814 {offsets = [0, 0], sizes = [1, 222], strides = [1, 1]} : vector<1x256xf32> to vector<1x222xf32>
    %1017 = tpu.concatenate %1015, %1016 in 1 : vector<1x34xf32>, vector<1x222xf32> -> vector<1x256xf32>
    %c32_332 = arith.constant 32 : index
    %1018 = memref.load %arg14[%c32_332] : memref<196xf32, #tpu.memory_space<smem>>
    %1019 = vector.broadcast %1018 : f32 to vector<1x256xf32>
    %1020 = arith.mulf %1014, %1019 : vector<1x256xf32>
    %1021 = arith.addf %1003, %1020 : vector<1x256xf32>
    %c34_333 = arith.constant 34 : index
    %1022 = memref.load %arg14[%c34_333] : memref<196xf32, #tpu.memory_space<smem>>
    %1023 = vector.broadcast %1022 : f32 to vector<1x256xf32>
    %1024 = arith.mulf %1017, %1023 : vector<1x256xf32>
    %1025 = arith.addf %1021, %1024 : vector<1x256xf32>
    %c33_334 = arith.constant 33 : index
    %1026 = memref.load %arg14[%c33_334] : memref<196xf32, #tpu.memory_space<smem>>
    %1027 = vector.broadcast %1026 : f32 to vector<1x256xf32>
    %1028 = arith.mulf %1014, %1027 : vector<1x256xf32>
    %1029 = arith.addf %1011, %1028 : vector<1x256xf32>
    %c35_335 = arith.constant 35 : index
    %1030 = memref.load %arg14[%c35_335] : memref<196xf32, #tpu.memory_space<smem>>
    %1031 = vector.broadcast %1030 : f32 to vector<1x256xf32>
    %1032 = arith.mulf %1017, %1031 : vector<1x256xf32>
    %1033 = arith.addf %1029, %1032 : vector<1x256xf32>
    %cst_336 = arith.constant 0.000000e+00 : f32
    %1034 = vector.broadcast %cst_336 : f32 to vector<1x18xf32>
    %1035 = vector.extract_strided_slice %809 {offsets = [0, 0], sizes = [1, 238], strides = [1, 1]} : vector<1x256xf32> to vector<1x238xf32>
    %1036 = tpu.concatenate %1034, %1035 in 1 : vector<1x18xf32>, vector<1x238xf32> -> vector<1x256xf32>
    %cst_337 = arith.constant 0.000000e+00 : f32
    %1037 = vector.broadcast %cst_337 : f32 to vector<1x18xf32>
    %1038 = vector.extract_strided_slice %814 {offsets = [0, 0], sizes = [1, 238], strides = [1, 1]} : vector<1x256xf32> to vector<1x238xf32>
    %1039 = tpu.concatenate %1037, %1038 in 1 : vector<1x18xf32>, vector<1x238xf32> -> vector<1x256xf32>
    %c60 = arith.constant 60 : index
    %1040 = memref.load %arg14[%c60] : memref<196xf32, #tpu.memory_space<smem>>
    %1041 = vector.broadcast %1040 : f32 to vector<1x256xf32>
    %1042 = arith.mulf %1036, %1041 : vector<1x256xf32>
    %1043 = arith.addf %1025, %1042 : vector<1x256xf32>
    %c62 = arith.constant 62 : index
    %1044 = memref.load %arg14[%c62] : memref<196xf32, #tpu.memory_space<smem>>
    %1045 = vector.broadcast %1044 : f32 to vector<1x256xf32>
    %1046 = arith.mulf %1039, %1045 : vector<1x256xf32>
    %1047 = arith.addf %1043, %1046 : vector<1x256xf32>
    %c61 = arith.constant 61 : index
    %1048 = memref.load %arg14[%c61] : memref<196xf32, #tpu.memory_space<smem>>
    %1049 = vector.broadcast %1048 : f32 to vector<1x256xf32>
    %1050 = arith.mulf %1036, %1049 : vector<1x256xf32>
    %1051 = arith.addf %1033, %1050 : vector<1x256xf32>
    %c63 = arith.constant 63 : index
    %1052 = memref.load %arg14[%c63] : memref<196xf32, #tpu.memory_space<smem>>
    %1053 = vector.broadcast %1052 : f32 to vector<1x256xf32>
    %1054 = arith.mulf %1039, %1053 : vector<1x256xf32>
    %1055 = arith.addf %1051, %1054 : vector<1x256xf32>
    %cst_338 = arith.constant 0.000000e+00 : f32
    %1056 = vector.broadcast %cst_338 : f32 to vector<1x2xf32>
    %1057 = vector.extract_strided_slice %809 {offsets = [0, 0], sizes = [1, 254], strides = [1, 1]} : vector<1x256xf32> to vector<1x254xf32>
    %1058 = tpu.concatenate %1056, %1057 in 1 : vector<1x2xf32>, vector<1x254xf32> -> vector<1x256xf32>
    %cst_339 = arith.constant 0.000000e+00 : f32
    %1059 = vector.broadcast %cst_339 : f32 to vector<1x2xf32>
    %1060 = vector.extract_strided_slice %814 {offsets = [0, 0], sizes = [1, 254], strides = [1, 1]} : vector<1x256xf32> to vector<1x254xf32>
    %1061 = tpu.concatenate %1059, %1060 in 1 : vector<1x2xf32>, vector<1x254xf32> -> vector<1x256xf32>
    %c88 = arith.constant 88 : index
    %1062 = memref.load %arg14[%c88] : memref<196xf32, #tpu.memory_space<smem>>
    %1063 = vector.broadcast %1062 : f32 to vector<1x256xf32>
    %1064 = arith.mulf %1058, %1063 : vector<1x256xf32>
    %1065 = arith.addf %1047, %1064 : vector<1x256xf32>
    %c90 = arith.constant 90 : index
    %1066 = memref.load %arg14[%c90] : memref<196xf32, #tpu.memory_space<smem>>
    %1067 = vector.broadcast %1066 : f32 to vector<1x256xf32>
    %1068 = arith.mulf %1061, %1067 : vector<1x256xf32>
    %1069 = arith.addf %1065, %1068 : vector<1x256xf32>
    %c89 = arith.constant 89 : index
    %1070 = memref.load %arg14[%c89] : memref<196xf32, #tpu.memory_space<smem>>
    %1071 = vector.broadcast %1070 : f32 to vector<1x256xf32>
    %1072 = arith.mulf %1058, %1071 : vector<1x256xf32>
    %1073 = arith.addf %1055, %1072 : vector<1x256xf32>
    %c91 = arith.constant 91 : index
    %1074 = memref.load %arg14[%c91] : memref<196xf32, #tpu.memory_space<smem>>
    %1075 = vector.broadcast %1074 : f32 to vector<1x256xf32>
    %1076 = arith.mulf %1061, %1075 : vector<1x256xf32>
    %1077 = arith.addf %1073, %1076 : vector<1x256xf32>
    %cst_340 = arith.constant 0.000000e+00 : f32
    %1078 = vector.broadcast %cst_340 : f32 to vector<1x14xf32>
    %1079 = vector.extract_strided_slice %809 {offsets = [0, 14], sizes = [1, 242], strides = [1, 1]} : vector<1x256xf32> to vector<1x242xf32>
    %1080 = tpu.concatenate %1079, %1078 in 1 : vector<1x242xf32>, vector<1x14xf32> -> vector<1x256xf32>
    %cst_341 = arith.constant 0.000000e+00 : f32
    %1081 = vector.broadcast %cst_341 : f32 to vector<1x14xf32>
    %1082 = vector.extract_strided_slice %814 {offsets = [0, 14], sizes = [1, 242], strides = [1, 1]} : vector<1x256xf32> to vector<1x242xf32>
    %1083 = tpu.concatenate %1082, %1081 in 1 : vector<1x242xf32>, vector<1x14xf32> -> vector<1x256xf32>
    %c116 = arith.constant 116 : index
    %1084 = memref.load %arg14[%c116] : memref<196xf32, #tpu.memory_space<smem>>
    %1085 = vector.broadcast %1084 : f32 to vector<1x256xf32>
    %1086 = arith.mulf %1080, %1085 : vector<1x256xf32>
    %1087 = arith.addf %1069, %1086 : vector<1x256xf32>
    %c118 = arith.constant 118 : index
    %1088 = memref.load %arg14[%c118] : memref<196xf32, #tpu.memory_space<smem>>
    %1089 = vector.broadcast %1088 : f32 to vector<1x256xf32>
    %1090 = arith.mulf %1083, %1089 : vector<1x256xf32>
    %1091 = arith.addf %1087, %1090 : vector<1x256xf32>
    %c117 = arith.constant 117 : index
    %1092 = memref.load %arg14[%c117] : memref<196xf32, #tpu.memory_space<smem>>
    %1093 = vector.broadcast %1092 : f32 to vector<1x256xf32>
    %1094 = arith.mulf %1080, %1093 : vector<1x256xf32>
    %1095 = arith.addf %1077, %1094 : vector<1x256xf32>
    %c119 = arith.constant 119 : index
    %1096 = memref.load %arg14[%c119] : memref<196xf32, #tpu.memory_space<smem>>
    %1097 = vector.broadcast %1096 : f32 to vector<1x256xf32>
    %1098 = arith.mulf %1083, %1097 : vector<1x256xf32>
    %1099 = arith.addf %1095, %1098 : vector<1x256xf32>
    %cst_342 = arith.constant 0.000000e+00 : f32
    %1100 = vector.broadcast %cst_342 : f32 to vector<1x30xf32>
    %1101 = vector.extract_strided_slice %809 {offsets = [0, 30], sizes = [1, 226], strides = [1, 1]} : vector<1x256xf32> to vector<1x226xf32>
    %1102 = tpu.concatenate %1101, %1100 in 1 : vector<1x226xf32>, vector<1x30xf32> -> vector<1x256xf32>
    %cst_343 = arith.constant 0.000000e+00 : f32
    %1103 = vector.broadcast %cst_343 : f32 to vector<1x30xf32>
    %1104 = vector.extract_strided_slice %814 {offsets = [0, 30], sizes = [1, 226], strides = [1, 1]} : vector<1x256xf32> to vector<1x226xf32>
    %1105 = tpu.concatenate %1104, %1103 in 1 : vector<1x226xf32>, vector<1x30xf32> -> vector<1x256xf32>
    %c144 = arith.constant 144 : index
    %1106 = memref.load %arg14[%c144] : memref<196xf32, #tpu.memory_space<smem>>
    %1107 = vector.broadcast %1106 : f32 to vector<1x256xf32>
    %1108 = arith.mulf %1102, %1107 : vector<1x256xf32>
    %1109 = arith.addf %1091, %1108 : vector<1x256xf32>
    %c146 = arith.constant 146 : index
    %1110 = memref.load %arg14[%c146] : memref<196xf32, #tpu.memory_space<smem>>
    %1111 = vector.broadcast %1110 : f32 to vector<1x256xf32>
    %1112 = arith.mulf %1105, %1111 : vector<1x256xf32>
    %1113 = arith.addf %1109, %1112 : vector<1x256xf32>
    %c145 = arith.constant 145 : index
    %1114 = memref.load %arg14[%c145] : memref<196xf32, #tpu.memory_space<smem>>
    %1115 = vector.broadcast %1114 : f32 to vector<1x256xf32>
    %1116 = arith.mulf %1102, %1115 : vector<1x256xf32>
    %1117 = arith.addf %1099, %1116 : vector<1x256xf32>
    %c147 = arith.constant 147 : index
    %1118 = memref.load %arg14[%c147] : memref<196xf32, #tpu.memory_space<smem>>
    %1119 = vector.broadcast %1118 : f32 to vector<1x256xf32>
    %1120 = arith.mulf %1105, %1119 : vector<1x256xf32>
    %1121 = arith.addf %1117, %1120 : vector<1x256xf32>
    %cst_344 = arith.constant 0.000000e+00 : f32
    %1122 = vector.broadcast %cst_344 : f32 to vector<1x46xf32>
    %1123 = vector.extract_strided_slice %809 {offsets = [0, 46], sizes = [1, 210], strides = [1, 1]} : vector<1x256xf32> to vector<1x210xf32>
    %1124 = tpu.concatenate %1123, %1122 in 1 : vector<1x210xf32>, vector<1x46xf32> -> vector<1x256xf32>
    %cst_345 = arith.constant 0.000000e+00 : f32
    %1125 = vector.broadcast %cst_345 : f32 to vector<1x46xf32>
    %1126 = vector.extract_strided_slice %814 {offsets = [0, 46], sizes = [1, 210], strides = [1, 1]} : vector<1x256xf32> to vector<1x210xf32>
    %1127 = tpu.concatenate %1126, %1125 in 1 : vector<1x210xf32>, vector<1x46xf32> -> vector<1x256xf32>
    %c172 = arith.constant 172 : index
    %1128 = memref.load %arg14[%c172] : memref<196xf32, #tpu.memory_space<smem>>
    %1129 = vector.broadcast %1128 : f32 to vector<1x256xf32>
    %1130 = arith.mulf %1124, %1129 : vector<1x256xf32>
    %1131 = arith.addf %1113, %1130 : vector<1x256xf32>
    %c174 = arith.constant 174 : index
    %1132 = memref.load %arg14[%c174] : memref<196xf32, #tpu.memory_space<smem>>
    %1133 = vector.broadcast %1132 : f32 to vector<1x256xf32>
    %1134 = arith.mulf %1127, %1133 : vector<1x256xf32>
    %1135 = arith.addf %1131, %1134 : vector<1x256xf32>
    %c173 = arith.constant 173 : index
    %1136 = memref.load %arg14[%c173] : memref<196xf32, #tpu.memory_space<smem>>
    %1137 = vector.broadcast %1136 : f32 to vector<1x256xf32>
    %1138 = arith.mulf %1124, %1137 : vector<1x256xf32>
    %1139 = arith.addf %1121, %1138 : vector<1x256xf32>
    %c175 = arith.constant 175 : index
    %1140 = memref.load %arg14[%c175] : memref<196xf32, #tpu.memory_space<smem>>
    %1141 = vector.broadcast %1140 : f32 to vector<1x256xf32>
    %1142 = arith.mulf %1127, %1141 : vector<1x256xf32>
    %1143 = arith.addf %1139, %1142 : vector<1x256xf32>
    %c-2_i32_346 = arith.constant -2 : i32
    %1144 = vector.broadcast %c-2_i32_346 : i32 to vector<1x256xi32>
    %1145 = arith.addi %18, %1144 : vector<1x256xi32>
    %c0_i32_347 = arith.constant 0 : i32
    %1146 = vector.broadcast %c0_i32_347 : i32 to vector<1x256xi32>
    %1147 = arith.cmpi sge, %1145, %1146 : vector<1x256xi32>
    %c-2_i32_348 = arith.constant -2 : i32
    %1148 = vector.broadcast %c-2_i32_348 : i32 to vector<1x256xi32>
    %1149 = arith.addi %18, %1148 : vector<1x256xi32>
    %c16_i32_349 = arith.constant 16 : i32
    %1150 = vector.broadcast %c16_i32_349 : i32 to vector<1x256xi32>
    %1151 = arith.cmpi slt, %1149, %1150 : vector<1x256xi32>
    %1152 = arith.andi %1147, %1151 : vector<1x256xi1>
    %cst_350 = arith.constant 0.000000e+00 : f32
    %1153 = vector.broadcast %cst_350 : f32 to vector<1x256xf32>
    %1154 = arith.select %1152, %1135, %1153 : vector<1x256xi1>, vector<1x256xf32>
    %1155 = arith.addf %984, %1154 : vector<1x256xf32>
    %cst_351 = arith.constant 0.000000e+00 : f32
    %1156 = vector.broadcast %cst_351 : f32 to vector<1x256xf32>
    %1157 = arith.select %1152, %1143, %1156 : vector<1x256xi1>, vector<1x256xf32>
    %1158 = arith.addf %987, %1157 : vector<1x256xf32>
    %cst_352 = arith.constant 0.000000e+00 : f32
    %1159 = vector.broadcast %cst_352 : f32 to vector<1x256xf32>
    %cst_353 = arith.constant 0.000000e+00 : f32
    %1160 = vector.broadcast %cst_353 : f32 to vector<1x256xf32>
    %cst_354 = arith.constant 0.000000e+00 : f32
    %1161 = vector.broadcast %cst_354 : f32 to vector<1x49xf32>
    %1162 = vector.extract_strided_slice %809 {offsets = [0, 0], sizes = [1, 207], strides = [1, 1]} : vector<1x256xf32> to vector<1x207xf32>
    %1163 = tpu.concatenate %1161, %1162 in 1 : vector<1x49xf32>, vector<1x207xf32> -> vector<1x256xf32>
    %cst_355 = arith.constant 0.000000e+00 : f32
    %1164 = vector.broadcast %cst_355 : f32 to vector<1x49xf32>
    %1165 = vector.extract_strided_slice %814 {offsets = [0, 0], sizes = [1, 207], strides = [1, 1]} : vector<1x256xf32> to vector<1x207xf32>
    %1166 = tpu.concatenate %1164, %1165 in 1 : vector<1x49xf32>, vector<1x207xf32> -> vector<1x256xf32>
    %c8_356 = arith.constant 8 : index
    %1167 = memref.load %arg14[%c8_356] : memref<196xf32, #tpu.memory_space<smem>>
    %1168 = vector.broadcast %1167 : f32 to vector<1x256xf32>
    %1169 = arith.mulf %1163, %1168 : vector<1x256xf32>
    %1170 = arith.addf %1159, %1169 : vector<1x256xf32>
    %c10_357 = arith.constant 10 : index
    %1171 = memref.load %arg14[%c10_357] : memref<196xf32, #tpu.memory_space<smem>>
    %1172 = vector.broadcast %1171 : f32 to vector<1x256xf32>
    %1173 = arith.mulf %1166, %1172 : vector<1x256xf32>
    %1174 = arith.addf %1170, %1173 : vector<1x256xf32>
    %c9_358 = arith.constant 9 : index
    %1175 = memref.load %arg14[%c9_358] : memref<196xf32, #tpu.memory_space<smem>>
    %1176 = vector.broadcast %1175 : f32 to vector<1x256xf32>
    %1177 = arith.mulf %1163, %1176 : vector<1x256xf32>
    %1178 = arith.addf %1160, %1177 : vector<1x256xf32>
    %c11_359 = arith.constant 11 : index
    %1179 = memref.load %arg14[%c11_359] : memref<196xf32, #tpu.memory_space<smem>>
    %1180 = vector.broadcast %1179 : f32 to vector<1x256xf32>
    %1181 = arith.mulf %1166, %1180 : vector<1x256xf32>
    %1182 = arith.addf %1178, %1181 : vector<1x256xf32>
    %cst_360 = arith.constant 0.000000e+00 : f32
    %1183 = vector.broadcast %cst_360 : f32 to vector<1x33xf32>
    %1184 = vector.extract_strided_slice %809 {offsets = [0, 0], sizes = [1, 223], strides = [1, 1]} : vector<1x256xf32> to vector<1x223xf32>
    %1185 = tpu.concatenate %1183, %1184 in 1 : vector<1x33xf32>, vector<1x223xf32> -> vector<1x256xf32>
    %cst_361 = arith.constant 0.000000e+00 : f32
    %1186 = vector.broadcast %cst_361 : f32 to vector<1x33xf32>
    %1187 = vector.extract_strided_slice %814 {offsets = [0, 0], sizes = [1, 223], strides = [1, 1]} : vector<1x256xf32> to vector<1x223xf32>
    %1188 = tpu.concatenate %1186, %1187 in 1 : vector<1x33xf32>, vector<1x223xf32> -> vector<1x256xf32>
    %c36_362 = arith.constant 36 : index
    %1189 = memref.load %arg14[%c36_362] : memref<196xf32, #tpu.memory_space<smem>>
    %1190 = vector.broadcast %1189 : f32 to vector<1x256xf32>
    %1191 = arith.mulf %1185, %1190 : vector<1x256xf32>
    %1192 = arith.addf %1174, %1191 : vector<1x256xf32>
    %c38_363 = arith.constant 38 : index
    %1193 = memref.load %arg14[%c38_363] : memref<196xf32, #tpu.memory_space<smem>>
    %1194 = vector.broadcast %1193 : f32 to vector<1x256xf32>
    %1195 = arith.mulf %1188, %1194 : vector<1x256xf32>
    %1196 = arith.addf %1192, %1195 : vector<1x256xf32>
    %c37_364 = arith.constant 37 : index
    %1197 = memref.load %arg14[%c37_364] : memref<196xf32, #tpu.memory_space<smem>>
    %1198 = vector.broadcast %1197 : f32 to vector<1x256xf32>
    %1199 = arith.mulf %1185, %1198 : vector<1x256xf32>
    %1200 = arith.addf %1182, %1199 : vector<1x256xf32>
    %c39_365 = arith.constant 39 : index
    %1201 = memref.load %arg14[%c39_365] : memref<196xf32, #tpu.memory_space<smem>>
    %1202 = vector.broadcast %1201 : f32 to vector<1x256xf32>
    %1203 = arith.mulf %1188, %1202 : vector<1x256xf32>
    %1204 = arith.addf %1200, %1203 : vector<1x256xf32>
    %cst_366 = arith.constant 0.000000e+00 : f32
    %1205 = vector.broadcast %cst_366 : f32 to vector<1x17xf32>
    %1206 = vector.extract_strided_slice %809 {offsets = [0, 0], sizes = [1, 239], strides = [1, 1]} : vector<1x256xf32> to vector<1x239xf32>
    %1207 = tpu.concatenate %1205, %1206 in 1 : vector<1x17xf32>, vector<1x239xf32> -> vector<1x256xf32>
    %cst_367 = arith.constant 0.000000e+00 : f32
    %1208 = vector.broadcast %cst_367 : f32 to vector<1x17xf32>
    %1209 = vector.extract_strided_slice %814 {offsets = [0, 0], sizes = [1, 239], strides = [1, 1]} : vector<1x256xf32> to vector<1x239xf32>
    %1210 = tpu.concatenate %1208, %1209 in 1 : vector<1x17xf32>, vector<1x239xf32> -> vector<1x256xf32>
    %c64 = arith.constant 64 : index
    %1211 = memref.load %arg14[%c64] : memref<196xf32, #tpu.memory_space<smem>>
    %1212 = vector.broadcast %1211 : f32 to vector<1x256xf32>
    %1213 = arith.mulf %1207, %1212 : vector<1x256xf32>
    %1214 = arith.addf %1196, %1213 : vector<1x256xf32>
    %c66 = arith.constant 66 : index
    %1215 = memref.load %arg14[%c66] : memref<196xf32, #tpu.memory_space<smem>>
    %1216 = vector.broadcast %1215 : f32 to vector<1x256xf32>
    %1217 = arith.mulf %1210, %1216 : vector<1x256xf32>
    %1218 = arith.addf %1214, %1217 : vector<1x256xf32>
    %c65 = arith.constant 65 : index
    %1219 = memref.load %arg14[%c65] : memref<196xf32, #tpu.memory_space<smem>>
    %1220 = vector.broadcast %1219 : f32 to vector<1x256xf32>
    %1221 = arith.mulf %1207, %1220 : vector<1x256xf32>
    %1222 = arith.addf %1204, %1221 : vector<1x256xf32>
    %c67 = arith.constant 67 : index
    %1223 = memref.load %arg14[%c67] : memref<196xf32, #tpu.memory_space<smem>>
    %1224 = vector.broadcast %1223 : f32 to vector<1x256xf32>
    %1225 = arith.mulf %1210, %1224 : vector<1x256xf32>
    %1226 = arith.addf %1222, %1225 : vector<1x256xf32>
    %cst_368 = arith.constant 0.000000e+00 : f32
    %1227 = vector.broadcast %cst_368 : f32 to vector<1x1xf32>
    %1228 = vector.extract_strided_slice %809 {offsets = [0, 0], sizes = [1, 255], strides = [1, 1]} : vector<1x256xf32> to vector<1x255xf32>
    %1229 = tpu.concatenate %1227, %1228 in 1 : vector<1x1xf32>, vector<1x255xf32> -> vector<1x256xf32>
    %cst_369 = arith.constant 0.000000e+00 : f32
    %1230 = vector.broadcast %cst_369 : f32 to vector<1x1xf32>
    %1231 = vector.extract_strided_slice %814 {offsets = [0, 0], sizes = [1, 255], strides = [1, 1]} : vector<1x256xf32> to vector<1x255xf32>
    %1232 = tpu.concatenate %1230, %1231 in 1 : vector<1x1xf32>, vector<1x255xf32> -> vector<1x256xf32>
    %c92 = arith.constant 92 : index
    %1233 = memref.load %arg14[%c92] : memref<196xf32, #tpu.memory_space<smem>>
    %1234 = vector.broadcast %1233 : f32 to vector<1x256xf32>
    %1235 = arith.mulf %1229, %1234 : vector<1x256xf32>
    %1236 = arith.addf %1218, %1235 : vector<1x256xf32>
    %c94 = arith.constant 94 : index
    %1237 = memref.load %arg14[%c94] : memref<196xf32, #tpu.memory_space<smem>>
    %1238 = vector.broadcast %1237 : f32 to vector<1x256xf32>
    %1239 = arith.mulf %1232, %1238 : vector<1x256xf32>
    %1240 = arith.addf %1236, %1239 : vector<1x256xf32>
    %c93 = arith.constant 93 : index
    %1241 = memref.load %arg14[%c93] : memref<196xf32, #tpu.memory_space<smem>>
    %1242 = vector.broadcast %1241 : f32 to vector<1x256xf32>
    %1243 = arith.mulf %1229, %1242 : vector<1x256xf32>
    %1244 = arith.addf %1226, %1243 : vector<1x256xf32>
    %c95 = arith.constant 95 : index
    %1245 = memref.load %arg14[%c95] : memref<196xf32, #tpu.memory_space<smem>>
    %1246 = vector.broadcast %1245 : f32 to vector<1x256xf32>
    %1247 = arith.mulf %1232, %1246 : vector<1x256xf32>
    %1248 = arith.addf %1244, %1247 : vector<1x256xf32>
    %cst_370 = arith.constant 0.000000e+00 : f32
    %1249 = vector.broadcast %cst_370 : f32 to vector<1x15xf32>
    %1250 = vector.extract_strided_slice %809 {offsets = [0, 15], sizes = [1, 241], strides = [1, 1]} : vector<1x256xf32> to vector<1x241xf32>
    %1251 = tpu.concatenate %1250, %1249 in 1 : vector<1x241xf32>, vector<1x15xf32> -> vector<1x256xf32>
    %cst_371 = arith.constant 0.000000e+00 : f32
    %1252 = vector.broadcast %cst_371 : f32 to vector<1x15xf32>
    %1253 = vector.extract_strided_slice %814 {offsets = [0, 15], sizes = [1, 241], strides = [1, 1]} : vector<1x256xf32> to vector<1x241xf32>
    %1254 = tpu.concatenate %1253, %1252 in 1 : vector<1x241xf32>, vector<1x15xf32> -> vector<1x256xf32>
    %c120 = arith.constant 120 : index
    %1255 = memref.load %arg14[%c120] : memref<196xf32, #tpu.memory_space<smem>>
    %1256 = vector.broadcast %1255 : f32 to vector<1x256xf32>
    %1257 = arith.mulf %1251, %1256 : vector<1x256xf32>
    %1258 = arith.addf %1240, %1257 : vector<1x256xf32>
    %c122 = arith.constant 122 : index
    %1259 = memref.load %arg14[%c122] : memref<196xf32, #tpu.memory_space<smem>>
    %1260 = vector.broadcast %1259 : f32 to vector<1x256xf32>
    %1261 = arith.mulf %1254, %1260 : vector<1x256xf32>
    %1262 = arith.addf %1258, %1261 : vector<1x256xf32>
    %c121 = arith.constant 121 : index
    %1263 = memref.load %arg14[%c121] : memref<196xf32, #tpu.memory_space<smem>>
    %1264 = vector.broadcast %1263 : f32 to vector<1x256xf32>
    %1265 = arith.mulf %1251, %1264 : vector<1x256xf32>
    %1266 = arith.addf %1248, %1265 : vector<1x256xf32>
    %c123 = arith.constant 123 : index
    %1267 = memref.load %arg14[%c123] : memref<196xf32, #tpu.memory_space<smem>>
    %1268 = vector.broadcast %1267 : f32 to vector<1x256xf32>
    %1269 = arith.mulf %1254, %1268 : vector<1x256xf32>
    %1270 = arith.addf %1266, %1269 : vector<1x256xf32>
    %cst_372 = arith.constant 0.000000e+00 : f32
    %1271 = vector.broadcast %cst_372 : f32 to vector<1x31xf32>
    %1272 = vector.extract_strided_slice %809 {offsets = [0, 31], sizes = [1, 225], strides = [1, 1]} : vector<1x256xf32> to vector<1x225xf32>
    %1273 = tpu.concatenate %1272, %1271 in 1 : vector<1x225xf32>, vector<1x31xf32> -> vector<1x256xf32>
    %cst_373 = arith.constant 0.000000e+00 : f32
    %1274 = vector.broadcast %cst_373 : f32 to vector<1x31xf32>
    %1275 = vector.extract_strided_slice %814 {offsets = [0, 31], sizes = [1, 225], strides = [1, 1]} : vector<1x256xf32> to vector<1x225xf32>
    %1276 = tpu.concatenate %1275, %1274 in 1 : vector<1x225xf32>, vector<1x31xf32> -> vector<1x256xf32>
    %c148 = arith.constant 148 : index
    %1277 = memref.load %arg14[%c148] : memref<196xf32, #tpu.memory_space<smem>>
    %1278 = vector.broadcast %1277 : f32 to vector<1x256xf32>
    %1279 = arith.mulf %1273, %1278 : vector<1x256xf32>
    %1280 = arith.addf %1262, %1279 : vector<1x256xf32>
    %c150 = arith.constant 150 : index
    %1281 = memref.load %arg14[%c150] : memref<196xf32, #tpu.memory_space<smem>>
    %1282 = vector.broadcast %1281 : f32 to vector<1x256xf32>
    %1283 = arith.mulf %1276, %1282 : vector<1x256xf32>
    %1284 = arith.addf %1280, %1283 : vector<1x256xf32>
    %c149 = arith.constant 149 : index
    %1285 = memref.load %arg14[%c149] : memref<196xf32, #tpu.memory_space<smem>>
    %1286 = vector.broadcast %1285 : f32 to vector<1x256xf32>
    %1287 = arith.mulf %1273, %1286 : vector<1x256xf32>
    %1288 = arith.addf %1270, %1287 : vector<1x256xf32>
    %c151 = arith.constant 151 : index
    %1289 = memref.load %arg14[%c151] : memref<196xf32, #tpu.memory_space<smem>>
    %1290 = vector.broadcast %1289 : f32 to vector<1x256xf32>
    %1291 = arith.mulf %1276, %1290 : vector<1x256xf32>
    %1292 = arith.addf %1288, %1291 : vector<1x256xf32>
    %cst_374 = arith.constant 0.000000e+00 : f32
    %1293 = vector.broadcast %cst_374 : f32 to vector<1x47xf32>
    %1294 = vector.extract_strided_slice %809 {offsets = [0, 47], sizes = [1, 209], strides = [1, 1]} : vector<1x256xf32> to vector<1x209xf32>
    %1295 = tpu.concatenate %1294, %1293 in 1 : vector<1x209xf32>, vector<1x47xf32> -> vector<1x256xf32>
    %cst_375 = arith.constant 0.000000e+00 : f32
    %1296 = vector.broadcast %cst_375 : f32 to vector<1x47xf32>
    %1297 = vector.extract_strided_slice %814 {offsets = [0, 47], sizes = [1, 209], strides = [1, 1]} : vector<1x256xf32> to vector<1x209xf32>
    %1298 = tpu.concatenate %1297, %1296 in 1 : vector<1x209xf32>, vector<1x47xf32> -> vector<1x256xf32>
    %c176 = arith.constant 176 : index
    %1299 = memref.load %arg14[%c176] : memref<196xf32, #tpu.memory_space<smem>>
    %1300 = vector.broadcast %1299 : f32 to vector<1x256xf32>
    %1301 = arith.mulf %1295, %1300 : vector<1x256xf32>
    %1302 = arith.addf %1284, %1301 : vector<1x256xf32>
    %c178 = arith.constant 178 : index
    %1303 = memref.load %arg14[%c178] : memref<196xf32, #tpu.memory_space<smem>>
    %1304 = vector.broadcast %1303 : f32 to vector<1x256xf32>
    %1305 = arith.mulf %1298, %1304 : vector<1x256xf32>
    %1306 = arith.addf %1302, %1305 : vector<1x256xf32>
    %c177 = arith.constant 177 : index
    %1307 = memref.load %arg14[%c177] : memref<196xf32, #tpu.memory_space<smem>>
    %1308 = vector.broadcast %1307 : f32 to vector<1x256xf32>
    %1309 = arith.mulf %1295, %1308 : vector<1x256xf32>
    %1310 = arith.addf %1292, %1309 : vector<1x256xf32>
    %c179 = arith.constant 179 : index
    %1311 = memref.load %arg14[%c179] : memref<196xf32, #tpu.memory_space<smem>>
    %1312 = vector.broadcast %1311 : f32 to vector<1x256xf32>
    %1313 = arith.mulf %1298, %1312 : vector<1x256xf32>
    %1314 = arith.addf %1310, %1313 : vector<1x256xf32>
    %c-1_i32_376 = arith.constant -1 : i32
    %1315 = vector.broadcast %c-1_i32_376 : i32 to vector<1x256xi32>
    %1316 = arith.addi %18, %1315 : vector<1x256xi32>
    %c0_i32_377 = arith.constant 0 : i32
    %1317 = vector.broadcast %c0_i32_377 : i32 to vector<1x256xi32>
    %1318 = arith.cmpi sge, %1316, %1317 : vector<1x256xi32>
    %c-1_i32_378 = arith.constant -1 : i32
    %1319 = vector.broadcast %c-1_i32_378 : i32 to vector<1x256xi32>
    %1320 = arith.addi %18, %1319 : vector<1x256xi32>
    %c16_i32_379 = arith.constant 16 : i32
    %1321 = vector.broadcast %c16_i32_379 : i32 to vector<1x256xi32>
    %1322 = arith.cmpi slt, %1320, %1321 : vector<1x256xi32>
    %1323 = arith.andi %1318, %1322 : vector<1x256xi1>
    %cst_380 = arith.constant 0.000000e+00 : f32
    %1324 = vector.broadcast %cst_380 : f32 to vector<1x256xf32>
    %1325 = arith.select %1323, %1306, %1324 : vector<1x256xi1>, vector<1x256xf32>
    %1326 = arith.addf %1155, %1325 : vector<1x256xf32>
    %cst_381 = arith.constant 0.000000e+00 : f32
    %1327 = vector.broadcast %cst_381 : f32 to vector<1x256xf32>
    %1328 = arith.select %1323, %1314, %1327 : vector<1x256xi1>, vector<1x256xf32>
    %1329 = arith.addf %1158, %1328 : vector<1x256xf32>
    %cst_382 = arith.constant 0.000000e+00 : f32
    %1330 = vector.broadcast %cst_382 : f32 to vector<1x256xf32>
    %cst_383 = arith.constant 0.000000e+00 : f32
    %1331 = vector.broadcast %cst_383 : f32 to vector<1x256xf32>
    %cst_384 = arith.constant 0.000000e+00 : f32
    %1332 = vector.broadcast %cst_384 : f32 to vector<1x48xf32>
    %1333 = vector.extract_strided_slice %809 {offsets = [0, 0], sizes = [1, 208], strides = [1, 1]} : vector<1x256xf32> to vector<1x208xf32>
    %1334 = tpu.concatenate %1332, %1333 in 1 : vector<1x48xf32>, vector<1x208xf32> -> vector<1x256xf32>
    %cst_385 = arith.constant 0.000000e+00 : f32
    %1335 = vector.broadcast %cst_385 : f32 to vector<1x48xf32>
    %1336 = vector.extract_strided_slice %814 {offsets = [0, 0], sizes = [1, 208], strides = [1, 1]} : vector<1x256xf32> to vector<1x208xf32>
    %1337 = tpu.concatenate %1335, %1336 in 1 : vector<1x48xf32>, vector<1x208xf32> -> vector<1x256xf32>
    %c12_386 = arith.constant 12 : index
    %1338 = memref.load %arg14[%c12_386] : memref<196xf32, #tpu.memory_space<smem>>
    %1339 = vector.broadcast %1338 : f32 to vector<1x256xf32>
    %1340 = arith.mulf %1334, %1339 : vector<1x256xf32>
    %1341 = arith.addf %1330, %1340 : vector<1x256xf32>
    %c14_387 = arith.constant 14 : index
    %1342 = memref.load %arg14[%c14_387] : memref<196xf32, #tpu.memory_space<smem>>
    %1343 = vector.broadcast %1342 : f32 to vector<1x256xf32>
    %1344 = arith.mulf %1337, %1343 : vector<1x256xf32>
    %1345 = arith.addf %1341, %1344 : vector<1x256xf32>
    %c13_388 = arith.constant 13 : index
    %1346 = memref.load %arg14[%c13_388] : memref<196xf32, #tpu.memory_space<smem>>
    %1347 = vector.broadcast %1346 : f32 to vector<1x256xf32>
    %1348 = arith.mulf %1334, %1347 : vector<1x256xf32>
    %1349 = arith.addf %1331, %1348 : vector<1x256xf32>
    %c15_389 = arith.constant 15 : index
    %1350 = memref.load %arg14[%c15_389] : memref<196xf32, #tpu.memory_space<smem>>
    %1351 = vector.broadcast %1350 : f32 to vector<1x256xf32>
    %1352 = arith.mulf %1337, %1351 : vector<1x256xf32>
    %1353 = arith.addf %1349, %1352 : vector<1x256xf32>
    %cst_390 = arith.constant 0.000000e+00 : f32
    %1354 = vector.broadcast %cst_390 : f32 to vector<1x32xf32>
    %1355 = vector.extract_strided_slice %809 {offsets = [0, 0], sizes = [1, 224], strides = [1, 1]} : vector<1x256xf32> to vector<1x224xf32>
    %1356 = tpu.concatenate %1354, %1355 in 1 : vector<1x32xf32>, vector<1x224xf32> -> vector<1x256xf32>
    %cst_391 = arith.constant 0.000000e+00 : f32
    %1357 = vector.broadcast %cst_391 : f32 to vector<1x32xf32>
    %1358 = vector.extract_strided_slice %814 {offsets = [0, 0], sizes = [1, 224], strides = [1, 1]} : vector<1x256xf32> to vector<1x224xf32>
    %1359 = tpu.concatenate %1357, %1358 in 1 : vector<1x32xf32>, vector<1x224xf32> -> vector<1x256xf32>
    %c40_392 = arith.constant 40 : index
    %1360 = memref.load %arg14[%c40_392] : memref<196xf32, #tpu.memory_space<smem>>
    %1361 = vector.broadcast %1360 : f32 to vector<1x256xf32>
    %1362 = arith.mulf %1356, %1361 : vector<1x256xf32>
    %1363 = arith.addf %1345, %1362 : vector<1x256xf32>
    %c42_393 = arith.constant 42 : index
    %1364 = memref.load %arg14[%c42_393] : memref<196xf32, #tpu.memory_space<smem>>
    %1365 = vector.broadcast %1364 : f32 to vector<1x256xf32>
    %1366 = arith.mulf %1359, %1365 : vector<1x256xf32>
    %1367 = arith.addf %1363, %1366 : vector<1x256xf32>
    %c41_394 = arith.constant 41 : index
    %1368 = memref.load %arg14[%c41_394] : memref<196xf32, #tpu.memory_space<smem>>
    %1369 = vector.broadcast %1368 : f32 to vector<1x256xf32>
    %1370 = arith.mulf %1356, %1369 : vector<1x256xf32>
    %1371 = arith.addf %1353, %1370 : vector<1x256xf32>
    %c43_395 = arith.constant 43 : index
    %1372 = memref.load %arg14[%c43_395] : memref<196xf32, #tpu.memory_space<smem>>
    %1373 = vector.broadcast %1372 : f32 to vector<1x256xf32>
    %1374 = arith.mulf %1359, %1373 : vector<1x256xf32>
    %1375 = arith.addf %1371, %1374 : vector<1x256xf32>
    %cst_396 = arith.constant 0.000000e+00 : f32
    %1376 = vector.broadcast %cst_396 : f32 to vector<1x16xf32>
    %1377 = vector.extract_strided_slice %809 {offsets = [0, 0], sizes = [1, 240], strides = [1, 1]} : vector<1x256xf32> to vector<1x240xf32>
    %1378 = tpu.concatenate %1376, %1377 in 1 : vector<1x16xf32>, vector<1x240xf32> -> vector<1x256xf32>
    %cst_397 = arith.constant 0.000000e+00 : f32
    %1379 = vector.broadcast %cst_397 : f32 to vector<1x16xf32>
    %1380 = vector.extract_strided_slice %814 {offsets = [0, 0], sizes = [1, 240], strides = [1, 1]} : vector<1x256xf32> to vector<1x240xf32>
    %1381 = tpu.concatenate %1379, %1380 in 1 : vector<1x16xf32>, vector<1x240xf32> -> vector<1x256xf32>
    %c68 = arith.constant 68 : index
    %1382 = memref.load %arg14[%c68] : memref<196xf32, #tpu.memory_space<smem>>
    %1383 = vector.broadcast %1382 : f32 to vector<1x256xf32>
    %1384 = arith.mulf %1378, %1383 : vector<1x256xf32>
    %1385 = arith.addf %1367, %1384 : vector<1x256xf32>
    %c70 = arith.constant 70 : index
    %1386 = memref.load %arg14[%c70] : memref<196xf32, #tpu.memory_space<smem>>
    %1387 = vector.broadcast %1386 : f32 to vector<1x256xf32>
    %1388 = arith.mulf %1381, %1387 : vector<1x256xf32>
    %1389 = arith.addf %1385, %1388 : vector<1x256xf32>
    %c69 = arith.constant 69 : index
    %1390 = memref.load %arg14[%c69] : memref<196xf32, #tpu.memory_space<smem>>
    %1391 = vector.broadcast %1390 : f32 to vector<1x256xf32>
    %1392 = arith.mulf %1378, %1391 : vector<1x256xf32>
    %1393 = arith.addf %1375, %1392 : vector<1x256xf32>
    %c71 = arith.constant 71 : index
    %1394 = memref.load %arg14[%c71] : memref<196xf32, #tpu.memory_space<smem>>
    %1395 = vector.broadcast %1394 : f32 to vector<1x256xf32>
    %1396 = arith.mulf %1381, %1395 : vector<1x256xf32>
    %1397 = arith.addf %1393, %1396 : vector<1x256xf32>
    %c96 = arith.constant 96 : index
    %1398 = memref.load %arg14[%c96] : memref<196xf32, #tpu.memory_space<smem>>
    %1399 = vector.broadcast %1398 : f32 to vector<1x256xf32>
    %1400 = arith.mulf %809, %1399 : vector<1x256xf32>
    %1401 = arith.addf %1389, %1400 : vector<1x256xf32>
    %c98 = arith.constant 98 : index
    %1402 = memref.load %arg14[%c98] : memref<196xf32, #tpu.memory_space<smem>>
    %1403 = vector.broadcast %1402 : f32 to vector<1x256xf32>
    %1404 = arith.mulf %814, %1403 : vector<1x256xf32>
    %1405 = arith.addf %1401, %1404 : vector<1x256xf32>
    %c97 = arith.constant 97 : index
    %1406 = memref.load %arg14[%c97] : memref<196xf32, #tpu.memory_space<smem>>
    %1407 = vector.broadcast %1406 : f32 to vector<1x256xf32>
    %1408 = arith.mulf %809, %1407 : vector<1x256xf32>
    %1409 = arith.addf %1397, %1408 : vector<1x256xf32>
    %c99 = arith.constant 99 : index
    %1410 = memref.load %arg14[%c99] : memref<196xf32, #tpu.memory_space<smem>>
    %1411 = vector.broadcast %1410 : f32 to vector<1x256xf32>
    %1412 = arith.mulf %814, %1411 : vector<1x256xf32>
    %1413 = arith.addf %1409, %1412 : vector<1x256xf32>
    %cst_398 = arith.constant 0.000000e+00 : f32
    %1414 = vector.broadcast %cst_398 : f32 to vector<1x16xf32>
    %1415 = vector.extract_strided_slice %809 {offsets = [0, 16], sizes = [1, 240], strides = [1, 1]} : vector<1x256xf32> to vector<1x240xf32>
    %1416 = tpu.concatenate %1415, %1414 in 1 : vector<1x240xf32>, vector<1x16xf32> -> vector<1x256xf32>
    %cst_399 = arith.constant 0.000000e+00 : f32
    %1417 = vector.broadcast %cst_399 : f32 to vector<1x16xf32>
    %1418 = vector.extract_strided_slice %814 {offsets = [0, 16], sizes = [1, 240], strides = [1, 1]} : vector<1x256xf32> to vector<1x240xf32>
    %1419 = tpu.concatenate %1418, %1417 in 1 : vector<1x240xf32>, vector<1x16xf32> -> vector<1x256xf32>
    %c124 = arith.constant 124 : index
    %1420 = memref.load %arg14[%c124] : memref<196xf32, #tpu.memory_space<smem>>
    %1421 = vector.broadcast %1420 : f32 to vector<1x256xf32>
    %1422 = arith.mulf %1416, %1421 : vector<1x256xf32>
    %1423 = arith.addf %1405, %1422 : vector<1x256xf32>
    %c126 = arith.constant 126 : index
    %1424 = memref.load %arg14[%c126] : memref<196xf32, #tpu.memory_space<smem>>
    %1425 = vector.broadcast %1424 : f32 to vector<1x256xf32>
    %1426 = arith.mulf %1419, %1425 : vector<1x256xf32>
    %1427 = arith.addf %1423, %1426 : vector<1x256xf32>
    %c125 = arith.constant 125 : index
    %1428 = memref.load %arg14[%c125] : memref<196xf32, #tpu.memory_space<smem>>
    %1429 = vector.broadcast %1428 : f32 to vector<1x256xf32>
    %1430 = arith.mulf %1416, %1429 : vector<1x256xf32>
    %1431 = arith.addf %1413, %1430 : vector<1x256xf32>
    %c127 = arith.constant 127 : index
    %1432 = memref.load %arg14[%c127] : memref<196xf32, #tpu.memory_space<smem>>
    %1433 = vector.broadcast %1432 : f32 to vector<1x256xf32>
    %1434 = arith.mulf %1419, %1433 : vector<1x256xf32>
    %1435 = arith.addf %1431, %1434 : vector<1x256xf32>
    %cst_400 = arith.constant 0.000000e+00 : f32
    %1436 = vector.broadcast %cst_400 : f32 to vector<1x32xf32>
    %1437 = vector.extract_strided_slice %809 {offsets = [0, 32], sizes = [1, 224], strides = [1, 1]} : vector<1x256xf32> to vector<1x224xf32>
    %1438 = tpu.concatenate %1437, %1436 in 1 : vector<1x224xf32>, vector<1x32xf32> -> vector<1x256xf32>
    %cst_401 = arith.constant 0.000000e+00 : f32
    %1439 = vector.broadcast %cst_401 : f32 to vector<1x32xf32>
    %1440 = vector.extract_strided_slice %814 {offsets = [0, 32], sizes = [1, 224], strides = [1, 1]} : vector<1x256xf32> to vector<1x224xf32>
    %1441 = tpu.concatenate %1440, %1439 in 1 : vector<1x224xf32>, vector<1x32xf32> -> vector<1x256xf32>
    %c152 = arith.constant 152 : index
    %1442 = memref.load %arg14[%c152] : memref<196xf32, #tpu.memory_space<smem>>
    %1443 = vector.broadcast %1442 : f32 to vector<1x256xf32>
    %1444 = arith.mulf %1438, %1443 : vector<1x256xf32>
    %1445 = arith.addf %1427, %1444 : vector<1x256xf32>
    %c154 = arith.constant 154 : index
    %1446 = memref.load %arg14[%c154] : memref<196xf32, #tpu.memory_space<smem>>
    %1447 = vector.broadcast %1446 : f32 to vector<1x256xf32>
    %1448 = arith.mulf %1441, %1447 : vector<1x256xf32>
    %1449 = arith.addf %1445, %1448 : vector<1x256xf32>
    %c153 = arith.constant 153 : index
    %1450 = memref.load %arg14[%c153] : memref<196xf32, #tpu.memory_space<smem>>
    %1451 = vector.broadcast %1450 : f32 to vector<1x256xf32>
    %1452 = arith.mulf %1438, %1451 : vector<1x256xf32>
    %1453 = arith.addf %1435, %1452 : vector<1x256xf32>
    %c155 = arith.constant 155 : index
    %1454 = memref.load %arg14[%c155] : memref<196xf32, #tpu.memory_space<smem>>
    %1455 = vector.broadcast %1454 : f32 to vector<1x256xf32>
    %1456 = arith.mulf %1441, %1455 : vector<1x256xf32>
    %1457 = arith.addf %1453, %1456 : vector<1x256xf32>
    %cst_402 = arith.constant 0.000000e+00 : f32
    %1458 = vector.broadcast %cst_402 : f32 to vector<1x48xf32>
    %1459 = vector.extract_strided_slice %809 {offsets = [0, 48], sizes = [1, 208], strides = [1, 1]} : vector<1x256xf32> to vector<1x208xf32>
    %1460 = tpu.concatenate %1459, %1458 in 1 : vector<1x208xf32>, vector<1x48xf32> -> vector<1x256xf32>
    %cst_403 = arith.constant 0.000000e+00 : f32
    %1461 = vector.broadcast %cst_403 : f32 to vector<1x48xf32>
    %1462 = vector.extract_strided_slice %814 {offsets = [0, 48], sizes = [1, 208], strides = [1, 1]} : vector<1x256xf32> to vector<1x208xf32>
    %1463 = tpu.concatenate %1462, %1461 in 1 : vector<1x208xf32>, vector<1x48xf32> -> vector<1x256xf32>
    %c180 = arith.constant 180 : index
    %1464 = memref.load %arg14[%c180] : memref<196xf32, #tpu.memory_space<smem>>
    %1465 = vector.broadcast %1464 : f32 to vector<1x256xf32>
    %1466 = arith.mulf %1460, %1465 : vector<1x256xf32>
    %1467 = arith.addf %1449, %1466 : vector<1x256xf32>
    %c182 = arith.constant 182 : index
    %1468 = memref.load %arg14[%c182] : memref<196xf32, #tpu.memory_space<smem>>
    %1469 = vector.broadcast %1468 : f32 to vector<1x256xf32>
    %1470 = arith.mulf %1463, %1469 : vector<1x256xf32>
    %1471 = arith.addf %1467, %1470 : vector<1x256xf32>
    %c181 = arith.constant 181 : index
    %1472 = memref.load %arg14[%c181] : memref<196xf32, #tpu.memory_space<smem>>
    %1473 = vector.broadcast %1472 : f32 to vector<1x256xf32>
    %1474 = arith.mulf %1460, %1473 : vector<1x256xf32>
    %1475 = arith.addf %1457, %1474 : vector<1x256xf32>
    %c183 = arith.constant 183 : index
    %1476 = memref.load %arg14[%c183] : memref<196xf32, #tpu.memory_space<smem>>
    %1477 = vector.broadcast %1476 : f32 to vector<1x256xf32>
    %1478 = arith.mulf %1463, %1477 : vector<1x256xf32>
    %1479 = arith.addf %1475, %1478 : vector<1x256xf32>
    %c0_i32_404 = arith.constant 0 : i32
    %1480 = vector.broadcast %c0_i32_404 : i32 to vector<1x256xi32>
    %1481 = arith.addi %18, %1480 : vector<1x256xi32>
    %c0_i32_405 = arith.constant 0 : i32
    %1482 = vector.broadcast %c0_i32_405 : i32 to vector<1x256xi32>
    %1483 = arith.cmpi sge, %1481, %1482 : vector<1x256xi32>
    %c0_i32_406 = arith.constant 0 : i32
    %1484 = vector.broadcast %c0_i32_406 : i32 to vector<1x256xi32>
    %1485 = arith.addi %18, %1484 : vector<1x256xi32>
    %c16_i32_407 = arith.constant 16 : i32
    %1486 = vector.broadcast %c16_i32_407 : i32 to vector<1x256xi32>
    %1487 = arith.cmpi slt, %1485, %1486 : vector<1x256xi32>
    %1488 = arith.andi %1483, %1487 : vector<1x256xi1>
    %cst_408 = arith.constant 0.000000e+00 : f32
    %1489 = vector.broadcast %cst_408 : f32 to vector<1x256xf32>
    %1490 = arith.select %1488, %1471, %1489 : vector<1x256xi1>, vector<1x256xf32>
    %1491 = arith.addf %1326, %1490 : vector<1x256xf32>
    %cst_409 = arith.constant 0.000000e+00 : f32
    %1492 = vector.broadcast %cst_409 : f32 to vector<1x256xf32>
    %1493 = arith.select %1488, %1479, %1492 : vector<1x256xi1>, vector<1x256xf32>
    %1494 = arith.addf %1329, %1493 : vector<1x256xf32>
    %cst_410 = arith.constant 0.000000e+00 : f32
    %1495 = vector.broadcast %cst_410 : f32 to vector<1x256xf32>
    %cst_411 = arith.constant 0.000000e+00 : f32
    %1496 = vector.broadcast %cst_411 : f32 to vector<1x256xf32>
    %cst_412 = arith.constant 0.000000e+00 : f32
    %1497 = vector.broadcast %cst_412 : f32 to vector<1x47xf32>
    %1498 = vector.extract_strided_slice %809 {offsets = [0, 0], sizes = [1, 209], strides = [1, 1]} : vector<1x256xf32> to vector<1x209xf32>
    %1499 = tpu.concatenate %1497, %1498 in 1 : vector<1x47xf32>, vector<1x209xf32> -> vector<1x256xf32>
    %cst_413 = arith.constant 0.000000e+00 : f32
    %1500 = vector.broadcast %cst_413 : f32 to vector<1x47xf32>
    %1501 = vector.extract_strided_slice %814 {offsets = [0, 0], sizes = [1, 209], strides = [1, 1]} : vector<1x256xf32> to vector<1x209xf32>
    %1502 = tpu.concatenate %1500, %1501 in 1 : vector<1x47xf32>, vector<1x209xf32> -> vector<1x256xf32>
    %c16_414 = arith.constant 16 : index
    %1503 = memref.load %arg14[%c16_414] : memref<196xf32, #tpu.memory_space<smem>>
    %1504 = vector.broadcast %1503 : f32 to vector<1x256xf32>
    %1505 = arith.mulf %1499, %1504 : vector<1x256xf32>
    %1506 = arith.addf %1495, %1505 : vector<1x256xf32>
    %c18_415 = arith.constant 18 : index
    %1507 = memref.load %arg14[%c18_415] : memref<196xf32, #tpu.memory_space<smem>>
    %1508 = vector.broadcast %1507 : f32 to vector<1x256xf32>
    %1509 = arith.mulf %1502, %1508 : vector<1x256xf32>
    %1510 = arith.addf %1506, %1509 : vector<1x256xf32>
    %c17_416 = arith.constant 17 : index
    %1511 = memref.load %arg14[%c17_416] : memref<196xf32, #tpu.memory_space<smem>>
    %1512 = vector.broadcast %1511 : f32 to vector<1x256xf32>
    %1513 = arith.mulf %1499, %1512 : vector<1x256xf32>
    %1514 = arith.addf %1496, %1513 : vector<1x256xf32>
    %c19_417 = arith.constant 19 : index
    %1515 = memref.load %arg14[%c19_417] : memref<196xf32, #tpu.memory_space<smem>>
    %1516 = vector.broadcast %1515 : f32 to vector<1x256xf32>
    %1517 = arith.mulf %1502, %1516 : vector<1x256xf32>
    %1518 = arith.addf %1514, %1517 : vector<1x256xf32>
    %cst_418 = arith.constant 0.000000e+00 : f32
    %1519 = vector.broadcast %cst_418 : f32 to vector<1x31xf32>
    %1520 = vector.extract_strided_slice %809 {offsets = [0, 0], sizes = [1, 225], strides = [1, 1]} : vector<1x256xf32> to vector<1x225xf32>
    %1521 = tpu.concatenate %1519, %1520 in 1 : vector<1x31xf32>, vector<1x225xf32> -> vector<1x256xf32>
    %cst_419 = arith.constant 0.000000e+00 : f32
    %1522 = vector.broadcast %cst_419 : f32 to vector<1x31xf32>
    %1523 = vector.extract_strided_slice %814 {offsets = [0, 0], sizes = [1, 225], strides = [1, 1]} : vector<1x256xf32> to vector<1x225xf32>
    %1524 = tpu.concatenate %1522, %1523 in 1 : vector<1x31xf32>, vector<1x225xf32> -> vector<1x256xf32>
    %c44_420 = arith.constant 44 : index
    %1525 = memref.load %arg14[%c44_420] : memref<196xf32, #tpu.memory_space<smem>>
    %1526 = vector.broadcast %1525 : f32 to vector<1x256xf32>
    %1527 = arith.mulf %1521, %1526 : vector<1x256xf32>
    %1528 = arith.addf %1510, %1527 : vector<1x256xf32>
    %c46_421 = arith.constant 46 : index
    %1529 = memref.load %arg14[%c46_421] : memref<196xf32, #tpu.memory_space<smem>>
    %1530 = vector.broadcast %1529 : f32 to vector<1x256xf32>
    %1531 = arith.mulf %1524, %1530 : vector<1x256xf32>
    %1532 = arith.addf %1528, %1531 : vector<1x256xf32>
    %c45_422 = arith.constant 45 : index
    %1533 = memref.load %arg14[%c45_422] : memref<196xf32, #tpu.memory_space<smem>>
    %1534 = vector.broadcast %1533 : f32 to vector<1x256xf32>
    %1535 = arith.mulf %1521, %1534 : vector<1x256xf32>
    %1536 = arith.addf %1518, %1535 : vector<1x256xf32>
    %c47_423 = arith.constant 47 : index
    %1537 = memref.load %arg14[%c47_423] : memref<196xf32, #tpu.memory_space<smem>>
    %1538 = vector.broadcast %1537 : f32 to vector<1x256xf32>
    %1539 = arith.mulf %1524, %1538 : vector<1x256xf32>
    %1540 = arith.addf %1536, %1539 : vector<1x256xf32>
    %cst_424 = arith.constant 0.000000e+00 : f32
    %1541 = vector.broadcast %cst_424 : f32 to vector<1x15xf32>
    %1542 = vector.extract_strided_slice %809 {offsets = [0, 0], sizes = [1, 241], strides = [1, 1]} : vector<1x256xf32> to vector<1x241xf32>
    %1543 = tpu.concatenate %1541, %1542 in 1 : vector<1x15xf32>, vector<1x241xf32> -> vector<1x256xf32>
    %cst_425 = arith.constant 0.000000e+00 : f32
    %1544 = vector.broadcast %cst_425 : f32 to vector<1x15xf32>
    %1545 = vector.extract_strided_slice %814 {offsets = [0, 0], sizes = [1, 241], strides = [1, 1]} : vector<1x256xf32> to vector<1x241xf32>
    %1546 = tpu.concatenate %1544, %1545 in 1 : vector<1x15xf32>, vector<1x241xf32> -> vector<1x256xf32>
    %c72 = arith.constant 72 : index
    %1547 = memref.load %arg14[%c72] : memref<196xf32, #tpu.memory_space<smem>>
    %1548 = vector.broadcast %1547 : f32 to vector<1x256xf32>
    %1549 = arith.mulf %1543, %1548 : vector<1x256xf32>
    %1550 = arith.addf %1532, %1549 : vector<1x256xf32>
    %c74 = arith.constant 74 : index
    %1551 = memref.load %arg14[%c74] : memref<196xf32, #tpu.memory_space<smem>>
    %1552 = vector.broadcast %1551 : f32 to vector<1x256xf32>
    %1553 = arith.mulf %1546, %1552 : vector<1x256xf32>
    %1554 = arith.addf %1550, %1553 : vector<1x256xf32>
    %c73 = arith.constant 73 : index
    %1555 = memref.load %arg14[%c73] : memref<196xf32, #tpu.memory_space<smem>>
    %1556 = vector.broadcast %1555 : f32 to vector<1x256xf32>
    %1557 = arith.mulf %1543, %1556 : vector<1x256xf32>
    %1558 = arith.addf %1540, %1557 : vector<1x256xf32>
    %c75 = arith.constant 75 : index
    %1559 = memref.load %arg14[%c75] : memref<196xf32, #tpu.memory_space<smem>>
    %1560 = vector.broadcast %1559 : f32 to vector<1x256xf32>
    %1561 = arith.mulf %1546, %1560 : vector<1x256xf32>
    %1562 = arith.addf %1558, %1561 : vector<1x256xf32>
    %cst_426 = arith.constant 0.000000e+00 : f32
    %1563 = vector.broadcast %cst_426 : f32 to vector<1x1xf32>
    %1564 = vector.extract_strided_slice %809 {offsets = [0, 1], sizes = [1, 255], strides = [1, 1]} : vector<1x256xf32> to vector<1x255xf32>
    %1565 = tpu.concatenate %1564, %1563 in 1 : vector<1x255xf32>, vector<1x1xf32> -> vector<1x256xf32>
    %cst_427 = arith.constant 0.000000e+00 : f32
    %1566 = vector.broadcast %cst_427 : f32 to vector<1x1xf32>
    %1567 = vector.extract_strided_slice %814 {offsets = [0, 1], sizes = [1, 255], strides = [1, 1]} : vector<1x256xf32> to vector<1x255xf32>
    %1568 = tpu.concatenate %1567, %1566 in 1 : vector<1x255xf32>, vector<1x1xf32> -> vector<1x256xf32>
    %c100 = arith.constant 100 : index
    %1569 = memref.load %arg14[%c100] : memref<196xf32, #tpu.memory_space<smem>>
    %1570 = vector.broadcast %1569 : f32 to vector<1x256xf32>
    %1571 = arith.mulf %1565, %1570 : vector<1x256xf32>
    %1572 = arith.addf %1554, %1571 : vector<1x256xf32>
    %c102 = arith.constant 102 : index
    %1573 = memref.load %arg14[%c102] : memref<196xf32, #tpu.memory_space<smem>>
    %1574 = vector.broadcast %1573 : f32 to vector<1x256xf32>
    %1575 = arith.mulf %1568, %1574 : vector<1x256xf32>
    %1576 = arith.addf %1572, %1575 : vector<1x256xf32>
    %c101 = arith.constant 101 : index
    %1577 = memref.load %arg14[%c101] : memref<196xf32, #tpu.memory_space<smem>>
    %1578 = vector.broadcast %1577 : f32 to vector<1x256xf32>
    %1579 = arith.mulf %1565, %1578 : vector<1x256xf32>
    %1580 = arith.addf %1562, %1579 : vector<1x256xf32>
    %c103 = arith.constant 103 : index
    %1581 = memref.load %arg14[%c103] : memref<196xf32, #tpu.memory_space<smem>>
    %1582 = vector.broadcast %1581 : f32 to vector<1x256xf32>
    %1583 = arith.mulf %1568, %1582 : vector<1x256xf32>
    %1584 = arith.addf %1580, %1583 : vector<1x256xf32>
    %cst_428 = arith.constant 0.000000e+00 : f32
    %1585 = vector.broadcast %cst_428 : f32 to vector<1x17xf32>
    %1586 = vector.extract_strided_slice %809 {offsets = [0, 17], sizes = [1, 239], strides = [1, 1]} : vector<1x256xf32> to vector<1x239xf32>
    %1587 = tpu.concatenate %1586, %1585 in 1 : vector<1x239xf32>, vector<1x17xf32> -> vector<1x256xf32>
    %cst_429 = arith.constant 0.000000e+00 : f32
    %1588 = vector.broadcast %cst_429 : f32 to vector<1x17xf32>
    %1589 = vector.extract_strided_slice %814 {offsets = [0, 17], sizes = [1, 239], strides = [1, 1]} : vector<1x256xf32> to vector<1x239xf32>
    %1590 = tpu.concatenate %1589, %1588 in 1 : vector<1x239xf32>, vector<1x17xf32> -> vector<1x256xf32>
    %c128 = arith.constant 128 : index
    %1591 = memref.load %arg14[%c128] : memref<196xf32, #tpu.memory_space<smem>>
    %1592 = vector.broadcast %1591 : f32 to vector<1x256xf32>
    %1593 = arith.mulf %1587, %1592 : vector<1x256xf32>
    %1594 = arith.addf %1576, %1593 : vector<1x256xf32>
    %c130 = arith.constant 130 : index
    %1595 = memref.load %arg14[%c130] : memref<196xf32, #tpu.memory_space<smem>>
    %1596 = vector.broadcast %1595 : f32 to vector<1x256xf32>
    %1597 = arith.mulf %1590, %1596 : vector<1x256xf32>
    %1598 = arith.addf %1594, %1597 : vector<1x256xf32>
    %c129 = arith.constant 129 : index
    %1599 = memref.load %arg14[%c129] : memref<196xf32, #tpu.memory_space<smem>>
    %1600 = vector.broadcast %1599 : f32 to vector<1x256xf32>
    %1601 = arith.mulf %1587, %1600 : vector<1x256xf32>
    %1602 = arith.addf %1584, %1601 : vector<1x256xf32>
    %c131 = arith.constant 131 : index
    %1603 = memref.load %arg14[%c131] : memref<196xf32, #tpu.memory_space<smem>>
    %1604 = vector.broadcast %1603 : f32 to vector<1x256xf32>
    %1605 = arith.mulf %1590, %1604 : vector<1x256xf32>
    %1606 = arith.addf %1602, %1605 : vector<1x256xf32>
    %cst_430 = arith.constant 0.000000e+00 : f32
    %1607 = vector.broadcast %cst_430 : f32 to vector<1x33xf32>
    %1608 = vector.extract_strided_slice %809 {offsets = [0, 33], sizes = [1, 223], strides = [1, 1]} : vector<1x256xf32> to vector<1x223xf32>
    %1609 = tpu.concatenate %1608, %1607 in 1 : vector<1x223xf32>, vector<1x33xf32> -> vector<1x256xf32>
    %cst_431 = arith.constant 0.000000e+00 : f32
    %1610 = vector.broadcast %cst_431 : f32 to vector<1x33xf32>
    %1611 = vector.extract_strided_slice %814 {offsets = [0, 33], sizes = [1, 223], strides = [1, 1]} : vector<1x256xf32> to vector<1x223xf32>
    %1612 = tpu.concatenate %1611, %1610 in 1 : vector<1x223xf32>, vector<1x33xf32> -> vector<1x256xf32>
    %c156 = arith.constant 156 : index
    %1613 = memref.load %arg14[%c156] : memref<196xf32, #tpu.memory_space<smem>>
    %1614 = vector.broadcast %1613 : f32 to vector<1x256xf32>
    %1615 = arith.mulf %1609, %1614 : vector<1x256xf32>
    %1616 = arith.addf %1598, %1615 : vector<1x256xf32>
    %c158 = arith.constant 158 : index
    %1617 = memref.load %arg14[%c158] : memref<196xf32, #tpu.memory_space<smem>>
    %1618 = vector.broadcast %1617 : f32 to vector<1x256xf32>
    %1619 = arith.mulf %1612, %1618 : vector<1x256xf32>
    %1620 = arith.addf %1616, %1619 : vector<1x256xf32>
    %c157 = arith.constant 157 : index
    %1621 = memref.load %arg14[%c157] : memref<196xf32, #tpu.memory_space<smem>>
    %1622 = vector.broadcast %1621 : f32 to vector<1x256xf32>
    %1623 = arith.mulf %1609, %1622 : vector<1x256xf32>
    %1624 = arith.addf %1606, %1623 : vector<1x256xf32>
    %c159 = arith.constant 159 : index
    %1625 = memref.load %arg14[%c159] : memref<196xf32, #tpu.memory_space<smem>>
    %1626 = vector.broadcast %1625 : f32 to vector<1x256xf32>
    %1627 = arith.mulf %1612, %1626 : vector<1x256xf32>
    %1628 = arith.addf %1624, %1627 : vector<1x256xf32>
    %cst_432 = arith.constant 0.000000e+00 : f32
    %1629 = vector.broadcast %cst_432 : f32 to vector<1x49xf32>
    %1630 = vector.extract_strided_slice %809 {offsets = [0, 49], sizes = [1, 207], strides = [1, 1]} : vector<1x256xf32> to vector<1x207xf32>
    %1631 = tpu.concatenate %1630, %1629 in 1 : vector<1x207xf32>, vector<1x49xf32> -> vector<1x256xf32>
    %cst_433 = arith.constant 0.000000e+00 : f32
    %1632 = vector.broadcast %cst_433 : f32 to vector<1x49xf32>
    %1633 = vector.extract_strided_slice %814 {offsets = [0, 49], sizes = [1, 207], strides = [1, 1]} : vector<1x256xf32> to vector<1x207xf32>
    %1634 = tpu.concatenate %1633, %1632 in 1 : vector<1x207xf32>, vector<1x49xf32> -> vector<1x256xf32>
    %c184 = arith.constant 184 : index
    %1635 = memref.load %arg14[%c184] : memref<196xf32, #tpu.memory_space<smem>>
    %1636 = vector.broadcast %1635 : f32 to vector<1x256xf32>
    %1637 = arith.mulf %1631, %1636 : vector<1x256xf32>
    %1638 = arith.addf %1620, %1637 : vector<1x256xf32>
    %c186 = arith.constant 186 : index
    %1639 = memref.load %arg14[%c186] : memref<196xf32, #tpu.memory_space<smem>>
    %1640 = vector.broadcast %1639 : f32 to vector<1x256xf32>
    %1641 = arith.mulf %1634, %1640 : vector<1x256xf32>
    %1642 = arith.addf %1638, %1641 : vector<1x256xf32>
    %c185 = arith.constant 185 : index
    %1643 = memref.load %arg14[%c185] : memref<196xf32, #tpu.memory_space<smem>>
    %1644 = vector.broadcast %1643 : f32 to vector<1x256xf32>
    %1645 = arith.mulf %1631, %1644 : vector<1x256xf32>
    %1646 = arith.addf %1628, %1645 : vector<1x256xf32>
    %c187 = arith.constant 187 : index
    %1647 = memref.load %arg14[%c187] : memref<196xf32, #tpu.memory_space<smem>>
    %1648 = vector.broadcast %1647 : f32 to vector<1x256xf32>
    %1649 = arith.mulf %1634, %1648 : vector<1x256xf32>
    %1650 = arith.addf %1646, %1649 : vector<1x256xf32>
    %c1_i32_434 = arith.constant 1 : i32
    %1651 = vector.broadcast %c1_i32_434 : i32 to vector<1x256xi32>
    %1652 = arith.addi %18, %1651 : vector<1x256xi32>
    %c0_i32_435 = arith.constant 0 : i32
    %1653 = vector.broadcast %c0_i32_435 : i32 to vector<1x256xi32>
    %1654 = arith.cmpi sge, %1652, %1653 : vector<1x256xi32>
    %c1_i32_436 = arith.constant 1 : i32
    %1655 = vector.broadcast %c1_i32_436 : i32 to vector<1x256xi32>
    %1656 = arith.addi %18, %1655 : vector<1x256xi32>
    %c16_i32_437 = arith.constant 16 : i32
    %1657 = vector.broadcast %c16_i32_437 : i32 to vector<1x256xi32>
    %1658 = arith.cmpi slt, %1656, %1657 : vector<1x256xi32>
    %1659 = arith.andi %1654, %1658 : vector<1x256xi1>
    %cst_438 = arith.constant 0.000000e+00 : f32
    %1660 = vector.broadcast %cst_438 : f32 to vector<1x256xf32>
    %1661 = arith.select %1659, %1642, %1660 : vector<1x256xi1>, vector<1x256xf32>
    %1662 = arith.addf %1491, %1661 : vector<1x256xf32>
    %cst_439 = arith.constant 0.000000e+00 : f32
    %1663 = vector.broadcast %cst_439 : f32 to vector<1x256xf32>
    %1664 = arith.select %1659, %1650, %1663 : vector<1x256xi1>, vector<1x256xf32>
    %1665 = arith.addf %1494, %1664 : vector<1x256xf32>
    %cst_440 = arith.constant 0.000000e+00 : f32
    %1666 = vector.broadcast %cst_440 : f32 to vector<1x256xf32>
    %cst_441 = arith.constant 0.000000e+00 : f32
    %1667 = vector.broadcast %cst_441 : f32 to vector<1x256xf32>
    %cst_442 = arith.constant 0.000000e+00 : f32
    %1668 = vector.broadcast %cst_442 : f32 to vector<1x46xf32>
    %1669 = vector.extract_strided_slice %809 {offsets = [0, 0], sizes = [1, 210], strides = [1, 1]} : vector<1x256xf32> to vector<1x210xf32>
    %1670 = tpu.concatenate %1668, %1669 in 1 : vector<1x46xf32>, vector<1x210xf32> -> vector<1x256xf32>
    %cst_443 = arith.constant 0.000000e+00 : f32
    %1671 = vector.broadcast %cst_443 : f32 to vector<1x46xf32>
    %1672 = vector.extract_strided_slice %814 {offsets = [0, 0], sizes = [1, 210], strides = [1, 1]} : vector<1x256xf32> to vector<1x210xf32>
    %1673 = tpu.concatenate %1671, %1672 in 1 : vector<1x46xf32>, vector<1x210xf32> -> vector<1x256xf32>
    %c20_444 = arith.constant 20 : index
    %1674 = memref.load %arg14[%c20_444] : memref<196xf32, #tpu.memory_space<smem>>
    %1675 = vector.broadcast %1674 : f32 to vector<1x256xf32>
    %1676 = arith.mulf %1670, %1675 : vector<1x256xf32>
    %1677 = arith.addf %1666, %1676 : vector<1x256xf32>
    %c22_445 = arith.constant 22 : index
    %1678 = memref.load %arg14[%c22_445] : memref<196xf32, #tpu.memory_space<smem>>
    %1679 = vector.broadcast %1678 : f32 to vector<1x256xf32>
    %1680 = arith.mulf %1673, %1679 : vector<1x256xf32>
    %1681 = arith.addf %1677, %1680 : vector<1x256xf32>
    %c21_446 = arith.constant 21 : index
    %1682 = memref.load %arg14[%c21_446] : memref<196xf32, #tpu.memory_space<smem>>
    %1683 = vector.broadcast %1682 : f32 to vector<1x256xf32>
    %1684 = arith.mulf %1670, %1683 : vector<1x256xf32>
    %1685 = arith.addf %1667, %1684 : vector<1x256xf32>
    %c23_447 = arith.constant 23 : index
    %1686 = memref.load %arg14[%c23_447] : memref<196xf32, #tpu.memory_space<smem>>
    %1687 = vector.broadcast %1686 : f32 to vector<1x256xf32>
    %1688 = arith.mulf %1673, %1687 : vector<1x256xf32>
    %1689 = arith.addf %1685, %1688 : vector<1x256xf32>
    %cst_448 = arith.constant 0.000000e+00 : f32
    %1690 = vector.broadcast %cst_448 : f32 to vector<1x30xf32>
    %1691 = vector.extract_strided_slice %809 {offsets = [0, 0], sizes = [1, 226], strides = [1, 1]} : vector<1x256xf32> to vector<1x226xf32>
    %1692 = tpu.concatenate %1690, %1691 in 1 : vector<1x30xf32>, vector<1x226xf32> -> vector<1x256xf32>
    %cst_449 = arith.constant 0.000000e+00 : f32
    %1693 = vector.broadcast %cst_449 : f32 to vector<1x30xf32>
    %1694 = vector.extract_strided_slice %814 {offsets = [0, 0], sizes = [1, 226], strides = [1, 1]} : vector<1x256xf32> to vector<1x226xf32>
    %1695 = tpu.concatenate %1693, %1694 in 1 : vector<1x30xf32>, vector<1x226xf32> -> vector<1x256xf32>
    %c48_450 = arith.constant 48 : index
    %1696 = memref.load %arg14[%c48_450] : memref<196xf32, #tpu.memory_space<smem>>
    %1697 = vector.broadcast %1696 : f32 to vector<1x256xf32>
    %1698 = arith.mulf %1692, %1697 : vector<1x256xf32>
    %1699 = arith.addf %1681, %1698 : vector<1x256xf32>
    %c50 = arith.constant 50 : index
    %1700 = memref.load %arg14[%c50] : memref<196xf32, #tpu.memory_space<smem>>
    %1701 = vector.broadcast %1700 : f32 to vector<1x256xf32>
    %1702 = arith.mulf %1695, %1701 : vector<1x256xf32>
    %1703 = arith.addf %1699, %1702 : vector<1x256xf32>
    %c49 = arith.constant 49 : index
    %1704 = memref.load %arg14[%c49] : memref<196xf32, #tpu.memory_space<smem>>
    %1705 = vector.broadcast %1704 : f32 to vector<1x256xf32>
    %1706 = arith.mulf %1692, %1705 : vector<1x256xf32>
    %1707 = arith.addf %1689, %1706 : vector<1x256xf32>
    %c51 = arith.constant 51 : index
    %1708 = memref.load %arg14[%c51] : memref<196xf32, #tpu.memory_space<smem>>
    %1709 = vector.broadcast %1708 : f32 to vector<1x256xf32>
    %1710 = arith.mulf %1695, %1709 : vector<1x256xf32>
    %1711 = arith.addf %1707, %1710 : vector<1x256xf32>
    %cst_451 = arith.constant 0.000000e+00 : f32
    %1712 = vector.broadcast %cst_451 : f32 to vector<1x14xf32>
    %1713 = vector.extract_strided_slice %809 {offsets = [0, 0], sizes = [1, 242], strides = [1, 1]} : vector<1x256xf32> to vector<1x242xf32>
    %1714 = tpu.concatenate %1712, %1713 in 1 : vector<1x14xf32>, vector<1x242xf32> -> vector<1x256xf32>
    %cst_452 = arith.constant 0.000000e+00 : f32
    %1715 = vector.broadcast %cst_452 : f32 to vector<1x14xf32>
    %1716 = vector.extract_strided_slice %814 {offsets = [0, 0], sizes = [1, 242], strides = [1, 1]} : vector<1x256xf32> to vector<1x242xf32>
    %1717 = tpu.concatenate %1715, %1716 in 1 : vector<1x14xf32>, vector<1x242xf32> -> vector<1x256xf32>
    %c76 = arith.constant 76 : index
    %1718 = memref.load %arg14[%c76] : memref<196xf32, #tpu.memory_space<smem>>
    %1719 = vector.broadcast %1718 : f32 to vector<1x256xf32>
    %1720 = arith.mulf %1714, %1719 : vector<1x256xf32>
    %1721 = arith.addf %1703, %1720 : vector<1x256xf32>
    %c78 = arith.constant 78 : index
    %1722 = memref.load %arg14[%c78] : memref<196xf32, #tpu.memory_space<smem>>
    %1723 = vector.broadcast %1722 : f32 to vector<1x256xf32>
    %1724 = arith.mulf %1717, %1723 : vector<1x256xf32>
    %1725 = arith.addf %1721, %1724 : vector<1x256xf32>
    %c77 = arith.constant 77 : index
    %1726 = memref.load %arg14[%c77] : memref<196xf32, #tpu.memory_space<smem>>
    %1727 = vector.broadcast %1726 : f32 to vector<1x256xf32>
    %1728 = arith.mulf %1714, %1727 : vector<1x256xf32>
    %1729 = arith.addf %1711, %1728 : vector<1x256xf32>
    %c79 = arith.constant 79 : index
    %1730 = memref.load %arg14[%c79] : memref<196xf32, #tpu.memory_space<smem>>
    %1731 = vector.broadcast %1730 : f32 to vector<1x256xf32>
    %1732 = arith.mulf %1717, %1731 : vector<1x256xf32>
    %1733 = arith.addf %1729, %1732 : vector<1x256xf32>
    %cst_453 = arith.constant 0.000000e+00 : f32
    %1734 = vector.broadcast %cst_453 : f32 to vector<1x2xf32>
    %1735 = vector.extract_strided_slice %809 {offsets = [0, 2], sizes = [1, 254], strides = [1, 1]} : vector<1x256xf32> to vector<1x254xf32>
    %1736 = tpu.concatenate %1735, %1734 in 1 : vector<1x254xf32>, vector<1x2xf32> -> vector<1x256xf32>
    %cst_454 = arith.constant 0.000000e+00 : f32
    %1737 = vector.broadcast %cst_454 : f32 to vector<1x2xf32>
    %1738 = vector.extract_strided_slice %814 {offsets = [0, 2], sizes = [1, 254], strides = [1, 1]} : vector<1x256xf32> to vector<1x254xf32>
    %1739 = tpu.concatenate %1738, %1737 in 1 : vector<1x254xf32>, vector<1x2xf32> -> vector<1x256xf32>
    %c104 = arith.constant 104 : index
    %1740 = memref.load %arg14[%c104] : memref<196xf32, #tpu.memory_space<smem>>
    %1741 = vector.broadcast %1740 : f32 to vector<1x256xf32>
    %1742 = arith.mulf %1736, %1741 : vector<1x256xf32>
    %1743 = arith.addf %1725, %1742 : vector<1x256xf32>
    %c106 = arith.constant 106 : index
    %1744 = memref.load %arg14[%c106] : memref<196xf32, #tpu.memory_space<smem>>
    %1745 = vector.broadcast %1744 : f32 to vector<1x256xf32>
    %1746 = arith.mulf %1739, %1745 : vector<1x256xf32>
    %1747 = arith.addf %1743, %1746 : vector<1x256xf32>
    %c105 = arith.constant 105 : index
    %1748 = memref.load %arg14[%c105] : memref<196xf32, #tpu.memory_space<smem>>
    %1749 = vector.broadcast %1748 : f32 to vector<1x256xf32>
    %1750 = arith.mulf %1736, %1749 : vector<1x256xf32>
    %1751 = arith.addf %1733, %1750 : vector<1x256xf32>
    %c107 = arith.constant 107 : index
    %1752 = memref.load %arg14[%c107] : memref<196xf32, #tpu.memory_space<smem>>
    %1753 = vector.broadcast %1752 : f32 to vector<1x256xf32>
    %1754 = arith.mulf %1739, %1753 : vector<1x256xf32>
    %1755 = arith.addf %1751, %1754 : vector<1x256xf32>
    %cst_455 = arith.constant 0.000000e+00 : f32
    %1756 = vector.broadcast %cst_455 : f32 to vector<1x18xf32>
    %1757 = vector.extract_strided_slice %809 {offsets = [0, 18], sizes = [1, 238], strides = [1, 1]} : vector<1x256xf32> to vector<1x238xf32>
    %1758 = tpu.concatenate %1757, %1756 in 1 : vector<1x238xf32>, vector<1x18xf32> -> vector<1x256xf32>
    %cst_456 = arith.constant 0.000000e+00 : f32
    %1759 = vector.broadcast %cst_456 : f32 to vector<1x18xf32>
    %1760 = vector.extract_strided_slice %814 {offsets = [0, 18], sizes = [1, 238], strides = [1, 1]} : vector<1x256xf32> to vector<1x238xf32>
    %1761 = tpu.concatenate %1760, %1759 in 1 : vector<1x238xf32>, vector<1x18xf32> -> vector<1x256xf32>
    %c132 = arith.constant 132 : index
    %1762 = memref.load %arg14[%c132] : memref<196xf32, #tpu.memory_space<smem>>
    %1763 = vector.broadcast %1762 : f32 to vector<1x256xf32>
    %1764 = arith.mulf %1758, %1763 : vector<1x256xf32>
    %1765 = arith.addf %1747, %1764 : vector<1x256xf32>
    %c134 = arith.constant 134 : index
    %1766 = memref.load %arg14[%c134] : memref<196xf32, #tpu.memory_space<smem>>
    %1767 = vector.broadcast %1766 : f32 to vector<1x256xf32>
    %1768 = arith.mulf %1761, %1767 : vector<1x256xf32>
    %1769 = arith.addf %1765, %1768 : vector<1x256xf32>
    %c133 = arith.constant 133 : index
    %1770 = memref.load %arg14[%c133] : memref<196xf32, #tpu.memory_space<smem>>
    %1771 = vector.broadcast %1770 : f32 to vector<1x256xf32>
    %1772 = arith.mulf %1758, %1771 : vector<1x256xf32>
    %1773 = arith.addf %1755, %1772 : vector<1x256xf32>
    %c135 = arith.constant 135 : index
    %1774 = memref.load %arg14[%c135] : memref<196xf32, #tpu.memory_space<smem>>
    %1775 = vector.broadcast %1774 : f32 to vector<1x256xf32>
    %1776 = arith.mulf %1761, %1775 : vector<1x256xf32>
    %1777 = arith.addf %1773, %1776 : vector<1x256xf32>
    %cst_457 = arith.constant 0.000000e+00 : f32
    %1778 = vector.broadcast %cst_457 : f32 to vector<1x34xf32>
    %1779 = vector.extract_strided_slice %809 {offsets = [0, 34], sizes = [1, 222], strides = [1, 1]} : vector<1x256xf32> to vector<1x222xf32>
    %1780 = tpu.concatenate %1779, %1778 in 1 : vector<1x222xf32>, vector<1x34xf32> -> vector<1x256xf32>
    %cst_458 = arith.constant 0.000000e+00 : f32
    %1781 = vector.broadcast %cst_458 : f32 to vector<1x34xf32>
    %1782 = vector.extract_strided_slice %814 {offsets = [0, 34], sizes = [1, 222], strides = [1, 1]} : vector<1x256xf32> to vector<1x222xf32>
    %1783 = tpu.concatenate %1782, %1781 in 1 : vector<1x222xf32>, vector<1x34xf32> -> vector<1x256xf32>
    %c160 = arith.constant 160 : index
    %1784 = memref.load %arg14[%c160] : memref<196xf32, #tpu.memory_space<smem>>
    %1785 = vector.broadcast %1784 : f32 to vector<1x256xf32>
    %1786 = arith.mulf %1780, %1785 : vector<1x256xf32>
    %1787 = arith.addf %1769, %1786 : vector<1x256xf32>
    %c162 = arith.constant 162 : index
    %1788 = memref.load %arg14[%c162] : memref<196xf32, #tpu.memory_space<smem>>
    %1789 = vector.broadcast %1788 : f32 to vector<1x256xf32>
    %1790 = arith.mulf %1783, %1789 : vector<1x256xf32>
    %1791 = arith.addf %1787, %1790 : vector<1x256xf32>
    %c161 = arith.constant 161 : index
    %1792 = memref.load %arg14[%c161] : memref<196xf32, #tpu.memory_space<smem>>
    %1793 = vector.broadcast %1792 : f32 to vector<1x256xf32>
    %1794 = arith.mulf %1780, %1793 : vector<1x256xf32>
    %1795 = arith.addf %1777, %1794 : vector<1x256xf32>
    %c163 = arith.constant 163 : index
    %1796 = memref.load %arg14[%c163] : memref<196xf32, #tpu.memory_space<smem>>
    %1797 = vector.broadcast %1796 : f32 to vector<1x256xf32>
    %1798 = arith.mulf %1783, %1797 : vector<1x256xf32>
    %1799 = arith.addf %1795, %1798 : vector<1x256xf32>
    %cst_459 = arith.constant 0.000000e+00 : f32
    %1800 = vector.broadcast %cst_459 : f32 to vector<1x50xf32>
    %1801 = vector.extract_strided_slice %809 {offsets = [0, 50], sizes = [1, 206], strides = [1, 1]} : vector<1x256xf32> to vector<1x206xf32>
    %1802 = tpu.concatenate %1801, %1800 in 1 : vector<1x206xf32>, vector<1x50xf32> -> vector<1x256xf32>
    %cst_460 = arith.constant 0.000000e+00 : f32
    %1803 = vector.broadcast %cst_460 : f32 to vector<1x50xf32>
    %1804 = vector.extract_strided_slice %814 {offsets = [0, 50], sizes = [1, 206], strides = [1, 1]} : vector<1x256xf32> to vector<1x206xf32>
    %1805 = tpu.concatenate %1804, %1803 in 1 : vector<1x206xf32>, vector<1x50xf32> -> vector<1x256xf32>
    %c188 = arith.constant 188 : index
    %1806 = memref.load %arg14[%c188] : memref<196xf32, #tpu.memory_space<smem>>
    %1807 = vector.broadcast %1806 : f32 to vector<1x256xf32>
    %1808 = arith.mulf %1802, %1807 : vector<1x256xf32>
    %1809 = arith.addf %1791, %1808 : vector<1x256xf32>
    %c190 = arith.constant 190 : index
    %1810 = memref.load %arg14[%c190] : memref<196xf32, #tpu.memory_space<smem>>
    %1811 = vector.broadcast %1810 : f32 to vector<1x256xf32>
    %1812 = arith.mulf %1805, %1811 : vector<1x256xf32>
    %1813 = arith.addf %1809, %1812 : vector<1x256xf32>
    %c189 = arith.constant 189 : index
    %1814 = memref.load %arg14[%c189] : memref<196xf32, #tpu.memory_space<smem>>
    %1815 = vector.broadcast %1814 : f32 to vector<1x256xf32>
    %1816 = arith.mulf %1802, %1815 : vector<1x256xf32>
    %1817 = arith.addf %1799, %1816 : vector<1x256xf32>
    %c191 = arith.constant 191 : index
    %1818 = memref.load %arg14[%c191] : memref<196xf32, #tpu.memory_space<smem>>
    %1819 = vector.broadcast %1818 : f32 to vector<1x256xf32>
    %1820 = arith.mulf %1805, %1819 : vector<1x256xf32>
    %1821 = arith.addf %1817, %1820 : vector<1x256xf32>
    %c2_i32_461 = arith.constant 2 : i32
    %1822 = vector.broadcast %c2_i32_461 : i32 to vector<1x256xi32>
    %1823 = arith.addi %18, %1822 : vector<1x256xi32>
    %c0_i32_462 = arith.constant 0 : i32
    %1824 = vector.broadcast %c0_i32_462 : i32 to vector<1x256xi32>
    %1825 = arith.cmpi sge, %1823, %1824 : vector<1x256xi32>
    %c2_i32_463 = arith.constant 2 : i32
    %1826 = vector.broadcast %c2_i32_463 : i32 to vector<1x256xi32>
    %1827 = arith.addi %18, %1826 : vector<1x256xi32>
    %c16_i32_464 = arith.constant 16 : i32
    %1828 = vector.broadcast %c16_i32_464 : i32 to vector<1x256xi32>
    %1829 = arith.cmpi slt, %1827, %1828 : vector<1x256xi32>
    %1830 = arith.andi %1825, %1829 : vector<1x256xi1>
    %cst_465 = arith.constant 0.000000e+00 : f32
    %1831 = vector.broadcast %cst_465 : f32 to vector<1x256xf32>
    %1832 = arith.select %1830, %1813, %1831 : vector<1x256xi1>, vector<1x256xf32>
    %1833 = arith.addf %1662, %1832 : vector<1x256xf32>
    %cst_466 = arith.constant 0.000000e+00 : f32
    %1834 = vector.broadcast %cst_466 : f32 to vector<1x256xf32>
    %1835 = arith.select %1830, %1821, %1834 : vector<1x256xi1>, vector<1x256xf32>
    %1836 = arith.addf %1665, %1835 : vector<1x256xf32>
    %cst_467 = arith.constant 0.000000e+00 : f32
    %1837 = vector.broadcast %cst_467 : f32 to vector<1x256xf32>
    %cst_468 = arith.constant 0.000000e+00 : f32
    %1838 = vector.broadcast %cst_468 : f32 to vector<1x256xf32>
    %cst_469 = arith.constant 0.000000e+00 : f32
    %1839 = vector.broadcast %cst_469 : f32 to vector<1x45xf32>
    %1840 = vector.extract_strided_slice %809 {offsets = [0, 0], sizes = [1, 211], strides = [1, 1]} : vector<1x256xf32> to vector<1x211xf32>
    %1841 = tpu.concatenate %1839, %1840 in 1 : vector<1x45xf32>, vector<1x211xf32> -> vector<1x256xf32>
    %cst_470 = arith.constant 0.000000e+00 : f32
    %1842 = vector.broadcast %cst_470 : f32 to vector<1x45xf32>
    %1843 = vector.extract_strided_slice %814 {offsets = [0, 0], sizes = [1, 211], strides = [1, 1]} : vector<1x256xf32> to vector<1x211xf32>
    %1844 = tpu.concatenate %1842, %1843 in 1 : vector<1x45xf32>, vector<1x211xf32> -> vector<1x256xf32>
    %c24_471 = arith.constant 24 : index
    %1845 = memref.load %arg14[%c24_471] : memref<196xf32, #tpu.memory_space<smem>>
    %1846 = vector.broadcast %1845 : f32 to vector<1x256xf32>
    %1847 = arith.mulf %1841, %1846 : vector<1x256xf32>
    %1848 = arith.addf %1837, %1847 : vector<1x256xf32>
    %c26_472 = arith.constant 26 : index
    %1849 = memref.load %arg14[%c26_472] : memref<196xf32, #tpu.memory_space<smem>>
    %1850 = vector.broadcast %1849 : f32 to vector<1x256xf32>
    %1851 = arith.mulf %1844, %1850 : vector<1x256xf32>
    %1852 = arith.addf %1848, %1851 : vector<1x256xf32>
    %c25_473 = arith.constant 25 : index
    %1853 = memref.load %arg14[%c25_473] : memref<196xf32, #tpu.memory_space<smem>>
    %1854 = vector.broadcast %1853 : f32 to vector<1x256xf32>
    %1855 = arith.mulf %1841, %1854 : vector<1x256xf32>
    %1856 = arith.addf %1838, %1855 : vector<1x256xf32>
    %c27_474 = arith.constant 27 : index
    %1857 = memref.load %arg14[%c27_474] : memref<196xf32, #tpu.memory_space<smem>>
    %1858 = vector.broadcast %1857 : f32 to vector<1x256xf32>
    %1859 = arith.mulf %1844, %1858 : vector<1x256xf32>
    %1860 = arith.addf %1856, %1859 : vector<1x256xf32>
    %cst_475 = arith.constant 0.000000e+00 : f32
    %1861 = vector.broadcast %cst_475 : f32 to vector<1x29xf32>
    %1862 = vector.extract_strided_slice %809 {offsets = [0, 0], sizes = [1, 227], strides = [1, 1]} : vector<1x256xf32> to vector<1x227xf32>
    %1863 = tpu.concatenate %1861, %1862 in 1 : vector<1x29xf32>, vector<1x227xf32> -> vector<1x256xf32>
    %cst_476 = arith.constant 0.000000e+00 : f32
    %1864 = vector.broadcast %cst_476 : f32 to vector<1x29xf32>
    %1865 = vector.extract_strided_slice %814 {offsets = [0, 0], sizes = [1, 227], strides = [1, 1]} : vector<1x256xf32> to vector<1x227xf32>
    %1866 = tpu.concatenate %1864, %1865 in 1 : vector<1x29xf32>, vector<1x227xf32> -> vector<1x256xf32>
    %c52 = arith.constant 52 : index
    %1867 = memref.load %arg14[%c52] : memref<196xf32, #tpu.memory_space<smem>>
    %1868 = vector.broadcast %1867 : f32 to vector<1x256xf32>
    %1869 = arith.mulf %1863, %1868 : vector<1x256xf32>
    %1870 = arith.addf %1852, %1869 : vector<1x256xf32>
    %c54 = arith.constant 54 : index
    %1871 = memref.load %arg14[%c54] : memref<196xf32, #tpu.memory_space<smem>>
    %1872 = vector.broadcast %1871 : f32 to vector<1x256xf32>
    %1873 = arith.mulf %1866, %1872 : vector<1x256xf32>
    %1874 = arith.addf %1870, %1873 : vector<1x256xf32>
    %c53 = arith.constant 53 : index
    %1875 = memref.load %arg14[%c53] : memref<196xf32, #tpu.memory_space<smem>>
    %1876 = vector.broadcast %1875 : f32 to vector<1x256xf32>
    %1877 = arith.mulf %1863, %1876 : vector<1x256xf32>
    %1878 = arith.addf %1860, %1877 : vector<1x256xf32>
    %c55 = arith.constant 55 : index
    %1879 = memref.load %arg14[%c55] : memref<196xf32, #tpu.memory_space<smem>>
    %1880 = vector.broadcast %1879 : f32 to vector<1x256xf32>
    %1881 = arith.mulf %1866, %1880 : vector<1x256xf32>
    %1882 = arith.addf %1878, %1881 : vector<1x256xf32>
    %cst_477 = arith.constant 0.000000e+00 : f32
    %1883 = vector.broadcast %cst_477 : f32 to vector<1x13xf32>
    %1884 = vector.extract_strided_slice %809 {offsets = [0, 0], sizes = [1, 243], strides = [1, 1]} : vector<1x256xf32> to vector<1x243xf32>
    %1885 = tpu.concatenate %1883, %1884 in 1 : vector<1x13xf32>, vector<1x243xf32> -> vector<1x256xf32>
    %cst_478 = arith.constant 0.000000e+00 : f32
    %1886 = vector.broadcast %cst_478 : f32 to vector<1x13xf32>
    %1887 = vector.extract_strided_slice %814 {offsets = [0, 0], sizes = [1, 243], strides = [1, 1]} : vector<1x256xf32> to vector<1x243xf32>
    %1888 = tpu.concatenate %1886, %1887 in 1 : vector<1x13xf32>, vector<1x243xf32> -> vector<1x256xf32>
    %c80 = arith.constant 80 : index
    %1889 = memref.load %arg14[%c80] : memref<196xf32, #tpu.memory_space<smem>>
    %1890 = vector.broadcast %1889 : f32 to vector<1x256xf32>
    %1891 = arith.mulf %1885, %1890 : vector<1x256xf32>
    %1892 = arith.addf %1874, %1891 : vector<1x256xf32>
    %c82 = arith.constant 82 : index
    %1893 = memref.load %arg14[%c82] : memref<196xf32, #tpu.memory_space<smem>>
    %1894 = vector.broadcast %1893 : f32 to vector<1x256xf32>
    %1895 = arith.mulf %1888, %1894 : vector<1x256xf32>
    %1896 = arith.addf %1892, %1895 : vector<1x256xf32>
    %c81 = arith.constant 81 : index
    %1897 = memref.load %arg14[%c81] : memref<196xf32, #tpu.memory_space<smem>>
    %1898 = vector.broadcast %1897 : f32 to vector<1x256xf32>
    %1899 = arith.mulf %1885, %1898 : vector<1x256xf32>
    %1900 = arith.addf %1882, %1899 : vector<1x256xf32>
    %c83 = arith.constant 83 : index
    %1901 = memref.load %arg14[%c83] : memref<196xf32, #tpu.memory_space<smem>>
    %1902 = vector.broadcast %1901 : f32 to vector<1x256xf32>
    %1903 = arith.mulf %1888, %1902 : vector<1x256xf32>
    %1904 = arith.addf %1900, %1903 : vector<1x256xf32>
    %cst_479 = arith.constant 0.000000e+00 : f32
    %1905 = vector.broadcast %cst_479 : f32 to vector<1x3xf32>
    %1906 = vector.extract_strided_slice %809 {offsets = [0, 3], sizes = [1, 253], strides = [1, 1]} : vector<1x256xf32> to vector<1x253xf32>
    %1907 = tpu.concatenate %1906, %1905 in 1 : vector<1x253xf32>, vector<1x3xf32> -> vector<1x256xf32>
    %cst_480 = arith.constant 0.000000e+00 : f32
    %1908 = vector.broadcast %cst_480 : f32 to vector<1x3xf32>
    %1909 = vector.extract_strided_slice %814 {offsets = [0, 3], sizes = [1, 253], strides = [1, 1]} : vector<1x256xf32> to vector<1x253xf32>
    %1910 = tpu.concatenate %1909, %1908 in 1 : vector<1x253xf32>, vector<1x3xf32> -> vector<1x256xf32>
    %c108 = arith.constant 108 : index
    %1911 = memref.load %arg14[%c108] : memref<196xf32, #tpu.memory_space<smem>>
    %1912 = vector.broadcast %1911 : f32 to vector<1x256xf32>
    %1913 = arith.mulf %1907, %1912 : vector<1x256xf32>
    %1914 = arith.addf %1896, %1913 : vector<1x256xf32>
    %c110 = arith.constant 110 : index
    %1915 = memref.load %arg14[%c110] : memref<196xf32, #tpu.memory_space<smem>>
    %1916 = vector.broadcast %1915 : f32 to vector<1x256xf32>
    %1917 = arith.mulf %1910, %1916 : vector<1x256xf32>
    %1918 = arith.addf %1914, %1917 : vector<1x256xf32>
    %c109 = arith.constant 109 : index
    %1919 = memref.load %arg14[%c109] : memref<196xf32, #tpu.memory_space<smem>>
    %1920 = vector.broadcast %1919 : f32 to vector<1x256xf32>
    %1921 = arith.mulf %1907, %1920 : vector<1x256xf32>
    %1922 = arith.addf %1904, %1921 : vector<1x256xf32>
    %c111 = arith.constant 111 : index
    %1923 = memref.load %arg14[%c111] : memref<196xf32, #tpu.memory_space<smem>>
    %1924 = vector.broadcast %1923 : f32 to vector<1x256xf32>
    %1925 = arith.mulf %1910, %1924 : vector<1x256xf32>
    %1926 = arith.addf %1922, %1925 : vector<1x256xf32>
    %cst_481 = arith.constant 0.000000e+00 : f32
    %1927 = vector.broadcast %cst_481 : f32 to vector<1x19xf32>
    %1928 = vector.extract_strided_slice %809 {offsets = [0, 19], sizes = [1, 237], strides = [1, 1]} : vector<1x256xf32> to vector<1x237xf32>
    %1929 = tpu.concatenate %1928, %1927 in 1 : vector<1x237xf32>, vector<1x19xf32> -> vector<1x256xf32>
    %cst_482 = arith.constant 0.000000e+00 : f32
    %1930 = vector.broadcast %cst_482 : f32 to vector<1x19xf32>
    %1931 = vector.extract_strided_slice %814 {offsets = [0, 19], sizes = [1, 237], strides = [1, 1]} : vector<1x256xf32> to vector<1x237xf32>
    %1932 = tpu.concatenate %1931, %1930 in 1 : vector<1x237xf32>, vector<1x19xf32> -> vector<1x256xf32>
    %c136 = arith.constant 136 : index
    %1933 = memref.load %arg14[%c136] : memref<196xf32, #tpu.memory_space<smem>>
    %1934 = vector.broadcast %1933 : f32 to vector<1x256xf32>
    %1935 = arith.mulf %1929, %1934 : vector<1x256xf32>
    %1936 = arith.addf %1918, %1935 : vector<1x256xf32>
    %c138 = arith.constant 138 : index
    %1937 = memref.load %arg14[%c138] : memref<196xf32, #tpu.memory_space<smem>>
    %1938 = vector.broadcast %1937 : f32 to vector<1x256xf32>
    %1939 = arith.mulf %1932, %1938 : vector<1x256xf32>
    %1940 = arith.addf %1936, %1939 : vector<1x256xf32>
    %c137 = arith.constant 137 : index
    %1941 = memref.load %arg14[%c137] : memref<196xf32, #tpu.memory_space<smem>>
    %1942 = vector.broadcast %1941 : f32 to vector<1x256xf32>
    %1943 = arith.mulf %1929, %1942 : vector<1x256xf32>
    %1944 = arith.addf %1926, %1943 : vector<1x256xf32>
    %c139 = arith.constant 139 : index
    %1945 = memref.load %arg14[%c139] : memref<196xf32, #tpu.memory_space<smem>>
    %1946 = vector.broadcast %1945 : f32 to vector<1x256xf32>
    %1947 = arith.mulf %1932, %1946 : vector<1x256xf32>
    %1948 = arith.addf %1944, %1947 : vector<1x256xf32>
    %cst_483 = arith.constant 0.000000e+00 : f32
    %1949 = vector.broadcast %cst_483 : f32 to vector<1x35xf32>
    %1950 = vector.extract_strided_slice %809 {offsets = [0, 35], sizes = [1, 221], strides = [1, 1]} : vector<1x256xf32> to vector<1x221xf32>
    %1951 = tpu.concatenate %1950, %1949 in 1 : vector<1x221xf32>, vector<1x35xf32> -> vector<1x256xf32>
    %cst_484 = arith.constant 0.000000e+00 : f32
    %1952 = vector.broadcast %cst_484 : f32 to vector<1x35xf32>
    %1953 = vector.extract_strided_slice %814 {offsets = [0, 35], sizes = [1, 221], strides = [1, 1]} : vector<1x256xf32> to vector<1x221xf32>
    %1954 = tpu.concatenate %1953, %1952 in 1 : vector<1x221xf32>, vector<1x35xf32> -> vector<1x256xf32>
    %c164 = arith.constant 164 : index
    %1955 = memref.load %arg14[%c164] : memref<196xf32, #tpu.memory_space<smem>>
    %1956 = vector.broadcast %1955 : f32 to vector<1x256xf32>
    %1957 = arith.mulf %1951, %1956 : vector<1x256xf32>
    %1958 = arith.addf %1940, %1957 : vector<1x256xf32>
    %c166 = arith.constant 166 : index
    %1959 = memref.load %arg14[%c166] : memref<196xf32, #tpu.memory_space<smem>>
    %1960 = vector.broadcast %1959 : f32 to vector<1x256xf32>
    %1961 = arith.mulf %1954, %1960 : vector<1x256xf32>
    %1962 = arith.addf %1958, %1961 : vector<1x256xf32>
    %c165 = arith.constant 165 : index
    %1963 = memref.load %arg14[%c165] : memref<196xf32, #tpu.memory_space<smem>>
    %1964 = vector.broadcast %1963 : f32 to vector<1x256xf32>
    %1965 = arith.mulf %1951, %1964 : vector<1x256xf32>
    %1966 = arith.addf %1948, %1965 : vector<1x256xf32>
    %c167 = arith.constant 167 : index
    %1967 = memref.load %arg14[%c167] : memref<196xf32, #tpu.memory_space<smem>>
    %1968 = vector.broadcast %1967 : f32 to vector<1x256xf32>
    %1969 = arith.mulf %1954, %1968 : vector<1x256xf32>
    %1970 = arith.addf %1966, %1969 : vector<1x256xf32>
    %cst_485 = arith.constant 0.000000e+00 : f32
    %1971 = vector.broadcast %cst_485 : f32 to vector<1x51xf32>
    %1972 = vector.extract_strided_slice %809 {offsets = [0, 51], sizes = [1, 205], strides = [1, 1]} : vector<1x256xf32> to vector<1x205xf32>
    %1973 = tpu.concatenate %1972, %1971 in 1 : vector<1x205xf32>, vector<1x51xf32> -> vector<1x256xf32>
    %cst_486 = arith.constant 0.000000e+00 : f32
    %1974 = vector.broadcast %cst_486 : f32 to vector<1x51xf32>
    %1975 = vector.extract_strided_slice %814 {offsets = [0, 51], sizes = [1, 205], strides = [1, 1]} : vector<1x256xf32> to vector<1x205xf32>
    %1976 = tpu.concatenate %1975, %1974 in 1 : vector<1x205xf32>, vector<1x51xf32> -> vector<1x256xf32>
    %c192 = arith.constant 192 : index
    %1977 = memref.load %arg14[%c192] : memref<196xf32, #tpu.memory_space<smem>>
    %1978 = vector.broadcast %1977 : f32 to vector<1x256xf32>
    %1979 = arith.mulf %1973, %1978 : vector<1x256xf32>
    %1980 = arith.addf %1962, %1979 : vector<1x256xf32>
    %c194 = arith.constant 194 : index
    %1981 = memref.load %arg14[%c194] : memref<196xf32, #tpu.memory_space<smem>>
    %1982 = vector.broadcast %1981 : f32 to vector<1x256xf32>
    %1983 = arith.mulf %1976, %1982 : vector<1x256xf32>
    %1984 = arith.addf %1980, %1983 : vector<1x256xf32>
    %c193 = arith.constant 193 : index
    %1985 = memref.load %arg14[%c193] : memref<196xf32, #tpu.memory_space<smem>>
    %1986 = vector.broadcast %1985 : f32 to vector<1x256xf32>
    %1987 = arith.mulf %1973, %1986 : vector<1x256xf32>
    %1988 = arith.addf %1970, %1987 : vector<1x256xf32>
    %c195 = arith.constant 195 : index
    %1989 = memref.load %arg14[%c195] : memref<196xf32, #tpu.memory_space<smem>>
    %1990 = vector.broadcast %1989 : f32 to vector<1x256xf32>
    %1991 = arith.mulf %1976, %1990 : vector<1x256xf32>
    %1992 = arith.addf %1988, %1991 : vector<1x256xf32>
    %c3_i32_487 = arith.constant 3 : i32
    %1993 = vector.broadcast %c3_i32_487 : i32 to vector<1x256xi32>
    %1994 = arith.addi %18, %1993 : vector<1x256xi32>
    %c0_i32_488 = arith.constant 0 : i32
    %1995 = vector.broadcast %c0_i32_488 : i32 to vector<1x256xi32>
    %1996 = arith.cmpi sge, %1994, %1995 : vector<1x256xi32>
    %c3_i32_489 = arith.constant 3 : i32
    %1997 = vector.broadcast %c3_i32_489 : i32 to vector<1x256xi32>
    %1998 = arith.addi %18, %1997 : vector<1x256xi32>
    %c16_i32_490 = arith.constant 16 : i32
    %1999 = vector.broadcast %c16_i32_490 : i32 to vector<1x256xi32>
    %2000 = arith.cmpi slt, %1998, %1999 : vector<1x256xi32>
    %2001 = arith.andi %1996, %2000 : vector<1x256xi1>
    %cst_491 = arith.constant 0.000000e+00 : f32
    %2002 = vector.broadcast %cst_491 : f32 to vector<1x256xf32>
    %2003 = arith.select %2001, %1984, %2002 : vector<1x256xi1>, vector<1x256xf32>
    %2004 = arith.addf %1833, %2003 : vector<1x256xf32>
    %cst_492 = arith.constant 0.000000e+00 : f32
    %2005 = vector.broadcast %cst_492 : f32 to vector<1x256xf32>
    %2006 = arith.select %2001, %1992, %2005 : vector<1x256xi1>, vector<1x256xf32>
    %2007 = arith.addf %1836, %2006 : vector<1x256xf32>
    %c0_493 = arith.constant 0 : index
    %2008 = memref.load %arg15[%c0_493] : memref<2xf32, #tpu.memory_space<smem>>
    %2009 = vector.broadcast %2008 : f32 to vector<1x256xf32>
    %2010 = arith.addf %2004, %2009 : vector<1x256xf32>
    %2011 = math.absf %2010 : vector<1x256xf32>
    %cst_494 = arith.constant 0.000000e+00 : f32
    %2012 = vector.broadcast %cst_494 : f32 to vector<1x256xf32>
    %2013 = arith.subf %2012, %2011 : vector<1x256xf32>
    %2014 = math.exp %2013 : vector<1x256xf32>
    %cst_495 = arith.constant 0.000000e+00 : f32
    %2015 = vector.broadcast %cst_495 : f32 to vector<1x256xf32>
    %2016 = arith.cmpf oge, %2010, %2015 : vector<1x256xf32>
    %cst_496 = arith.constant 1.000000e+00 : f32
    %2017 = vector.broadcast %cst_496 : f32 to vector<1x256xf32>
    %2018 = arith.addf %2017, %2014 : vector<1x256xf32>
    %cst_497 = arith.constant 1.000000e+00 : f32
    %2019 = vector.broadcast %cst_497 : f32 to vector<1x256xf32>
    %2020 = arith.divf %2019, %2018 : vector<1x256xf32>
    %cst_498 = arith.constant 1.000000e+00 : f32
    %2021 = vector.broadcast %cst_498 : f32 to vector<1x256xf32>
    %2022 = arith.addf %2021, %2014 : vector<1x256xf32>
    %2023 = arith.divf %2014, %2022 : vector<1x256xf32>
    %2024 = arith.select %2016, %2020, %2023 : vector<1x256xi1>, vector<1x256xf32>
    %c1_499 = arith.constant 1 : index
    %2025 = memref.load %arg15[%c1_499] : memref<2xf32, #tpu.memory_space<smem>>
    %2026 = vector.broadcast %2025 : f32 to vector<1x256xf32>
    %2027 = arith.addf %2007, %2026 : vector<1x256xf32>
    %2028 = math.absf %2027 : vector<1x256xf32>
    %cst_500 = arith.constant 0.000000e+00 : f32
    %2029 = vector.broadcast %cst_500 : f32 to vector<1x256xf32>
    %2030 = arith.subf %2029, %2028 : vector<1x256xf32>
    %2031 = math.exp %2030 : vector<1x256xf32>
    %cst_501 = arith.constant 0.000000e+00 : f32
    %2032 = vector.broadcast %cst_501 : f32 to vector<1x256xf32>
    %2033 = arith.cmpf oge, %2027, %2032 : vector<1x256xf32>
    %cst_502 = arith.constant 1.000000e+00 : f32
    %2034 = vector.broadcast %cst_502 : f32 to vector<1x256xf32>
    %2035 = arith.addf %2034, %2031 : vector<1x256xf32>
    %cst_503 = arith.constant 1.000000e+00 : f32
    %2036 = vector.broadcast %cst_503 : f32 to vector<1x256xf32>
    %2037 = arith.divf %2036, %2035 : vector<1x256xf32>
    %cst_504 = arith.constant 1.000000e+00 : f32
    %2038 = vector.broadcast %cst_504 : f32 to vector<1x256xf32>
    %2039 = arith.addf %2038, %2031 : vector<1x256xf32>
    %2040 = arith.divf %2031, %2039 : vector<1x256xf32>
    %2041 = arith.select %2033, %2037, %2040 : vector<1x256xi1>, vector<1x256xf32>
    %2042 = vector.broadcast %2024 : vector<1x256xf32> to vector<4x256xf32>
    %2043 = arith.mulf %346, %2042 : vector<4x256xf32>
    %2044 = vector.broadcast %2041 : vector<1x256xf32> to vector<4x256xf32>
    %2045 = arith.mulf %802, %2044 : vector<4x256xf32>
    %2046 = arith.addf %2043, %2045 : vector<4x256xf32>
    %c0_505 = arith.constant 0 : index
    %c0_506 = arith.constant 0 : index
    %2047 = vector.load %arg16[%c0_505, %c0_506] : memref<8x4xf32, #tpu.memory_space<vmem>>, vector<8x4xf32>
    %2048 = arith.truncf %2047 : vector<8x4xf32> to vector<8x4xbf16>
    %2049 = arith.truncf %2046 : vector<4x256xf32> to vector<4x256xbf16>
    %cst_507 = arith.constant dense<0.000000e+00> : vector<8x256xf32>
    %2050 = tpu.matmul %2048, %2049, %cst_507 {dimension_numbers = #tpu.dot_dimension_numbers<[1], [0], [0], [1], [0, 0, 1, 1], [], []>} : vector<8x4xbf16>, vector<4x256xbf16>, vector<8x256xf32> -> vector<8x256xf32>
    %c0_508 = arith.constant 0 : index
    %c0_509 = arith.constant 0 : index
    %2051 = vector.load %arg17[%c0_508, %c0_509] : memref<8x1xf32, #tpu.memory_space<vmem>>, vector<8x1xf32>
    %2052 = vector.broadcast %2051 : vector<8x1xf32> to vector<8x256xf32>
    %2053 = arith.addf %2050, %2052 : vector<8x256xf32>
    %c0_510 = arith.constant 0 : index
    %c0_511 = arith.constant 0 : index
    %2054 = vector.load %arg18[%c0_510, %c0_511] : memref<8x8xf32, #tpu.memory_space<vmem>>, vector<8x8xf32>
    %2055 = arith.truncf %2054 : vector<8x8xf32> to vector<8x8xbf16>
    %2056 = arith.truncf %2053 : vector<8x256xf32> to vector<8x256xbf16>
    %cst_512 = arith.constant dense<0.000000e+00> : vector<8x256xf32>
    %2057 = tpu.matmul %2055, %2056, %cst_512 {dimension_numbers = #tpu.dot_dimension_numbers<[1], [0], [0], [1], [0, 0, 1, 1], [], []>} : vector<8x8xbf16>, vector<8x256xbf16>, vector<8x256xf32> -> vector<8x256xf32>
    %c0_513 = arith.constant 0 : index
    %c0_514 = arith.constant 0 : index
    %2058 = vector.load %arg19[%c0_513, %c0_514] : memref<8x1xf32, #tpu.memory_space<vmem>>, vector<8x1xf32>
    %2059 = vector.broadcast %2058 : vector<8x1xf32> to vector<8x256xf32>
    %2060 = arith.addf %2057, %2059 : vector<8x256xf32>
    %c0_515 = arith.constant 0 : index
    %c0_516 = arith.constant 0 : index
    %2061 = vector.load %arg20[%c0_515, %c0_516] : memref<8x1xf32, #tpu.memory_space<vmem>>, vector<8x1xf32>
    %2062 = vector.broadcast %2061 : vector<8x1xf32> to vector<8x256xf32>
    %2063 = arith.mulf %2060, %2062 : vector<8x256xf32>
    %2064 = arith.addf %2063, %1 : vector<8x256xf32>
    %c0_517 = arith.constant 0 : index
    %c0_518 = arith.constant 0 : index
    %2065 = vector.load %arg21[%c0_517, %c0_518] : memref<8x1xf32, #tpu.memory_space<vmem>>, vector<8x1xf32>
    %c0_519 = arith.constant 0 : index
    %c0_520 = arith.constant 0 : index
    %2066 = vector.load %arg22[%c0_519, %c0_520] : memref<8x1xf32, #tpu.memory_space<vmem>>, vector<8x1xf32>
    %cst_521 = arith.constant dense<0.000000e+00> : vector<256xf32>
    %2067 = vector.multi_reduction <add>, %2064, %cst_521 [0] : vector<8x256xf32> to vector<256xf32>
    %2068 = vector.shape_cast %2067 : vector<256xf32> to vector<1x256xf32>
    %cst_522 = arith.constant 8.000000e+00 : f32
    %2069 = vector.broadcast %cst_522 : f32 to vector<1x256xf32>
    %2070 = arith.divf %2068, %2069 : vector<1x256xf32>
    %2071 = vector.broadcast %2070 : vector<1x256xf32> to vector<8x256xf32>
    %2072 = arith.subf %2064, %2071 : vector<8x256xf32>
    %2073 = arith.mulf %2072, %2072 : vector<8x256xf32>
    %cst_523 = arith.constant dense<0.000000e+00> : vector<256xf32>
    %2074 = vector.multi_reduction <add>, %2073, %cst_523 [0] : vector<8x256xf32> to vector<256xf32>
    %2075 = vector.shape_cast %2074 : vector<256xf32> to vector<1x256xf32>
    %cst_524 = arith.constant 8.000000e+00 : f32
    %2076 = vector.broadcast %cst_524 : f32 to vector<1x256xf32>
    %2077 = arith.divf %2075, %2076 : vector<1x256xf32>
    %cst_525 = arith.constant 9.99999997E-7 : f32
    %2078 = vector.broadcast %cst_525 : f32 to vector<1x256xf32>
    %2079 = arith.addf %2077, %2078 : vector<1x256xf32>
    %2080 = math.rsqrt %2079 : vector<1x256xf32>
    %2081 = vector.broadcast %2080 : vector<1x256xf32> to vector<8x256xf32>
    %2082 = arith.mulf %2072, %2081 : vector<8x256xf32>
    %2083 = vector.broadcast %2065 : vector<8x1xf32> to vector<8x256xf32>
    %2084 = arith.mulf %2082, %2083 : vector<8x256xf32>
    %2085 = vector.broadcast %2066 : vector<8x1xf32> to vector<8x256xf32>
    %2086 = arith.addf %2084, %2085 : vector<8x256xf32>
    %c0_526 = arith.constant 0 : index
    %c0_527 = arith.constant 0 : index
    %c0_528 = arith.constant 0 : index
    %2087 = vector.load %arg23[%c0_526, %c0_527, %c0_528] : memref<3x8x8xf32, #tpu.memory_space<vmem>>, vector<1x8x8xf32>
    %2088 = vector.shape_cast %2087 : vector<1x8x8xf32> to vector<8x8xf32>
    %2089 = arith.truncf %2088 : vector<8x8xf32> to vector<8x8xbf16>
    %2090 = arith.truncf %2086 : vector<8x256xf32> to vector<8x256xbf16>
    %cst_529 = arith.constant dense<0.000000e+00> : vector<8x256xf32>
    %2091 = tpu.matmul %2089, %2090, %cst_529 {dimension_numbers = #tpu.dot_dimension_numbers<[1], [0], [0], [1], [0, 0, 1, 1], [], []>} : vector<8x8xbf16>, vector<8x256xbf16>, vector<8x256xf32> -> vector<8x256xf32>
    %c1_530 = arith.constant 1 : index
    %c0_531 = arith.constant 0 : index
    %c0_532 = arith.constant 0 : index
    %2092 = vector.load %arg23[%c1_530, %c0_531, %c0_532] : memref<3x8x8xf32, #tpu.memory_space<vmem>>, vector<1x8x8xf32>
    %2093 = vector.shape_cast %2092 : vector<1x8x8xf32> to vector<8x8xf32>
    %2094 = arith.truncf %2093 : vector<8x8xf32> to vector<8x8xbf16>
    %2095 = arith.truncf %2086 : vector<8x256xf32> to vector<8x256xbf16>
    %cst_533 = arith.constant dense<0.000000e+00> : vector<8x256xf32>
    %2096 = tpu.matmul %2094, %2095, %cst_533 {dimension_numbers = #tpu.dot_dimension_numbers<[1], [0], [0], [1], [0, 0, 1, 1], [], []>} : vector<8x8xbf16>, vector<8x256xbf16>, vector<8x256xf32> -> vector<8x256xf32>
    %c2_534 = arith.constant 2 : index
    %c0_535 = arith.constant 0 : index
    %c0_536 = arith.constant 0 : index
    %2097 = vector.load %arg23[%c2_534, %c0_535, %c0_536] : memref<3x8x8xf32, #tpu.memory_space<vmem>>, vector<1x8x8xf32>
    %2098 = vector.shape_cast %2097 : vector<1x8x8xf32> to vector<8x8xf32>
    %2099 = arith.truncf %2098 : vector<8x8xf32> to vector<8x8xbf16>
    %2100 = arith.truncf %2086 : vector<8x256xf32> to vector<8x256xbf16>
    %cst_537 = arith.constant dense<0.000000e+00> : vector<8x256xf32>
    %2101 = tpu.matmul %2099, %2100, %cst_537 {dimension_numbers = #tpu.dot_dimension_numbers<[1], [0], [0], [1], [0, 0, 1, 1], [], []>} : vector<8x8xbf16>, vector<8x256xbf16>, vector<8x256xf32> -> vector<8x256xf32>
    %c1_i32_538 = arith.constant 1 : i32
    %2102 = vector.broadcast %c1_i32_538 : i32 to vector<1x256xi32>
    %2103 = arith.cmpi sge, %18, %2102 : vector<1x256xi32>
    %cst_539 = arith.constant 0.000000e+00 : f32
    %2104 = vector.broadcast %cst_539 : f32 to vector<8x1xf32>
    %2105 = vector.extract_strided_slice %2091 {offsets = [0, 0], sizes = [8, 255], strides = [1, 1]} : vector<8x256xf32> to vector<8x255xf32>
    %2106 = tpu.concatenate %2104, %2105 in 1 : vector<8x1xf32>, vector<8x255xf32> -> vector<8x256xf32>
    %cst_540 = arith.constant 0.000000e+00 : f32
    %2107 = vector.shape_cast %2103 : vector<1x256xi1> to vector<1x256xi1>
    %2108 = vector.broadcast %2107 : vector<1x256xi1> to vector<8x256xi1>
    %2109 = vector.broadcast %cst_540 : f32 to vector<8x256xf32>
    %2110 = arith.select %2108, %2106, %2109 : vector<8x256xi1>, vector<8x256xf32>
    %2111 = arith.addf %2096, %2110 : vector<8x256xf32>
    %c14_i32 = arith.constant 14 : i32
    %2112 = vector.broadcast %c14_i32 : i32 to vector<1x256xi32>
    %2113 = arith.cmpi sle, %18, %2112 : vector<1x256xi32>
    %cst_541 = arith.constant 0.000000e+00 : f32
    %2114 = vector.broadcast %cst_541 : f32 to vector<8x1xf32>
    %2115 = vector.extract_strided_slice %2101 {offsets = [0, 1], sizes = [8, 255], strides = [1, 1]} : vector<8x256xf32> to vector<8x255xf32>
    %2116 = tpu.concatenate %2115, %2114 in 1 : vector<8x255xf32>, vector<8x1xf32> -> vector<8x256xf32>
    %cst_542 = arith.constant 0.000000e+00 : f32
    %2117 = vector.shape_cast %2113 : vector<1x256xi1> to vector<1x256xi1>
    %2118 = vector.broadcast %2117 : vector<1x256xi1> to vector<8x256xi1>
    %2119 = vector.broadcast %cst_542 : f32 to vector<8x256xf32>
    %2120 = arith.select %2118, %2116, %2119 : vector<8x256xi1>, vector<8x256xf32>
    %2121 = arith.addf %2111, %2120 : vector<8x256xf32>
    %c0_543 = arith.constant 0 : index
    %c0_544 = arith.constant 0 : index
    %2122 = vector.load %arg24[%c0_543, %c0_544] : memref<8x1xf32, #tpu.memory_space<vmem>>, vector<8x1xf32>
    %2123 = vector.broadcast %2122 : vector<8x1xf32> to vector<8x256xf32>
    %2124 = arith.addf %2121, %2123 : vector<8x256xf32>
    %c0_545 = arith.constant 0 : index
    %c0_546 = arith.constant 0 : index
    %c0_547 = arith.constant 0 : index
    %2125 = vector.load %arg25[%c0_545, %c0_546, %c0_547] : memref<3x16x8xf32, #tpu.memory_space<vmem>>, vector<1x16x8xf32>
    %2126 = vector.shape_cast %2125 : vector<1x16x8xf32> to vector<16x8xf32>
    %2127 = arith.truncf %2126 : vector<16x8xf32> to vector<16x8xbf16>
    %2128 = arith.truncf %2124 : vector<8x256xf32> to vector<8x256xbf16>
    %cst_548 = arith.constant dense<0.000000e+00> : vector<16x256xf32>
    %2129 = tpu.matmul %2127, %2128, %cst_548 {dimension_numbers = #tpu.dot_dimension_numbers<[1], [0], [0], [1], [0, 0, 1, 1], [], []>} : vector<16x8xbf16>, vector<8x256xbf16>, vector<16x256xf32> -> vector<16x256xf32>
    %c1_549 = arith.constant 1 : index
    %c0_550 = arith.constant 0 : index
    %c0_551 = arith.constant 0 : index
    %2130 = vector.load %arg25[%c1_549, %c0_550, %c0_551] : memref<3x16x8xf32, #tpu.memory_space<vmem>>, vector<1x16x8xf32>
    %2131 = vector.shape_cast %2130 : vector<1x16x8xf32> to vector<16x8xf32>
    %2132 = arith.truncf %2131 : vector<16x8xf32> to vector<16x8xbf16>
    %2133 = arith.truncf %2124 : vector<8x256xf32> to vector<8x256xbf16>
    %cst_552 = arith.constant dense<0.000000e+00> : vector<16x256xf32>
    %2134 = tpu.matmul %2132, %2133, %cst_552 {dimension_numbers = #tpu.dot_dimension_numbers<[1], [0], [0], [1], [0, 0, 1, 1], [], []>} : vector<16x8xbf16>, vector<8x256xbf16>, vector<16x256xf32> -> vector<16x256xf32>
    %c2_553 = arith.constant 2 : index
    %c0_554 = arith.constant 0 : index
    %c0_555 = arith.constant 0 : index
    %2135 = vector.load %arg25[%c2_553, %c0_554, %c0_555] : memref<3x16x8xf32, #tpu.memory_space<vmem>>, vector<1x16x8xf32>
    %2136 = vector.shape_cast %2135 : vector<1x16x8xf32> to vector<16x8xf32>
    %2137 = arith.truncf %2136 : vector<16x8xf32> to vector<16x8xbf16>
    %2138 = arith.truncf %2124 : vector<8x256xf32> to vector<8x256xbf16>
    %cst_556 = arith.constant dense<0.000000e+00> : vector<16x256xf32>
    %2139 = tpu.matmul %2137, %2138, %cst_556 {dimension_numbers = #tpu.dot_dimension_numbers<[1], [0], [0], [1], [0, 0, 1, 1], [], []>} : vector<16x8xbf16>, vector<8x256xbf16>, vector<16x256xf32> -> vector<16x256xf32>
    %cst_557 = arith.constant 0.000000e+00 : f32
    %2140 = vector.broadcast %cst_557 : f32 to vector<16x16xf32>
    %2141 = vector.extract_strided_slice %2129 {offsets = [0, 0], sizes = [16, 240], strides = [1, 1]} : vector<16x256xf32> to vector<16x240xf32>
    %2142 = tpu.concatenate %2140, %2141 in 1 : vector<16x16xf32>, vector<16x240xf32> -> vector<16x256xf32>
    %2143 = arith.addf %2134, %2142 : vector<16x256xf32>
    %cst_558 = arith.constant 0.000000e+00 : f32
    %2144 = vector.broadcast %cst_558 : f32 to vector<16x16xf32>
    %2145 = vector.extract_strided_slice %2139 {offsets = [0, 16], sizes = [16, 240], strides = [1, 1]} : vector<16x256xf32> to vector<16x240xf32>
    %2146 = tpu.concatenate %2145, %2144 in 1 : vector<16x240xf32>, vector<16x16xf32> -> vector<16x256xf32>
    %2147 = arith.addf %2143, %2146 : vector<16x256xf32>
    %c0_559 = arith.constant 0 : index
    %c0_560 = arith.constant 0 : index
    %2148 = vector.load %arg26[%c0_559, %c0_560] : memref<16x1xf32, #tpu.memory_space<vmem>>, vector<16x1xf32>
    %2149 = vector.broadcast %2148 : vector<16x1xf32> to vector<16x256xf32>
    %2150 = arith.addf %2147, %2149 : vector<16x256xf32>
    %cst_561 = arith.constant 5.000000e-01 : f32
    %2151 = vector.broadcast %cst_561 : f32 to vector<16x256xf32>
    %2152 = arith.mulf %2151, %2150 : vector<16x256xf32>
    %cst_562 = arith.constant 0.707106769 : f32
    %2153 = vector.broadcast %cst_562 : f32 to vector<16x256xf32>
    %2154 = arith.mulf %2150, %2153 : vector<16x256xf32>
    %cst_563 = arith.constant 0.000000e+00 : f32
    %2155 = vector.broadcast %cst_563 : f32 to vector<16x256xf32>
    %2156 = arith.cmpf oge, %2154, %2155 : vector<16x256xf32>
    %cst_564 = arith.constant 1.000000e+00 : f32
    %cst_565 = arith.constant -1.000000e+00 : f32
    %2157 = vector.broadcast %cst_564 : f32 to vector<16x256xf32>
    %2158 = vector.broadcast %cst_565 : f32 to vector<16x256xf32>
    %2159 = arith.select %2156, %2157, %2158 : vector<16x256xi1>, vector<16x256xf32>
    %2160 = math.absf %2154 : vector<16x256xf32>
    %cst_566 = arith.constant 0.327591091 : f32
    %2161 = vector.broadcast %cst_566 : f32 to vector<16x256xf32>
    %2162 = arith.mulf %2161, %2160 : vector<16x256xf32>
    %cst_567 = arith.constant 1.000000e+00 : f32
    %2163 = vector.broadcast %cst_567 : f32 to vector<16x256xf32>
    %2164 = arith.addf %2163, %2162 : vector<16x256xf32>
    %cst_568 = arith.constant 1.000000e+00 : f32
    %2165 = vector.broadcast %cst_568 : f32 to vector<16x256xf32>
    %2166 = arith.divf %2165, %2164 : vector<16x256xf32>
    %cst_569 = arith.constant 1.06140542 : f32
    %2167 = vector.broadcast %cst_569 : f32 to vector<16x256xf32>
    %2168 = arith.mulf %2167, %2166 : vector<16x256xf32>
    %cst_570 = arith.constant -1.45315206 : f32
    %2169 = vector.broadcast %cst_570 : f32 to vector<16x256xf32>
    %2170 = arith.addf %2168, %2169 : vector<16x256xf32>
    %2171 = arith.mulf %2170, %2166 : vector<16x256xf32>
    %cst_571 = arith.constant 1.42141378 : f32
    %2172 = vector.broadcast %cst_571 : f32 to vector<16x256xf32>
    %2173 = arith.addf %2171, %2172 : vector<16x256xf32>
    %2174 = arith.mulf %2173, %2166 : vector<16x256xf32>
    %cst_572 = arith.constant -0.284496725 : f32
    %2175 = vector.broadcast %cst_572 : f32 to vector<16x256xf32>
    %2176 = arith.addf %2174, %2175 : vector<16x256xf32>
    %2177 = arith.mulf %2176, %2166 : vector<16x256xf32>
    %cst_573 = arith.constant 0.254829586 : f32
    %2178 = vector.broadcast %cst_573 : f32 to vector<16x256xf32>
    %2179 = arith.addf %2177, %2178 : vector<16x256xf32>
    %2180 = arith.mulf %2179, %2166 : vector<16x256xf32>
    %cst_574 = arith.constant 0.000000e+00 : f32
    %2181 = vector.broadcast %cst_574 : f32 to vector<16x256xf32>
    %2182 = arith.subf %2181, %2160 : vector<16x256xf32>
    %2183 = arith.mulf %2182, %2160 : vector<16x256xf32>
    %2184 = math.exp %2183 : vector<16x256xf32>
    %2185 = arith.mulf %2180, %2184 : vector<16x256xf32>
    %cst_575 = arith.constant 1.000000e+00 : f32
    %2186 = vector.broadcast %cst_575 : f32 to vector<16x256xf32>
    %2187 = arith.subf %2186, %2185 : vector<16x256xf32>
    %2188 = arith.mulf %2159, %2187 : vector<16x256xf32>
    %cst_576 = arith.constant 1.000000e+00 : f32
    %2189 = vector.broadcast %cst_576 : f32 to vector<16x256xf32>
    %2190 = arith.addf %2189, %2188 : vector<16x256xf32>
    %2191 = arith.mulf %2152, %2190 : vector<16x256xf32>
    %c0_577 = arith.constant 0 : index
    %c0_578 = arith.constant 0 : index
    %2192 = vector.load %arg27[%c0_577, %c0_578] : memref<8x16xf32, #tpu.memory_space<vmem>>, vector<8x16xf32>
    %2193 = arith.truncf %2192 : vector<8x16xf32> to vector<8x16xbf16>
    %2194 = arith.truncf %2191 : vector<16x256xf32> to vector<16x256xbf16>
    %cst_579 = arith.constant dense<0.000000e+00> : vector<8x256xf32>
    %2195 = tpu.matmul %2193, %2194, %cst_579 {dimension_numbers = #tpu.dot_dimension_numbers<[1], [0], [0], [1], [0, 0, 1, 1], [], []>} : vector<8x16xbf16>, vector<16x256xbf16>, vector<8x256xf32> -> vector<8x256xf32>
    %c0_580 = arith.constant 0 : index
    %c0_581 = arith.constant 0 : index
    %2196 = vector.load %arg28[%c0_580, %c0_581] : memref<8x1xf32, #tpu.memory_space<vmem>>, vector<8x1xf32>
    %2197 = vector.broadcast %2196 : vector<8x1xf32> to vector<8x256xf32>
    %2198 = arith.addf %2195, %2197 : vector<8x256xf32>
    %c0_582 = arith.constant 0 : index
    %c0_583 = arith.constant 0 : index
    %2199 = vector.load %arg29[%c0_582, %c0_583] : memref<8x1xf32, #tpu.memory_space<vmem>>, vector<8x1xf32>
    %2200 = vector.broadcast %2199 : vector<8x1xf32> to vector<8x256xf32>
    %2201 = arith.mulf %2198, %2200 : vector<8x256xf32>
    %2202 = arith.addf %2201, %2064 : vector<8x256xf32>
    %c0_584 = arith.constant 0 : index
    %c0_585 = arith.constant 0 : index
    %c0_586 = arith.constant 0 : index
    %2203 = vector.load %arg30[%c0_584, %c0_585, %c0_586] : memref<1x8x256xf32, #tpu.memory_space<vmem>>, vector<1x8x256xf32>
    %2204 = vector.shape_cast %2203 : vector<1x8x256xf32> to vector<8x256xf32>
    %2205 = vector.shape_cast %2202 : vector<8x256xf32> to vector<1x8x256xf32>
    tpu.vector_store %arg30[%c0_584, %c0_585, %c0_586], %2205 {strides = array<i32>} : memref<1x8x256xf32, #tpu.memory_space<vmem>>, vector<1x8x256xf32>,
    return
  }
  func.func @transform_0(%arg0: i32) -> (i32, i32, i32) {
    %c0_i32 = arith.constant 0 : i32
    %c0_i32_0 = arith.constant 0 : i32
    %c0_i32_1 = arith.constant 0 : i32
    return %arg0, %c0_i32, %c0_i32_0 : i32, i32, i32
  }
  func.func @transform_1(%arg0: i32) -> (i32, i32) {
    %c0_i32 = arith.constant 0 : i32
    %c0_i32_0 = arith.constant 0 : i32
    %c0_i32_1 = arith.constant 0 : i32
    return %c0_i32, %c0_i32_0 : i32, i32
  }
  func.func @transform_2(%arg0: i32) -> (i32, i32) {
    %c0_i32 = arith.constant 0 : i32
    %c0_i32_0 = arith.constant 0 : i32
    %c0_i32_1 = arith.constant 0 : i32
    return %c0_i32, %c0_i32_0 : i32, i32
  }
  func.func @transform_3(%arg0: i32) -> (i32, i32) {
    %c0_i32 = arith.constant 0 : i32
    %c0_i32_0 = arith.constant 0 : i32
    %c0_i32_1 = arith.constant 0 : i32
    return %c0_i32, %c0_i32_0 : i32, i32
  }
  func.func @transform_4(%arg0: i32) -> (i32, i32) {
    %c0_i32 = arith.constant 0 : i32
    %c0_i32_0 = arith.constant 0 : i32
    %c0_i32_1 = arith.constant 0 : i32
    return %c0_i32, %c0_i32_0 : i32, i32
  }
  func.func @transform_5(%arg0: i32) -> (i32, i32) {
    %c0_i32 = arith.constant 0 : i32
    %c0_i32_0 = arith.constant 0 : i32
    %c0_i32_1 = arith.constant 0 : i32
    return %c0_i32, %c0_i32_0 : i32, i32
  }
  func.func @transform_6(%arg0: i32) -> (i32, i32) {
    %c0_i32 = arith.constant 0 : i32
    %c0_i32_0 = arith.constant 0 : i32
    %c0_i32_1 = arith.constant 0 : i32
    return %c0_i32, %c0_i32_0 : i32, i32
  }
  func.func @transform_7(%arg0: i32) -> (i32, i32) {
    %c0_i32 = arith.constant 0 : i32
    %c0_i32_0 = arith.constant 0 : i32
    %c0_i32_1 = arith.constant 0 : i32
    return %c0_i32, %c0_i32_0 : i32, i32
  }
  func.func @transform_8(%arg0: i32) -> (i32, i32) {
    %c0_i32 = arith.constant 0 : i32
    %c0_i32_0 = arith.constant 0 : i32
    %c0_i32_1 = arith.constant 0 : i32
    return %c0_i32, %c0_i32_0 : i32, i32
  }
  func.func @transform_9(%arg0: i32) -> (i32, i32) {
    %c0_i32 = arith.constant 0 : i32
    %c0_i32_0 = arith.constant 0 : i32
    %c0_i32_1 = arith.constant 0 : i32
    return %c0_i32, %c0_i32_0 : i32, i32
  }
  func.func @transform_10(%arg0: i32) -> (i32, i32) {
    %c0_i32 = arith.constant 0 : i32
    %c0_i32_0 = arith.constant 0 : i32
    %c0_i32_1 = arith.constant 0 : i32
    return %c0_i32, %c0_i32_0 : i32, i32
  }
  func.func @transform_11(%arg0: i32) -> (i32, i32) {
    %c0_i32 = arith.constant 0 : i32
    %c0_i32_0 = arith.constant 0 : i32
    %c0_i32_1 = arith.constant 0 : i32
    return %c0_i32, %c0_i32_0 : i32, i32
  }
  func.func @transform_12(%arg0: i32) -> (i32, i32) {
    %c0_i32 = arith.constant 0 : i32
    %c0_i32_0 = arith.constant 0 : i32
    %c0_i32_1 = arith.constant 0 : i32
    return %c0_i32, %c0_i32_0 : i32, i32
  }
  func.func @transform_13(%arg0: i32) -> i32 {
    %c0_i32 = arith.constant 0 : i32
    %c0_i32_0 = arith.constant 0 : i32
    return %c0_i32 : i32
  }
  func.func @transform_14(%arg0: i32) -> i32 {
    %c0_i32 = arith.constant 0 : i32
    %c0_i32_0 = arith.constant 0 : i32
    return %c0_i32 : i32
  }
  func.func @transform_15(%arg0: i32) -> (i32, i32) {
    %c0_i32 = arith.constant 0 : i32
    %c0_i32_0 = arith.constant 0 : i32
    %c0_i32_1 = arith.constant 0 : i32
    return %c0_i32, %c0_i32_0 : i32, i32
  }
  func.func @transform_16(%arg0: i32) -> (i32, i32) {
    %c0_i32 = arith.constant 0 : i32
    %c0_i32_0 = arith.constant 0 : i32
    %c0_i32_1 = arith.constant 0 : i32
    return %c0_i32, %c0_i32_0 : i32, i32
  }
  func.func @transform_17(%arg0: i32) -> (i32, i32) {
    %c0_i32 = arith.constant 0 : i32
    %c0_i32_0 = arith.constant 0 : i32
    %c0_i32_1 = arith.constant 0 : i32
    return %c0_i32, %c0_i32_0 : i32, i32
  }
  func.func @transform_18(%arg0: i32) -> (i32, i32) {
    %c0_i32 = arith.constant 0 : i32
    %c0_i32_0 = arith.constant 0 : i32
    %c0_i32_1 = arith.constant 0 : i32
    return %c0_i32, %c0_i32_0 : i32, i32
  }
  func.func @transform_19(%arg0: i32) -> (i32, i32) {
    %c0_i32 = arith.constant 0 : i32
    %c0_i32_0 = arith.constant 0 : i32
    %c0_i32_1 = arith.constant 0 : i32
    return %c0_i32, %c0_i32_0 : i32, i32
  }
  func.func @transform_20(%arg0: i32) -> (i32, i32) {
    %c0_i32 = arith.constant 0 : i32
    %c0_i32_0 = arith.constant 0 : i32
    %c0_i32_1 = arith.constant 0 : i32
    return %c0_i32, %c0_i32_0 : i32, i32
  }
  func.func @transform_21(%arg0: i32) -> (i32, i32) {
    %c0_i32 = arith.constant 0 : i32
    %c0_i32_0 = arith.constant 0 : i32
    %c0_i32_1 = arith.constant 0 : i32
    return %c0_i32, %c0_i32_0 : i32, i32
  }
  func.func @transform_22(%arg0: i32) -> (i32, i32, i32) {
    %c0_i32 = arith.constant 0 : i32
    %c0_i32_0 = arith.constant 0 : i32
    %c0_i32_1 = arith.constant 0 : i32
    %c0_i32_2 = arith.constant 0 : i32
    return %c0_i32, %c0_i32_0, %c0_i32_1 : i32, i32, i32
  }
  func.func @transform_23(%arg0: i32) -> (i32, i32) {
    %c0_i32 = arith.constant 0 : i32
    %c0_i32_0 = arith.constant 0 : i32
    %c0_i32_1 = arith.constant 0 : i32
    return %c0_i32, %c0_i32_0 : i32, i32
  }
  func.func @transform_24(%arg0: i32) -> (i32, i32, i32) {
    %c0_i32 = arith.constant 0 : i32
    %c0_i32_0 = arith.constant 0 : i32
    %c0_i32_1 = arith.constant 0 : i32
    %c0_i32_2 = arith.constant 0 : i32
    return %c0_i32, %c0_i32_0, %c0_i32_1 : i32, i32, i32
  }
  func.func @transform_25(%arg0: i32) -> (i32, i32) {
    %c0_i32 = arith.constant 0 : i32
    %c0_i32_0 = arith.constant 0 : i32
    %c0_i32_1 = arith.constant 0 : i32
    return %c0_i32, %c0_i32_0 : i32, i32
  }
  func.func @transform_26(%arg0: i32) -> (i32, i32) {
    %c0_i32 = arith.constant 0 : i32
    %c0_i32_0 = arith.constant 0 : i32
    %c0_i32_1 = arith.constant 0 : i32
    return %c0_i32, %c0_i32_0 : i32, i32
  }
  func.func @transform_27(%arg0: i32) -> (i32, i32) {
    %c0_i32 = arith.constant 0 : i32
    %c0_i32_0 = arith.constant 0 : i32
    %c0_i32_1 = arith.constant 0 : i32
    return %c0_i32, %c0_i32_0 : i32, i32
  }
  func.func @transform_28(%arg0: i32) -> (i32, i32) {
    %c0_i32 = arith.constant 0 : i32
    %c0_i32_0 = arith.constant 0 : i32
    %c0_i32_1 = arith.constant 0 : i32
    return %c0_i32, %c0_i32_0 : i32, i32
  }
  func.func @transform_29(%arg0: i32) -> (i32, i32, i32) {
    %c0_i32 = arith.constant 0 : i32
    %c0_i32_0 = arith.constant 0 : i32
    %c0_i32_1 = arith.constant 0 : i32
    return %arg0, %c0_i32, %c0_i32_0 : i32, i32, i32
  }
}

</mosaic_0001>

<llo_original>
// kernel: resgroup_forward.2
$region0: #{resgroup_forward.2}
  #allocation0 [shape = 'u32[]', space=smem, size = 0x4, offset = 0x4, fixed_abs, tag = 'smem constant byte address 0x4 - core index']
  #allocation1 [shape = 'u32[144,128]{1,0:T(1,128)}', space=vmem, size = 0x12000, scoped, tag = 'internal scratch']
  %s0 = inlined_call_operand.smem [shape: u32[30], index: -1, kind: input, shape index: {}]
  %s1 = sld [smem:[%s0]]
  %s2 = scalar_lea.smem %s0, 1
  %s3 = sld [smem:[%s2]]
  %s4 = scalar_lea.smem %s0, 2
  %s5 = sld [smem:[%s4]]
  %s6 = scalar_lea.smem %s0, 3
  %s7 = sld [smem:[%s6]]
  %s8 = scalar_lea.smem %s0, 4
  %s9 = sld [smem:[%s8]]
  %s10 = scalar_lea.smem %s0, 5
  %s11 = sld [smem:[%s10]]
  %s12 = scalar_lea.smem %s0, 6
  %s13 = sld [smem:[%s12]]
  %s14 = scalar_lea.smem %s0, 7
  %s15 = sld [smem:[%s14]]
  %s16 = scalar_lea.smem %s0, 8
  %s17 = sld [smem:[%s16]]
  %s18 = scalar_lea.smem %s0, 9
  %s19 = sld [smem:[%s18]]
  %s20 = scalar_lea.smem %s0, 10
  %s21 = sld [smem:[%s20]]
  %s22 = scalar_lea.smem %s0, 11
  %s23 = sld [smem:[%s22]]
  %s24 = scalar_lea.smem %s0, 12
  %s25 = sld [smem:[%s24]]
  %s26 = scalar_lea.smem %s0, 13
  %s27 = sld [smem:[%s26]]
  %s28 = scalar_lea.smem %s0, 14
  %s29 = sld [smem:[%s28]]
  %s30 = scalar_lea.smem %s0, 15
  %s31 = sld [smem:[%s30]]
  %s32 = scalar_lea.smem %s0, 16
  %s33 = sld [smem:[%s32]]
  %s34 = scalar_lea.smem %s0, 17
  %s35 = sld [smem:[%s34]]
  %s36 = scalar_lea.smem %s0, 18
  %s37 = sld [smem:[%s36]]
  %s38 = scalar_lea.smem %s0, 19
  %s39 = sld [smem:[%s38]]
  %s40 = scalar_lea.smem %s0, 20
  %s41 = sld [smem:[%s40]]
  %s42 = scalar_lea.smem %s0, 21
  %s43 = sld [smem:[%s42]]
  %s44 = scalar_lea.smem %s0, 22
  %s45 = sld [smem:[%s44]]
  %s46 = scalar_lea.smem %s0, 23
  %s47 = sld [smem:[%s46]]
  %s48 = scalar_lea.smem %s0, 24
  %s49 = sld [smem:[%s48]]
  %s50 = scalar_lea.smem %s0, 25
  %s51 = sld [smem:[%s50]]
  %s52 = scalar_lea.smem %s0, 26
  %s53 = sld [smem:[%s52]]
  %s54 = scalar_lea.smem %s0, 27
  %s55 = sld [smem:[%s54]]
  %s56 = scalar_lea.smem %s0, 28
  %s57 = sld [smem:[%s56]]
  %s58 = scalar_lea.smem %s0, 29
  %s59 = sld [smem:[%s58]]
  %s60 = sld [smem:[#allocation0]]
  $region157: #{resgroup_forward.2} parent=0
    _
  %s62 = ssub.s32 1, %s60
  %s63 = scalar_select 0, %s62, %s60
  $region1: #{resgroup_forward.2} parent=0
    #allocation2 [shape = 'u8[1024]{0}', space=smem, size = 0x400, scoped, tag = 'input window, operand 13, single buffered']
    #allocation3 [shape = 's32[2]{0}', space=sflag, size = 0x8, scoped, tag = 'scoped memory for resgroup_forward.2']
    #allocation4 [shape = 'u8[512]{0}', space=smem, size = 0x200, scoped, tag = 'input window, operand 14, single buffered']
    #allocation5 [shape = 's32[1]{0}', space=sflag, size = 0x4, scoped, tag = 'scoped memory for resgroup_forward.2']
    %64 = vsyncpa [#allocation3], 0
    %65 = vsyncpa [#allocation5], 0
    loop: start=0, step=1, limit=4
    $region2: #{resgroup_forward.2} parent=1 // loop_pre_header
      _
    $region3: #{resgroup_forward.2} parent=1 // loop_header
      %s67 = sphi 0, %s71
      %p68 = scmp.ge.s32.totalorder %s67, 4
      %s77 = sphi 0, %s79
      %s80 = sphi 0, %s77
      %s81 = sphi 0, %s80
      %s97 = sphi 0, %s81
      %s101 = sphi 0, %s101
      %s103 = sphi 0, %s101
      %s104 = sphi 0, %s103
      %s118 = sphi 0, %s104
      %s122 = sphi 0, %s122
      %s124 = sphi 0, %s122
      %s125 = sphi 0, %s124
      %s139 = sphi 0, %s125
      %s143 = sphi 0, %s143
      %s145 = sphi 0, %s143
      %s146 = sphi 0, %s145
      %s160 = sphi 0, %s146
      %s164 = sphi 0, %s164
      %s166 = sphi 0, %s164
      %s167 = sphi 0, %s166
      %s181 = sphi 0, %s167
      %s185 = sphi 0, %s185
      %s187 = sphi 0, %s185
      %s188 = sphi 0, %s187
      %s202 = sphi 0, %s188
      %s206 = sphi 0, %s206
      %s208 = sphi 0, %s206
      %s209 = sphi 0, %s208
      %s223 = sphi 0, %s209
      %s227 = sphi 0, %s227
      %s229 = sphi 0, %s227
      %s230 = sphi 0, %s229
      %s244 = sphi 0, %s230
      %s248 = sphi 0, %s248
      %s250 = sphi 0, %s248
      %s251 = sphi 0, %s250
      %s265 = sphi 0, %s251
      %s269 = sphi 0, %s269
      %s271 = sphi 0, %s269
      %s272 = sphi 0, %s271
      %s286 = sphi 0, %s272
      %s290 = sphi 0, %s290
      %s292 = sphi 0, %s290
      %s293 = sphi 0, %s292
      %s307 = sphi 0, %s293
      %s311 = sphi 0, %s311
      %s313 = sphi 0, %s311
      %s314 = sphi 0, %s313
      %s328 = sphi 0, %s314
      %s332 = sphi 0, %s332
      %s334 = sphi 0, %s332
      %s335 = sphi 0, %s334
      %s349 = sphi 0, %s335
      %s353 = sphi 0, %s353
      %s355 = sphi 0, %s353
      %s356 = sphi 0, %s355
      %s370 = sphi 0, %s356
      %s374 = sphi 0, %s374
      %s376 = sphi 0, %s374
      %s377 = sphi 0, %s376
      %s391 = sphi 0, %s377
      %s395 = sphi 0, %s395
      %s397 = sphi 0, %s395
      %s398 = sphi 0, %s397
      %s412 = sphi 0, %s398
      %s416 = sphi 0, %s416
      %s418 = sphi 0, %s416
      %s419 = sphi 0, %s418
      %s433 = sphi 0, %s419
      %s437 = sphi 0, %s437
      %s439 = sphi 0, %s437
      %s440 = sphi 0, %s439
      %s454 = sphi 0, %s440
      %s458 = sphi 0, %s458
      %s460 = sphi 0, %s458
      %s461 = sphi 0, %s460
      %s475 = sphi 0, %s461
      %s479 = sphi 0, %s479
      %s481 = sphi 0, %s479
      %s482 = sphi 0, %s481
      %s496 = sphi 0, %s482
      %s500 = sphi 0, %s500
      %s502 = sphi 0, %s500
      %s503 = sphi 0, %s502
      %s517 = sphi 0, %s503
      %s521 = sphi 0, %s521
      %s523 = sphi 0, %s521
      %s524 = sphi 0, %s523
      %s538 = sphi 0, %s524
      %s542 = sphi 0, %s542
      %s544 = sphi 0, %s542
      %s545 = sphi 0, %s544
      %s559 = sphi 0, %s545
      %s563 = sphi 0, %s563
      %s565 = sphi 0, %s563
      %s566 = sphi 0, %s565
      %s580 = sphi 0, %s566
      %s584 = sphi 0, %s584
      %s586 = sphi 0, %s584
      %s587 = sphi 0, %s586
      %s601 = sphi 0, %s587
      %s605 = sphi 0, %s605
      %s607 = sphi 0, %s605
      %s608 = sphi 0, %s607
      %s622 = sphi 0, %s608
      %s626 = sphi 0, %s626
      %s628 = sphi 0, %s626
      %s629 = sphi 0, %s628
      %s643 = sphi 0, %s629
      %s647 = sphi 0, %s647
      %s649 = sphi 0, %s647
      %s650 = sphi 0, %s649
      %s664 = sphi 0, %s650
      %s668 = sphi 0, %s668
      %s670 = sphi 0, %s668
      %s671 = sphi 0, %s670
      %s685 = sphi 0, %s671
      %s691 = sphi 0, %s693
      %s694 = sphi 0, %s691
      %s695 = sphi 0, %s694
      %s711 = sphi 0, %s695
    $region4: #{resgroup_forward.2} parent=1 // loop_header_branch
      %70 = sbr.rel (%p68) target = $region8
    $region5: #{resgroup_forward.2} parent=1 // loop_body
      %s72 = ssub.s32 %s67, 1
      %s73 = ssub.s32 %s67, 2
      %s74 = sadd.s32 %s67, 1
      %s75 = ssub.s32 %s67, %s74
      %p76 = scmp.eq.s32.totalorder %s75, 0
      %s78 = sadd.s32 %s77, 1
      %s79 = scalar_select %p76, %s77, %s78
      %p82 = pneg %p76
      %p83 = scmp.eq.s32.totalorder %s67, 1
      %p84 = por %p82, %p83
      %p85 = scmp.ne.s32.totalorder %s77, %s80
      %p86 = scmp.eq.s32.totalorder %s67, 0
      %p87 = por %p85, %p86
      %p88 = scmp.ne.s32.totalorder %s77, %s80
      %p89 = scmp.eq.s32.totalorder %s72, 1
      %p90 = por %p88, %p89
      %p91 = scmp.ne.s32.totalorder %s80, %s81
      %p92 = scmp.eq.s32.totalorder %s72, 0
      %p93 = por %p91, %p92
      %p94 = scmp.ne.s32.totalorder %s80, %s81
      %p95 = scmp.eq.s32.totalorder %s73, 1
      %p96 = por %p94, %p95
      %p98 = scmp.ne.s32.totalorder %s81, %s97
      %p99 = scmp.eq.s32.totalorder %s73, 0
      %p100 = por %p98, %p99
      %s102 = sadd.s32 %s101, 1
      %p105 = scmp.eq.s32.totalorder %s67, 1
      %p106 = scmp.ne.s32.totalorder %s101, %s103
      %p107 = scmp.eq.s32.totalorder %s67, 0
      %p108 = por %p106, %p107
      %p109 = scmp.ne.s32.totalorder %s101, %s103
      %p110 = scmp.eq.s32.totalorder %s72, 1
      %p111 = por %p109, %p110
      %p112 = scmp.ne.s32.totalorder %s103, %s104
      %p113 = scmp.eq.s32.totalorder %s72, 0
      %p114 = por %p112, %p113
      %p115 = scmp.ne.s32.totalorder %s103, %s104
      %p116 = scmp.eq.s32.totalorder %s73, 1
      %p117 = por %p115, %p116
      %p119 = scmp.ne.s32.totalorder %s104, %s118
      %p120 = scmp.eq.s32.totalorder %s73, 0
      %p121 = por %p119, %p120
      %s123 = sadd.s32 %s122, 1
      %p126 = scmp.eq.s32.totalorder %s67, 1
      %p127 = scmp.ne.s32.totalorder %s122, %s124
      %p128 = scmp.eq.s32.totalorder %s67, 0
      %p129 = por %p127, %p128
      %p130 = scmp.ne.s32.totalorder %s122, %s124
      %p131 = scmp.eq.s32.totalorder %s72, 1
      %p132 = por %p130, %p131
      %p133 = scmp.ne.s32.totalorder %s124, %s125
      %p134 = scmp.eq.s32.totalorder %s72, 0
      %p135 = por %p133, %p134
      %p136 = scmp.ne.s32.totalorder %s124, %s125
      %p137 = scmp.eq.s32.totalorder %s73, 1
      %p138 = por %p136, %p137
      %p140 = scmp.ne.s32.totalorder %s125, %s139
      %p141 = scmp.eq.s32.totalorder %s73, 0
      %p142 = por %p140, %p141
      %s144 = sadd.s32 %s143, 1
      %p147 = scmp.eq.s32.totalorder %s67, 1
      %p148 = scmp.ne.s32.totalorder %s143, %s145
      %p149 = scmp.eq.s32.totalorder %s67, 0
      %p150 = por %p148, %p149
      %p151 = scmp.ne.s32.totalorder %s143, %s145
      %p152 = scmp.eq.s32.totalorder %s72, 1
      %p153 = por %p151, %p152
      %p154 = scmp.ne.s32.totalorder %s145, %s146
      %p155 = scmp.eq.s32.totalorder %s72, 0
      %p156 = por %p154, %p155
      %p157 = scmp.ne.s32.totalorder %s145, %s146
      %p158 = scmp.eq.s32.totalorder %s73, 1
      %p159 = por %p157, %p158
      %p161 = scmp.ne.s32.totalorder %s146, %s160
      %p162 = scmp.eq.s32.totalorder %s73, 0
      %p163 = por %p161, %p162
      %s165 = sadd.s32 %s164, 1
      %p168 = scmp.eq.s32.totalorder %s67, 1
      %p169 = scmp.ne.s32.totalorder %s164, %s166
      %p170 = scmp.eq.s32.totalorder %s67, 0
      %p171 = por %p169, %p170
      %p172 = scmp.ne.s32.totalorder %s164, %s166
      %p173 = scmp.eq.s32.totalorder %s72, 1
      %p174 = por %p172, %p173
      %p175 = scmp.ne.s32.totalorder %s166, %s167
      %p176 = scmp.eq.s32.totalorder %s72, 0
      %p177 = por %p175, %p176
      %p178 = scmp.ne.s32.totalorder %s166, %s167
      %p179 = scmp.eq.s32.totalorder %s73, 1
      %p180 = por %p178, %p179
      %p182 = scmp.ne.s32.totalorder %s167, %s181
      %p183 = scmp.eq.s32.totalorder %s73, 0
      %p184 = por %p182, %p183
      %s186 = sadd.s32 %s185, 1
      %p189 = scmp.eq.s32.totalorder %s67, 1
      %p190 = scmp.ne.s32.totalorder %s185, %s187
      %p191 = scmp.eq.s32.totalorder %s67, 0
      %p192 = por %p190, %p191
      %p193 = scmp.ne.s32.totalorder %s185, %s187
      %p194 = scmp.eq.s32.totalorder %s72, 1
      %p195 = por %p193, %p194
      %p196 = scmp.ne.s32.totalorder %s187, %s188
      %p197 = scmp.eq.s32.totalorder %s72, 0
      %p198 = por %p196, %p197
      %p199 = scmp.ne.s32.totalorder %s187, %s188
      %p200 = scmp.eq.s32.totalorder %s73, 1
      %p201 = por %p199, %p200
      %p203 = scmp.ne.s32.totalorder %s188, %s202
      %p204 = scmp.eq.s32.totalorder %s73, 0
      %p205 = por %p203, %p204
      %s207 = sadd.s32 %s206, 1
      %p210 = scmp.eq.s32.totalorder %s67, 1
      %p211 = scmp.ne.s32.totalorder %s206, %s208
      %p212 = scmp.eq.s32.totalorder %s67, 0
      %p213 = por %p211, %p212
      %p214 = scmp.ne.s32.totalorder %s206, %s208
      %p215 = scmp.eq.s32.totalorder %s72, 1
      %p216 = por %p214, %p215
      %p217 = scmp.ne.s32.totalorder %s208, %s209
      %p218 = scmp.eq.s32.totalorder %s72, 0
      %p219 = por %p217, %p218
      %p220 = scmp.ne.s32.totalorder %s208, %s209
      %p221 = scmp.eq.s32.totalorder %s73, 1
      %p222 = por %p220, %p221
      %p224 = scmp.ne.s32.totalorder %s209, %s223
      %p225 = scmp.eq.s32.totalorder %s73, 0
      %p226 = por %p224, %p225
      %s228 = sadd.s32 %s227, 1
      %p231 = scmp.eq.s32.totalorder %s67, 1
      %p232 = scmp.ne.s32.totalorder %s227, %s229
      %p233 = scmp.eq.s32.totalorder %s67, 0
      %p234 = por %p232, %p233
      %p235 = scmp.ne.s32.totalorder %s227, %s229
      %p236 = scmp.eq.s32.totalorder %s72, 1
      %p237 = por %p235, %p236
      %p238 = scmp.ne.s32.totalorder %s229, %s230
      %p239 = scmp.eq.s32.totalorder %s72, 0
      %p240 = por %p238, %p239
      %p241 = scmp.ne.s32.totalorder %s229, %s230
      %p242 = scmp.eq.s32.totalorder %s73, 1
      %p243 = por %p241, %p242
      %p245 = scmp.ne.s32.totalorder %s230, %s244
      %p246 = scmp.eq.s32.totalorder %s73, 0
      %p247 = por %p245, %p246
      %s249 = sadd.s32 %s248, 1
      %p252 = scmp.eq.s32.totalorder %s67, 1
      %p253 = scmp.ne.s32.totalorder %s248, %s250
      %p254 = scmp.eq.s32.totalorder %s67, 0
      %p255 = por %p253, %p254
      %p256 = scmp.ne.s32.totalorder %s248, %s250
      %p257 = scmp.eq.s32.totalorder %s72, 1
      %p258 = por %p256, %p257
      %p259 = scmp.ne.s32.totalorder %s250, %s251
      %p260 = scmp.eq.s32.totalorder %s72, 0
      %p261 = por %p259, %p260
      %p262 = scmp.ne.s32.totalorder %s250, %s251
      %p263 = scmp.eq.s32.totalorder %s73, 1
      %p264 = por %p262, %p263
      %p266 = scmp.ne.s32.totalorder %s251, %s265
      %p267 = scmp.eq.s32.totalorder %s73, 0
      %p268 = por %p266, %p267
      %s270 = sadd.s32 %s269, 1
      %p273 = scmp.eq.s32.totalorder %s67, 1
      %p274 = scmp.ne.s32.totalorder %s269, %s271
      %p275 = scmp.eq.s32.totalorder %s67, 0
      %p276 = por %p274, %p275
      %p277 = scmp.ne.s32.totalorder %s269, %s271
      %p278 = scmp.eq.s32.totalorder %s72, 1
      %p279 = por %p277, %p278
      %p280 = scmp.ne.s32.totalorder %s271, %s272
      %p281 = scmp.eq.s32.totalorder %s72, 0
      %p282 = por %p280, %p281
      %p283 = scmp.ne.s32.totalorder %s271, %s272
      %p284 = scmp.eq.s32.totalorder %s73, 1
      %p285 = por %p283, %p284
      %p287 = scmp.ne.s32.totalorder %s272, %s286
      %p288 = scmp.eq.s32.totalorder %s73, 0
      %p289 = por %p287, %p288
      %s291 = sadd.s32 %s290, 1
      %p294 = scmp.eq.s32.totalorder %s67, 1
      %p295 = scmp.ne.s32.totalorder %s290, %s292
      %p296 = scmp.eq.s32.totalorder %s67, 0
      %p297 = por %p295, %p296
      %p298 = scmp.ne.s32.totalorder %s290, %s292
      %p299 = scmp.eq.s32.totalorder %s72, 1
      %p300 = por %p298, %p299
      %p301 = scmp.ne.s32.totalorder %s292, %s293
      %p302 = scmp.eq.s32.totalorder %s72, 0
      %p303 = por %p301, %p302
      %p304 = scmp.ne.s32.totalorder %s292, %s293
      %p305 = scmp.eq.s32.totalorder %s73, 1
      %p306 = por %p304, %p305
      %p308 = scmp.ne.s32.totalorder %s293, %s307
      %p309 = scmp.eq.s32.totalorder %s73, 0
      %p310 = por %p308, %p309
      %s312 = sadd.s32 %s311, 1
      %p315 = scmp.eq.s32.totalorder %s67, 1
      %p316 = scmp.ne.s32.totalorder %s311, %s313
      %p317 = scmp.eq.s32.totalorder %s67, 0
      %p318 = por %p316, %p317
      %p319 = scmp.ne.s32.totalorder %s311, %s313
      %p320 = scmp.eq.s32.totalorder %s72, 1
      %p321 = por %p319, %p320
      %p322 = scmp.ne.s32.totalorder %s313, %s314
      %p323 = scmp.eq.s32.totalorder %s72, 0
      %p324 = por %p322, %p323
      %p325 = scmp.ne.s32.totalorder %s313, %s314
      %p326 = scmp.eq.s32.totalorder %s73, 1
      %p327 = por %p325, %p326
      %p329 = scmp.ne.s32.totalorder %s314, %s328
      %p330 = scmp.eq.s32.totalorder %s73, 0
      %p331 = por %p329, %p330
      %s333 = sadd.s32 %s332, 1
      %p336 = scmp.eq.s32.totalorder %s67, 1
      %p337 = scmp.ne.s32.totalorder %s332, %s334
      %p338 = scmp.eq.s32.totalorder %s67, 0
      %p339 = por %p337, %p338
      %p340 = scmp.ne.s32.totalorder %s332, %s334
      %p341 = scmp.eq.s32.totalorder %s72, 1
      %p342 = por %p340, %p341
      %p343 = scmp.ne.s32.totalorder %s334, %s335
      %p344 = scmp.eq.s32.totalorder %s72, 0
      %p345 = por %p343, %p344
      %p346 = scmp.ne.s32.totalorder %s334, %s335
      %p347 = scmp.eq.s32.totalorder %s73, 1
      %p348 = por %p346, %p347
      %p350 = scmp.ne.s32.totalorder %s335, %s349
      %p351 = scmp.eq.s32.totalorder %s73, 0
      %p352 = por %p350, %p351
      %s354 = sadd.s32 %s353, 1
      %p357 = scmp.eq.s32.totalorder %s67, 1
      %p358 = scmp.ne.s32.totalorder %s353, %s355
      %p359 = scmp.eq.s32.totalorder %s67, 0
      %p360 = por %p358, %p359
      %p361 = scmp.ne.s32.totalorder %s353, %s355
      %p362 = scmp.eq.s32.totalorder %s72, 1
      %p363 = por %p361, %p362
      %p364 = scmp.ne.s32.totalorder %s355, %s356
      %p365 = scmp.eq.s32.totalorder %s72, 0
      %p366 = por %p364, %p365
      %p367 = scmp.ne.s32.totalorder %s355, %s356
      %p368 = scmp.eq.s32.totalorder %s73, 1
      %p369 = por %p367, %p368
      %p371 = scmp.ne.s32.totalorder %s356, %s370
      %p372 = scmp.eq.s32.totalorder %s73, 0
      %p373 = por %p371, %p372
      %s375 = sadd.s32 %s374, 1
      %p378 = scmp.eq.s32.totalorder %s67, 1
      %p379 = scmp.ne.s32.totalorder %s374, %s376
      %p380 = scmp.eq.s32.totalorder %s67, 0
      %p381 = por %p379, %p380
      %p382 = scmp.ne.s32.totalorder %s374, %s376
      %p383 = scmp.eq.s32.totalorder %s72, 1
      %p384 = por %p382, %p383
      %p385 = scmp.ne.s32.totalorder %s376, %s377
      %p386 = scmp.eq.s32.totalorder %s72, 0
      %p387 = por %p385, %p386
      %p388 = scmp.ne.s32.totalorder %s376, %s377
      %p389 = scmp.eq.s32.totalorder %s73, 1
      %p390 = por %p388, %p389
      %p392 = scmp.ne.s32.totalorder %s377, %s391
      %p393 = scmp.eq.s32.totalorder %s73, 0
      %p394 = por %p392, %p393
      %s396 = sadd.s32 %s395, 1
      %p399 = scmp.eq.s32.totalorder %s67, 1
      %p400 = scmp.ne.s32.totalorder %s395, %s397
      %p401 = scmp.eq.s32.totalorder %s67, 0
      %p402 = por %p400, %p401
      %p403 = scmp.ne.s32.totalorder %s395, %s397
      %p404 = scmp.eq.s32.totalorder %s72, 1
      %p405 = por %p403, %p404
      %p406 = scmp.ne.s32.totalorder %s397, %s398
      %p407 = scmp.eq.s32.totalorder %s72, 0
      %p408 = por %p406, %p407
      %p409 = scmp.ne.s32.totalorder %s397, %s398
      %p410 = scmp.eq.s32.totalorder %s73, 1
      %p411 = por %p409, %p410
      %p413 = scmp.ne.s32.totalorder %s398, %s412
      %p414 = scmp.eq.s32.totalorder %s73, 0
      %p415 = por %p413, %p414
      %s417 = sadd.s32 %s416, 1
      %p420 = scmp.eq.s32.totalorder %s67, 1
      %p421 = scmp.ne.s32.totalorder %s416, %s418
      %p422 = scmp.eq.s32.totalorder %s67, 0
      %p423 = por %p421, %p422
      %p424 = scmp.ne.s32.totalorder %s416, %s418
      %p425 = scmp.eq.s32.totalorder %s72, 1
      %p426 = por %p424, %p425
      %p427 = scmp.ne.s32.totalorder %s418, %s419
      %p428 = scmp.eq.s32.totalorder %s72, 0
      %p429 = por %p427, %p428
      %p430 = scmp.ne.s32.totalorder %s418, %s419
      %p431 = scmp.eq.s32.totalorder %s73, 1
      %p432 = por %p430, %p431
      %p434 = scmp.ne.s32.totalorder %s419, %s433
      %p435 = scmp.eq.s32.totalorder %s73, 0
      %p436 = por %p434, %p435
      %s438 = sadd.s32 %s437, 1
      %p441 = scmp.eq.s32.totalorder %s67, 1
      %p442 = scmp.ne.s32.totalorder %s437, %s439
      %p443 = scmp.eq.s32.totalorder %s67, 0
      %p444 = por %p442, %p443
      %p445 = scmp.ne.s32.totalorder %s437, %s439
      %p446 = scmp.eq.s32.totalorder %s72, 1
      %p447 = por %p445, %p446
      %p448 = scmp.ne.s32.totalorder %s439, %s440
      %p449 = scmp.eq.s32.totalorder %s72, 0
      %p450 = por %p448, %p449
      %p451 = scmp.ne.s32.totalorder %s439, %s440
      %p452 = scmp.eq.s32.totalorder %s73, 1
      %p453 = por %p451, %p452
      %p455 = scmp.ne.s32.totalorder %s440, %s454
      %p456 = scmp.eq.s32.totalorder %s73, 0
      %p457 = por %p455, %p456
      %s459 = sadd.s32 %s458, 1
      %p462 = scmp.eq.s32.totalorder %s67, 1
      %p463 = scmp.ne.s32.totalorder %s458, %s460
      %p464 = scmp.eq.s32.totalorder %s67, 0
      %p465 = por %p463, %p464
      %p466 = scmp.ne.s32.totalorder %s458, %s460
      %p467 = scmp.eq.s32.totalorder %s72, 1
      %p468 = por %p466, %p467
      %p469 = scmp.ne.s32.totalorder %s460, %s461
      %p470 = scmp.eq.s32.totalorder %s72, 0
      %p471 = por %p469, %p470
      %p472 = scmp.ne.s32.totalorder %s460, %s461
      %p473 = scmp.eq.s32.totalorder %s73, 1
      %p474 = por %p472, %p473
      %p476 = scmp.ne.s32.totalorder %s461, %s475
      %p477 = scmp.eq.s32.totalorder %s73, 0
      %p478 = por %p476, %p477
      %s480 = sadd.s32 %s479, 1
      %p483 = scmp.eq.s32.totalorder %s67, 1
      %p484 = scmp.ne.s32.totalorder %s479, %s481
      %p485 = scmp.eq.s32.totalorder %s67, 0
      %p486 = por %p484, %p485
      %p487 = scmp.ne.s32.totalorder %s479, %s481
      %p488 = scmp.eq.s32.totalorder %s72, 1
      %p489 = por %p487, %p488
      %p490 = scmp.ne.s32.totalorder %s481, %s482
      %p491 = scmp.eq.s32.totalorder %s72, 0
      %p492 = por %p490, %p491
      %p493 = scmp.ne.s32.totalorder %s481, %s482
      %p494 = scmp.eq.s32.totalorder %s73, 1
      %p495 = por %p493, %p494
      %p497 = scmp.ne.s32.totalorder %s482, %s496
      %p498 = scmp.eq.s32.totalorder %s73, 0
      %p499 = por %p497, %p498
      %s501 = sadd.s32 %s500, 1
      %p504 = scmp.eq.s32.totalorder %s67, 1
      %p505 = scmp.ne.s32.totalorder %s500, %s502
      %p506 = scmp.eq.s32.totalorder %s67, 0
      %p507 = por %p505, %p506
      %p508 = scmp.ne.s32.totalorder %s500, %s502
      %p509 = scmp.eq.s32.totalorder %s72, 1
      %p510 = por %p508, %p509
      %p511 = scmp.ne.s32.totalorder %s502, %s503
      %p512 = scmp.eq.s32.totalorder %s72, 0
      %p513 = por %p511, %p512
      %p514 = scmp.ne.s32.totalorder %s502, %s503
      %p515 = scmp.eq.s32.totalorder %s73, 1
      %p516 = por %p514, %p515
      %p518 = scmp.ne.s32.totalorder %s503, %s517
      %p519 = scmp.eq.s32.totalorder %s73, 0
      %p520 = por %p518, %p519
      %s522 = sadd.s32 %s521, 1
      %p525 = scmp.eq.s32.totalorder %s67, 1
      %p526 = scmp.ne.s32.totalorder %s521, %s523
      %p527 = scmp.eq.s32.totalorder %s67, 0
      %p528 = por %p526, %p527
      %p529 = scmp.ne.s32.totalorder %s521, %s523
      %p530 = scmp.eq.s32.totalorder %s72, 1
      %p531 = por %p529, %p530
      %p532 = scmp.ne.s32.totalorder %s523, %s524
      %p533 = scmp.eq.s32.totalorder %s72, 0
      %p534 = por %p532, %p533
      %p535 = scmp.ne.s32.totalorder %s523, %s524
      %p536 = scmp.eq.s32.totalorder %s73, 1
      %p537 = por %p535, %p536
      %p539 = scmp.ne.s32.totalorder %s524, %s538
      %p540 = scmp.eq.s32.totalorder %s73, 0
      %p541 = por %p539, %p540
      %s543 = sadd.s32 %s542, 1
      %p546 = scmp.eq.s32.totalorder %s67, 1
      %p547 = scmp.ne.s32.totalorder %s542, %s544
      %p548 = scmp.eq.s32.totalorder %s67, 0
      %p549 = por %p547, %p548
      %p550 = scmp.ne.s32.totalorder %s542, %s544
      %p551 = scmp.eq.s32.totalorder %s72, 1
      %p552 = por %p550, %p551
      %p553 = scmp.ne.s32.totalorder %s544, %s545
      %p554 = scmp.eq.s32.totalorder %s72, 0
      %p555 = por %p553, %p554
      %p556 = scmp.ne.s32.totalorder %s544, %s545
      %p557 = scmp.eq.s32.totalorder %s73, 1
      %p558 = por %p556, %p557
      %p560 = scmp.ne.s32.totalorder %s545, %s559
      %p561 = scmp.eq.s32.totalorder %s73, 0
      %p562 = por %p560, %p561
      %s564 = sadd.s32 %s563, 1
      %p567 = scmp.eq.s32.totalorder %s67, 1
      %p568 = scmp.ne.s32.totalorder %s563, %s565
      %p569 = scmp.eq.s32.totalorder %s67, 0
      %p570 = por %p568, %p569
      %p571 = scmp.ne.s32.totalorder %s563, %s565
      %p572 = scmp.eq.s32.totalorder %s72, 1
      %p573 = por %p571, %p572
      %p574 = scmp.ne.s32.totalorder %s565, %s566
      %p575 = scmp.eq.s32.totalorder %s72, 0
      %p576 = por %p574, %p575
      %p577 = scmp.ne.s32.totalorder %s565, %s566
      %p578 = scmp.eq.s32.totalorder %s73, 1
      %p579 = por %p577, %p578
      %p581 = scmp.ne.s32.totalorder %s566, %s580
      %p582 = scmp.eq.s32.totalorder %s73, 0
      %p583 = por %p581, %p582
      %s585 = sadd.s32 %s584, 1
      %p588 = scmp.eq.s32.totalorder %s67, 1
      %p589 = scmp.ne.s32.totalorder %s584, %s586
      %p590 = scmp.eq.s32.totalorder %s67, 0
      %p591 = por %p589, %p590
      %p592 = scmp.ne.s32.totalorder %s584, %s586
      %p593 = scmp.eq.s32.totalorder %s72, 1
      %p594 = por %p592, %p593
      %p595 = scmp.ne.s32.totalorder %s586, %s587
      %p596 = scmp.eq.s32.totalorder %s72, 0
      %p597 = por %p595, %p596
      %p598 = scmp.ne.s32.totalorder %s586, %s587
      %p599 = scmp.eq.s32.totalorder %s73, 1
      %p600 = por %p598, %p599
      %p602 = scmp.ne.s32.totalorder %s587, %s601
      %p603 = scmp.eq.s32.totalorder %s73, 0
      %p604 = por %p602, %p603
      %s606 = sadd.s32 %s605, 1
      %p609 = scmp.eq.s32.totalorder %s67, 1
      %p610 = scmp.ne.s32.totalorder %s605, %s607
      %p611 = scmp.eq.s32.totalorder %s67, 0
      %p612 = por %p610, %p611
      %p613 = scmp.ne.s32.totalorder %s605, %s607
      %p614 = scmp.eq.s32.totalorder %s72, 1
      %p615 = por %p613, %p614
      %p616 = scmp.ne.s32.totalorder %s607, %s608
      %p617 = scmp.eq.s32.totalorder %s72, 0
      %p618 = por %p616, %p617
      %p619 = scmp.ne.s32.totalorder %s607, %s608
      %p620 = scmp.eq.s32.totalorder %s73, 1
      %p621 = por %p619, %p620
      %p623 = scmp.ne.s32.totalorder %s608, %s622
      %p624 = scmp.eq.s32.totalorder %s73, 0
      %p625 = por %p623, %p624
      %s627 = sadd.s32 %s626, 1
      %p630 = scmp.eq.s32.totalorder %s67, 1
      %p631 = scmp.ne.s32.totalorder %s626, %s628
      %p632 = scmp.eq.s32.totalorder %s67, 0
      %p633 = por %p631, %p632
      %p634 = scmp.ne.s32.totalorder %s626, %s628
      %p635 = scmp.eq.s32.totalorder %s72, 1
      %p636 = por %p634, %p635
      %p637 = scmp.ne.s32.totalorder %s628, %s629
      %p638 = scmp.eq.s32.totalorder %s72, 0
      %p639 = por %p637, %p638
      %p640 = scmp.ne.s32.totalorder %s628, %s629
      %p641 = scmp.eq.s32.totalorder %s73, 1
      %p642 = por %p640, %p641
      %p644 = scmp.ne.s32.totalorder %s629, %s643
      %p645 = scmp.eq.s32.totalorder %s73, 0
      %p646 = por %p644, %p645
      %s648 = sadd.s32 %s647, 1
      %p651 = scmp.eq.s32.totalorder %s67, 1
      %p652 = scmp.ne.s32.totalorder %s647, %s649
      %p653 = scmp.eq.s32.totalorder %s67, 0
      %p654 = por %p652, %p653
      %p655 = scmp.ne.s32.totalorder %s647, %s649
      %p656 = scmp.eq.s32.totalorder %s72, 1
      %p657 = por %p655, %p656
      %p658 = scmp.ne.s32.totalorder %s649, %s650
      %p659 = scmp.eq.s32.totalorder %s72, 0
      %p660 = por %p658, %p659
      %p661 = scmp.ne.s32.totalorder %s649, %s650
      %p662 = scmp.eq.s32.totalorder %s73, 1
      %p663 = por %p661, %p662
      %p665 = scmp.ne.s32.totalorder %s650, %s664
      %p666 = scmp.eq.s32.totalorder %s73, 0
      %p667 = por %p665, %p666
      %s669 = sadd.s32 %s668, 1
      %p672 = scmp.eq.s32.totalorder %s67, 1
      %p673 = scmp.ne.s32.totalorder %s668, %s670
      %p674 = scmp.eq.s32.totalorder %s67, 0
      %p675 = por %p673, %p674
      %p676 = scmp.ne.s32.totalorder %s668, %s670
      %p677 = scmp.eq.s32.totalorder %s72, 1
      %p678 = por %p676, %p677
      %p679 = scmp.ne.s32.totalorder %s670, %s671
      %p680 = scmp.eq.s32.totalorder %s72, 0
      %p681 = por %p679, %p680
      %p682 = scmp.ne.s32.totalorder %s670, %s671
      %p683 = scmp.eq.s32.totalorder %s73, 1
      %p684 = por %p682, %p683
      %p686 = scmp.ne.s32.totalorder %s671, %s685
      %p687 = scmp.eq.s32.totalorder %s73, 0
      %p688 = por %p686, %p687
      %s689 = ssub.s32 %s67, %s74
      %p690 = scmp.eq.s32.totalorder %s689, 0
      %s692 = sadd.s32 %s691, 1
      %s693 = scalar_select %p690, %s691, %s692
      %p696 = pneg %p690
      %p697 = scmp.eq.s32.totalorder %s67, 1
      %p698 = por %p696, %p697
      %p699 = scmp.ne.s32.totalorder %s691, %s694
      %p700 = scmp.eq.s32.totalorder %s67, 0
      %p701 = por %p699, %p700
      %p702 = scmp.ne.s32.totalorder %s691, %s694
      %p703 = scmp.eq.s32.totalorder %s72, 1
      %p704 = por %p702, %p703
      %p705 = scmp.ne.s32.totalorder %s694, %s695
      %p706 = scmp.eq.s32.totalorder %s72, 0
      %p707 = por %p705, %p706
      %p708 = scmp.ne.s32.totalorder %s694, %s695
      %p709 = scmp.eq.s32.totalorder %s73, 1
      %p710 = por %p708, %p709
      %p712 = scmp.ne.s32.totalorder %s695, %s711
      %p713 = scmp.eq.s32.totalorder %s73, 0
      %p714 = por %p712, %p713
      %p715 = scmp.le.s32.totalorder 1, %s67
      %p716 = scmp.lt.s32.totalorder %s67, 3
      %p717 = pnand %p715, %p716
      %p718 = pneg %p717
      // Predicated region
      $region9: #{resgroup_forward.2} parent=5 // pred_check
        _
      $region10: #{resgroup_forward.2} parent=5 // pred_check_branch
        %720 = sbr.rel (%p717) target = $region12
      $region11: #{resgroup_forward.2} parent=5 // pred_region
        %s721 = ssub.s32 %s67, 1
        // Predicated region
        $region13: #{resgroup_forward.2} parent=11 // pred_check
          %p722 = pneg %p114
        $region14: #{resgroup_forward.2} parent=11 // pred_check_branch
          %724 = sbr.rel (%p722) target = $region16
        $region15: #{resgroup_forward.2} parent=11 // pred_region
          _
        $region16: #{resgroup_forward.2} parent=11 // pred_fallthru
          _
        // Predicated region
        $region17: #{resgroup_forward.2} parent=11 // pred_check
          %p725 = pneg %p135
        $region18: #{resgroup_forward.2} parent=11 // pred_check_branch
          %727 = sbr.rel (%p725) target = $region20
        $region19: #{resgroup_forward.2} parent=11 // pred_region
          _
        $region20: #{resgroup_forward.2} parent=11 // pred_fallthru
          _
        // Predicated region
        $region21: #{resgroup_forward.2} parent=11 // pred_check
          %p728 = pneg %p156
        $region22: #{resgroup_forward.2} parent=11 // pred_check_branch
          %730 = sbr.rel (%p728) target = $region24
        $region23: #{resgroup_forward.2} parent=11 // pred_region
          _
        $region24: #{resgroup_forward.2} parent=11 // pred_fallthru
          _
        // Predicated region
        $region25: #{resgroup_forward.2} parent=11 // pred_check
          %p731 = pneg %p177
        $region26: #{resgroup_forward.2} parent=11 // pred_check_branch
          %733 = sbr.rel (%p731) target = $region28
        $region27: #{resgroup_forward.2} parent=11 // pred_region
          _
        $region28: #{resgroup_forward.2} parent=11 // pred_fallthru
          _
        // Predicated region
        $region29: #{resgroup_forward.2} parent=11 // pred_check
          %p734 = pneg %p198
        $region30: #{resgroup_forward.2} parent=11 // pred_check_branch
          %736 = sbr.rel (%p734) target = $region32
        $region31: #{resgroup_forward.2} parent=11 // pred_region
          _
        $region32: #{resgroup_forward.2} parent=11 // pred_fallthru
          _
        // Predicated region
        $region33: #{resgroup_forward.2} parent=11 // pred_check
          %p737 = pneg %p219
        $region34: #{resgroup_forward.2} parent=11 // pred_check_branch
          %739 = sbr.rel (%p737) target = $region36
        $region35: #{resgroup_forward.2} parent=11 // pred_region
          _
        $region36: #{resgroup_forward.2} parent=11 // pred_fallthru
          _
        // Predicated region
        $region37: #{resgroup_forward.2} parent=11 // pred_check
          %p740 = pneg %p240
        $region38: #{resgroup_forward.2} parent=11 // pred_check_branch
          %742 = sbr.rel (%p740) target = $region40
        $region39: #{resgroup_forward.2} parent=11 // pred_region
          _
        $region40: #{resgroup_forward.2} parent=11 // pred_fallthru
          _
        // Predicated region
        $region41: #{resgroup_forward.2} parent=11 // pred_check
          %p743 = pneg %p261
        $region42: #{resgroup_forward.2} parent=11 // pred_check_branch
          %745 = sbr.rel (%p743) target = $region44
        $region43: #{resgroup_forward.2} parent=11 // pred_region
          _
        $region44: #{resgroup_forward.2} parent=11 // pred_fallthru
          _
        // Predicated region
        $region45: #{resgroup_forward.2} parent=11 // pred_check
          %p746 = pneg %p282
        $region46: #{resgroup_forward.2} parent=11 // pred_check_branch
          %748 = sbr.rel (%p746) target = $region48
        $region47: #{resgroup_forward.2} parent=11 // pred_region
          _
        $region48: #{resgroup_forward.2} parent=11 // pred_fallthru
          _
        // Predicated region
        $region49: #{resgroup_forward.2} parent=11 // pred_check
          %p749 = pneg %p303
        $region50: #{resgroup_forward.2} parent=11 // pred_check_branch
          %751 = sbr.rel (%p749) target = $region52
        $region51: #{resgroup_forward.2} parent=11 // pred_region
          _
        $region52: #{resgroup_forward.2} parent=11 // pred_fallthru
          _
        // Predicated region
        $region53: #{resgroup_forward.2} parent=11 // pred_check
          %p752 = pneg %p324
        $region54: #{resgroup_forward.2} parent=11 // pred_check_branch
          %754 = sbr.rel (%p752) target = $region56
        $region55: #{resgroup_forward.2} parent=11 // pred_region
          _
        $region56: #{resgroup_forward.2} parent=11 // pred_fallthru
          _
        // Predicated region
        $region57: #{resgroup_forward.2} parent=11 // pred_check
          %p755 = pneg %p345
        $region58: #{resgroup_forward.2} parent=11 // pred_check_branch
          %757 = sbr.rel (%p755) target = $region60
        $region59: #{resgroup_forward.2} parent=11 // pred_region
          _
        $region60: #{resgroup_forward.2} parent=11 // pred_fallthru
          _
        // Predicated region
        $region61: #{resgroup_forward.2} parent=11 // pred_check
          %p758 = pneg %p366
        $region62: #{resgroup_forward.2} parent=11 // pred_check_branch
          %760 = sbr.rel (%p758) target = $region64
        $region63: #{resgroup_forward.2} parent=11 // pred_region
          %s762 = ssub.s32 32, 32
          %763 = vsyncadd [#allocation3], %s762
          %s765 = sshll.u32 %s27, 4
          %s766 = int_to_ptr.vmem [resolvable:$true] %s765
          %768 = dma.vmem_to_smem %s766, 32, [#allocation2], [#allocation3]
        $region64: #{resgroup_forward.2} parent=11 // pred_fallthru
          _
        // Predicated region
        $region65: #{resgroup_forward.2} parent=11 // pred_check
          %p769 = pneg %p387
        $region66: #{resgroup_forward.2} parent=11 // pred_check_branch
          %771 = sbr.rel (%p769) target = $region68
        $region67: #{resgroup_forward.2} parent=11 // pred_region
          %s773 = ssub.s32 16, 16
          %774 = vsyncadd [#allocation5], %s773
          %s776 = sshll.u32 %s29, 4
          %s777 = int_to_ptr.vmem [resolvable:$true] %s776
          %779 = dma.vmem_to_smem %s777, 16, [#allocation4], [#allocation5]
        $region68: #{resgroup_forward.2} parent=11 // pred_fallthru
          _
        // Predicated region
        $region69: #{resgroup_forward.2} parent=11 // pred_check
          %p780 = pneg %p408
        $region70: #{resgroup_forward.2} parent=11 // pred_check_branch
          %782 = sbr.rel (%p780) target = $region72
        $region71: #{resgroup_forward.2} parent=11 // pred_region
          _
        $region72: #{resgroup_forward.2} parent=11 // pred_fallthru
          _
        // Predicated region
        $region73: #{resgroup_forward.2} parent=11 // pred_check
          %p783 = pneg %p429
        $region74: #{resgroup_forward.2} parent=11 // pred_check_branch
          %785 = sbr.rel (%p783) target = $region76
        $region75: #{resgroup_forward.2} parent=11 // pred_region
          _
        $region76: #{resgroup_forward.2} parent=11 // pred_fallthru
          _
        // Predicated region
        $region77: #{resgroup_forward.2} parent=11 // pred_check
          %p786 = pneg %p450
        $region78: #{resgroup_forward.2} parent=11 // pred_check_branch
          %788 = sbr.rel (%p786) target = $region80
        $region79: #{resgroup_forward.2} parent=11 // pred_region
          _
        $region80: #{resgroup_forward.2} parent=11 // pred_fallthru
          _
        // Predicated region
        $region81: #{resgroup_forward.2} parent=11 // pred_check
          %p789 = pneg %p471
        $region82: #{resgroup_forward.2} parent=11 // pred_check_branch
          %791 = sbr.rel (%p789) target = $region84
        $region83: #{resgroup_forward.2} parent=11 // pred_region
          _
        $region84: #{resgroup_forward.2} parent=11 // pred_fallthru
          _
        // Predicated region
        $region85: #{resgroup_forward.2} parent=11 // pred_check
          %p792 = pneg %p492
        $region86: #{resgroup_forward.2} parent=11 // pred_check_branch
          %794 = sbr.rel (%p792) target = $region88
        $region87: #{resgroup_forward.2} parent=11 // pred_region
          _
        $region88: #{resgroup_forward.2} parent=11 // pred_fallthru
          _
        // Predicated region
        $region89: #{resgroup_forward.2} parent=11 // pred_check
          %p795 = pneg %p513
        $region90: #{resgroup_forward.2} parent=11 // pred_check_branch
          %797 = sbr.rel (%p795) target = $region92
        $region91: #{resgroup_forward.2} parent=11 // pred_region
          _
        $region92: #{resgroup_forward.2} parent=11 // pred_fallthru
          _
        // Predicated region
        $region93: #{resgroup_forward.2} parent=11 // pred_check
          %p798 = pneg %p534
        $region94: #{resgroup_forward.2} parent=11 // pred_check_branch
          %800 = sbr.rel (%p798) target = $region96
        $region95: #{resgroup_forward.2} parent=11 // pred_region
          _
        $region96: #{resgroup_forward.2} parent=11 // pred_fallthru
          _
        // Predicated region
        $region97: #{resgroup_forward.2} parent=11 // pred_check
          %p801 = pneg %p555
        $region98: #{resgroup_forward.2} parent=11 // pred_check_branch
          %803 = sbr.rel (%p801) target = $region100
        $region99: #{resgroup_forward.2} parent=11 // pred_region
          _
        $region100: #{resgroup_forward.2} parent=11 // pred_fallthru
          _
        // Predicated region
        $region101: #{resgroup_forward.2} parent=11 // pred_check
          %p804 = pneg %p576
        $region102: #{resgroup_forward.2} parent=11 // pred_check_branch
          %806 = sbr.rel (%p804) target = $region104
        $region103: #{resgroup_forward.2} parent=11 // pred_region
          _
        $region104: #{resgroup_forward.2} parent=11 // pred_fallthru
          _
        // Predicated region
        $region105: #{resgroup_forward.2} parent=11 // pred_check
          %p807 = pneg %p597
        $region106: #{resgroup_forward.2} parent=11 // pred_check_branch
          %809 = sbr.rel (%p807) target = $region108
        $region107: #{resgroup_forward.2} parent=11 // pred_region
          _
        $region108: #{resgroup_forward.2} parent=11 // pred_fallthru
          _
        // Predicated region
        $region109: #{resgroup_forward.2} parent=11 // pred_check
          %p810 = pneg %p618
        $region110: #{resgroup_forward.2} parent=11 // pred_check_branch
          %812 = sbr.rel (%p810) target = $region112
        $region111: #{resgroup_forward.2} parent=11 // pred_region
          _
        $region112: #{resgroup_forward.2} parent=11 // pred_fallthru
          _
        // Predicated region
        $region113: #{resgroup_forward.2} parent=11 // pred_check
          %p813 = pneg %p639
        $region114: #{resgroup_forward.2} parent=11 // pred_check_branch
          %815 = sbr.rel (%p813) target = $region116
        $region115: #{resgroup_forward.2} parent=11 // pred_region
          _
        $region116: #{resgroup_forward.2} parent=11 // pred_fallthru
          _
        // Predicated region
        $region117: #{resgroup_forward.2} parent=11 // pred_check
          %p816 = pneg %p660
        $region118: #{resgroup_forward.2} parent=11 // pred_check_branch
          %818 = sbr.rel (%p816) target = $region120
        $region119: #{resgroup_forward.2} parent=11 // pred_region
          _
        $region120: #{resgroup_forward.2} parent=11 // pred_fallthru
          _
        // Predicated region
        $region121: #{resgroup_forward.2} parent=11 // pred_check
          %p819 = pneg %p681
        $region122: #{resgroup_forward.2} parent=11 // pred_check_branch
          %821 = sbr.rel (%p819) target = $region124
        $region123: #{resgroup_forward.2} parent=11 // pred_region
          _
        $region124: #{resgroup_forward.2} parent=11 // pred_fallthru
          _
      $region12: #{resgroup_forward.2} parent=5 // pred_fallthru
        _
      %p822 = scmp.lt.s32.totalorder %s67, 2
      // Predicated region
      $region125: #{resgroup_forward.2} parent=5 // pred_check
        %p823 = pneg %p822
      $region126: #{resgroup_forward.2} parent=5 // pred_check_branch
        %825 = sbr.rel (%p823) target = $region128
      $region127: #{resgroup_forward.2} parent=5 // pred_region
        // Predicated region
        $region129: #{resgroup_forward.2} parent=127 // pred_check
          %p826 = pneg %p87
        $region130: #{resgroup_forward.2} parent=127 // pred_check_branch
          %828 = sbr.rel (%p826) target = $region132
        $region131: #{resgroup_forward.2} parent=127 // pred_region
          %p829 = scmp.lt.s32.totalorder %s67, 1
          %s830 = scalar_select %p829, %s67, 1
          %s831 = smul.addr %s830, 2
          %s832 = smul.addr %s831, 8
          %s833 = scalar_lea.vmem %s1, %s832
        $region132: #{resgroup_forward.2} parent=127 // pred_fallthru
          _
      $region128: #{resgroup_forward.2} parent=5 // pred_fallthru
        _
      %p834 = scmp.le.s32.totalorder 1, %s67
      %p835 = scmp.lt.s32.totalorder %s67, 3
      %p836 = pnand %p834, %p835
      %p837 = pneg %p836
      // Predicated region
      $region133: #{resgroup_forward.2} parent=5 // pred_check
        _
      $region134: #{resgroup_forward.2} parent=5 // pred_check_branch
        %839 = sbr.rel (%p836) target = $region136
      $region135: #{resgroup_forward.2} parent=5 // pred_region
        %s840 = ssub.s32 %s67, 1
        // Predicated region
        $region137: #{resgroup_forward.2} parent=135 // pred_check
          %p841 = pneg %p366
        $region138: #{resgroup_forward.2} parent=135 // pred_check_branch
          %843 = sbr.rel (%p841) target = $region140
        $region139: #{resgroup_forward.2} parent=135 // pred_region
          %844 = dma.done [#allocation3], 32
        $region140: #{resgroup_forward.2} parent=135 // pred_fallthru
          _
        // Predicated region
        $region141: #{resgroup_forward.2} parent=135 // pred_check
          %p845 = pneg %p387
        $region142: #{resgroup_forward.2} parent=135 // pred_check_branch
          %847 = sbr.rel (%p845) target = $region144
        $region143: #{resgroup_forward.2} parent=135 // pred_region
          %848 = dma.done [#allocation5], 16
        $region144: #{resgroup_forward.2} parent=135 // pred_fallthru
          _
        %849 = sfence
        %p850 = scmp.lt.s32.totalorder %s72, 1
        %s851 = scalar_select %p850, %s72, 1
        %s852 = smul.addr %s851, 2
        %s853 = smul.addr %s852, 8
        %s854 = scalar_lea.vmem %s1, %s853
        %p855 = pneg %p93
        %p856 = pneg %p90
        %p857 = pneg %p114
        %p858 = pneg %p111
        %p859 = pneg %p135
        %p860 = pneg %p132
        %p861 = pneg %p156
        %p862 = pneg %p153
        %p863 = pneg %p177
        %p864 = pneg %p174
        %p865 = pneg %p198
        %p866 = pneg %p195
        %p867 = pneg %p219
        %p868 = pneg %p216
        %p869 = pneg %p240
        %p870 = pneg %p237
        %p871 = pneg %p261
        %p872 = pneg %p258
        %p873 = pneg %p282
        %p874 = pneg %p279
        %p875 = pneg %p303
        %p876 = pneg %p300
        %p877 = pneg %p324
        %p878 = pneg %p321
        %p879 = pneg %p345
        %p880 = pneg %p342
        %p881 = pneg %p366
        %p882 = pneg %p363
        %p883 = pneg %p387
        %p884 = pneg %p384
        %p885 = pneg %p408
        %p886 = pneg %p405
        %p887 = pneg %p429
        %p888 = pneg %p426
        %p889 = pneg %p450
        %p890 = pneg %p447
        %p891 = pneg %p471
        %p892 = pneg %p468
        %p893 = pneg %p492
        %p894 = pneg %p489
        %p895 = pneg %p513
        %p896 = pneg %p510
        %p897 = pneg %p534
        %p898 = pneg %p531
        %p899 = pneg %p555
        %p900 = pneg %p552
        %p901 = pneg %p576
        %p902 = pneg %p573
        %p903 = pneg %p597
        %p904 = pneg %p594
        %p905 = pneg %p618
        %p906 = pneg %p615
        %p907 = pneg %p639
        %p908 = pneg %p636
        %p909 = pneg %p660
        %p910 = pneg %p657
        %p911 = pneg %p681
        %p912 = pneg %p678
        %p913 = pneg %p707
        %p914 = pneg %p704
        %p915 = scmp.lt.s32.totalorder %s72, 1
        %s916 = scalar_select %p915, %s72, 1
        %s917 = smul.addr %s916, 2
        %s918 = smul.addr %s917, 8
        %s919 = scalar_lea.vmem %s59, %s918
        %p920 = scmp.lt.s32.totalorder %s72, 1
        %s921 = scalar_select %p920, %s72, 1
        %s922 = smul.addr %s921, 2
        %s923 = smul.addr %s922, 8
        %s924 = scalar_lea.vmem %s1, %s923
        %p925 = scmp.lt.s32.totalorder %s72, 1
        %s926 = scalar_select %p925, %s72, 1
        %s927 = smul.addr %s926, 2
        %s928 = smul.addr %s927, 8
        %s929 = scalar_lea.vmem %s59, %s928
        %v931 = vld [vmem:[%s924] sm:$0xff]
        %v932 = vld [vmem:[%s924 + $0x8] sm:$0xff]
        %v933 = vlaneseq
        %v934 = vand.u32 %v933, 127
        %v935 = vadd.s32 %v934, 128
        %vm936 = vcmp.lt.s32.totalorder %v934, 0
        %v937 = vsub.s32 0, %v934
        %v938 = vsel %vm936, %v937, %v934
        %v939 = vshrl.u32 %v938, 4
        %v940 = vand.u32 %v938, 15
        %v941 = vsub.s32 0, %v940
        %v942 = vsel %vm936, %v941, %v940
        %vm943 = vcmp.lt.s32.totalorder %v935, 0
        %v944 = vsub.s32 0, %v935
        %v945 = vsel %vm943, %v944, %v935
        %v946 = vshrl.u32 %v945, 4
        %v947 = vand.u32 %v945, 15
        %v948 = vsub.s32 0, %v947
        %v949 = vsel %vm943, %v948, %v947
        %vm950 = vcmp.ne.s32.totalorder %v942, 0
        %vm951 = vcmp.ne.s32.totalorder %v949, 0
        %vm952 = vcmp.lt.s32.totalorder %v942, 0
        %vm953 = vcmp.lt.s32.totalorder %v949, 0
        %vm954 = vmand %vm952, %vm950
        %vm955 = vmand %vm953, %vm951
        %v956 = vadd.s32 %v942, 16
        %v957 = vadd.s32 %v949, 16
        %v958 = vsel %vm954, %v956, %v942
        %v959 = vsel %vm955, %v957, %v949
        %v960 = vld [vmem:[%s3] sm:$0xff]
        %v961 = vld [vmem:[%s5] sm:$0xff]
        %v962 = vrot.slane %v931, 4
        %v963 = vadd.f32 %v931, %v962
        %v964 = vrot.slane %v963, 2
        %v965 = vadd.f32 %v963, %v964
        %v966 = vrot.slane %v965, 1
        %v967 = vadd.f32 %v965, %v966
        %v968 = vrot.slane %v932, 4
        %v969 = vadd.f32 %v932, %v968
        %v970 = vrot.slane %v969, 2
        %v971 = vadd.f32 %v969, %v970
        %v972 = vrot.slane %v971, 1
        %v973 = vadd.f32 %v971, %v972
        %v974 = vrcp.pop 8.0
        %v975 = vmul.f32 %v967, %v974
        %v976 = vmul.f32 %v973, %v974
        %v977 = vsub.f32 %v931, %v975
        %v978 = vsub.f32 %v932, %v976
        %v979 = vmul.f32 %v977, %v977
        %v980 = vmul.f32 %v978, %v978
        %v981 = vrot.slane %v979, 4
        %v982 = vadd.f32 %v979, %v981
        %v983 = vrot.slane %v982, 2
        %v984 = vadd.f32 %v982, %v983
        %v985 = vrot.slane %v984, 1
        %v986 = vadd.f32 %v984, %v985
        %v987 = vrot.slane %v980, 4
        %v988 = vadd.f32 %v980, %v987
        %v989 = vrot.slane %v988, 2
        %v990 = vadd.f32 %v988, %v989
        %v991 = vrot.slane %v990, 1
        %v992 = vadd.f32 %v990, %v991
        %v993 = vmul.f32 %v986, %v974
        %v994 = vmul.f32 %v992, %v974
        %v995 = vadd.f32 %v993, 1e-06
        %v996 = vadd.f32 %v994, 1e-06
        %v997 = vrsqrt.pop %v995
        %v998 = vrsqrt.pop %v996
        %v999 = vmul.f32 %v977, %v997
        %v1000 = vmul.f32 %v978, %v998
        %1002 = vset.pattern.permute.xlu0 0
        %1003 = vperm.xlu0 %1002, %v960
        %v1004 = vpop.permute.xlu0 %1003
        %v1006 = vmul.f32 %v999, %v1004
        %v1007 = vmul.f32 %v1000, %v1004
        %1009 = vset.pattern.permute.xlu0 0
        %1010 = vperm.xlu0 %1009, %v961
        %v1011 = vpop.permute.xlu0 %1010
        %v1013 = vadd.f32 %v1006, %v1011
        %v1014 = vadd.f32 %v1007, %v1011
        %v1015 = vld [vmem:[%s7] sm:$0xff]
        %v1016 = vpack.c.bf16 %v1015, %v1015
        %v1017 = vpack.c.bf16 %v1013, %v1013
        %v1018 = vpack.c.bf16 %v1014, %v1014
        %v1019 = vld [vmem:[%s9] sm:$0xff]
        %1021 = vset.pattern.permute.xlu0 0
        %1022 = vperm.xlu0 %1021, %v1019
        %v1023 = vpop.permute.xlu0 %1022
        %vm1025 = vcmask 64512
        %v1027 = vsel %vm1025, %v1016, 0
        %vm1029 = vcmask 1043456
        %v1031 = vsel %vm1029, %v1017, 0
        %v1034 = vsel %vm1029, %v1018, 0
        %1036 = vmatprep.subr.bf16.mxu0 0
        %1037 = vmatpush1.bf16.msra.mxu0 0
        %1038 = vmatprep.subr.bf16.mxu0 0
        %1039 = vmatpush1.bf16.msra.mxu0 0
        %1040 = vmatprep.subr.bf16.mxu0 0
        %1041 = vmatpush1.bf16.msra.mxu0 0
        %1042 = vmatprep.subr.bf16.mxu0 0
        %1043 = vmatpush1.bf16.msra.mxu0 0
        %1044 = vmatprep.subr.bf16.mxu0 0
        %1045 = vmatpush1.bf16.msra.mxu0 0
        %1046 = vmatprep.subr.bf16.mxu0 0
        %1047 = vmatpush1.bf16.msra.mxu0 0
        %1048 = vmatprep.subr.bf16.mxu0 0
        %1049 = vmatpush1.bf16.msra.mxu0 0
        %1050 = vmatprep.subr.bf16.mxu0 %v1034
        %1051 = vmatpush1.bf16.msra.mxu0 %v1031
        %1052 = vmatprep.subr.bf16.mxu0 0
        %1053 = vmatpush2.bf16.msra.mxu0 0
        %1054 = vmatprep.subr.bf16.mxu0 0
        %1055 = vmatpush2.bf16.msra.mxu0 0
        %1056 = vmatprep.subr.bf16.mxu0 0
        %1057 = vmatpush2.bf16.msra.mxu0 0
        %1058 = vmatprep.subr.bf16.mxu0 0
        %1059 = vmatpush2.bf16.msra.mxu0 0
        %1060 = vmatprep.subr.bf16.mxu0 0
        %1061 = vmatpush2.bf16.msra.mxu0 0
        %1062 = vmatprep.subr.bf16.mxu0 0
        %1063 = vmatpush2.bf16.msra.mxu0 0
        %1064 = vmatprep.subr.bf16.mxu0 0
        %1065 = vmatpush2.bf16.msra.mxu0 0
        %1066 = vmatprep.subr.bf16.mxu0 0
        %1067 = vmatpush2.bf16.msra.mxu0 0
        %1068 = vmatprep.mubr.bf16.mxu0 0
        %1069 = vmatmul.mubr.bf16.gmra.mxu0 %v1027
        %v1070 = vpop.f32.mrf.mxu0
        %v1071 = vadd.f32 %v1023, %v1070
        %v1072 = vpop.f32.mrf.mxu0
        %v1073 = vadd.f32 %v1023, %v1072
        %v1074 = vpop.f32.mrf.mxu0
        %v1075 = vpop.f32.mrf.mxu0
        %1076 = vdwg.mxu0
        %v1077 = vmul.f32 %v1071, 0.5
        %v1078 = vmul.f32 %v1073, 0.5
        %v1079 = vmul.f32 %v1071, 0.70710677
        %v1080 = vmul.f32 %v1073, 0.70710677
        %vm1081 = vcmp.ge.f32.partialorder %v1079, 0.0
        %vm1082 = vcmp.ge.f32.partialorder %v1080, 0.0
        %v1083 = vsel %vm1081, 1.0, -1.0
        %v1084 = vsel %vm1082, 1.0, -1.0
        %v1085 = vand.u32 2147483647, %v1079
        %v1086 = vand.u32 2147483647, %v1080
        %v1087 = vmul.f32 %v1085, 0.3275911
        %v1088 = vmul.f32 %v1086, 0.3275911
        %v1089 = vadd.f32 %v1087, 1.0
        %v1090 = vadd.f32 %v1088, 1.0
        %v1091 = vrcp.pop %v1089
        %v1092 = vmul.f32 1.0, %v1091
        %v1093 = vrcp.pop %v1090
        %v1094 = vmul.f32 1.0, %v1093
        %v1095 = vmul.f32 %v1092, 1.0614054
        %v1096 = vmul.f32 %v1094, 1.0614054
        %v1097 = vadd.f32 %v1095, -1.4531521
        %v1098 = vadd.f32 %v1096, -1.4531521
        %v1099 = vmul.f32 %v1097, %v1092
        %v1100 = vmul.f32 %v1098, %v1094
        %v1101 = vadd.f32 %v1099, 1.4214138
        %v1102 = vadd.f32 %v1100, 1.4214138
        %v1103 = vmul.f32 %v1101, %v1092
        %v1104 = vmul.f32 %v1102, %v1094
        %v1105 = vadd.f32 %v1103, -0.28449672
        %v1106 = vadd.f32 %v1104, -0.28449672
        %v1107 = vmul.f32 %v1105, %v1092
        %v1108 = vmul.f32 %v1106, %v1094
        %v1109 = vadd.f32 %v1107, 0.2548296
        %v1110 = vadd.f32 %v1108, 0.2548296
        %v1111 = vmul.f32 %v1109, %v1092
        %v1112 = vmul.f32 %v1110, %v1094
        %v1113 = vsub.f32 0.0, %v1085
        %v1114 = vsub.f32 0.0, %v1086
        %v1115 = vmul.f32 %v1113, %v1085
        %v1116 = vmul.f32 %v1114, %v1086
        %v1117 = vmul.f32 %v1115, 1.442695
        %v1118 = vpow.pop %v1117
        %v1119 = vmul.f32 %v1116, 1.442695
        %v1120 = vpow.pop %v1119
        %v1121 = vmul.f32 %v1111, %v1118
        %v1122 = vmul.f32 %v1112, %v1120
        %v1123 = vsub.f32 1.0, %v1121
        %v1124 = vsub.f32 1.0, %v1122
        %v1125 = vmul.f32 %v1083, %v1123
        %v1126 = vmul.f32 %v1084, %v1124
        %v1127 = vadd.f32 %v1125, 1.0
        %v1128 = vadd.f32 %v1126, 1.0
        %v1129 = vmul.f32 %v1077, %v1127
        %v1130 = vmul.f32 %v1078, %v1128
        %1133 = vrot.lane.b32.xlu0 %v1129, 34
        %v1134 = vpop.permute.xlu0 %1133
        %1135 = vrot.lane.b32.xlu0 %v1130, 34
        %v1136 = vpop.permute.xlu0 %1135
        %vm1137 = vcmask 277504
        %v1138 = vsel %vm1137, %v1134, %v1136
        %v1141 = vsel %vm1137, 0.0, %v1134
        %v1142 = vld [vmem:[%s11] sm:$0xff]
        %1144 = vset.pattern.permute.xlu0 0
        %1145 = vperm.xlu0 %1144, %v1142
        %v1146 = vpop.permute.xlu0 %1145
        %v1148 = vmul.f32 %v1141, %v1146
        %v1149 = vmul.f32 %v1138, %v1146
        %v1150 = vadd.f32 %v1148, 0.0
        %v1151 = vadd.f32 %v1149, 0.0
        %1152 = vrot.lane.b32.xlu0 %v1129, 18
        %v1153 = vpop.permute.xlu0 %1152
        %1154 = vrot.lane.b32.xlu0 %v1130, 18
        %v1155 = vpop.permute.xlu0 %1154
        %vm1156 = vcmask 146432
        %v1157 = vsel %vm1156, %v1153, %v1155
        %v1160 = vsel %vm1156, 0.0, %v1153
        %1161 = vset.pattern.permute.xlu0 5
        %1162 = vperm.xlu0 %1161, %v1142
        %v1163 = vpop.permute.xlu0 %1162
        %v1165 = vmul.f32 %v1160, %v1163
        %v1166 = vmul.f32 %v1157, %v1163
        %v1167 = vadd.f32 %v1150, %v1165
        %v1168 = vadd.f32 %v1151, %v1166
        %1169 = vrot.lane.b32.xlu0 %v1129, 2
        %v1170 = vpop.permute.xlu0 %1169
        %1171 = vrot.lane.b32.xlu0 %v1130, 2
        %v1172 = vpop.permute.xlu0 %1171
        %vm1173 = vcmask 15360
        %v1174 = vsel %vm1173, %v1170, %v1172
        %v1177 = vsel %vm1173, 0.0, %v1170
        %1178 = vset.pattern.permute.xlu0 10
        %1179 = vperm.xlu0 %1178, %v1142
        %v1180 = vpop.permute.xlu0 %1179
        %v1182 = vmul.f32 %v1177, %v1180
        %v1183 = vmul.f32 %v1174, %v1180
        %v1184 = vadd.f32 %v1167, %v1182
        %v1185 = vadd.f32 %v1168, %v1183
        %1186 = vrot.lane.b32.xlu0 %v1129, 114
        %v1187 = vpop.permute.xlu0 %1186
        %1188 = vrot.lane.b32.xlu0 %v1130, 114
        %v1189 = vpop.permute.xlu0 %1188
        %vm1190 = vcmask 932864
        %v1191 = vsel %vm1190, %v1187, %v1189
        %v1194 = vsel %vm1190, %v1189, 0.0
        %1195 = vset.pattern.permute.xlu0 15
        %1196 = vperm.xlu0 %1195, %v1142
        %v1197 = vpop.permute.xlu0 %1196
        %v1199 = vmul.f32 %v1191, %v1197
        %v1200 = vmul.f32 %v1194, %v1197
        %v1201 = vadd.f32 %v1184, %v1199
        %v1202 = vadd.f32 %v1185, %v1200
        %1203 = vrot.lane.b32.xlu0 %v1129, 98
        %v1204 = vpop.permute.xlu0 %1203
        %1205 = vrot.lane.b32.xlu0 %v1130, 98
        %v1206 = vpop.permute.xlu0 %1205
        %vm1207 = vcmask 801792
        %v1208 = vsel %vm1207, %v1204, %v1206
        %v1211 = vsel %vm1207, %v1206, 0.0
        %1212 = vset.pattern.permute.xlu0 20
        %1213 = vperm.xlu0 %1212, %v1142
        %v1214 = vpop.permute.xlu0 %1213
        %v1216 = vmul.f32 %v1208, %v1214
        %v1217 = vmul.f32 %v1211, %v1214
        %v1218 = vadd.f32 %v1201, %v1216
        %v1219 = vadd.f32 %v1202, %v1217
        %v1220 = vadd.s32 %v958, 4294967294
        %v1221 = vadd.s32 %v959, 4294967294
        %vm1222 = vcmp.ge.s32.totalorder %v1220, 0
        %vm1223 = vcmp.ge.s32.totalorder %v1221, 0
        %vm1224 = vcmp.lt.s32.totalorder %v1220, 16
        %vm1225 = vcmp.lt.s32.totalorder %v1221, 16
        %vm1226 = vmand %vm1222, %vm1224
        %vm1227 = vmand %vm1223, %vm1225
        %v1228 = vsel %vm1226, 1, 0
        %v1229 = vsel %vm1227, 1, 0
        %vm1230 = vcmp.eq.s32.totalorder %v1228, 1
        %vm1231 = vcmp.eq.s32.totalorder %v1229, 1
        %v1232 = vsel %vm1230, %v1218, 0.0
        %v1233 = vsel %vm1231, %v1219, 0.0
        %v1234 = vadd.f32 %v1232, 0.0
        %v1235 = vadd.f32 %v1233, 0.0
        %1236 = vrot.lane.b32.xlu0 %v1129, 33
        %v1237 = vpop.permute.xlu0 %1236
        %1238 = vrot.lane.b32.xlu0 %v1130, 33
        %v1239 = vpop.permute.xlu0 %1238
        %vm1240 = vcmask 269312
        %v1241 = vsel %vm1240, %v1237, %v1239
        %v1244 = vsel %vm1240, 0.0, %v1237
        %1245 = vset.pattern.permute.xlu0 1
        %1246 = vperm.xlu0 %1245, %v1142
        %v1247 = vpop.permute.xlu0 %1246
        %v1249 = vmul.f32 %v1244, %v1247
        %v1250 = vmul.f32 %v1241, %v1247
        %v1251 = vadd.f32 %v1249, 0.0
        %v1252 = vadd.f32 %v1250, 0.0
        %1253 = vrot.lane.b32.xlu0 %v1129, 17
        %v1254 = vpop.permute.xlu0 %1253
        %1255 = vrot.lane.b32.xlu0 %v1130, 17
        %v1256 = vpop.permute.xlu0 %1255
        %vm1257 = vcmask 138240
        %v1258 = vsel %vm1257, %v1254, %v1256
        %v1261 = vsel %vm1257, 0.0, %v1254
        %1262 = vset.pattern.permute.xlu0 6
        %1263 = vperm.xlu0 %1262, %v1142
        %v1264 = vpop.permute.xlu0 %1263
        %v1266 = vmul.f32 %v1261, %v1264
        %v1267 = vmul.f32 %v1258, %v1264
        %v1268 = vadd.f32 %v1251, %v1266
        %v1269 = vadd.f32 %v1252, %v1267
        %1270 = vrot.lane.b32.xlu0 %v1129, 1
        %v1271 = vpop.permute.xlu0 %1270
        %1272 = vrot.lane.b32.xlu0 %v1130, 1
        %v1273 = vpop.permute.xlu0 %1272
        %vm1274 = vcmask 7168
        %v1275 = vsel %vm1274, %v1271, %v1273
        %v1278 = vsel %vm1274, 0.0, %v1271
        %1279 = vset.pattern.permute.xlu0 11
        %1280 = vperm.xlu0 %1279, %v1142
        %v1281 = vpop.permute.xlu0 %1280
        %v1283 = vmul.f32 %v1278, %v1281
        %v1284 = vmul.f32 %v1275, %v1281
        %v1285 = vadd.f32 %v1268, %v1283
        %v1286 = vadd.f32 %v1269, %v1284
        %1287 = vrot.lane.b32.xlu0 %v1129, 113
        %v1288 = vpop.permute.xlu0 %1287
        %1289 = vrot.lane.b32.xlu0 %v1130, 113
        %v1290 = vpop.permute.xlu0 %1289
        %vm1291 = vcmask 924672
        %v1292 = vsel %vm1291, %v1288, %v1290
        %v1295 = vsel %vm1291, %v1290, 0.0
        %1296 = vset.pattern.permute.xlu0 16
        %1297 = vperm.xlu0 %1296, %v1142
        %v1298 = vpop.permute.xlu0 %1297
        %v1300 = vmul.f32 %v1292, %v1298
        %v1301 = vmul.f32 %v1295, %v1298
        %v1302 = vadd.f32 %v1285, %v1300
        %v1303 = vadd.f32 %v1286, %v1301
        %1304 = vrot.lane.b32.xlu0 %v1129, 97
        %v1305 = vpop.permute.xlu0 %1304
        %1306 = vrot.lane.b32.xlu0 %v1130, 97
        %v1307 = vpop.permute.xlu0 %1306
        %vm1308 = vcmask 793600
        %v1309 = vsel %vm1308, %v1305, %v1307
        %v1312 = vsel %vm1308, %v1307, 0.0
        %1313 = vset.pattern.permute.xlu0 21
        %1314 = vperm.xlu0 %1313, %v1142
        %v1315 = vpop.permute.xlu0 %1314
        %v1317 = vmul.f32 %v1309, %v1315
        %v1318 = vmul.f32 %v1312, %v1315
        %v1319 = vadd.f32 %v1302, %v1317
        %v1320 = vadd.f32 %v1303, %v1318
        %v1321 = vadd.s32 %v958, 4294967295
        %v1322 = vadd.s32 %v959, 4294967295
        %vm1323 = vcmp.ge.s32.totalorder %v1321, 0
        %vm1324 = vcmp.ge.s32.totalorder %v1322, 0
        %vm1325 = vcmp.lt.s32.totalorder %v1321, 16
        %vm1326 = vcmp.lt.s32.totalorder %v1322, 16
        %vm1327 = vmand %vm1323, %vm1325
        %vm1328 = vmand %vm1324, %vm1326
        %v1329 = vsel %vm1327, 1, 0
        %v1330 = vsel %vm1328, 1, 0
        %vm1331 = vcmp.eq.s32.totalorder %v1329, 1
        %vm1332 = vcmp.eq.s32.totalorder %v1330, 1
        %v1333 = vsel %vm1331, %v1319, 0.0
        %v1334 = vsel %vm1332, %v1320, 0.0
        %v1335 = vadd.f32 %v1234, %v1333
        %v1336 = vadd.f32 %v1235, %v1334
        %1337 = vrot.lane.b32.xlu0 %v1129, 32
        %v1338 = vpop.permute.xlu0 %1337
        %1339 = vrot.lane.b32.xlu0 %v1130, 32
        %v1340 = vpop.permute.xlu0 %1339
        %vm1341 = vcmask 261120
        %v1342 = vsel %vm1341, %v1338, %v1340
        %v1345 = vsel %vm1341, 0.0, %v1338
        %1346 = vset.pattern.permute.xlu0 2
        %1347 = vperm.xlu0 %1346, %v1142
        %v1348 = vpop.permute.xlu0 %1347
        %v1350 = vmul.f32 %v1345, %v1348
        %v1351 = vmul.f32 %v1342, %v1348
        %v1352 = vadd.f32 %v1350, 0.0
        %v1353 = vadd.f32 %v1351, 0.0
        %1354 = vrot.lane.b32.xlu0 %v1129, 16
        %v1355 = vpop.permute.xlu0 %1354
        %1356 = vrot.lane.b32.xlu0 %v1130, 16
        %v1357 = vpop.permute.xlu0 %1356
        %vm1358 = vcmask 130048
        %v1359 = vsel %vm1358, %v1355, %v1357
        %v1362 = vsel %vm1358, 0.0, %v1355
        %1363 = vset.pattern.permute.xlu0 7
        %1364 = vperm.xlu0 %1363, %v1142
        %v1365 = vpop.permute.xlu0 %1364
        %v1367 = vmul.f32 %v1362, %v1365
        %v1368 = vmul.f32 %v1359, %v1365
        %v1369 = vadd.f32 %v1352, %v1367
        %v1370 = vadd.f32 %v1353, %v1368
        %1371 = vset.pattern.permute.xlu0 12
        %1372 = vperm.xlu0 %1371, %v1142
        %v1373 = vpop.permute.xlu0 %1372
        %v1375 = vmul.f32 %v1129, %v1373
        %v1376 = vmul.f32 %v1130, %v1373
        %v1377 = vadd.f32 %v1369, %v1375
        %v1378 = vadd.f32 %v1370, %v1376
        %1379 = vrot.lane.b32.xlu0 %v1129, 112
        %v1380 = vpop.permute.xlu0 %1379
        %1381 = vrot.lane.b32.xlu0 %v1130, 112
        %v1382 = vpop.permute.xlu0 %1381
        %vm1383 = vcmask 916480
        %v1384 = vsel %vm1383, %v1380, %v1382
        %v1387 = vsel %vm1383, %v1382, 0.0
        %1388 = vset.pattern.permute.xlu0 17
        %1389 = vperm.xlu0 %1388, %v1142
        %v1390 = vpop.permute.xlu0 %1389
        %v1392 = vmul.f32 %v1384, %v1390
        %v1393 = vmul.f32 %v1387, %v1390
        %v1394 = vadd.f32 %v1377, %v1392
        %v1395 = vadd.f32 %v1378, %v1393
        %1396 = vrot.lane.b32.xlu0 %v1129, 96
        %v1397 = vpop.permute.xlu0 %1396
        %1398 = vrot.lane.b32.xlu0 %v1130, 96
        %v1399 = vpop.permute.xlu0 %1398
        %vm1400 = vcmask 785408
        %v1401 = vsel %vm1400, %v1397, %v1399
        %v1404 = vsel %vm1400, %v1399, 0.0
        %1405 = vset.pattern.permute.xlu0 22
        %1406 = vperm.xlu0 %1405, %v1142
        %v1407 = vpop.permute.xlu0 %1406
        %v1409 = vmul.f32 %v1401, %v1407
        %v1410 = vmul.f32 %v1404, %v1407
        %v1411 = vadd.f32 %v1394, %v1409
        %v1412 = vadd.f32 %v1395, %v1410
        %vm1413 = vcmp.ge.s32.totalorder %v958, 0
        %vm1414 = vcmp.ge.s32.totalorder %v959, 0
        %vm1415 = vcmp.lt.s32.totalorder %v958, 16
        %vm1416 = vcmp.lt.s32.totalorder %v959, 16
        %vm1417 = vmand %vm1413, %vm1415
        %vm1418 = vmand %vm1414, %vm1416
        %v1419 = vsel %vm1417, 1, 0
        %v1420 = vsel %vm1418, 1, 0
        %vm1421 = vcmp.eq.s32.totalorder %v1419, 1
        %vm1422 = vcmp.eq.s32.totalorder %v1420, 1
        %v1423 = vsel %vm1421, %v1411, 0.0
        %v1424 = vsel %vm1422, %v1412, 0.0
        %v1425 = vadd.f32 %v1335, %v1423
        %v1426 = vadd.f32 %v1336, %v1424
        %1427 = vrot.lane.b32.xlu0 %v1129, 31
        %v1428 = vpop.permute.xlu0 %1427
        %1429 = vrot.lane.b32.xlu0 %v1130, 31
        %v1430 = vpop.permute.xlu0 %1429
        %vm1431 = vcmask 252928
        %v1432 = vsel %vm1431, %v1428, %v1430
        %v1435 = vsel %vm1431, 0.0, %v1428
        %1436 = vset.pattern.permute.xlu0 3
        %1437 = vperm.xlu0 %1436, %v1142
        %v1438 = vpop.permute.xlu0 %1437
        %v1440 = vmul.f32 %v1435, %v1438
        %v1441 = vmul.f32 %v1432, %v1438
        %v1442 = vadd.f32 %v1440, 0.0
        %v1443 = vadd.f32 %v1441, 0.0
        %1444 = vrot.lane.b32.xlu0 %v1129, 15
        %v1445 = vpop.permute.xlu0 %1444
        %1446 = vrot.lane.b32.xlu0 %v1130, 15
        %v1447 = vpop.permute.xlu0 %1446
        %vm1448 = vcmask 121856
        %v1449 = vsel %vm1448, %v1445, %v1447
        %v1452 = vsel %vm1448, 0.0, %v1445
        %1453 = vset.pattern.permute.xlu0 8
        %1454 = vperm.xlu0 %1453, %v1142
        %v1455 = vpop.permute.xlu0 %1454
        %v1457 = vmul.f32 %v1452, %v1455
        %v1458 = vmul.f32 %v1449, %v1455
        %v1459 = vadd.f32 %v1442, %v1457
        %v1460 = vadd.f32 %v1443, %v1458
        %1461 = vrot.lane.b32.xlu0 %v1129, 127
        %v1462 = vpop.permute.xlu0 %1461
        %1463 = vrot.lane.b32.xlu0 %v1130, 127
        %v1464 = vpop.permute.xlu0 %1463
        %vm1465 = vcmask 1039360
        %v1466 = vsel %vm1465, %v1462, %v1464
        %v1469 = vsel %vm1465, %v1464, 0.0
        %1470 = vset.pattern.permute.xlu0 13
        %1471 = vperm.xlu0 %1470, %v1142
        %v1472 = vpop.permute.xlu0 %1471
        %v1474 = vmul.f32 %v1466, %v1472
        %v1475 = vmul.f32 %v1469, %v1472
        %v1476 = vadd.f32 %v1459, %v1474
        %v1477 = vadd.f32 %v1460, %v1475
        %1478 = vrot.lane.b32.xlu0 %v1129, 111
        %v1479 = vpop.permute.xlu0 %1478
        %1480 = vrot.lane.b32.xlu0 %v1130, 111
        %v1481 = vpop.permute.xlu0 %1480
        %vm1482 = vcmask 908288
        %v1483 = vsel %vm1482, %v1479, %v1481
        %v1486 = vsel %vm1482, %v1481, 0.0
        %1487 = vset.pattern.permute.xlu0 18
        %1488 = vperm.xlu0 %1487, %v1142
        %v1489 = vpop.permute.xlu0 %1488
        %v1491 = vmul.f32 %v1483, %v1489
        %v1492 = vmul.f32 %v1486, %v1489
        %v1493 = vadd.f32 %v1476, %v1491
        %v1494 = vadd.f32 %v1477, %v1492
        %1495 = vrot.lane.b32.xlu0 %v1129, 95
        %v1496 = vpop.permute.xlu0 %1495
        %1497 = vrot.lane.b32.xlu0 %v1130, 95
        %v1498 = vpop.permute.xlu0 %1497
        %vm1499 = vcmask 777216
        %v1500 = vsel %vm1499, %v1496, %v1498
        %v1503 = vsel %vm1499, %v1498, 0.0
        %1504 = vset.pattern.permute.xlu0 23
        %1505 = vperm.xlu0 %1504, %v1142
        %v1506 = vpop.permute.xlu0 %1505
        %v1508 = vmul.f32 %v1500, %v1506
        %v1509 = vmul.f32 %v1503, %v1506
        %v1510 = vadd.f32 %v1493, %v1508
        %v1511 = vadd.f32 %v1494, %v1509
        %v1512 = vadd.s32 %v958, 1
        %v1513 = vadd.s32 %v959, 1
        %vm1514 = vcmp.ge.s32.totalorder %v1512, 0
        %vm1515 = vcmp.ge.s32.totalorder %v1513, 0
        %vm1516 = vcmp.lt.s32.totalorder %v1512, 16
        %vm1517 = vcmp.lt.s32.totalorder %v1513, 16
        %vm1518 = vmand %vm1514, %vm1516
        %vm1519 = vmand %vm1515, %vm1517
        %v1520 = vsel %vm1518, 1, 0
        %v1521 = vsel %vm1519, 1, 0
        %vm1522 = vcmp.eq.s32.totalorder %v1520, 1
        %vm1523 = vcmp.eq.s32.totalorder %v1521, 1
        %v1524 = vsel %vm1522, %v1510, 0.0
        %v1525 = vsel %vm1523, %v1511, 0.0
        %v1526 = vadd.f32 %v1425, %v1524
        %v1527 = vadd.f32 %v1426, %v1525
        %1528 = vrot.lane.b32.xlu0 %v1129, 30
        %v1529 = vpop.permute.xlu0 %1528
        %1530 = vrot.lane.b32.xlu0 %v1130, 30
        %v1531 = vpop.permute.xlu0 %1530
        %vm1532 = vcmask 244736
        %v1533 = vsel %vm1532, %v1529, %v1531
        %v1536 = vsel %vm1532, 0.0, %v1529
        %1537 = vset.pattern.permute.xlu0 4
        %1538 = vperm.xlu0 %1537, %v1142
        %v1539 = vpop.permute.xlu0 %1538
        %v1541 = vmul.f32 %v1536, %v1539
        %v1542 = vmul.f32 %v1533, %v1539
        %v1543 = vadd.f32 %v1541, 0.0
        %v1544 = vadd.f32 %v1542, 0.0
        %1545 = vrot.lane.b32.xlu0 %v1129, 14
        %v1546 = vpop.permute.xlu0 %1545
        %1547 = vrot.lane.b32.xlu0 %v1130, 14
        %v1548 = vpop.permute.xlu0 %1547
        %vm1549 = vcmask 113664
        %v1550 = vsel %vm1549, %v1546, %v1548
        %v1553 = vsel %vm1549, 0.0, %v1546
        %1554 = vset.pattern.permute.xlu0 9
        %1555 = vperm.xlu0 %1554, %v1142
        %v1556 = vpop.permute.xlu0 %1555
        %v1558 = vmul.f32 %v1553, %v1556
        %v1559 = vmul.f32 %v1550, %v1556
        %v1560 = vadd.f32 %v1543, %v1558
        %v1561 = vadd.f32 %v1544, %v1559
        %1562 = vrot.lane.b32.xlu0 %v1129, 126
        %v1563 = vpop.permute.xlu0 %1562
        %1564 = vrot.lane.b32.xlu0 %v1130, 126
        %v1565 = vpop.permute.xlu0 %1564
        %vm1566 = vcmask 1031168
        %v1567 = vsel %vm1566, %v1563, %v1565
        %v1570 = vsel %vm1566, %v1565, 0.0
        %1571 = vset.pattern.permute.xlu0 14
        %1572 = vperm.xlu0 %1571, %v1142
        %v1573 = vpop.permute.xlu0 %1572
        %v1575 = vmul.f32 %v1567, %v1573
        %v1576 = vmul.f32 %v1570, %v1573
        %v1577 = vadd.f32 %v1560, %v1575
        %v1578 = vadd.f32 %v1561, %v1576
        %1579 = vrot.lane.b32.xlu0 %v1129, 110
        %v1580 = vpop.permute.xlu0 %1579
        %1581 = vrot.lane.b32.xlu0 %v1130, 110
        %v1582 = vpop.permute.xlu0 %1581
        %vm1583 = vcmask 900096
        %v1584 = vsel %vm1583, %v1580, %v1582
        %v1587 = vsel %vm1583, %v1582, 0.0
        %1588 = vset.pattern.permute.xlu0 19
        %1589 = vperm.xlu0 %1588, %v1142
        %v1590 = vpop.permute.xlu0 %1589
        %v1592 = vmul.f32 %v1584, %v1590
        %v1593 = vmul.f32 %v1587, %v1590
        %v1594 = vadd.f32 %v1577, %v1592
        %v1595 = vadd.f32 %v1578, %v1593
        %1596 = vrot.lane.b32.xlu0 %v1129, 94
        %v1597 = vpop.permute.xlu0 %1596
        %1598 = vrot.lane.b32.xlu0 %v1130, 94
        %v1599 = vpop.permute.xlu0 %1598
        %vm1600 = vcmask 769024
        %v1601 = vsel %vm1600, %v1597, %v1599
        %v1604 = vsel %vm1600, %v1599, 0.0
        %1605 = vset.pattern.permute.xlu0 24
        %1606 = vperm.xlu0 %1605, %v1142
        %v1607 = vpop.permute.xlu0 %1606
        %v1609 = vmul.f32 %v1601, %v1607
        %v1610 = vmul.f32 %v1604, %v1607
        %v1611 = vadd.f32 %v1594, %v1609
        %v1612 = vadd.f32 %v1595, %v1610
        %v1613 = vadd.s32 %v958, 2
        %v1614 = vadd.s32 %v959, 2
        %vm1615 = vcmp.ge.s32.totalorder %v1613, 0
        %vm1616 = vcmp.ge.s32.totalorder %v1614, 0
        %vm1617 = vcmp.lt.s32.totalorder %v1613, 16
        %vm1618 = vcmp.lt.s32.totalorder %v1614, 16
        %vm1619 = vmand %vm1615, %vm1617
        %vm1620 = vmand %vm1616, %vm1618
        %v1621 = vsel %vm1619, 1, 0
        %v1622 = vsel %vm1620, 1, 0
        %vm1623 = vcmp.eq.s32.totalorder %v1621, 1
        %vm1624 = vcmp.eq.s32.totalorder %v1622, 1
        %v1625 = vsel %vm1623, %v1611, 0.0
        %v1626 = vsel %vm1624, %v1612, 0.0
        %v1627 = vadd.f32 %v1526, %v1625
        %v1628 = vadd.f32 %v1527, %v1626
        %v1629 = vld [vmem:[%s13] sm:$0xff]
        %1631 = vset.pattern.permute.xlu0 0
        %1632 = vperm.xlu0 %1631, %v1629
        %v1633 = vpop.permute.xlu0 %1632
        %v1635 = vadd.f32 %v1627, %v1633
        %v1636 = vadd.f32 %v1628, %v1633
        %v1637 = vld [vmem:[%s19] sm:$0xf]
        %v1638 = vpack.c.bf16 %v1637, %v1637
        %v1639 = vpack.c.bf16 %v1635, %v1635
        %v1640 = vpack.c.bf16 %v1636, %v1636
        %v1641 = vld [vmem:[%s21] sm:$0xf]
        %1643 = vset.pattern.permute.xlu0 0
        %1644 = vperm.xlu0 %1643, %v1641
        %v1645 = vpop.permute.xlu0 %1644
        %v1648 = vsel %vm1025, %v1638, 0
        %v1651 = vsel %vm1029, %v1639, 0
        %v1654 = vsel %vm1029, %v1640, 0
        %1656 = vmatprep.subr.bf16.mxu0 0
        %1657 = vmatpush1.bf16.msra.mxu0 0
        %1658 = vmatprep.subr.bf16.mxu0 0
        %1659 = vmatpush1.bf16.msra.mxu0 0
        %1660 = vmatprep.subr.bf16.mxu0 0
        %1661 = vmatpush1.bf16.msra.mxu0 0
        %1662 = vmatprep.subr.bf16.mxu0 0
        %1663 = vmatpush1.bf16.msra.mxu0 0
        %1664 = vmatprep.subr.bf16.mxu0 0
        %1665 = vmatpush1.bf16.msra.mxu0 0
        %1666 = vmatprep.subr.bf16.mxu0 0
        %1667 = vmatpush1.bf16.msra.mxu0 0
        %1668 = vmatprep.subr.bf16.mxu0 0
        %1669 = vmatpush1.bf16.msra.mxu0 0
        %1670 = vmatprep.subr.bf16.mxu0 %v1654
        %1671 = vmatpush1.bf16.msra.mxu0 %v1651
        %1672 = vmatprep.subr.bf16.mxu0 0
        %1673 = vmatpush2.bf16.msra.mxu0 0
        %1674 = vmatprep.subr.bf16.mxu0 0
        %1675 = vmatpush2.bf16.msra.mxu0 0
        %1676 = vmatprep.subr.bf16.mxu0 0
        %1677 = vmatpush2.bf16.msra.mxu0 0
        %1678 = vmatprep.subr.bf16.mxu0 0
        %1679 = vmatpush2.bf16.msra.mxu0 0
        %1680 = vmatprep.subr.bf16.mxu0 0
        %1681 = vmatpush2.bf16.msra.mxu0 0
        %1682 = vmatprep.subr.bf16.mxu0 0
        %1683 = vmatpush2.bf16.msra.mxu0 0
        %1684 = vmatprep.subr.bf16.mxu0 0
        %1685 = vmatpush2.bf16.msra.mxu0 0
        %1686 = vmatprep.subr.bf16.mxu0 0
        %1687 = vmatpush2.bf16.msra.mxu0 0
        %1688 = vmatprep.mubr.bf16.mxu0 0
        %1689 = vmatmul.mubr.bf16.gmra.mxu0 %v1648
        %v1690 = vpop.f32.mrf.mxu0
        %v1691 = vadd.f32 %v1645, %v1690
        %v1692 = vpop.f32.mrf.mxu0
        %v1693 = vadd.f32 %v1645, %v1692
        %v1694 = vpop.f32.mrf.mxu0
        %v1695 = vpop.f32.mrf.mxu0
        %1696 = vdwg.mxu0
        %1698 = vrot.lane.b32.xlu0 %v1635, 25
        %v1699 = vpop.permute.xlu0 %1698
        %vm1701 = vcmask 203776
        %v1702 = vsel %vm1701, 0.0, %v1699
        %v1703 = vld [vmem:[%s15] sm:$0xff]
        %1705 = vset.pattern.permute.xlu0 0
        %1706 = vperm.xlu0 %1705, %v1703
        %v1707 = vpop.permute.xlu0 %1706
        %v1709 = vmul.f32 %v1707, 0.0
        %v1710 = vmul.f32 %v1702, %v1707
        %v1711 = vadd.f32 %v1709, 0.0
        %v1712 = vadd.f32 %v1710, 0.0
        %1714 = vrot.lane.b32.xlu0 %v1635, 105
        %v1715 = vpop.permute.xlu0 %1714
        %1716 = vrot.lane.b32.xlu0 %v1636, 105
        %v1717 = vpop.permute.xlu0 %1716
        %vm1718 = vcmask 859136
        %v1719 = vsel %vm1718, %v1715, %v1717
        %v1722 = vsel %vm1718, 0.0, %v1715
        %1723 = vset.pattern.permute.xlu0 7
        %1724 = vperm.xlu0 %1723, %v1703
        %v1725 = vpop.permute.xlu0 %1724
        %v1727 = vmul.f32 %v1722, %v1725
        %v1728 = vmul.f32 %v1719, %v1725
        %v1729 = vadd.f32 %v1711, %v1727
        %v1730 = vadd.f32 %v1712, %v1728
        %1731 = vrot.lane.b32.xlu0 %v1635, 57
        %v1732 = vpop.permute.xlu0 %1731
        %1733 = vrot.lane.b32.xlu0 %v1636, 57
        %v1734 = vpop.permute.xlu0 %1733
        %vm1735 = vcmask 465920
        %v1736 = vsel %vm1735, %v1732, %v1734
        %v1739 = vsel %vm1735, 0.0, %v1732
        %1740 = vset.pattern.permute.xlu0 14
        %1741 = vperm.xlu0 %1740, %v1703
        %v1742 = vpop.permute.xlu0 %1741
        %v1744 = vmul.f32 %v1739, %v1742
        %v1745 = vmul.f32 %v1736, %v1742
        %v1746 = vadd.f32 %v1729, %v1744
        %v1747 = vadd.f32 %v1730, %v1745
        %1748 = vrot.lane.b32.xlu0 %v1635, 9
        %v1749 = vpop.permute.xlu0 %1748
        %1750 = vrot.lane.b32.xlu0 %v1636, 9
        %v1751 = vpop.permute.xlu0 %1750
        %vm1752 = vcmask 72704
        %v1753 = vsel %vm1752, %v1749, %v1751
        %v1756 = vsel %vm1752, 0.0, %v1749
        %1757 = vset.pattern.permute.xlu0 21
        %1758 = vperm.xlu0 %1757, %v1703
        %v1759 = vpop.permute.xlu0 %1758
        %v1761 = vmul.f32 %v1756, %v1759
        %v1762 = vmul.f32 %v1753, %v1759
        %v1763 = vadd.f32 %v1746, %v1761
        %v1764 = vadd.f32 %v1747, %v1762
        %1765 = vrot.lane.b32.xlu0 %v1635, 89
        %v1766 = vpop.permute.xlu0 %1765
        %1767 = vrot.lane.b32.xlu0 %v1636, 89
        %v1768 = vpop.permute.xlu0 %1767
        %vm1769 = vcmask 728064
        %v1770 = vsel %vm1769, %v1766, %v1768
        %v1773 = vsel %vm1769, %v1768, 0.0
        %1774 = vset.pattern.permute.xlu0 28
        %1775 = vperm.xlu0 %1774, %v1703
        %v1776 = vpop.permute.xlu0 %1775
        %v1778 = vmul.f32 %v1770, %v1776
        %v1779 = vmul.f32 %v1773, %v1776
        %v1780 = vadd.f32 %v1763, %v1778
        %v1781 = vadd.f32 %v1764, %v1779
        %1782 = vrot.lane.b32.xlu0 %v1635, 41
        %v1783 = vpop.permute.xlu0 %1782
        %1784 = vrot.lane.b32.xlu0 %v1636, 41
        %v1785 = vpop.permute.xlu0 %1784
        %vm1786 = vcmask 334848
        %v1787 = vsel %vm1786, %v1783, %v1785
        %v1790 = vsel %vm1786, %v1785, 0.0
        %1791 = vset.pattern.permute.xlu0 35
        %1792 = vperm.xlu0 %1791, %v1703
        %v1793 = vpop.permute.xlu0 %1792
        %v1795 = vmul.f32 %v1787, %v1793
        %v1796 = vmul.f32 %v1790, %v1793
        %v1797 = vadd.f32 %v1780, %v1795
        %v1798 = vadd.f32 %v1781, %v1796
        %1799 = vrot.lane.b32.xlu0 %v1636, 121
        %v1800 = vpop.permute.xlu0 %1799
        %vm1802 = vcmask 990208
        %v1803 = vsel %vm1802, %v1800, 0.0
        %1804 = vset.pattern.permute.xlu0 42
        %1805 = vperm.xlu0 %1804, %v1703
        %v1806 = vpop.permute.xlu0 %1805
        %v1808 = vmul.f32 %v1803, %v1806
        %v1809 = vmul.f32 %v1806, 0.0
        %v1810 = vadd.f32 %v1797, %v1808
        %v1811 = vadd.f32 %v1798, %v1809
        %v1812 = vadd.s32 %v958, 4294967287
        %v1813 = vadd.s32 %v959, 4294967287
        %vm1814 = vcmp.ge.s32.totalorder %v1812, 0
        %vm1815 = vcmp.ge.s32.totalorder %v1813, 0
        %vm1816 = vcmp.lt.s32.totalorder %v1812, 16
        %vm1817 = vcmp.lt.s32.totalorder %v1813, 16
        %vm1818 = vmand %vm1814, %vm1816
        %vm1819 = vmand %vm1815, %vm1817
        %v1820 = vsel %vm1818, 1, 0
        %v1821 = vsel %vm1819, 1, 0
        %vm1822 = vcmp.eq.s32.totalorder %v1820, 1
        %vm1823 = vcmp.eq.s32.totalorder %v1821, 1
        %v1824 = vsel %vm1822, %v1810, 0.0
        %v1825 = vsel %vm1823, %v1811, 0.0
        %v1826 = vadd.f32 %v1824, 0.0
        %v1827 = vadd.f32 %v1825, 0.0
        %1828 = vrot.lane.b32.xlu0 %v1635, 22
        %v1829 = vpop.permute.xlu0 %1828
        %vm1831 = vcmask 179200
        %v1832 = vsel %vm1831, 0.0, %v1829
        %1833 = vset.pattern.permute.xlu0 1
        %1834 = vperm.xlu0 %1833, %v1703
        %v1835 = vpop.permute.xlu0 %1834
        %v1837 = vmul.f32 %v1835, 0.0
        %v1838 = vmul.f32 %v1832, %v1835
        %v1839 = vadd.f32 %v1837, 0.0
        %v1840 = vadd.f32 %v1838, 0.0
        %1841 = vrot.lane.b32.xlu0 %v1635, 102
        %v1842 = vpop.permute.xlu0 %1841
        %1843 = vrot.lane.b32.xlu0 %v1636, 102
        %v1844 = vpop.permute.xlu0 %1843
        %vm1845 = vcmask 834560
        %v1846 = vsel %vm1845, %v1842, %v1844
        %v1849 = vsel %vm1845, 0.0, %v1842
        %1850 = vset.pattern.permute.xlu0 8
        %1851 = vperm.xlu0 %1850, %v1703
        %v1852 = vpop.permute.xlu0 %1851
        %v1854 = vmul.f32 %v1849, %v1852
        %v1855 = vmul.f32 %v1846, %v1852
        %v1856 = vadd.f32 %v1839, %v1854
        %v1857 = vadd.f32 %v1840, %v1855
        %1858 = vrot.lane.b32.xlu0 %v1635, 54
        %v1859 = vpop.permute.xlu0 %1858
        %1860 = vrot.lane.b32.xlu0 %v1636, 54
        %v1861 = vpop.permute.xlu0 %1860
        %vm1862 = vcmask 441344
        %v1863 = vsel %vm1862, %v1859, %v1861
        %v1866 = vsel %vm1862, 0.0, %v1859
        %1867 = vset.pattern.permute.xlu0 15
        %1868 = vperm.xlu0 %1867, %v1703
        %v1869 = vpop.permute.xlu0 %1868
        %v1871 = vmul.f32 %v1866, %v1869
        %v1872 = vmul.f32 %v1863, %v1869
        %v1873 = vadd.f32 %v1856, %v1871
        %v1874 = vadd.f32 %v1857, %v1872
        %1875 = vrot.lane.b32.xlu0 %v1635, 6
        %v1876 = vpop.permute.xlu0 %1875
        %1877 = vrot.lane.b32.xlu0 %v1636, 6
        %v1878 = vpop.permute.xlu0 %1877
        %vm1879 = vcmask 48128
        %v1880 = vsel %vm1879, %v1876, %v1878
        %v1883 = vsel %vm1879, 0.0, %v1876
        %1884 = vset.pattern.permute.xlu0 22
        %1885 = vperm.xlu0 %1884, %v1703
        %v1886 = vpop.permute.xlu0 %1885
        %v1888 = vmul.f32 %v1883, %v1886
        %v1889 = vmul.f32 %v1880, %v1886
        %v1890 = vadd.f32 %v1873, %v1888
        %v1891 = vadd.f32 %v1874, %v1889
        %1892 = vrot.lane.b32.xlu0 %v1635, 86
        %v1893 = vpop.permute.xlu0 %1892
        %1894 = vrot.lane.b32.xlu0 %v1636, 86
        %v1895 = vpop.permute.xlu0 %1894
        %vm1896 = vcmask 703488
        %v1897 = vsel %vm1896, %v1893, %v1895
        %v1900 = vsel %vm1896, %v1895, 0.0
        %1901 = vset.pattern.permute.xlu0 29
        %1902 = vperm.xlu0 %1901, %v1703
        %v1903 = vpop.permute.xlu0 %1902
        %v1905 = vmul.f32 %v1897, %v1903
        %v1906 = vmul.f32 %v1900, %v1903
        %v1907 = vadd.f32 %v1890, %v1905
        %v1908 = vadd.f32 %v1891, %v1906
        %1909 = vrot.lane.b32.xlu0 %v1635, 38
        %v1910 = vpop.permute.xlu0 %1909
        %1911 = vrot.lane.b32.xlu0 %v1636, 38
        %v1912 = vpop.permute.xlu0 %1911
        %vm1913 = vcmask 310272
        %v1914 = vsel %vm1913, %v1910, %v1912
        %v1917 = vsel %vm1913, %v1912, 0.0
        %1918 = vset.pattern.permute.xlu0 36
        %1919 = vperm.xlu0 %1918, %v1703
        %v1920 = vpop.permute.xlu0 %1919
        %v1922 = vmul.f32 %v1914, %v1920
        %v1923 = vmul.f32 %v1917, %v1920
        %v1924 = vadd.f32 %v1907, %v1922
        %v1925 = vadd.f32 %v1908, %v1923
        %1926 = vrot.lane.b32.xlu0 %v1636, 118
        %v1927 = vpop.permute.xlu0 %1926
        %vm1929 = vcmask 965632
        %v1930 = vsel %vm1929, %v1927, 0.0
        %1931 = vset.pattern.permute.xlu0 43
        %1932 = vperm.xlu0 %1931, %v1703
        %v1933 = vpop.permute.xlu0 %1932
        %v1935 = vmul.f32 %v1930, %v1933
        %v1936 = vmul.f32 %v1933, 0.0
        %v1937 = vadd.f32 %v1924, %v1935
        %v1938 = vadd.f32 %v1925, %v1936
        %v1939 = vadd.s32 %v958, 4294967290
        %v1940 = vadd.s32 %v959, 4294967290
        %vm1941 = vcmp.ge.s32.totalorder %v1939, 0
        %vm1942 = vcmp.ge.s32.totalorder %v1940, 0
        %vm1943 = vcmp.lt.s32.totalorder %v1939, 16
        %vm1944 = vcmp.lt.s32.totalorder %v1940, 16
        %vm1945 = vmand %vm1941, %vm1943
        %vm1946 = vmand %vm1942, %vm1944
        %v1947 = vsel %vm1945, 1, 0
        %v1948 = vsel %vm1946, 1, 0
        %vm1949 = vcmp.eq.s32.totalorder %v1947, 1
        %vm1950 = vcmp.eq.s32.totalorder %v1948, 1
        %v1951 = vsel %vm1949, %v1937, 0.0
        %v1952 = vsel %vm1950, %v1938, 0.0
        %v1953 = vadd.f32 %v1826, %v1951
        %v1954 = vadd.f32 %v1827, %v1952
        %1955 = vrot.lane.b32.xlu0 %v1635, 19
        %v1956 = vpop.permute.xlu0 %1955
        %vm1958 = vcmask 154624
        %v1959 = vsel %vm1958, 0.0, %v1956
        %1960 = vset.pattern.permute.xlu0 2
        %1961 = vperm.xlu0 %1960, %v1703
        %v1962 = vpop.permute.xlu0 %1961
        %v1964 = vmul.f32 %v1962, 0.0
        %v1965 = vmul.f32 %v1959, %v1962
        %v1966 = vadd.f32 %v1964, 0.0
        %v1967 = vadd.f32 %v1965, 0.0
        %1968 = vrot.lane.b32.xlu0 %v1635, 99
        %v1969 = vpop.permute.xlu0 %1968
        %1970 = vrot.lane.b32.xlu0 %v1636, 99
        %v1971 = vpop.permute.xlu0 %1970
        %vm1972 = vcmask 809984
        %v1973 = vsel %vm1972, %v1969, %v1971
        %v1976 = vsel %vm1972, 0.0, %v1969
        %1977 = vset.pattern.permute.xlu0 9
        %1978 = vperm.xlu0 %1977, %v1703
        %v1979 = vpop.permute.xlu0 %1978
        %v1981 = vmul.f32 %v1976, %v1979
        %v1982 = vmul.f32 %v1973, %v1979
        %v1983 = vadd.f32 %v1966, %v1981
        %v1984 = vadd.f32 %v1967, %v1982
        %1985 = vrot.lane.b32.xlu0 %v1635, 51
        %v1986 = vpop.permute.xlu0 %1985
        %1987 = vrot.lane.b32.xlu0 %v1636, 51
        %v1988 = vpop.permute.xlu0 %1987
        %vm1989 = vcmask 416768
        %v1990 = vsel %vm1989, %v1986, %v1988
        %v1993 = vsel %vm1989, 0.0, %v1986
        %1994 = vset.pattern.permute.xlu0 16
        %1995 = vperm.xlu0 %1994, %v1703
        %v1996 = vpop.permute.xlu0 %1995
        %v1998 = vmul.f32 %v1993, %v1996
        %v1999 = vmul.f32 %v1990, %v1996
        %v2000 = vadd.f32 %v1983, %v1998
        %v2001 = vadd.f32 %v1984, %v1999
        %2002 = vrot.lane.b32.xlu0 %v1635, 3
        %v2003 = vpop.permute.xlu0 %2002
        %2004 = vrot.lane.b32.xlu0 %v1636, 3
        %v2005 = vpop.permute.xlu0 %2004
        %vm2006 = vcmask 23552
        %v2007 = vsel %vm2006, %v2003, %v2005
        %v2010 = vsel %vm2006, 0.0, %v2003
        %2011 = vset.pattern.permute.xlu0 23
        %2012 = vperm.xlu0 %2011, %v1703
        %v2013 = vpop.permute.xlu0 %2012
        %v2015 = vmul.f32 %v2010, %v2013
        %v2016 = vmul.f32 %v2007, %v2013
        %v2017 = vadd.f32 %v2000, %v2015
        %v2018 = vadd.f32 %v2001, %v2016
        %2019 = vrot.lane.b32.xlu0 %v1635, 83
        %v2020 = vpop.permute.xlu0 %2019
        %2021 = vrot.lane.b32.xlu0 %v1636, 83
        %v2022 = vpop.permute.xlu0 %2021
        %vm2023 = vcmask 678912
        %v2024 = vsel %vm2023, %v2020, %v2022
        %v2027 = vsel %vm2023, %v2022, 0.0
        %2028 = vset.pattern.permute.xlu0 30
        %2029 = vperm.xlu0 %2028, %v1703
        %v2030 = vpop.permute.xlu0 %2029
        %v2032 = vmul.f32 %v2024, %v2030
        %v2033 = vmul.f32 %v2027, %v2030
        %v2034 = vadd.f32 %v2017, %v2032
        %v2035 = vadd.f32 %v2018, %v2033
        %2036 = vrot.lane.b32.xlu0 %v1635, 35
        %v2037 = vpop.permute.xlu0 %2036
        %2038 = vrot.lane.b32.xlu0 %v1636, 35
        %v2039 = vpop.permute.xlu0 %2038
        %vm2040 = vcmask 285696
        %v2041 = vsel %vm2040, %v2037, %v2039
        %v2044 = vsel %vm2040, %v2039, 0.0
        %2045 = vset.pattern.permute.xlu0 37
        %2046 = vperm.xlu0 %2045, %v1703
        %v2047 = vpop.permute.xlu0 %2046
        %v2049 = vmul.f32 %v2041, %v2047
        %v2050 = vmul.f32 %v2044, %v2047
        %v2051 = vadd.f32 %v2034, %v2049
        %v2052 = vadd.f32 %v2035, %v2050
        %2053 = vrot.lane.b32.xlu0 %v1636, 115
        %v2054 = vpop.permute.xlu0 %2053
        %vm2056 = vcmask 941056
        %v2057 = vsel %vm2056, %v2054, 0.0
        %2058 = vset.pattern.permute.xlu0 44
        %2059 = vperm.xlu0 %2058, %v1703
        %v2060 = vpop.permute.xlu0 %2059
        %v2062 = vmul.f32 %v2057, %v2060
        %v2063 = vmul.f32 %v2060, 0.0
        %v2064 = vadd.f32 %v2051, %v2062
        %v2065 = vadd.f32 %v2052, %v2063
        %v2066 = vadd.s32 %v958, 4294967293
        %v2067 = vadd.s32 %v959, 4294967293
        %vm2068 = vcmp.ge.s32.totalorder %v2066, 0
        %vm2069 = vcmp.ge.s32.totalorder %v2067, 0
        %vm2070 = vcmp.lt.s32.totalorder %v2066, 16
        %vm2071 = vcmp.lt.s32.totalorder %v2067, 16
        %vm2072 = vmand %vm2068, %vm2070
        %vm2073 = vmand %vm2069, %vm2071
        %v2074 = vsel %vm2072, 1, 0
        %v2075 = vsel %vm2073, 1, 0
        %vm2076 = vcmp.eq.s32.totalorder %v2074, 1
        %vm2077 = vcmp.eq.s32.totalorder %v2075, 1
        %v2078 = vsel %vm2076, %v2064, 0.0
        %v2079 = vsel %vm2077, %v2065, 0.0
        %v2080 = vadd.f32 %v1953, %v2078
        %v2081 = vadd.f32 %v1954, %v2079
        %2082 = vrot.lane.b32.xlu0 %v1635, 16
        %v2083 = vpop.permute.xlu0 %2082
        %v2085 = vsel %vm1358, 0.0, %v2083
        %2086 = vset.pattern.permute.xlu0 3
        %2087 = vperm.xlu0 %2086, %v1703
        %v2088 = vpop.permute.xlu0 %2087
        %v2090 = vmul.f32 %v2088, 0.0
        %v2091 = vmul.f32 %v2085, %v2088
        %v2092 = vadd.f32 %v2090, 0.0
        %v2093 = vadd.f32 %v2091, 0.0
        %2094 = vrot.lane.b32.xlu0 %v1635, 96
        %v2095 = vpop.permute.xlu0 %2094
        %2096 = vrot.lane.b32.xlu0 %v1636, 96
        %v2097 = vpop.permute.xlu0 %2096
        %v2098 = vsel %vm1400, %v2095, %v2097
        %v2101 = vsel %vm1400, 0.0, %v2095
        %2102 = vset.pattern.permute.xlu0 10
        %2103 = vperm.xlu0 %2102, %v1703
        %v2104 = vpop.permute.xlu0 %2103
        %v2106 = vmul.f32 %v2101, %v2104
        %v2107 = vmul.f32 %v2098, %v2104
        %v2108 = vadd.f32 %v2092, %v2106
        %v2109 = vadd.f32 %v2093, %v2107
        %2110 = vrot.lane.b32.xlu0 %v1635, 48
        %v2111 = vpop.permute.xlu0 %2110
        %2112 = vrot.lane.b32.xlu0 %v1636, 48
        %v2113 = vpop.permute.xlu0 %2112
        %vm2114 = vcmask 392192
        %v2115 = vsel %vm2114, %v2111, %v2113
        %v2118 = vsel %vm2114, 0.0, %v2111
        %2119 = vset.pattern.permute.xlu0 17
        %2120 = vperm.xlu0 %2119, %v1703
        %v2121 = vpop.permute.xlu0 %2120
        %v2123 = vmul.f32 %v2118, %v2121
        %v2124 = vmul.f32 %v2115, %v2121
        %v2125 = vadd.f32 %v2108, %v2123
        %v2126 = vadd.f32 %v2109, %v2124
        %2127 = vset.pattern.permute.xlu0 24
        %2128 = vperm.xlu0 %2127, %v1703
        %v2129 = vpop.permute.xlu0 %2128
        %v2131 = vmul.f32 %v1635, %v2129
        %v2132 = vmul.f32 %v1636, %v2129
        %v2133 = vadd.f32 %v2125, %v2131
        %v2134 = vadd.f32 %v2126, %v2132
        %2135 = vrot.lane.b32.xlu0 %v1635, 80
        %v2136 = vpop.permute.xlu0 %2135
        %2137 = vrot.lane.b32.xlu0 %v1636, 80
        %v2138 = vpop.permute.xlu0 %2137
        %vm2139 = vcmask 654336
        %v2140 = vsel %vm2139, %v2136, %v2138
        %v2143 = vsel %vm2139, %v2138, 0.0
        %2144 = vset.pattern.permute.xlu0 31
        %2145 = vperm.xlu0 %2144, %v1703
        %v2146 = vpop.permute.xlu0 %2145
        %v2148 = vmul.f32 %v2140, %v2146
        %v2149 = vmul.f32 %v2143, %v2146
        %v2150 = vadd.f32 %v2133, %v2148
        %v2151 = vadd.f32 %v2134, %v2149
        %2152 = vrot.lane.b32.xlu0 %v1635, 32
        %v2153 = vpop.permute.xlu0 %2152
        %2154 = vrot.lane.b32.xlu0 %v1636, 32
        %v2155 = vpop.permute.xlu0 %2154
        %v2156 = vsel %vm1341, %v2153, %v2155
        %v2159 = vsel %vm1341, %v2155, 0.0
        %2160 = vset.pattern.permute.xlu0 38
        %2161 = vperm.xlu0 %2160, %v1703
        %v2162 = vpop.permute.xlu0 %2161
        %v2164 = vmul.f32 %v2156, %v2162
        %v2165 = vmul.f32 %v2159, %v2162
        %v2166 = vadd.f32 %v2150, %v2164
        %v2167 = vadd.f32 %v2151, %v2165
        %2168 = vrot.lane.b32.xlu0 %v1636, 112
        %v2169 = vpop.permute.xlu0 %2168
        %v2171 = vsel %vm1383, %v2169, 0.0
        %2172 = vset.pattern.permute.xlu0 45
        %2173 = vperm.xlu0 %2172, %v1703
        %v2174 = vpop.permute.xlu0 %2173
        %v2176 = vmul.f32 %v2171, %v2174
        %v2177 = vmul.f32 %v2174, 0.0
        %v2178 = vadd.f32 %v2166, %v2176
        %v2179 = vadd.f32 %v2167, %v2177
        %v2180 = vsel %vm1421, %v2178, 0.0
        %v2181 = vsel %vm1422, %v2179, 0.0
        %v2182 = vadd.f32 %v2080, %v2180
        %v2183 = vadd.f32 %v2081, %v2181
        %2184 = vrot.lane.b32.xlu0 %v1635, 13
        %v2185 = vpop.permute.xlu0 %2184
        %vm2187 = vcmask 105472
        %v2188 = vsel %vm2187, 0.0, %v2185
        %2189 = vset.pattern.permute.xlu0 4
        %2190 = vperm.xlu0 %2189, %v1703
        %v2191 = vpop.permute.xlu0 %2190
        %v2193 = vmul.f32 %v2191, 0.0
        %v2194 = vmul.f32 %v2188, %v2191
        %v2195 = vadd.f32 %v2193, 0.0
        %v2196 = vadd.f32 %v2194, 0.0
        %2197 = vrot.lane.b32.xlu0 %v1635, 93
        %v2198 = vpop.permute.xlu0 %2197
        %2199 = vrot.lane.b32.xlu0 %v1636, 93
        %v2200 = vpop.permute.xlu0 %2199
        %vm2201 = vcmask 760832
        %v2202 = vsel %vm2201, %v2198, %v2200
        %v2205 = vsel %vm2201, 0.0, %v2198
        %2206 = vset.pattern.permute.xlu0 11
        %2207 = vperm.xlu0 %2206, %v1703
        %v2208 = vpop.permute.xlu0 %2207
        %v2210 = vmul.f32 %v2205, %v2208
        %v2211 = vmul.f32 %v2202, %v2208
        %v2212 = vadd.f32 %v2195, %v2210
        %v2213 = vadd.f32 %v2196, %v2211
        %2214 = vrot.lane.b32.xlu0 %v1635, 45
        %v2215 = vpop.permute.xlu0 %2214
        %2216 = vrot.lane.b32.xlu0 %v1636, 45
        %v2217 = vpop.permute.xlu0 %2216
        %vm2218 = vcmask 367616
        %v2219 = vsel %vm2218, %v2215, %v2217
        %v2222 = vsel %vm2218, 0.0, %v2215
        %2223 = vset.pattern.permute.xlu0 18
        %2224 = vperm.xlu0 %2223, %v1703
        %v2225 = vpop.permute.xlu0 %2224
        %v2227 = vmul.f32 %v2222, %v2225
        %v2228 = vmul.f32 %v2219, %v2225
        %v2229 = vadd.f32 %v2212, %v2227
        %v2230 = vadd.f32 %v2213, %v2228
        %2231 = vrot.lane.b32.xlu0 %v1635, 125
        %v2232 = vpop.permute.xlu0 %2231
        %2233 = vrot.lane.b32.xlu0 %v1636, 125
        %v2234 = vpop.permute.xlu0 %2233
        %vm2235 = vcmask 1022976
        %v2236 = vsel %vm2235, %v2232, %v2234
        %v2239 = vsel %vm2235, %v2234, 0.0
        %2240 = vset.pattern.permute.xlu0 25
        %2241 = vperm.xlu0 %2240, %v1703
        %v2242 = vpop.permute.xlu0 %2241
        %v2244 = vmul.f32 %v2236, %v2242
        %v2245 = vmul.f32 %v2239, %v2242
        %v2246 = vadd.f32 %v2229, %v2244
        %v2247 = vadd.f32 %v2230, %v2245
        %2248 = vrot.lane.b32.xlu0 %v1635, 77
        %v2249 = vpop.permute.xlu0 %2248
        %2250 = vrot.lane.b32.xlu0 %v1636, 77
        %v2251 = vpop.permute.xlu0 %2250
        %vm2252 = vcmask 629760
        %v2253 = vsel %vm2252, %v2249, %v2251
        %v2256 = vsel %vm2252, %v2251, 0.0
        %2257 = vset.pattern.permute.xlu0 32
        %2258 = vperm.xlu0 %2257, %v1703
        %v2259 = vpop.permute.xlu0 %2258
        %v2261 = vmul.f32 %v2253, %v2259
        %v2262 = vmul.f32 %v2256, %v2259
        %v2263 = vadd.f32 %v2246, %v2261
        %v2264 = vadd.f32 %v2247, %v2262
        %2265 = vrot.lane.b32.xlu0 %v1635, 29
        %v2266 = vpop.permute.xlu0 %2265
        %2267 = vrot.lane.b32.xlu0 %v1636, 29
        %v2268 = vpop.permute.xlu0 %2267
        %vm2269 = vcmask 236544
        %v2270 = vsel %vm2269, %v2266, %v2268
        %v2273 = vsel %vm2269, %v2268, 0.0
        %2274 = vset.pattern.permute.xlu0 39
        %2275 = vperm.xlu0 %2274, %v1703
        %v2276 = vpop.permute.xlu0 %2275
        %v2278 = vmul.f32 %v2270, %v2276
        %v2279 = vmul.f32 %v2273, %v2276
        %v2280 = vadd.f32 %v2263, %v2278
        %v2281 = vadd.f32 %v2264, %v2279
        %2282 = vrot.lane.b32.xlu0 %v1636, 109
        %v2283 = vpop.permute.xlu0 %2282
        %vm2285 = vcmask 891904
        %v2286 = vsel %vm2285, %v2283, 0.0
        %2287 = vset.pattern.permute.xlu0 46
        %2288 = vperm.xlu0 %2287, %v1703
        %v2289 = vpop.permute.xlu0 %2288
        %v2291 = vmul.f32 %v2286, %v2289
        %v2292 = vmul.f32 %v2289, 0.0
        %v2293 = vadd.f32 %v2280, %v2291
        %v2294 = vadd.f32 %v2281, %v2292
        %v2295 = vadd.s32 %v958, 3
        %v2296 = vadd.s32 %v959, 3
        %vm2297 = vcmp.ge.s32.totalorder %v2295, 0
        %vm2298 = vcmp.ge.s32.totalorder %v2296, 0
        %vm2299 = vcmp.lt.s32.totalorder %v2295, 16
        %vm2300 = vcmp.lt.s32.totalorder %v2296, 16
        %vm2301 = vmand %vm2297, %vm2299
        %vm2302 = vmand %vm2298, %vm2300
        %v2303 = vsel %vm2301, 1, 0
        %v2304 = vsel %vm2302, 1, 0
        %vm2305 = vcmp.eq.s32.totalorder %v2303, 1
        %vm2306 = vcmp.eq.s32.totalorder %v2304, 1
        %v2307 = vsel %vm2305, %v2293, 0.0
        %v2308 = vsel %vm2306, %v2294, 0.0
        %v2309 = vadd.f32 %v2182, %v2307
        %v2310 = vadd.f32 %v2183, %v2308
        %2311 = vrot.lane.b32.xlu0 %v1635, 10
        %v2312 = vpop.permute.xlu0 %2311
        %vm2314 = vcmask 80896
        %v2315 = vsel %vm2314, 0.0, %v2312
        %2316 = vset.pattern.permute.xlu0 5
        %2317 = vperm.xlu0 %2316, %v1703
        %v2318 = vpop.permute.xlu0 %2317
        %v2320 = vmul.f32 %v2318, 0.0
        %v2321 = vmul.f32 %v2315, %v2318
        %v2322 = vadd.f32 %v2320, 0.0
        %v2323 = vadd.f32 %v2321, 0.0
        %2324 = vrot.lane.b32.xlu0 %v1635, 90
        %v2325 = vpop.permute.xlu0 %2324
        %2326 = vrot.lane.b32.xlu0 %v1636, 90
        %v2327 = vpop.permute.xlu0 %2326
        %vm2328 = vcmask 736256
        %v2329 = vsel %vm2328, %v2325, %v2327
        %v2332 = vsel %vm2328, 0.0, %v2325
        %2333 = vset.pattern.permute.xlu0 12
        %2334 = vperm.xlu0 %2333, %v1703
        %v2335 = vpop.permute.xlu0 %2334
        %v2337 = vmul.f32 %v2332, %v2335
        %v2338 = vmul.f32 %v2329, %v2335
        %v2339 = vadd.f32 %v2322, %v2337
        %v2340 = vadd.f32 %v2323, %v2338
        %2341 = vrot.lane.b32.xlu0 %v1635, 42
        %v2342 = vpop.permute.xlu0 %2341
        %2343 = vrot.lane.b32.xlu0 %v1636, 42
        %v2344 = vpop.permute.xlu0 %2343
        %vm2345 = vcmask 343040
        %v2346 = vsel %vm2345, %v2342, %v2344
        %v2349 = vsel %vm2345, 0.0, %v2342
        %2350 = vset.pattern.permute.xlu0 19
        %2351 = vperm.xlu0 %2350, %v1703
        %v2352 = vpop.permute.xlu0 %2351
        %v2354 = vmul.f32 %v2349, %v2352
        %v2355 = vmul.f32 %v2346, %v2352
        %v2356 = vadd.f32 %v2339, %v2354
        %v2357 = vadd.f32 %v2340, %v2355
        %2358 = vrot.lane.b32.xlu0 %v1635, 122
        %v2359 = vpop.permute.xlu0 %2358
        %2360 = vrot.lane.b32.xlu0 %v1636, 122
        %v2361 = vpop.permute.xlu0 %2360
        %vm2362 = vcmask 998400
        %v2363 = vsel %vm2362, %v2359, %v2361
        %v2366 = vsel %vm2362, %v2361, 0.0
        %2367 = vset.pattern.permute.xlu0 26
        %2368 = vperm.xlu0 %2367, %v1703
        %v2369 = vpop.permute.xlu0 %2368
        %v2371 = vmul.f32 %v2363, %v2369
        %v2372 = vmul.f32 %v2366, %v2369
        %v2373 = vadd.f32 %v2356, %v2371
        %v2374 = vadd.f32 %v2357, %v2372
        %2375 = vrot.lane.b32.xlu0 %v1635, 74
        %v2376 = vpop.permute.xlu0 %2375
        %2377 = vrot.lane.b32.xlu0 %v1636, 74
        %v2378 = vpop.permute.xlu0 %2377
        %vm2379 = vcmask 605184
        %v2380 = vsel %vm2379, %v2376, %v2378
        %v2383 = vsel %vm2379, %v2378, 0.0
        %2384 = vset.pattern.permute.xlu0 33
        %2385 = vperm.xlu0 %2384, %v1703
        %v2386 = vpop.permute.xlu0 %2385
        %v2388 = vmul.f32 %v2380, %v2386
        %v2389 = vmul.f32 %v2383, %v2386
        %v2390 = vadd.f32 %v2373, %v2388
        %v2391 = vadd.f32 %v2374, %v2389
        %2392 = vrot.lane.b32.xlu0 %v1635, 26
        %v2393 = vpop.permute.xlu0 %2392
        %2394 = vrot.lane.b32.xlu0 %v1636, 26
        %v2395 = vpop.permute.xlu0 %2394
        %vm2396 = vcmask 211968
        %v2397 = vsel %vm2396, %v2393, %v2395
        %v2400 = vsel %vm2396, %v2395, 0.0
        %2401 = vset.pattern.permute.xlu0 40
        %2402 = vperm.xlu0 %2401, %v1703
        %v2403 = vpop.permute.xlu0 %2402
        %v2405 = vmul.f32 %v2397, %v2403
        %v2406 = vmul.f32 %v2400, %v2403
        %v2407 = vadd.f32 %v2390, %v2405
        %v2408 = vadd.f32 %v2391, %v2406
        %2409 = vrot.lane.b32.xlu0 %v1636, 106
        %v2410 = vpop.permute.xlu0 %2409
        %vm2412 = vcmask 867328
        %v2413 = vsel %vm2412, %v2410, 0.0
        %2414 = vset.pattern.permute.xlu0 47
        %2415 = vperm.xlu0 %2414, %v1703
        %v2416 = vpop.permute.xlu0 %2415
        %v2418 = vmul.f32 %v2413, %v2416
        %v2419 = vmul.f32 %v2416, 0.0
        %v2420 = vadd.f32 %v2407, %v2418
        %v2421 = vadd.f32 %v2408, %v2419
        %v2422 = vadd.s32 %v958, 6
        %v2423 = vadd.s32 %v959, 6
        %vm2424 = vcmp.ge.s32.totalorder %v2422, 0
        %vm2425 = vcmp.ge.s32.totalorder %v2423, 0
        %vm2426 = vcmp.lt.s32.totalorder %v2422, 16
        %vm2427 = vcmp.lt.s32.totalorder %v2423, 16
        %vm2428 = vmand %vm2424, %vm2426
        %vm2429 = vmand %vm2425, %vm2427
        %v2430 = vsel %vm2428, 1, 0
        %v2431 = vsel %vm2429, 1, 0
        %vm2432 = vcmp.eq.s32.totalorder %v2430, 1
        %vm2433 = vcmp.eq.s32.totalorder %v2431, 1
        %v2434 = vsel %vm2432, %v2420, 0.0
        %v2435 = vsel %vm2433, %v2421, 0.0
        %v2436 = vadd.f32 %v2309, %v2434
        %v2437 = vadd.f32 %v2310, %v2435
        %2438 = vrot.lane.b32.xlu0 %v1635, 7
        %v2439 = vpop.permute.xlu0 %2438
        %vm2441 = vcmask 56320
        %v2442 = vsel %vm2441, 0.0, %v2439
        %2443 = vset.pattern.permute.xlu0 6
        %2444 = vperm.xlu0 %2443, %v1703
        %v2445 = vpop.permute.xlu0 %2444
        %v2447 = vmul.f32 %v2445, 0.0
        %v2448 = vmul.f32 %v2442, %v2445
        %v2449 = vadd.f32 %v2447, 0.0
        %v2450 = vadd.f32 %v2448, 0.0
        %2451 = vrot.lane.b32.xlu0 %v1635, 87
        %v2452 = vpop.permute.xlu0 %2451
        %2453 = vrot.lane.b32.xlu0 %v1636, 87
        %v2454 = vpop.permute.xlu0 %2453
        %vm2455 = vcmask 711680
        %v2456 = vsel %vm2455, %v2452, %v2454
        %v2459 = vsel %vm2455, 0.0, %v2452
        %2460 = vset.pattern.permute.xlu0 13
        %2461 = vperm.xlu0 %2460, %v1703
        %v2462 = vpop.permute.xlu0 %2461
        %v2464 = vmul.f32 %v2459, %v2462
        %v2465 = vmul.f32 %v2456, %v2462
        %v2466 = vadd.f32 %v2449, %v2464
        %v2467 = vadd.f32 %v2450, %v2465
        %2468 = vrot.lane.b32.xlu0 %v1635, 39
        %v2469 = vpop.permute.xlu0 %2468
        %2470 = vrot.lane.b32.xlu0 %v1636, 39
        %v2471 = vpop.permute.xlu0 %2470
        %vm2472 = vcmask 318464
        %v2473 = vsel %vm2472, %v2469, %v2471
        %v2476 = vsel %vm2472, 0.0, %v2469
        %2477 = vset.pattern.permute.xlu0 20
        %2478 = vperm.xlu0 %2477, %v1703
        %v2479 = vpop.permute.xlu0 %2478
        %v2481 = vmul.f32 %v2476, %v2479
        %v2482 = vmul.f32 %v2473, %v2479
        %v2483 = vadd.f32 %v2466, %v2481
        %v2484 = vadd.f32 %v2467, %v2482
        %2485 = vrot.lane.b32.xlu0 %v1635, 119
        %v2486 = vpop.permute.xlu0 %2485
        %2487 = vrot.lane.b32.xlu0 %v1636, 119
        %v2488 = vpop.permute.xlu0 %2487
        %vm2489 = vcmask 973824
        %v2490 = vsel %vm2489, %v2486, %v2488
        %v2493 = vsel %vm2489, %v2488, 0.0
        %2494 = vset.pattern.permute.xlu0 27
        %2495 = vperm.xlu0 %2494, %v1703
        %v2496 = vpop.permute.xlu0 %2495
        %v2498 = vmul.f32 %v2490, %v2496
        %v2499 = vmul.f32 %v2493, %v2496
        %v2500 = vadd.f32 %v2483, %v2498
        %v2501 = vadd.f32 %v2484, %v2499
        %2502 = vrot.lane.b32.xlu0 %v1635, 71
        %v2503 = vpop.permute.xlu0 %2502
        %2504 = vrot.lane.b32.xlu0 %v1636, 71
        %v2505 = vpop.permute.xlu0 %2504
        %vm2506 = vcmask 580608
        %v2507 = vsel %vm2506, %v2503, %v2505
        %v2510 = vsel %vm2506, %v2505, 0.0
        %2511 = vset.pattern.permute.xlu0 34
        %2512 = vperm.xlu0 %2511, %v1703
        %v2513 = vpop.permute.xlu0 %2512
        %v2515 = vmul.f32 %v2507, %v2513
        %v2516 = vmul.f32 %v2510, %v2513
        %v2517 = vadd.f32 %v2500, %v2515
        %v2518 = vadd.f32 %v2501, %v2516
        %2519 = vrot.lane.b32.xlu0 %v1635, 23
        %v2520 = vpop.permute.xlu0 %2519
        %2521 = vrot.lane.b32.xlu0 %v1636, 23
        %v2522 = vpop.permute.xlu0 %2521
        %vm2523 = vcmask 187392
        %v2524 = vsel %vm2523, %v2520, %v2522
        %v2527 = vsel %vm2523, %v2522, 0.0
        %2528 = vset.pattern.permute.xlu0 41
        %2529 = vperm.xlu0 %2528, %v1703
        %v2530 = vpop.permute.xlu0 %2529
        %v2532 = vmul.f32 %v2524, %v2530
        %v2533 = vmul.f32 %v2527, %v2530
        %v2534 = vadd.f32 %v2517, %v2532
        %v2535 = vadd.f32 %v2518, %v2533
        %2536 = vrot.lane.b32.xlu0 %v1636, 103
        %v2537 = vpop.permute.xlu0 %2536
        %vm2539 = vcmask 842752
        %v2540 = vsel %vm2539, %v2537, 0.0
        %2541 = vset.pattern.permute.xlu0 48
        %2542 = vperm.xlu0 %2541, %v1703
        %v2543 = vpop.permute.xlu0 %2542
        %v2545 = vmul.f32 %v2540, %v2543
        %v2546 = vmul.f32 %v2543, 0.0
        %v2547 = vadd.f32 %v2534, %v2545
        %v2548 = vadd.f32 %v2535, %v2546
        %v2549 = vadd.s32 %v958, 9
        %v2550 = vadd.s32 %v959, 9
        %vm2551 = vcmp.ge.s32.totalorder %v2549, 0
        %vm2552 = vcmp.ge.s32.totalorder %v2550, 0
        %vm2553 = vcmp.lt.s32.totalorder %v2549, 16
        %vm2554 = vcmp.lt.s32.totalorder %v2550, 16
        %vm2555 = vmand %vm2551, %vm2553
        %vm2556 = vmand %vm2552, %vm2554
        %v2557 = vsel %vm2555, 1, 0
        %v2558 = vsel %vm2556, 1, 0
        %vm2559 = vcmp.eq.s32.totalorder %v2557, 1
        %vm2560 = vcmp.eq.s32.totalorder %v2558, 1
        %v2561 = vsel %vm2559, %v2547, 0.0
        %v2562 = vsel %vm2560, %v2548, 0.0
        %v2563 = vadd.f32 %v2436, %v2561
        %v2564 = vadd.f32 %v2437, %v2562
        %v2565 = vld [vmem:[%s17] sm:$0xff]
        %2567 = vset.pattern.permute.xlu0 0
        %2568 = vperm.xlu0 %2567, %v2565
        %v2569 = vpop.permute.xlu0 %2568
        %v2571 = vadd.f32 %v2563, %v2569
        %v2572 = vadd.f32 %v2564, %v2569
        %v2573 = vld [vmem:[%s23] sm:$0xf]
        %v2574 = vpack.c.bf16 %v2573, %v2573
        %v2575 = vpack.c.bf16 %v2571, %v2571
        %v2576 = vpack.c.bf16 %v2572, %v2572
        %v2577 = vld [vmem:[%s25] sm:$0xf]
        %2579 = vset.pattern.permute.xlu0 0
        %2580 = vperm.xlu0 %2579, %v2577
        %v2581 = vpop.permute.xlu0 %2580
        %v2584 = vsel %vm1025, %v2574, 0
        %v2587 = vsel %vm1029, %v2575, 0
        %v2590 = vsel %vm1029, %v2576, 0
        %2592 = vmatprep.subr.bf16.mxu0 0
        %2593 = vmatpush1.bf16.msra.mxu0 0
        %2594 = vmatprep.subr.bf16.mxu0 0
        %2595 = vmatpush1.bf16.msra.mxu0 0
        %2596 = vmatprep.subr.bf16.mxu0 0
        %2597 = vmatpush1.bf16.msra.mxu0 0
        %2598 = vmatprep.subr.bf16.mxu0 0
        %2599 = vmatpush1.bf16.msra.mxu0 0
        %2600 = vmatprep.subr.bf16.mxu0 0
        %2601 = vmatpush1.bf16.msra.mxu0 0
        %2602 = vmatprep.subr.bf16.mxu0 0
        %2603 = vmatpush1.bf16.msra.mxu0 0
        %2604 = vmatprep.subr.bf16.mxu0 0
        %2605 = vmatpush1.bf16.msra.mxu0 0
        %2606 = vmatprep.subr.bf16.mxu0 %v2590
        %2607 = vmatpush1.bf16.msra.mxu0 %v2587
        %2608 = vmatprep.subr.bf16.mxu0 0
        %2609 = vmatpush2.bf16.msra.mxu0 0
        %2610 = vmatprep.subr.bf16.mxu0 0
        %2611 = vmatpush2.bf16.msra.mxu0 0
        %2612 = vmatprep.subr.bf16.mxu0 0
        %2613 = vmatpush2.bf16.msra.mxu0 0
        %2614 = vmatprep.subr.bf16.mxu0 0
        %2615 = vmatpush2.bf16.msra.mxu0 0
        %2616 = vmatprep.subr.bf16.mxu0 0
        %2617 = vmatpush2.bf16.msra.mxu0 0
        %2618 = vmatprep.subr.bf16.mxu0 0
        %2619 = vmatpush2.bf16.msra.mxu0 0
        %2620 = vmatprep.subr.bf16.mxu0 0
        %2621 = vmatpush2.bf16.msra.mxu0 0
        %2622 = vmatprep.subr.bf16.mxu0 0
        %2623 = vmatpush2.bf16.msra.mxu0 0
        %2624 = vmatprep.mubr.bf16.mxu0 0
        %2625 = vmatmul.mubr.bf16.gmra.mxu0 %v2584
        %v2626 = vpop.f32.mrf.mxu0
        %v2627 = vadd.f32 %v2581, %v2626
        %v2628 = vpop.f32.mrf.mxu0
        %v2629 = vadd.f32 %v2581, %v2628
        %v2630 = vpop.f32.mrf.mxu0
        %v2631 = vpop.f32.mrf.mxu0
        %2632 = vdwg.mxu0
        %v2633 = vsel %vm1029, %v1691, 0.0
        %v2634 = vrot.slane %v2633, 4
        %v2635 = vadd.f32 %v2633, %v2634
        %v2636 = vrot.slane %v2635, 2
        %v2637 = vadd.f32 %v2635, %v2636
        %v2638 = vrot.slane %v2637, 1
        %v2639 = vadd.f32 %v2637, %v2638
        %v2640 = vsel %vm1029, %v1693, 0.0
        %v2641 = vrot.slane %v2640, 4
        %v2642 = vadd.f32 %v2640, %v2641
        %v2643 = vrot.slane %v2642, 2
        %v2644 = vadd.f32 %v2642, %v2643
        %v2645 = vrot.slane %v2644, 1
        %v2646 = vadd.f32 %v2644, %v2645
        %v2647 = vsel %vm1029, %v2627, 0.0
        %v2648 = vrot.slane %v2647, 4
        %v2649 = vadd.f32 %v2647, %v2648
        %v2650 = vrot.slane %v2649, 2
        %v2651 = vadd.f32 %v2649, %v2650
        %v2652 = vrot.slane %v2651, 1
        %v2653 = vadd.f32 %v2651, %v2652
        %v2654 = vsel %vm1029, %v2629, 0.0
        %v2655 = vrot.slane %v2654, 4
        %v2656 = vadd.f32 %v2654, %v2655
        %v2657 = vrot.slane %v2656, 2
        %v2658 = vadd.f32 %v2656, %v2657
        %v2659 = vrot.slane %v2658, 1
        %v2660 = vadd.f32 %v2658, %v2659
        %v2661 = vadd.f32 %v2639, %v2653
        %v2662 = vadd.f32 %v2646, %v2660
        %v2663 = vmul.f32 %v2661, 0.125
        %v2664 = vmul.f32 %v2662, 0.125
        %v2665 = vsel %vm1029, %v1691, -inf
        %v2666 = vrot.slane %v2665, 4
        %v2667 = vmax.f32 %v2665, %v2666
        %v2668 = vrot.slane %v2667, 2
        %v2669 = vmax.f32 %v2667, %v2668
        %v2670 = vrot.slane %v2669, 1
        %v2671 = vmax.f32 %v2669, %v2670
        %v2672 = vsel %vm1029, %v1693, -inf
        %v2673 = vrot.slane %v2672, 4
        %v2674 = vmax.f32 %v2672, %v2673
        %v2675 = vrot.slane %v2674, 2
        %v2676 = vmax.f32 %v2674, %v2675
        %v2677 = vrot.slane %v2676, 1
        %v2678 = vmax.f32 %v2676, %v2677
        %v2679 = vsel %vm1029, %v2627, -inf
        %v2680 = vrot.slane %v2679, 4
        %v2681 = vmax.f32 %v2679, %v2680
        %v2682 = vrot.slane %v2681, 2
        %v2683 = vmax.f32 %v2681, %v2682
        %v2684 = vrot.slane %v2683, 1
        %v2685 = vmax.f32 %v2683, %v2684
        %v2686 = vsel %vm1029, %v2629, -inf
        %v2687 = vrot.slane %v2686, 4
        %v2688 = vmax.f32 %v2686, %v2687
        %v2689 = vrot.slane %v2688, 2
        %v2690 = vmax.f32 %v2688, %v2689
        %v2691 = vrot.slane %v2690, 1
        %v2692 = vmax.f32 %v2690, %v2691
        %v2693 = vmax.f32 %v2671, %v2685
        %v2694 = vmax.f32 %v2678, %v2692
        %2697 = vrot.lane.b32.xlu0 %v2663, 51
        %v2698 = vpop.permute.xlu0 %2697
        %2699 = vrot.lane.b32.xlu0 %v2664, 51
        %v2700 = vpop.permute.xlu0 %2699
        %v2701 = vsel %vm1989, %v2698, %v2700
        %v2704 = vsel %vm1989, 0.0, %v2698
        %2707 = vrot.lane.b32.xlu0 %v2693, 51
        %v2708 = vpop.permute.xlu0 %2707
        %2709 = vrot.lane.b32.xlu0 %v2694, 51
        %v2710 = vpop.permute.xlu0 %2709
        %v2711 = vsel %vm1989, %v2708, %v2710
        %v2714 = vsel %vm1989, 0.0, %v2708
        %s2715 = sld [smem:[#allocation2]]
        %v2716 = vstv %s2715
        %v2717 = vmul.f32 %v2704, %v2716
        %v2718 = vmul.f32 %v2701, %v2716
        %v2719 = vadd.f32 %v2717, 0.0
        %v2720 = vadd.f32 %v2718, 0.0
        %s2721 = sld [smem:[#allocation2 + $0x2]]
        %v2722 = vstv %s2721
        %v2723 = vmul.f32 %v2714, %v2722
        %v2724 = vmul.f32 %v2711, %v2722
        %v2725 = vadd.f32 %v2719, %v2723
        %v2726 = vadd.f32 %v2720, %v2724
        %s2727 = sld [smem:[#allocation2 + $0x1]]
        %v2728 = vstv %s2727
        %v2729 = vmul.f32 %v2704, %v2728
        %v2730 = vmul.f32 %v2701, %v2728
        %v2731 = vadd.f32 %v2729, 0.0
        %v2732 = vadd.f32 %v2730, 0.0
        %s2733 = sld [smem:[#allocation2 + $0x3]]
        %v2734 = vstv %s2733
        %v2735 = vmul.f32 %v2714, %v2734
        %v2736 = vmul.f32 %v2711, %v2734
        %v2737 = vadd.f32 %v2731, %v2735
        %v2738 = vadd.f32 %v2732, %v2736
        %2739 = vrot.lane.b32.xlu0 %v2663, 35
        %v2740 = vpop.permute.xlu0 %2739
        %2741 = vrot.lane.b32.xlu0 %v2664, 35
        %v2742 = vpop.permute.xlu0 %2741
        %v2743 = vsel %vm2040, %v2740, %v2742
        %v2746 = vsel %vm2040, 0.0, %v2740
        %2747 = vrot.lane.b32.xlu0 %v2693, 35
        %v2748 = vpop.permute.xlu0 %2747
        %2749 = vrot.lane.b32.xlu0 %v2694, 35
        %v2750 = vpop.permute.xlu0 %2749
        %v2751 = vsel %vm2040, %v2748, %v2750
        %v2754 = vsel %vm2040, 0.0, %v2748
        %s2755 = sld [smem:[#allocation2 + $0x1c]]
        %v2756 = vstv %s2755
        %v2757 = vmul.f32 %v2746, %v2756
        %v2758 = vmul.f32 %v2743, %v2756
        %v2759 = vadd.f32 %v2725, %v2757
        %v2760 = vadd.f32 %v2726, %v2758
        %s2761 = sld [smem:[#allocation2 + $0x1e]]
        %v2762 = vstv %s2761
        %v2763 = vmul.f32 %v2754, %v2762
        %v2764 = vmul.f32 %v2751, %v2762
        %v2765 = vadd.f32 %v2759, %v2763
        %v2766 = vadd.f32 %v2760, %v2764
        %s2767 = sld [smem:[#allocation2 + $0x1d]]
        %v2768 = vstv %s2767
        %v2769 = vmul.f32 %v2746, %v2768
        %v2770 = vmul.f32 %v2743, %v2768
        %v2771 = vadd.f32 %v2737, %v2769
        %v2772 = vadd.f32 %v2738, %v2770
        %s2773 = sld [smem:[#allocation2 + $0x1f]]
        %v2774 = vstv %s2773
        %v2775 = vmul.f32 %v2754, %v2774
        %v2776 = vmul.f32 %v2751, %v2774
        %v2777 = vadd.f32 %v2771, %v2775
        %v2778 = vadd.f32 %v2772, %v2776
        %2779 = vrot.lane.b32.xlu0 %v2663, 19
        %v2780 = vpop.permute.xlu0 %2779
        %2781 = vrot.lane.b32.xlu0 %v2664, 19
        %v2782 = vpop.permute.xlu0 %2781
        %v2783 = vsel %vm1958, %v2780, %v2782
        %v2786 = vsel %vm1958, 0.0, %v2780
        %2787 = vrot.lane.b32.xlu0 %v2693, 19
        %v2788 = vpop.permute.xlu0 %2787
        %2789 = vrot.lane.b32.xlu0 %v2694, 19
        %v2790 = vpop.permute.xlu0 %2789
        %v2791 = vsel %vm1958, %v2788, %v2790
        %v2794 = vsel %vm1958, 0.0, %v2788
        %s2795 = sld [smem:[#allocation2 + $0x38]]
        %v2796 = vstv %s2795
        %v2797 = vmul.f32 %v2786, %v2796
        %v2798 = vmul.f32 %v2783, %v2796
        %v2799 = vadd.f32 %v2765, %v2797
        %v2800 = vadd.f32 %v2766, %v2798
        %s2801 = sld [smem:[#allocation2 + $0x3a]]
        %v2802 = vstv %s2801
        %v2803 = vmul.f32 %v2794, %v2802
        %v2804 = vmul.f32 %v2791, %v2802
        %v2805 = vadd.f32 %v2799, %v2803
        %v2806 = vadd.f32 %v2800, %v2804
        %s2807 = sld [smem:[#allocation2 + $0x39]]
        %v2808 = vstv %s2807
        %v2809 = vmul.f32 %v2786, %v2808
        %v2810 = vmul.f32 %v2783, %v2808
        %v2811 = vadd.f32 %v2777, %v2809
        %v2812 = vadd.f32 %v2778, %v2810
        %s2813 = sld [smem:[#allocation2 + $0x3b]]
        %v2814 = vstv %s2813
        %v2815 = vmul.f32 %v2794, %v2814
        %v2816 = vmul.f32 %v2791, %v2814
        %v2817 = vadd.f32 %v2811, %v2815
        %v2818 = vadd.f32 %v2812, %v2816
        %2819 = vrot.lane.b32.xlu0 %v2663, 3
        %v2820 = vpop.permute.xlu0 %2819
        %2821 = vrot.lane.b32.xlu0 %v2664, 3
        %v2822 = vpop.permute.xlu0 %2821
        %v2823 = vsel %vm2006, %v2820, %v2822
        %v2826 = vsel %vm2006, 0.0, %v2820
        %2827 = vrot.lane.b32.xlu0 %v2693, 3
        %v2828 = vpop.permute.xlu0 %2827
        %2829 = vrot.lane.b32.xlu0 %v2694, 3
        %v2830 = vpop.permute.xlu0 %2829
        %v2831 = vsel %vm2006, %v2828, %v2830
        %v2834 = vsel %vm2006, 0.0, %v2828
        %s2835 = sld [smem:[#allocation2 + $0x54]]
        %v2836 = vstv %s2835
        %v2837 = vmul.f32 %v2826, %v2836
        %v2838 = vmul.f32 %v2823, %v2836
        %v2839 = vadd.f32 %v2805, %v2837
        %v2840 = vadd.f32 %v2806, %v2838
        %s2841 = sld [smem:[#allocation2 + $0x56]]
        %v2842 = vstv %s2841
        %v2843 = vmul.f32 %v2834, %v2842
        %v2844 = vmul.f32 %v2831, %v2842
        %v2845 = vadd.f32 %v2839, %v2843
        %v2846 = vadd.f32 %v2840, %v2844
        %s2847 = sld [smem:[#allocation2 + $0x55]]
        %v2848 = vstv %s2847
        %v2849 = vmul.f32 %v2826, %v2848
        %v2850 = vmul.f32 %v2823, %v2848
        %v2851 = vadd.f32 %v2817, %v2849
        %v2852 = vadd.f32 %v2818, %v2850
        %s2853 = sld [smem:[#allocation2 + $0x57]]
        %v2854 = vstv %s2853
        %v2855 = vmul.f32 %v2834, %v2854
        %v2856 = vmul.f32 %v2831, %v2854
        %v2857 = vadd.f32 %v2851, %v2855
        %v2858 = vadd.f32 %v2852, %v2856
        %2859 = vrot.lane.b32.xlu0 %v2663, 115
        %v2860 = vpop.permute.xlu0 %2859
        %2861 = vrot.lane.b32.xlu0 %v2664, 115
        %v2862 = vpop.permute.xlu0 %2861
        %v2863 = vsel %vm2056, %v2860, %v2862
        %v2866 = vsel %vm2056, %v2862, 0.0
        %2867 = vrot.lane.b32.xlu0 %v2693, 115
        %v2868 = vpop.permute.xlu0 %2867
        %2869 = vrot.lane.b32.xlu0 %v2694, 115
        %v2870 = vpop.permute.xlu0 %2869
        %v2871 = vsel %vm2056, %v2868, %v2870
        %v2874 = vsel %vm2056, %v2870, 0.0
        %s2875 = sld [smem:[#allocation2 + $0x70]]
        %v2876 = vstv %s2875
        %v2877 = vmul.f32 %v2863, %v2876
        %v2878 = vmul.f32 %v2866, %v2876
        %v2879 = vadd.f32 %v2845, %v2877
        %v2880 = vadd.f32 %v2846, %v2878
        %s2881 = sld [smem:[#allocation2 + $0x72]]
        %v2882 = vstv %s2881
        %v2883 = vmul.f32 %v2871, %v2882
        %v2884 = vmul.f32 %v2874, %v2882
        %v2885 = vadd.f32 %v2879, %v2883
        %v2886 = vadd.f32 %v2880, %v2884
        %s2887 = sld [smem:[#allocation2 + $0x71]]
        %v2888 = vstv %s2887
        %v2889 = vmul.f32 %v2863, %v2888
        %v2890 = vmul.f32 %v2866, %v2888
        %v2891 = vadd.f32 %v2857, %v2889
        %v2892 = vadd.f32 %v2858, %v2890
        %s2893 = sld [smem:[#allocation2 + $0x73]]
        %v2894 = vstv %s2893
        %v2895 = vmul.f32 %v2871, %v2894
        %v2896 = vmul.f32 %v2874, %v2894
        %v2897 = vadd.f32 %v2891, %v2895
        %v2898 = vadd.f32 %v2892, %v2896
        %2899 = vrot.lane.b32.xlu0 %v2663, 99
        %v2900 = vpop.permute.xlu0 %2899
        %2901 = vrot.lane.b32.xlu0 %v2664, 99
        %v2902 = vpop.permute.xlu0 %2901
        %v2903 = vsel %vm1972, %v2900, %v2902
        %v2906 = vsel %vm1972, %v2902, 0.0
        %2907 = vrot.lane.b32.xlu0 %v2693, 99
        %v2908 = vpop.permute.xlu0 %2907
        %2909 = vrot.lane.b32.xlu0 %v2694, 99
        %v2910 = vpop.permute.xlu0 %2909
        %v2911 = vsel %vm1972, %v2908, %v2910
        %v2914 = vsel %vm1972, %v2910, 0.0
        %s2915 = sld [smem:[#allocation2 + $0x8c]]
        %v2916 = vstv %s2915
        %v2917 = vmul.f32 %v2903, %v2916
        %v2918 = vmul.f32 %v2906, %v2916
        %v2919 = vadd.f32 %v2885, %v2917
        %v2920 = vadd.f32 %v2886, %v2918
        %s2921 = sld [smem:[#allocation2 + $0x8e]]
        %v2922 = vstv %s2921
        %v2923 = vmul.f32 %v2911, %v2922
        %v2924 = vmul.f32 %v2914, %v2922
        %v2925 = vadd.f32 %v2919, %v2923
        %v2926 = vadd.f32 %v2920, %v2924
        %s2927 = sld [smem:[#allocation2 + $0x8d]]
        %v2928 = vstv %s2927
        %v2929 = vmul.f32 %v2903, %v2928
        %v2930 = vmul.f32 %v2906, %v2928
        %v2931 = vadd.f32 %v2897, %v2929
        %v2932 = vadd.f32 %v2898, %v2930
        %s2933 = sld [smem:[#allocation2 + $0x8f]]
        %v2934 = vstv %s2933
        %v2935 = vmul.f32 %v2911, %v2934
        %v2936 = vmul.f32 %v2914, %v2934
        %v2937 = vadd.f32 %v2931, %v2935
        %v2938 = vadd.f32 %v2932, %v2936
        %2939 = vrot.lane.b32.xlu0 %v2663, 83
        %v2940 = vpop.permute.xlu0 %2939
        %2941 = vrot.lane.b32.xlu0 %v2664, 83
        %v2942 = vpop.permute.xlu0 %2941
        %v2943 = vsel %vm2023, %v2940, %v2942
        %v2946 = vsel %vm2023, %v2942, 0.0
        %2947 = vrot.lane.b32.xlu0 %v2693, 83
        %v2948 = vpop.permute.xlu0 %2947
        %2949 = vrot.lane.b32.xlu0 %v2694, 83
        %v2950 = vpop.permute.xlu0 %2949
        %v2951 = vsel %vm2023, %v2948, %v2950
        %v2954 = vsel %vm2023, %v2950, 0.0
        %s2955 = sld [smem:[#allocation2 + $0xa8]]
        %v2956 = vstv %s2955
        %v2957 = vmul.f32 %v2943, %v2956
        %v2958 = vmul.f32 %v2946, %v2956
        %v2959 = vadd.f32 %v2925, %v2957
        %v2960 = vadd.f32 %v2926, %v2958
        %s2961 = sld [smem:[#allocation2 + $0xaa]]
        %v2962 = vstv %s2961
        %v2963 = vmul.f32 %v2951, %v2962
        %v2964 = vmul.f32 %v2954, %v2962
        %v2965 = vadd.f32 %v2959, %v2963
        %v2966 = vadd.f32 %v2960, %v2964
        %s2967 = sld [smem:[#allocation2 + $0xa9]]
        %v2968 = vstv %s2967
        %v2969 = vmul.f32 %v2943, %v2968
        %v2970 = vmul.f32 %v2946, %v2968
        %v2971 = vadd.f32 %v2937, %v2969
        %v2972 = vadd.f32 %v2938, %v2970
        %s2973 = sld [smem:[#allocation2 + $0xab]]
        %v2974 = vstv %s2973
        %v2975 = vmul.f32 %v2951, %v2974
        %v2976 = vmul.f32 %v2954, %v2974
        %v2977 = vadd.f32 %v2971, %v2975
        %v2978 = vadd.f32 %v2972, %v2976
        %v2979 = vsel %vm2072, %v2965, 0.0
        %v2980 = vsel %vm2073, %v2966, 0.0
        %v2981 = vadd.f32 %v2979, 0.0
        %v2982 = vadd.f32 %v2980, 0.0
        %v2983 = vsel %vm2072, %v2977, 0.0
        %v2984 = vsel %vm2073, %v2978, 0.0
        %v2985 = vadd.f32 %v2983, 0.0
        %v2986 = vadd.f32 %v2984, 0.0
        %2987 = vrot.lane.b32.xlu0 %v2663, 50
        %v2988 = vpop.permute.xlu0 %2987
        %2989 = vrot.lane.b32.xlu0 %v2664, 50
        %v2990 = vpop.permute.xlu0 %2989
        %vm2991 = vcmask 408576
        %v2992 = vsel %vm2991, %v2988, %v2990
        %v2995 = vsel %vm2991, 0.0, %v2988
        %2996 = vrot.lane.b32.xlu0 %v2693, 50
        %v2997 = vpop.permute.xlu0 %2996
        %2998 = vrot.lane.b32.xlu0 %v2694, 50
        %v2999 = vpop.permute.xlu0 %2998
        %v3000 = vsel %vm2991, %v2997, %v2999
        %v3003 = vsel %vm2991, 0.0, %v2997
        %s3004 = sld [smem:[#allocation2 + $0x4]]
        %v3005 = vstv %s3004
        %v3006 = vmul.f32 %v2995, %v3005
        %v3007 = vmul.f32 %v2992, %v3005
        %v3008 = vadd.f32 %v3006, 0.0
        %v3009 = vadd.f32 %v3007, 0.0
        %s3010 = sld [smem:[#allocation2 + $0x6]]
        %v3011 = vstv %s3010
        %v3012 = vmul.f32 %v3003, %v3011
        %v3013 = vmul.f32 %v3000, %v3011
        %v3014 = vadd.f32 %v3008, %v3012
        %v3015 = vadd.f32 %v3009, %v3013
        %s3016 = sld [smem:[#allocation2 + $0x5]]
        %v3017 = vstv %s3016
        %v3018 = vmul.f32 %v2995, %v3017
        %v3019 = vmul.f32 %v2992, %v3017
        %v3020 = vadd.f32 %v3018, 0.0
        %v3021 = vadd.f32 %v3019, 0.0
        %s3022 = sld [smem:[#allocation2 + $0x7]]
        %v3023 = vstv %s3022
        %v3024 = vmul.f32 %v3003, %v3023
        %v3025 = vmul.f32 %v3000, %v3023
        %v3026 = vadd.f32 %v3020, %v3024
        %v3027 = vadd.f32 %v3021, %v3025
        %3028 = vrot.lane.b32.xlu0 %v2663, 34
        %v3029 = vpop.permute.xlu0 %3028
        %3030 = vrot.lane.b32.xlu0 %v2664, 34
        %v3031 = vpop.permute.xlu0 %3030
        %v3032 = vsel %vm1137, %v3029, %v3031
        %v3035 = vsel %vm1137, 0.0, %v3029
        %3036 = vrot.lane.b32.xlu0 %v2693, 34
        %v3037 = vpop.permute.xlu0 %3036
        %3038 = vrot.lane.b32.xlu0 %v2694, 34
        %v3039 = vpop.permute.xlu0 %3038
        %v3040 = vsel %vm1137, %v3037, %v3039
        %v3043 = vsel %vm1137, 0.0, %v3037
        %s3044 = sld [smem:[#allocation2 + $0x20]]
        %v3045 = vstv %s3044
        %v3046 = vmul.f32 %v3035, %v3045
        %v3047 = vmul.f32 %v3032, %v3045
        %v3048 = vadd.f32 %v3014, %v3046
        %v3049 = vadd.f32 %v3015, %v3047
        %s3050 = sld [smem:[#allocation2 + $0x22]]
        %v3051 = vstv %s3050
        %v3052 = vmul.f32 %v3043, %v3051
        %v3053 = vmul.f32 %v3040, %v3051
        %v3054 = vadd.f32 %v3048, %v3052
        %v3055 = vadd.f32 %v3049, %v3053
        %s3056 = sld [smem:[#allocation2 + $0x21]]
        %v3057 = vstv %s3056
        %v3058 = vmul.f32 %v3035, %v3057
        %v3059 = vmul.f32 %v3032, %v3057
        %v3060 = vadd.f32 %v3026, %v3058
        %v3061 = vadd.f32 %v3027, %v3059
        %s3062 = sld [smem:[#allocation2 + $0x23]]
        %v3063 = vstv %s3062
        %v3064 = vmul.f32 %v3043, %v3063
        %v3065 = vmul.f32 %v3040, %v3063
        %v3066 = vadd.f32 %v3060, %v3064
        %v3067 = vadd.f32 %v3061, %v3065
        %3068 = vrot.lane.b32.xlu0 %v2663, 18
        %v3069 = vpop.permute.xlu0 %3068
        %3070 = vrot.lane.b32.xlu0 %v2664, 18
        %v3071 = vpop.permute.xlu0 %3070
        %v3072 = vsel %vm1156, %v3069, %v3071
        %v3075 = vsel %vm1156, 0.0, %v3069
        %3076 = vrot.lane.b32.xlu0 %v2693, 18
        %v3077 = vpop.permute.xlu0 %3076
        %3078 = vrot.lane.b32.xlu0 %v2694, 18
        %v3079 = vpop.permute.xlu0 %3078
        %v3080 = vsel %vm1156, %v3077, %v3079
        %v3083 = vsel %vm1156, 0.0, %v3077
        %s3084 = sld [smem:[#allocation2 + $0x3c]]
        %v3085 = vstv %s3084
        %v3086 = vmul.f32 %v3075, %v3085
        %v3087 = vmul.f32 %v3072, %v3085
        %v3088 = vadd.f32 %v3054, %v3086
        %v3089 = vadd.f32 %v3055, %v3087
        %s3090 = sld [smem:[#allocation2 + $0x3e]]
        %v3091 = vstv %s3090
        %v3092 = vmul.f32 %v3083, %v3091
        %v3093 = vmul.f32 %v3080, %v3091
        %v3094 = vadd.f32 %v3088, %v3092
        %v3095 = vadd.f32 %v3089, %v3093
        %s3096 = sld [smem:[#allocation2 + $0x3d]]
        %v3097 = vstv %s3096
        %v3098 = vmul.f32 %v3075, %v3097
        %v3099 = vmul.f32 %v3072, %v3097
        %v3100 = vadd.f32 %v3066, %v3098
        %v3101 = vadd.f32 %v3067, %v3099
        %s3102 = sld [smem:[#allocation2 + $0x3f]]
        %v3103 = vstv %s3102
        %v3104 = vmul.f32 %v3083, %v3103
        %v3105 = vmul.f32 %v3080, %v3103
        %v3106 = vadd.f32 %v3100, %v3104
        %v3107 = vadd.f32 %v3101, %v3105
        %3108 = vrot.lane.b32.xlu0 %v2663, 2
        %v3109 = vpop.permute.xlu0 %3108
        %3110 = vrot.lane.b32.xlu0 %v2664, 2
        %v3111 = vpop.permute.xlu0 %3110
        %v3112 = vsel %vm1173, %v3109, %v3111
        %v3115 = vsel %vm1173, 0.0, %v3109
        %3116 = vrot.lane.b32.xlu0 %v2693, 2
        %v3117 = vpop.permute.xlu0 %3116
        %3118 = vrot.lane.b32.xlu0 %v2694, 2
        %v3119 = vpop.permute.xlu0 %3118
        %v3120 = vsel %vm1173, %v3117, %v3119
        %v3123 = vsel %vm1173, 0.0, %v3117
        %s3124 = sld [smem:[#allocation2 + $0x58]]
        %v3125 = vstv %s3124
        %v3126 = vmul.f32 %v3115, %v3125
        %v3127 = vmul.f32 %v3112, %v3125
        %v3128 = vadd.f32 %v3094, %v3126
        %v3129 = vadd.f32 %v3095, %v3127
        %s3130 = sld [smem:[#allocation2 + $0x5a]]
        %v3131 = vstv %s3130
        %v3132 = vmul.f32 %v3123, %v3131
        %v3133 = vmul.f32 %v3120, %v3131
        %v3134 = vadd.f32 %v3128, %v3132
        %v3135 = vadd.f32 %v3129, %v3133
        %s3136 = sld [smem:[#allocation2 + $0x59]]
        %v3137 = vstv %s3136
        %v3138 = vmul.f32 %v3115, %v3137
        %v3139 = vmul.f32 %v3112, %v3137
        %v3140 = vadd.f32 %v3106, %v3138
        %v3141 = vadd.f32 %v3107, %v3139
        %s3142 = sld [smem:[#allocation2 + $0x5b]]
        %v3143 = vstv %s3142
        %v3144 = vmul.f32 %v3123, %v3143
        %v3145 = vmul.f32 %v3120, %v3143
        %v3146 = vadd.f32 %v3140, %v3144
        %v3147 = vadd.f32 %v3141, %v3145
        %3148 = vrot.lane.b32.xlu0 %v2663, 114
        %v3149 = vpop.permute.xlu0 %3148
        %3150 = vrot.lane.b32.xlu0 %v2664, 114
        %v3151 = vpop.permute.xlu0 %3150
        %v3152 = vsel %vm1190, %v3149, %v3151
        %v3155 = vsel %vm1190, %v3151, 0.0
        %3156 = vrot.lane.b32.xlu0 %v2693, 114
        %v3157 = vpop.permute.xlu0 %3156
        %3158 = vrot.lane.b32.xlu0 %v2694, 114
        %v3159 = vpop.permute.xlu0 %3158
        %v3160 = vsel %vm1190, %v3157, %v3159
        %v3163 = vsel %vm1190, %v3159, 0.0
        %s3164 = sld [smem:[#allocation2 + $0x74]]
        %v3165 = vstv %s3164
        %v3166 = vmul.f32 %v3152, %v3165
        %v3167 = vmul.f32 %v3155, %v3165
        %v3168 = vadd.f32 %v3134, %v3166
        %v3169 = vadd.f32 %v3135, %v3167
        %s3170 = sld [smem:[#allocation2 + $0x76]]
        %v3171 = vstv %s3170
        %v3172 = vmul.f32 %v3160, %v3171
        %v3173 = vmul.f32 %v3163, %v3171
        %v3174 = vadd.f32 %v3168, %v3172
        %v3175 = vadd.f32 %v3169, %v3173
        %s3176 = sld [smem:[#allocation2 + $0x75]]
        %v3177 = vstv %s3176
        %v3178 = vmul.f32 %v3152, %v3177
        %v3179 = vmul.f32 %v3155, %v3177
        %v3180 = vadd.f32 %v3146, %v3178
        %v3181 = vadd.f32 %v3147, %v3179
        %s3182 = sld [smem:[#allocation2 + $0x77]]
        %v3183 = vstv %s3182
        %v3184 = vmul.f32 %v3160, %v3183
        %v3185 = vmul.f32 %v3163, %v3183
        %v3186 = vadd.f32 %v3180, %v3184
        %v3187 = vadd.f32 %v3181, %v3185
        %3188 = vrot.lane.b32.xlu0 %v2663, 98
        %v3189 = vpop.permute.xlu0 %3188
        %3190 = vrot.lane.b32.xlu0 %v2664, 98
        %v3191 = vpop.permute.xlu0 %3190
        %v3192 = vsel %vm1207, %v3189, %v3191
        %v3195 = vsel %vm1207, %v3191, 0.0
        %3196 = vrot.lane.b32.xlu0 %v2693, 98
        %v3197 = vpop.permute.xlu0 %3196
        %3198 = vrot.lane.b32.xlu0 %v2694, 98
        %v3199 = vpop.permute.xlu0 %3198
        %v3200 = vsel %vm1207, %v3197, %v3199
        %v3203 = vsel %vm1207, %v3199, 0.0
        %s3204 = sld [smem:[#allocation2 + $0x90]]
        %v3205 = vstv %s3204
        %v3206 = vmul.f32 %v3192, %v3205
        %v3207 = vmul.f32 %v3195, %v3205
        %v3208 = vadd.f32 %v3174, %v3206
        %v3209 = vadd.f32 %v3175, %v3207
        %s3210 = sld [smem:[#allocation2 + $0x92]]
        %v3211 = vstv %s3210
        %v3212 = vmul.f32 %v3200, %v3211
        %v3213 = vmul.f32 %v3203, %v3211
        %v3214 = vadd.f32 %v3208, %v3212
        %v3215 = vadd.f32 %v3209, %v3213
        %s3216 = sld [smem:[#allocation2 + $0x91]]
        %v3217 = vstv %s3216
        %v3218 = vmul.f32 %v3192, %v3217
        %v3219 = vmul.f32 %v3195, %v3217
        %v3220 = vadd.f32 %v3186, %v3218
        %v3221 = vadd.f32 %v3187, %v3219
        %s3222 = sld [smem:[#allocation2 + $0x93]]
        %v3223 = vstv %s3222
        %v3224 = vmul.f32 %v3200, %v3223
        %v3225 = vmul.f32 %v3203, %v3223
        %v3226 = vadd.f32 %v3220, %v3224
        %v3227 = vadd.f32 %v3221, %v3225
        %3228 = vrot.lane.b32.xlu0 %v2663, 82
        %v3229 = vpop.permute.xlu0 %3228
        %3230 = vrot.lane.b32.xlu0 %v2664, 82
        %v3231 = vpop.permute.xlu0 %3230
        %vm3232 = vcmask 670720
        %v3233 = vsel %vm3232, %v3229, %v3231
        %v3236 = vsel %vm3232, %v3231, 0.0
        %3237 = vrot.lane.b32.xlu0 %v2693, 82
        %v3238 = vpop.permute.xlu0 %3237
        %3239 = vrot.lane.b32.xlu0 %v2694, 82
        %v3240 = vpop.permute.xlu0 %3239
        %v3241 = vsel %vm3232, %v3238, %v3240
        %v3244 = vsel %vm3232, %v3240, 0.0
        %s3245 = sld [smem:[#allocation2 + $0xac]]
        %v3246 = vstv %s3245
        %v3247 = vmul.f32 %v3233, %v3246
        %v3248 = vmul.f32 %v3236, %v3246
        %v3249 = vadd.f32 %v3214, %v3247
        %v3250 = vadd.f32 %v3215, %v3248
        %s3251 = sld [smem:[#allocation2 + $0xae]]
        %v3252 = vstv %s3251
        %v3253 = vmul.f32 %v3241, %v3252
        %v3254 = vmul.f32 %v3244, %v3252
        %v3255 = vadd.f32 %v3249, %v3253
        %v3256 = vadd.f32 %v3250, %v3254
        %s3257 = sld [smem:[#allocation2 + $0xad]]
        %v3258 = vstv %s3257
        %v3259 = vmul.f32 %v3233, %v3258
        %v3260 = vmul.f32 %v3236, %v3258
        %v3261 = vadd.f32 %v3226, %v3259
        %v3262 = vadd.f32 %v3227, %v3260
        %s3263 = sld [smem:[#allocation2 + $0xaf]]
        %v3264 = vstv %s3263
        %v3265 = vmul.f32 %v3241, %v3264
        %v3266 = vmul.f32 %v3244, %v3264
        %v3267 = vadd.f32 %v3261, %v3265
        %v3268 = vadd.f32 %v3262, %v3266
        %v3269 = vsel %vm1226, %v3255, 0.0
        %v3270 = vsel %vm1227, %v3256, 0.0
        %v3271 = vadd.f32 %v2981, %v3269
        %v3272 = vadd.f32 %v2982, %v3270
        %v3273 = vsel %vm1226, %v3267, 0.0
        %v3274 = vsel %vm1227, %v3268, 0.0
        %v3275 = vadd.f32 %v2985, %v3273
        %v3276 = vadd.f32 %v2986, %v3274
        %3277 = vrot.lane.b32.xlu0 %v2663, 49
        %v3278 = vpop.permute.xlu0 %3277
        %3279 = vrot.lane.b32.xlu0 %v2664, 49
        %v3280 = vpop.permute.xlu0 %3279
        %vm3281 = vcmask 400384
        %v3282 = vsel %vm3281, %v3278, %v3280
        %v3285 = vsel %vm3281, 0.0, %v3278
        %3286 = vrot.lane.b32.xlu0 %v2693, 49
        %v3287 = vpop.permute.xlu0 %3286
        %3288 = vrot.lane.b32.xlu0 %v2694, 49
        %v3289 = vpop.permute.xlu0 %3288
        %v3290 = vsel %vm3281, %v3287, %v3289
        %v3293 = vsel %vm3281, 0.0, %v3287
        %s3294 = sld [smem:[#allocation2 + $0x8]]
        %v3295 = vstv %s3294
        %v3296 = vmul.f32 %v3285, %v3295
        %v3297 = vmul.f32 %v3282, %v3295
        %v3298 = vadd.f32 %v3296, 0.0
        %v3299 = vadd.f32 %v3297, 0.0
        %s3300 = sld [smem:[#allocation2 + $0xa]]
        %v3301 = vstv %s3300
        %v3302 = vmul.f32 %v3293, %v3301
        %v3303 = vmul.f32 %v3290, %v3301
        %v3304 = vadd.f32 %v3298, %v3302
        %v3305 = vadd.f32 %v3299, %v3303
        %s3306 = sld [smem:[#allocation2 + $0x9]]
        %v3307 = vstv %s3306
        %v3308 = vmul.f32 %v3285, %v3307
        %v3309 = vmul.f32 %v3282, %v3307
        %v3310 = vadd.f32 %v3308, 0.0
        %v3311 = vadd.f32 %v3309, 0.0
        %s3312 = sld [smem:[#allocation2 + $0xb]]
        %v3313 = vstv %s3312
        %v3314 = vmul.f32 %v3293, %v3313
        %v3315 = vmul.f32 %v3290, %v3313
        %v3316 = vadd.f32 %v3310, %v3314
        %v3317 = vadd.f32 %v3311, %v3315
        %3318 = vrot.lane.b32.xlu0 %v2663, 33
        %v3319 = vpop.permute.xlu0 %3318
        %3320 = vrot.lane.b32.xlu0 %v2664, 33
        %v3321 = vpop.permute.xlu0 %3320
        %v3322 = vsel %vm1240, %v3319, %v3321
        %v3325 = vsel %vm1240, 0.0, %v3319
        %3326 = vrot.lane.b32.xlu0 %v2693, 33
        %v3327 = vpop.permute.xlu0 %3326
        %3328 = vrot.lane.b32.xlu0 %v2694, 33
        %v3329 = vpop.permute.xlu0 %3328
        %v3330 = vsel %vm1240, %v3327, %v3329
        %v3333 = vsel %vm1240, 0.0, %v3327
        %s3334 = sld [smem:[#allocation2 + $0x24]]
        %v3335 = vstv %s3334
        %v3336 = vmul.f32 %v3325, %v3335
        %v3337 = vmul.f32 %v3322, %v3335
        %v3338 = vadd.f32 %v3304, %v3336
        %v3339 = vadd.f32 %v3305, %v3337
        %s3340 = sld [smem:[#allocation2 + $0x26]]
        %v3341 = vstv %s3340
        %v3342 = vmul.f32 %v3333, %v3341
        %v3343 = vmul.f32 %v3330, %v3341
        %v3344 = vadd.f32 %v3338, %v3342
        %v3345 = vadd.f32 %v3339, %v3343
        %s3346 = sld [smem:[#allocation2 + $0x25]]
        %v3347 = vstv %s3346
        %v3348 = vmul.f32 %v3325, %v3347
        %v3349 = vmul.f32 %v3322, %v3347
        %v3350 = vadd.f32 %v3316, %v3348
        %v3351 = vadd.f32 %v3317, %v3349
        %s3352 = sld [smem:[#allocation2 + $0x27]]
        %v3353 = vstv %s3352
        %v3354 = vmul.f32 %v3333, %v3353
        %v3355 = vmul.f32 %v3330, %v3353
        %v3356 = vadd.f32 %v3350, %v3354
        %v3357 = vadd.f32 %v3351, %v3355
        %3358 = vrot.lane.b32.xlu0 %v2663, 17
        %v3359 = vpop.permute.xlu0 %3358
        %3360 = vrot.lane.b32.xlu0 %v2664, 17
        %v3361 = vpop.permute.xlu0 %3360
        %v3362 = vsel %vm1257, %v3359, %v3361
        %v3365 = vsel %vm1257, 0.0, %v3359
        %3366 = vrot.lane.b32.xlu0 %v2693, 17
        %v3367 = vpop.permute.xlu0 %3366
        %3368 = vrot.lane.b32.xlu0 %v2694, 17
        %v3369 = vpop.permute.xlu0 %3368
        %v3370 = vsel %vm1257, %v3367, %v3369
        %v3373 = vsel %vm1257, 0.0, %v3367
        %s3374 = sld [smem:[#allocation2 + $0x40]]
        %v3375 = vstv %s3374
        %v3376 = vmul.f32 %v3365, %v3375
        %v3377 = vmul.f32 %v3362, %v3375
        %v3378 = vadd.f32 %v3344, %v3376
        %v3379 = vadd.f32 %v3345, %v3377
        %s3380 = sld [smem:[#allocation2 + $0x42]]
        %v3381 = vstv %s3380
        %v3382 = vmul.f32 %v3373, %v3381
        %v3383 = vmul.f32 %v3370, %v3381
        %v3384 = vadd.f32 %v3378, %v3382
        %v3385 = vadd.f32 %v3379, %v3383
        %s3386 = sld [smem:[#allocation2 + $0x41]]
        %v3387 = vstv %s3386
        %v3388 = vmul.f32 %v3365, %v3387
        %v3389 = vmul.f32 %v3362, %v3387
        %v3390 = vadd.f32 %v3356, %v3388
        %v3391 = vadd.f32 %v3357, %v3389
        %s3392 = sld [smem:[#allocation2 + $0x43]]
        %v3393 = vstv %s3392
        %v3394 = vmul.f32 %v3373, %v3393
        %v3395 = vmul.f32 %v3370, %v3393
        %v3396 = vadd.f32 %v3390, %v3394
        %v3397 = vadd.f32 %v3391, %v3395
        %3398 = vrot.lane.b32.xlu0 %v2663, 1
        %v3399 = vpop.permute.xlu0 %3398
        %3400 = vrot.lane.b32.xlu0 %v2664, 1
        %v3401 = vpop.permute.xlu0 %3400
        %v3402 = vsel %vm1274, %v3399, %v3401
        %v3405 = vsel %vm1274, 0.0, %v3399
        %3406 = vrot.lane.b32.xlu0 %v2693, 1
        %v3407 = vpop.permute.xlu0 %3406
        %3408 = vrot.lane.b32.xlu0 %v2694, 1
        %v3409 = vpop.permute.xlu0 %3408
        %v3410 = vsel %vm1274, %v3407, %v3409
        %v3413 = vsel %vm1274, 0.0, %v3407
        %s3414 = sld [smem:[#allocation2 + $0x5c]]
        %v3415 = vstv %s3414
        %v3416 = vmul.f32 %v3405, %v3415
        %v3417 = vmul.f32 %v3402, %v3415
        %v3418 = vadd.f32 %v3384, %v3416
        %v3419 = vadd.f32 %v3385, %v3417
        %s3420 = sld [smem:[#allocation2 + $0x5e]]
        %v3421 = vstv %s3420
        %v3422 = vmul.f32 %v3413, %v3421
        %v3423 = vmul.f32 %v3410, %v3421
        %v3424 = vadd.f32 %v3418, %v3422
        %v3425 = vadd.f32 %v3419, %v3423
        %s3426 = sld [smem:[#allocation2 + $0x5d]]
        %v3427 = vstv %s3426
        %v3428 = vmul.f32 %v3405, %v3427
        %v3429 = vmul.f32 %v3402, %v3427
        %v3430 = vadd.f32 %v3396, %v3428
        %v3431 = vadd.f32 %v3397, %v3429
        %s3432 = sld [smem:[#allocation2 + $0x5f]]
        %v3433 = vstv %s3432
        %v3434 = vmul.f32 %v3413, %v3433
        %v3435 = vmul.f32 %v3410, %v3433
        %v3436 = vadd.f32 %v3430, %v3434
        %v3437 = vadd.f32 %v3431, %v3435
        %3438 = vrot.lane.b32.xlu0 %v2663, 113
        %v3439 = vpop.permute.xlu0 %3438
        %3440 = vrot.lane.b32.xlu0 %v2664, 113
        %v3441 = vpop.permute.xlu0 %3440
        %v3442 = vsel %vm1291, %v3439, %v3441
        %v3445 = vsel %vm1291, %v3441, 0.0
        %3446 = vrot.lane.b32.xlu0 %v2693, 113
        %v3447 = vpop.permute.xlu0 %3446
        %3448 = vrot.lane.b32.xlu0 %v2694, 113
        %v3449 = vpop.permute.xlu0 %3448
        %v3450 = vsel %vm1291, %v3447, %v3449
        %v3453 = vsel %vm1291, %v3449, 0.0
        %s3454 = sld [smem:[#allocation2 + $0x78]]
        %v3455 = vstv %s3454
        %v3456 = vmul.f32 %v3442, %v3455
        %v3457 = vmul.f32 %v3445, %v3455
        %v3458 = vadd.f32 %v3424, %v3456
        %v3459 = vadd.f32 %v3425, %v3457
        %s3460 = sld [smem:[#allocation2 + $0x7a]]
        %v3461 = vstv %s3460
        %v3462 = vmul.f32 %v3450, %v3461
        %v3463 = vmul.f32 %v3453, %v3461
        %v3464 = vadd.f32 %v3458, %v3462
        %v3465 = vadd.f32 %v3459, %v3463
        %s3466 = sld [smem:[#allocation2 + $0x79]]
        %v3467 = vstv %s3466
        %v3468 = vmul.f32 %v3442, %v3467
        %v3469 = vmul.f32 %v3445, %v3467
        %v3470 = vadd.f32 %v3436, %v3468
        %v3471 = vadd.f32 %v3437, %v3469
        %s3472 = sld [smem:[#allocation2 + $0x7b]]
        %v3473 = vstv %s3472
        %v3474 = vmul.f32 %v3450, %v3473
        %v3475 = vmul.f32 %v3453, %v3473
        %v3476 = vadd.f32 %v3470, %v3474
        %v3477 = vadd.f32 %v3471, %v3475
        %3478 = vrot.lane.b32.xlu0 %v2663, 97
        %v3479 = vpop.permute.xlu0 %3478
        %3480 = vrot.lane.b32.xlu0 %v2664, 97
        %v3481 = vpop.permute.xlu0 %3480
        %v3482 = vsel %vm1308, %v3479, %v3481
        %v3485 = vsel %vm1308, %v3481, 0.0
        %3486 = vrot.lane.b32.xlu0 %v2693, 97
        %v3487 = vpop.permute.xlu0 %3486
        %3488 = vrot.lane.b32.xlu0 %v2694, 97
        %v3489 = vpop.permute.xlu0 %3488
        %v3490 = vsel %vm1308, %v3487, %v3489
        %v3493 = vsel %vm1308, %v3489, 0.0
        %s3494 = sld [smem:[#allocation2 + $0x94]]
        %v3495 = vstv %s3494
        %v3496 = vmul.f32 %v3482, %v3495
        %v3497 = vmul.f32 %v3485, %v3495
        %v3498 = vadd.f32 %v3464, %v3496
        %v3499 = vadd.f32 %v3465, %v3497
        %s3500 = sld [smem:[#allocation2 + $0x96]]
        %v3501 = vstv %s3500
        %v3502 = vmul.f32 %v3490, %v3501
        %v3503 = vmul.f32 %v3493, %v3501
        %v3504 = vadd.f32 %v3498, %v3502
        %v3505 = vadd.f32 %v3499, %v3503
        %s3506 = sld [smem:[#allocation2 + $0x95]]
        %v3507 = vstv %s3506
        %v3508 = vmul.f32 %v3482, %v3507
        %v3509 = vmul.f32 %v3485, %v3507
        %v3510 = vadd.f32 %v3476, %v3508
        %v3511 = vadd.f32 %v3477, %v3509
        %s3512 = sld [smem:[#allocation2 + $0x97]]
        %v3513 = vstv %s3512
        %v3514 = vmul.f32 %v3490, %v3513
        %v3515 = vmul.f32 %v3493, %v3513
        %v3516 = vadd.f32 %v3510, %v3514
        %v3517 = vadd.f32 %v3511, %v3515
        %3518 = vrot.lane.b32.xlu0 %v2663, 81
        %v3519 = vpop.permute.xlu0 %3518
        %3520 = vrot.lane.b32.xlu0 %v2664, 81
        %v3521 = vpop.permute.xlu0 %3520
        %vm3522 = vcmask 662528
        %v3523 = vsel %vm3522, %v3519, %v3521
        %v3526 = vsel %vm3522, %v3521, 0.0
        %3527 = vrot.lane.b32.xlu0 %v2693, 81
        %v3528 = vpop.permute.xlu0 %3527
        %3529 = vrot.lane.b32.xlu0 %v2694, 81
        %v3530 = vpop.permute.xlu0 %3529
        %v3531 = vsel %vm3522, %v3528, %v3530
        %v3534 = vsel %vm3522, %v3530, 0.0
        %s3535 = sld [smem:[#allocation2 + $0xb0]]
        %v3536 = vstv %s3535
        %v3537 = vmul.f32 %v3523, %v3536
        %v3538 = vmul.f32 %v3526, %v3536
        %v3539 = vadd.f32 %v3504, %v3537
        %v3540 = vadd.f32 %v3505, %v3538
        %s3541 = sld [smem:[#allocation2 + $0xb2]]
        %v3542 = vstv %s3541
        %v3543 = vmul.f32 %v3531, %v3542
        %v3544 = vmul.f32 %v3534, %v3542
        %v3545 = vadd.f32 %v3539, %v3543
        %v3546 = vadd.f32 %v3540, %v3544
        %s3547 = sld [smem:[#allocation2 + $0xb1]]
        %v3548 = vstv %s3547
        %v3549 = vmul.f32 %v3523, %v3548
        %v3550 = vmul.f32 %v3526, %v3548
        %v3551 = vadd.f32 %v3516, %v3549
        %v3552 = vadd.f32 %v3517, %v3550
        %s3553 = sld [smem:[#allocation2 + $0xb3]]
        %v3554 = vstv %s3553
        %v3555 = vmul.f32 %v3531, %v3554
        %v3556 = vmul.f32 %v3534, %v3554
        %v3557 = vadd.f32 %v3551, %v3555
        %v3558 = vadd.f32 %v3552, %v3556
        %v3559 = vsel %vm1327, %v3545, 0.0
        %v3560 = vsel %vm1328, %v3546, 0.0
        %v3561 = vadd.f32 %v3271, %v3559
        %v3562 = vadd.f32 %v3272, %v3560
        %v3563 = vsel %vm1327, %v3557, 0.0
        %v3564 = vsel %vm1328, %v3558, 0.0
        %v3565 = vadd.f32 %v3275, %v3563
        %v3566 = vadd.f32 %v3276, %v3564
        %3567 = vrot.lane.b32.xlu0 %v2663, 48
        %v3568 = vpop.permute.xlu0 %3567
        %3569 = vrot.lane.b32.xlu0 %v2664, 48
        %v3570 = vpop.permute.xlu0 %3569
        %v3571 = vsel %vm2114, %v3568, %v3570
        %v3574 = vsel %vm2114, 0.0, %v3568
        %3575 = vrot.lane.b32.xlu0 %v2693, 48
        %v3576 = vpop.permute.xlu0 %3575
        %3577 = vrot.lane.b32.xlu0 %v2694, 48
        %v3578 = vpop.permute.xlu0 %3577
        %v3579 = vsel %vm2114, %v3576, %v3578
        %v3582 = vsel %vm2114, 0.0, %v3576
        %s3583 = sld [smem:[#allocation2 + $0xc]]
        %v3584 = vstv %s3583
        %v3585 = vmul.f32 %v3574, %v3584
        %v3586 = vmul.f32 %v3571, %v3584
        %v3587 = vadd.f32 %v3585, 0.0
        %v3588 = vadd.f32 %v3586, 0.0
        %s3589 = sld [smem:[#allocation2 + $0xe]]
        %v3590 = vstv %s3589
        %v3591 = vmul.f32 %v3582, %v3590
        %v3592 = vmul.f32 %v3579, %v3590
        %v3593 = vadd.f32 %v3587, %v3591
        %v3594 = vadd.f32 %v3588, %v3592
        %s3595 = sld [smem:[#allocation2 + $0xd]]
        %v3596 = vstv %s3595
        %v3597 = vmul.f32 %v3574, %v3596
        %v3598 = vmul.f32 %v3571, %v3596
        %v3599 = vadd.f32 %v3597, 0.0
        %v3600 = vadd.f32 %v3598, 0.0
        %s3601 = sld [smem:[#allocation2 + $0xf]]
        %v3602 = vstv %s3601
        %v3603 = vmul.f32 %v3582, %v3602
        %v3604 = vmul.f32 %v3579, %v3602
        %v3605 = vadd.f32 %v3599, %v3603
        %v3606 = vadd.f32 %v3600, %v3604
        %3607 = vrot.lane.b32.xlu0 %v2663, 32
        %v3608 = vpop.permute.xlu0 %3607
        %3609 = vrot.lane.b32.xlu0 %v2664, 32
        %v3610 = vpop.permute.xlu0 %3609
        %v3611 = vsel %vm1341, %v3608, %v3610
        %v3614 = vsel %vm1341, 0.0, %v3608
        %3615 = vrot.lane.b32.xlu0 %v2693, 32
        %v3616 = vpop.permute.xlu0 %3615
        %3617 = vrot.lane.b32.xlu0 %v2694, 32
        %v3618 = vpop.permute.xlu0 %3617
        %v3619 = vsel %vm1341, %v3616, %v3618
        %v3622 = vsel %vm1341, 0.0, %v3616
        %s3623 = sld [smem:[#allocation2 + $0x28]]
        %v3624 = vstv %s3623
        %v3625 = vmul.f32 %v3614, %v3624
        %v3626 = vmul.f32 %v3611, %v3624
        %v3627 = vadd.f32 %v3593, %v3625
        %v3628 = vadd.f32 %v3594, %v3626
        %s3629 = sld [smem:[#allocation2 + $0x2a]]
        %v3630 = vstv %s3629
        %v3631 = vmul.f32 %v3622, %v3630
        %v3632 = vmul.f32 %v3619, %v3630
        %v3633 = vadd.f32 %v3627, %v3631
        %v3634 = vadd.f32 %v3628, %v3632
        %s3635 = sld [smem:[#allocation2 + $0x29]]
        %v3636 = vstv %s3635
        %v3637 = vmul.f32 %v3614, %v3636
        %v3638 = vmul.f32 %v3611, %v3636
        %v3639 = vadd.f32 %v3605, %v3637
        %v3640 = vadd.f32 %v3606, %v3638
        %s3641 = sld [smem:[#allocation2 + $0x2b]]
        %v3642 = vstv %s3641
        %v3643 = vmul.f32 %v3622, %v3642
        %v3644 = vmul.f32 %v3619, %v3642
        %v3645 = vadd.f32 %v3639, %v3643
        %v3646 = vadd.f32 %v3640, %v3644
        %3647 = vrot.lane.b32.xlu0 %v2663, 16
        %v3648 = vpop.permute.xlu0 %3647
        %3649 = vrot.lane.b32.xlu0 %v2664, 16
        %v3650 = vpop.permute.xlu0 %3649
        %v3651 = vsel %vm1358, %v3648, %v3650
        %v3654 = vsel %vm1358, 0.0, %v3648
        %3655 = vrot.lane.b32.xlu0 %v2693, 16
        %v3656 = vpop.permute.xlu0 %3655
        %3657 = vrot.lane.b32.xlu0 %v2694, 16
        %v3658 = vpop.permute.xlu0 %3657
        %v3659 = vsel %vm1358, %v3656, %v3658
        %v3662 = vsel %vm1358, 0.0, %v3656
        %s3663 = sld [smem:[#allocation2 + $0x44]]
        %v3664 = vstv %s3663
        %v3665 = vmul.f32 %v3654, %v3664
        %v3666 = vmul.f32 %v3651, %v3664
        %v3667 = vadd.f32 %v3633, %v3665
        %v3668 = vadd.f32 %v3634, %v3666
        %s3669 = sld [smem:[#allocation2 + $0x46]]
        %v3670 = vstv %s3669
        %v3671 = vmul.f32 %v3662, %v3670
        %v3672 = vmul.f32 %v3659, %v3670
        %v3673 = vadd.f32 %v3667, %v3671
        %v3674 = vadd.f32 %v3668, %v3672
        %s3675 = sld [smem:[#allocation2 + $0x45]]
        %v3676 = vstv %s3675
        %v3677 = vmul.f32 %v3654, %v3676
        %v3678 = vmul.f32 %v3651, %v3676
        %v3679 = vadd.f32 %v3645, %v3677
        %v3680 = vadd.f32 %v3646, %v3678
        %s3681 = sld [smem:[#allocation2 + $0x47]]
        %v3682 = vstv %s3681
        %v3683 = vmul.f32 %v3662, %v3682
        %v3684 = vmul.f32 %v3659, %v3682
        %v3685 = vadd.f32 %v3679, %v3683
        %v3686 = vadd.f32 %v3680, %v3684
        %s3687 = sld [smem:[#allocation2 + $0x60]]
        %v3688 = vstv %s3687
        %v3689 = vmul.f32 %v2663, %v3688
        %v3690 = vmul.f32 %v2664, %v3688
        %v3691 = vadd.f32 %v3673, %v3689
        %v3692 = vadd.f32 %v3674, %v3690
        %s3693 = sld [smem:[#allocation2 + $0x62]]
        %v3694 = vstv %s3693
        %v3695 = vmul.f32 %v2693, %v3694
        %v3696 = vmul.f32 %v2694, %v3694
        %v3697 = vadd.f32 %v3691, %v3695
        %v3698 = vadd.f32 %v3692, %v3696
        %s3699 = sld [smem:[#allocation2 + $0x61]]
        %v3700 = vstv %s3699
        %v3701 = vmul.f32 %v2663, %v3700
        %v3702 = vmul.f32 %v2664, %v3700
        %v3703 = vadd.f32 %v3685, %v3701
        %v3704 = vadd.f32 %v3686, %v3702
        %s3705 = sld [smem:[#allocation2 + $0x63]]
        %v3706 = vstv %s3705
        %v3707 = vmul.f32 %v2693, %v3706
        %v3708 = vmul.f32 %v2694, %v3706
        %v3709 = vadd.f32 %v3703, %v3707
        %v3710 = vadd.f32 %v3704, %v3708
        %3711 = vrot.lane.b32.xlu0 %v2663, 112
        %v3712 = vpop.permute.xlu0 %3711
        %3713 = vrot.lane.b32.xlu0 %v2664, 112
        %v3714 = vpop.permute.xlu0 %3713
        %v3715 = vsel %vm1383, %v3712, %v3714
        %v3718 = vsel %vm1383, %v3714, 0.0
        %3719 = vrot.lane.b32.xlu0 %v2693, 112
        %v3720 = vpop.permute.xlu0 %3719
        %3721 = vrot.lane.b32.xlu0 %v2694, 112
        %v3722 = vpop.permute.xlu0 %3721
        %v3723 = vsel %vm1383, %v3720, %v3722
        %v3726 = vsel %vm1383, %v3722, 0.0
        %s3727 = sld [smem:[#allocation2 + $0x7c]]
        %v3728 = vstv %s3727
        %v3729 = vmul.f32 %v3715, %v3728
        %v3730 = vmul.f32 %v3718, %v3728
        %v3731 = vadd.f32 %v3697, %v3729
        %v3732 = vadd.f32 %v3698, %v3730
        %s3733 = sld [smem:[#allocation2 + $0x7e]]
        %v3734 = vstv %s3733
        %v3735 = vmul.f32 %v3723, %v3734
        %v3736 = vmul.f32 %v3726, %v3734
        %v3737 = vadd.f32 %v3731, %v3735
        %v3738 = vadd.f32 %v3732, %v3736
        %s3739 = sld [smem:[#allocation2 + $0x7d]]
        %v3740 = vstv %s3739
        %v3741 = vmul.f32 %v3715, %v3740
        %v3742 = vmul.f32 %v3718, %v3740
        %v3743 = vadd.f32 %v3709, %v3741
        %v3744 = vadd.f32 %v3710, %v3742
        %s3745 = sld [smem:[#allocation2 + $0x7f]]
        %v3746 = vstv %s3745
        %v3747 = vmul.f32 %v3723, %v3746
        %v3748 = vmul.f32 %v3726, %v3746
        %v3749 = vadd.f32 %v3743, %v3747
        %v3750 = vadd.f32 %v3744, %v3748
        %3751 = vrot.lane.b32.xlu0 %v2663, 96
        %v3752 = vpop.permute.xlu0 %3751
        %3753 = vrot.lane.b32.xlu0 %v2664, 96
        %v3754 = vpop.permute.xlu0 %3753
        %v3755 = vsel %vm1400, %v3752, %v3754
        %v3758 = vsel %vm1400, %v3754, 0.0
        %3759 = vrot.lane.b32.xlu0 %v2693, 96
        %v3760 = vpop.permute.xlu0 %3759
        %3761 = vrot.lane.b32.xlu0 %v2694, 96
        %v3762 = vpop.permute.xlu0 %3761
        %v3763 = vsel %vm1400, %v3760, %v3762
        %v3766 = vsel %vm1400, %v3762, 0.0
        %s3767 = sld [smem:[#allocation2 + $0x98]]
        %v3768 = vstv %s3767
        %v3769 = vmul.f32 %v3755, %v3768
        %v3770 = vmul.f32 %v3758, %v3768
        %v3771 = vadd.f32 %v3737, %v3769
        %v3772 = vadd.f32 %v3738, %v3770
        %s3773 = sld [smem:[#allocation2 + $0x9a]]
        %v3774 = vstv %s3773
        %v3775 = vmul.f32 %v3763, %v3774
        %v3776 = vmul.f32 %v3766, %v3774
        %v3777 = vadd.f32 %v3771, %v3775
        %v3778 = vadd.f32 %v3772, %v3776
        %s3779 = sld [smem:[#allocation2 + $0x99]]
        %v3780 = vstv %s3779
        %v3781 = vmul.f32 %v3755, %v3780
        %v3782 = vmul.f32 %v3758, %v3780
        %v3783 = vadd.f32 %v3749, %v3781
        %v3784 = vadd.f32 %v3750, %v3782
        %s3785 = sld [smem:[#allocation2 + $0x9b]]
        %v3786 = vstv %s3785
        %v3787 = vmul.f32 %v3763, %v3786
        %v3788 = vmul.f32 %v3766, %v3786
        %v3789 = vadd.f32 %v3783, %v3787
        %v3790 = vadd.f32 %v3784, %v3788
        %3791 = vrot.lane.b32.xlu0 %v2663, 80
        %v3792 = vpop.permute.xlu0 %3791
        %3793 = vrot.lane.b32.xlu0 %v2664, 80
        %v3794 = vpop.permute.xlu0 %3793
        %v3795 = vsel %vm2139, %v3792, %v3794
        %v3798 = vsel %vm2139, %v3794, 0.0
        %3799 = vrot.lane.b32.xlu0 %v2693, 80
        %v3800 = vpop.permute.xlu0 %3799
        %3801 = vrot.lane.b32.xlu0 %v2694, 80
        %v3802 = vpop.permute.xlu0 %3801
        %v3803 = vsel %vm2139, %v3800, %v3802
        %v3806 = vsel %vm2139, %v3802, 0.0
        %s3807 = sld [smem:[#allocation2 + $0xb4]]
        %v3808 = vstv %s3807
        %v3809 = vmul.f32 %v3795, %v3808
        %v3810 = vmul.f32 %v3798, %v3808
        %v3811 = vadd.f32 %v3777, %v3809
        %v3812 = vadd.f32 %v3778, %v3810
        %s3813 = sld [smem:[#allocation2 + $0xb6]]
        %v3814 = vstv %s3813
        %v3815 = vmul.f32 %v3803, %v3814
        %v3816 = vmul.f32 %v3806, %v3814
        %v3817 = vadd.f32 %v3811, %v3815
        %v3818 = vadd.f32 %v3812, %v3816
        %s3819 = sld [smem:[#allocation2 + $0xb5]]
        %v3820 = vstv %s3819
        %v3821 = vmul.f32 %v3795, %v3820
        %v3822 = vmul.f32 %v3798, %v3820
        %v3823 = vadd.f32 %v3789, %v3821
        %v3824 = vadd.f32 %v3790, %v3822
        %s3825 = sld [smem:[#allocation2 + $0xb7]]
        %v3826 = vstv %s3825
        %v3827 = vmul.f32 %v3803, %v3826
        %v3828 = vmul.f32 %v3806, %v3826
        %v3829 = vadd.f32 %v3823, %v3827
        %v3830 = vadd.f32 %v3824, %v3828
        %v3831 = vsel %vm1417, %v3817, 0.0
        %v3832 = vsel %vm1418, %v3818, 0.0
        %v3833 = vadd.f32 %v3561, %v3831
        %v3834 = vadd.f32 %v3562, %v3832
        %v3835 = vsel %vm1417, %v3829, 0.0
        %v3836 = vsel %vm1418, %v3830, 0.0
        %v3837 = vadd.f32 %v3565, %v3835
        %v3838 = vadd.f32 %v3566, %v3836
        %3839 = vrot.lane.b32.xlu0 %v2663, 47
        %v3840 = vpop.permute.xlu0 %3839
        %3841 = vrot.lane.b32.xlu0 %v2664, 47
        %v3842 = vpop.permute.xlu0 %3841
        %vm3843 = vcmask 384000
        %v3844 = vsel %vm3843, %v3840, %v3842
        %v3847 = vsel %vm3843, 0.0, %v3840
        %3848 = vrot.lane.b32.xlu0 %v2693, 47
        %v3849 = vpop.permute.xlu0 %3848
        %3850 = vrot.lane.b32.xlu0 %v2694, 47
        %v3851 = vpop.permute.xlu0 %3850
        %v3852 = vsel %vm3843, %v3849, %v3851
        %v3855 = vsel %vm3843, 0.0, %v3849
        %s3856 = sld [smem:[#allocation2 + $0x10]]
        %v3857 = vstv %s3856
        %v3858 = vmul.f32 %v3847, %v3857
        %v3859 = vmul.f32 %v3844, %v3857
        %v3860 = vadd.f32 %v3858, 0.0
        %v3861 = vadd.f32 %v3859, 0.0
        %s3862 = sld [smem:[#allocation2 + $0x12]]
        %v3863 = vstv %s3862
        %v3864 = vmul.f32 %v3855, %v3863
        %v3865 = vmul.f32 %v3852, %v3863
        %v3866 = vadd.f32 %v3860, %v3864
        %v3867 = vadd.f32 %v3861, %v3865
        %s3868 = sld [smem:[#allocation2 + $0x11]]
        %v3869 = vstv %s3868
        %v3870 = vmul.f32 %v3847, %v3869
        %v3871 = vmul.f32 %v3844, %v3869
        %v3872 = vadd.f32 %v3870, 0.0
        %v3873 = vadd.f32 %v3871, 0.0
        %s3874 = sld [smem:[#allocation2 + $0x13]]
        %v3875 = vstv %s3874
        %v3876 = vmul.f32 %v3855, %v3875
        %v3877 = vmul.f32 %v3852, %v3875
        %v3878 = vadd.f32 %v3872, %v3876
        %v3879 = vadd.f32 %v3873, %v3877
        %3880 = vrot.lane.b32.xlu0 %v2663, 31
        %v3881 = vpop.permute.xlu0 %3880
        %3882 = vrot.lane.b32.xlu0 %v2664, 31
        %v3883 = vpop.permute.xlu0 %3882
        %v3884 = vsel %vm1431, %v3881, %v3883
        %v3887 = vsel %vm1431, 0.0, %v3881
        %3888 = vrot.lane.b32.xlu0 %v2693, 31
        %v3889 = vpop.permute.xlu0 %3888
        %3890 = vrot.lane.b32.xlu0 %v2694, 31
        %v3891 = vpop.permute.xlu0 %3890
        %v3892 = vsel %vm1431, %v3889, %v3891
        %v3895 = vsel %vm1431, 0.0, %v3889
        %s3896 = sld [smem:[#allocation2 + $0x2c]]
        %v3897 = vstv %s3896
        %v3898 = vmul.f32 %v3887, %v3897
        %v3899 = vmul.f32 %v3884, %v3897
        %v3900 = vadd.f32 %v3866, %v3898
        %v3901 = vadd.f32 %v3867, %v3899
        %s3902 = sld [smem:[#allocation2 + $0x2e]]
        %v3903 = vstv %s3902
        %v3904 = vmul.f32 %v3895, %v3903
        %v3905 = vmul.f32 %v3892, %v3903
        %v3906 = vadd.f32 %v3900, %v3904
        %v3907 = vadd.f32 %v3901, %v3905
        %s3908 = sld [smem:[#allocation2 + $0x2d]]
        %v3909 = vstv %s3908
        %v3910 = vmul.f32 %v3887, %v3909
        %v3911 = vmul.f32 %v3884, %v3909
        %v3912 = vadd.f32 %v3878, %v3910
        %v3913 = vadd.f32 %v3879, %v3911
        %s3914 = sld [smem:[#allocation2 + $0x2f]]
        %v3915 = vstv %s3914
        %v3916 = vmul.f32 %v3895, %v3915
        %v3917 = vmul.f32 %v3892, %v3915
        %v3918 = vadd.f32 %v3912, %v3916
        %v3919 = vadd.f32 %v3913, %v3917
        %3920 = vrot.lane.b32.xlu0 %v2663, 15
        %v3921 = vpop.permute.xlu0 %3920
        %3922 = vrot.lane.b32.xlu0 %v2664, 15
        %v3923 = vpop.permute.xlu0 %3922
        %v3924 = vsel %vm1448, %v3921, %v3923
        %v3927 = vsel %vm1448, 0.0, %v3921
        %3928 = vrot.lane.b32.xlu0 %v2693, 15
        %v3929 = vpop.permute.xlu0 %3928
        %3930 = vrot.lane.b32.xlu0 %v2694, 15
        %v3931 = vpop.permute.xlu0 %3930
        %v3932 = vsel %vm1448, %v3929, %v3931
        %v3935 = vsel %vm1448, 0.0, %v3929
        %s3936 = sld [smem:[#allocation2 + $0x48]]
        %v3937 = vstv %s3936
        %v3938 = vmul.f32 %v3927, %v3937
        %v3939 = vmul.f32 %v3924, %v3937
        %v3940 = vadd.f32 %v3906, %v3938
        %v3941 = vadd.f32 %v3907, %v3939
        %s3942 = sld [smem:[#allocation2 + $0x4a]]
        %v3943 = vstv %s3942
        %v3944 = vmul.f32 %v3935, %v3943
        %v3945 = vmul.f32 %v3932, %v3943
        %v3946 = vadd.f32 %v3940, %v3944
        %v3947 = vadd.f32 %v3941, %v3945
        %s3948 = sld [smem:[#allocation2 + $0x49]]
        %v3949 = vstv %s3948
        %v3950 = vmul.f32 %v3927, %v3949
        %v3951 = vmul.f32 %v3924, %v3949
        %v3952 = vadd.f32 %v3918, %v3950
        %v3953 = vadd.f32 %v3919, %v3951
        %s3954 = sld [smem:[#allocation2 + $0x4b]]
        %v3955 = vstv %s3954
        %v3956 = vmul.f32 %v3935, %v3955
        %v3957 = vmul.f32 %v3932, %v3955
        %v3958 = vadd.f32 %v3952, %v3956
        %v3959 = vadd.f32 %v3953, %v3957
        %3960 = vrot.lane.b32.xlu0 %v2663, 127
        %v3961 = vpop.permute.xlu0 %3960
        %3962 = vrot.lane.b32.xlu0 %v2664, 127
        %v3963 = vpop.permute.xlu0 %3962
        %v3964 = vsel %vm1465, %v3961, %v3963
        %v3967 = vsel %vm1465, %v3963, 0.0
        %3968 = vrot.lane.b32.xlu0 %v2693, 127
        %v3969 = vpop.permute.xlu0 %3968
        %3970 = vrot.lane.b32.xlu0 %v2694, 127
        %v3971 = vpop.permute.xlu0 %3970
        %v3972 = vsel %vm1465, %v3969, %v3971
        %v3975 = vsel %vm1465, %v3971, 0.0
        %s3976 = sld [smem:[#allocation2 + $0x64]]
        %v3977 = vstv %s3976
        %v3978 = vmul.f32 %v3964, %v3977
        %v3979 = vmul.f32 %v3967, %v3977
        %v3980 = vadd.f32 %v3946, %v3978
        %v3981 = vadd.f32 %v3947, %v3979
        %s3982 = sld [smem:[#allocation2 + $0x66]]
        %v3983 = vstv %s3982
        %v3984 = vmul.f32 %v3972, %v3983
        %v3985 = vmul.f32 %v3975, %v3983
        %v3986 = vadd.f32 %v3980, %v3984
        %v3987 = vadd.f32 %v3981, %v3985
        %s3988 = sld [smem:[#allocation2 + $0x65]]
        %v3989 = vstv %s3988
        %v3990 = vmul.f32 %v3964, %v3989
        %v3991 = vmul.f32 %v3967, %v3989
        %v3992 = vadd.f32 %v3958, %v3990
        %v3993 = vadd.f32 %v3959, %v3991
        %s3994 = sld [smem:[#allocation2 + $0x67]]
        %v3995 = vstv %s3994
        %v3996 = vmul.f32 %v3972, %v3995
        %v3997 = vmul.f32 %v3975, %v3995
        %v3998 = vadd.f32 %v3992, %v3996
        %v3999 = vadd.f32 %v3993, %v3997
        %4000 = vrot.lane.b32.xlu0 %v2663, 111
        %v4001 = vpop.permute.xlu0 %4000
        %4002 = vrot.lane.b32.xlu0 %v2664, 111
        %v4003 = vpop.permute.xlu0 %4002
        %v4004 = vsel %vm1482, %v4001, %v4003
        %v4007 = vsel %vm1482, %v4003, 0.0
        %4008 = vrot.lane.b32.xlu0 %v2693, 111
        %v4009 = vpop.permute.xlu0 %4008
        %4010 = vrot.lane.b32.xlu0 %v2694, 111
        %v4011 = vpop.permute.xlu0 %4010
        %v4012 = vsel %vm1482, %v4009, %v4011
        %v4015 = vsel %vm1482, %v4011, 0.0
        %s4016 = sld [smem:[#allocation2 + $0x80]]
        %v4017 = vstv %s4016
        %v4018 = vmul.f32 %v4004, %v4017
        %v4019 = vmul.f32 %v4007, %v4017
        %v4020 = vadd.f32 %v3986, %v4018
        %v4021 = vadd.f32 %v3987, %v4019
        %s4022 = sld [smem:[#allocation2 + $0x82]]
        %v4023 = vstv %s4022
        %v4024 = vmul.f32 %v4012, %v4023
        %v4025 = vmul.f32 %v4015, %v4023
        %v4026 = vadd.f32 %v4020, %v4024
        %v4027 = vadd.f32 %v4021, %v4025
        %s4028 = sld [smem:[#allocation2 + $0x81]]
        %v4029 = vstv %s4028
        %v4030 = vmul.f32 %v4004, %v4029
        %v4031 = vmul.f32 %v4007, %v4029
        %v4032 = vadd.f32 %v3998, %v4030
        %v4033 = vadd.f32 %v3999, %v4031
        %s4034 = sld [smem:[#allocation2 + $0x83]]
        %v4035 = vstv %s4034
        %v4036 = vmul.f32 %v4012, %v4035
        %v4037 = vmul.f32 %v4015, %v4035
        %v4038 = vadd.f32 %v4032, %v4036
        %v4039 = vadd.f32 %v4033, %v4037
        %4040 = vrot.lane.b32.xlu0 %v2663, 95
        %v4041 = vpop.permute.xlu0 %4040
        %4042 = vrot.lane.b32.xlu0 %v2664, 95
        %v4043 = vpop.permute.xlu0 %4042
        %v4044 = vsel %vm1499, %v4041, %v4043
        %v4047 = vsel %vm1499, %v4043, 0.0
        %4048 = vrot.lane.b32.xlu0 %v2693, 95
        %v4049 = vpop.permute.xlu0 %4048
        %4050 = vrot.lane.b32.xlu0 %v2694, 95
        %v4051 = vpop.permute.xlu0 %4050
        %v4052 = vsel %vm1499, %v4049, %v4051
        %v4055 = vsel %vm1499, %v4051, 0.0
        %s4056 = sld [smem:[#allocation2 + $0x9c]]
        %v4057 = vstv %s4056
        %v4058 = vmul.f32 %v4044, %v4057
        %v4059 = vmul.f32 %v4047, %v4057
        %v4060 = vadd.f32 %v4026, %v4058
        %v4061 = vadd.f32 %v4027, %v4059
        %s4062 = sld [smem:[#allocation2 + $0x9e]]
        %v4063 = vstv %s4062
        %v4064 = vmul.f32 %v4052, %v4063
        %v4065 = vmul.f32 %v4055, %v4063
        %v4066 = vadd.f32 %v4060, %v4064
        %v4067 = vadd.f32 %v4061, %v4065
        %s4068 = sld [smem:[#allocation2 + $0x9d]]
        %v4069 = vstv %s4068
        %v4070 = vmul.f32 %v4044, %v4069
        %v4071 = vmul.f32 %v4047, %v4069
        %v4072 = vadd.f32 %v4038, %v4070
        %v4073 = vadd.f32 %v4039, %v4071
        %s4074 = sld [smem:[#allocation2 + $0x9f]]
        %v4075 = vstv %s4074
        %v4076 = vmul.f32 %v4052, %v4075
        %v4077 = vmul.f32 %v4055, %v4075
        %v4078 = vadd.f32 %v4072, %v4076
        %v4079 = vadd.f32 %v4073, %v4077
        %4080 = vrot.lane.b32.xlu0 %v2663, 79
        %v4081 = vpop.permute.xlu0 %4080
        %4082 = vrot.lane.b32.xlu0 %v2664, 79
        %v4083 = vpop.permute.xlu0 %4082
        %vm4084 = vcmask 646144
        %v4085 = vsel %vm4084, %v4081, %v4083
        %v4088 = vsel %vm4084, %v4083, 0.0
        %4089 = vrot.lane.b32.xlu0 %v2693, 79
        %v4090 = vpop.permute.xlu0 %4089
        %4091 = vrot.lane.b32.xlu0 %v2694, 79
        %v4092 = vpop.permute.xlu0 %4091
        %v4093 = vsel %vm4084, %v4090, %v4092
        %v4096 = vsel %vm4084, %v4092, 0.0
        %s4097 = sld [smem:[#allocation2 + $0xb8]]
        %v4098 = vstv %s4097
        %v4099 = vmul.f32 %v4085, %v4098
        %v4100 = vmul.f32 %v4088, %v4098
        %v4101 = vadd.f32 %v4066, %v4099
        %v4102 = vadd.f32 %v4067, %v4100
        %s4103 = sld [smem:[#allocation2 + $0xba]]
        %v4104 = vstv %s4103
        %v4105 = vmul.f32 %v4093, %v4104
        %v4106 = vmul.f32 %v4096, %v4104
        %v4107 = vadd.f32 %v4101, %v4105
        %v4108 = vadd.f32 %v4102, %v4106
        %s4109 = sld [smem:[#allocation2 + $0xb9]]
        %v4110 = vstv %s4109
        %v4111 = vmul.f32 %v4085, %v4110
        %v4112 = vmul.f32 %v4088, %v4110
        %v4113 = vadd.f32 %v4078, %v4111
        %v4114 = vadd.f32 %v4079, %v4112
        %s4115 = sld [smem:[#allocation2 + $0xbb]]
        %v4116 = vstv %s4115
        %v4117 = vmul.f32 %v4093, %v4116
        %v4118 = vmul.f32 %v4096, %v4116
        %v4119 = vadd.f32 %v4113, %v4117
        %v4120 = vadd.f32 %v4114, %v4118
        %v4121 = vsel %vm1518, %v4107, 0.0
        %v4122 = vsel %vm1519, %v4108, 0.0
        %v4123 = vadd.f32 %v3833, %v4121
        %v4124 = vadd.f32 %v3834, %v4122
        %v4125 = vsel %vm1518, %v4119, 0.0
        %v4126 = vsel %vm1519, %v4120, 0.0
        %v4127 = vadd.f32 %v3837, %v4125
        %v4128 = vadd.f32 %v3838, %v4126
        %4129 = vrot.lane.b32.xlu0 %v2663, 46
        %v4130 = vpop.permute.xlu0 %4129
        %4131 = vrot.lane.b32.xlu0 %v2664, 46
        %v4132 = vpop.permute.xlu0 %4131
        %vm4133 = vcmask 375808
        %v4134 = vsel %vm4133, %v4130, %v4132
        %v4137 = vsel %vm4133, 0.0, %v4130
        %4138 = vrot.lane.b32.xlu0 %v2693, 46
        %v4139 = vpop.permute.xlu0 %4138
        %4140 = vrot.lane.b32.xlu0 %v2694, 46
        %v4141 = vpop.permute.xlu0 %4140
        %v4142 = vsel %vm4133, %v4139, %v4141
        %v4145 = vsel %vm4133, 0.0, %v4139
        %s4146 = sld [smem:[#allocation2 + $0x14]]
        %v4147 = vstv %s4146
        %v4148 = vmul.f32 %v4137, %v4147
        %v4149 = vmul.f32 %v4134, %v4147
        %v4150 = vadd.f32 %v4148, 0.0
        %v4151 = vadd.f32 %v4149, 0.0
        %s4152 = sld [smem:[#allocation2 + $0x16]]
        %v4153 = vstv %s4152
        %v4154 = vmul.f32 %v4145, %v4153
        %v4155 = vmul.f32 %v4142, %v4153
        %v4156 = vadd.f32 %v4150, %v4154
        %v4157 = vadd.f32 %v4151, %v4155
        %s4158 = sld [smem:[#allocation2 + $0x15]]
        %v4159 = vstv %s4158
        %v4160 = vmul.f32 %v4137, %v4159
        %v4161 = vmul.f32 %v4134, %v4159
        %v4162 = vadd.f32 %v4160, 0.0
        %v4163 = vadd.f32 %v4161, 0.0
        %s4164 = sld [smem:[#allocation2 + $0x17]]
        %v4165 = vstv %s4164
        %v4166 = vmul.f32 %v4145, %v4165
        %v4167 = vmul.f32 %v4142, %v4165
        %v4168 = vadd.f32 %v4162, %v4166
        %v4169 = vadd.f32 %v4163, %v4167
        %4170 = vrot.lane.b32.xlu0 %v2663, 30
        %v4171 = vpop.permute.xlu0 %4170
        %4172 = vrot.lane.b32.xlu0 %v2664, 30
        %v4173 = vpop.permute.xlu0 %4172
        %v4174 = vsel %vm1532, %v4171, %v4173
        %v4177 = vsel %vm1532, 0.0, %v4171
        %4178 = vrot.lane.b32.xlu0 %v2693, 30
        %v4179 = vpop.permute.xlu0 %4178
        %4180 = vrot.lane.b32.xlu0 %v2694, 30
        %v4181 = vpop.permute.xlu0 %4180
        %v4182 = vsel %vm1532, %v4179, %v4181
        %v4185 = vsel %vm1532, 0.0, %v4179
        %s4186 = sld [smem:[#allocation2 + $0x30]]
        %v4187 = vstv %s4186
        %v4188 = vmul.f32 %v4177, %v4187
        %v4189 = vmul.f32 %v4174, %v4187
        %v4190 = vadd.f32 %v4156, %v4188
        %v4191 = vadd.f32 %v4157, %v4189
        %s4192 = sld [smem:[#allocation2 + $0x32]]
        %v4193 = vstv %s4192
        %v4194 = vmul.f32 %v4185, %v4193
        %v4195 = vmul.f32 %v4182, %v4193
        %v4196 = vadd.f32 %v4190, %v4194
        %v4197 = vadd.f32 %v4191, %v4195
        %s4198 = sld [smem:[#allocation2 + $0x31]]
        %v4199 = vstv %s4198
        %v4200 = vmul.f32 %v4177, %v4199
        %v4201 = vmul.f32 %v4174, %v4199
        %v4202 = vadd.f32 %v4168, %v4200
        %v4203 = vadd.f32 %v4169, %v4201
        %s4204 = sld [smem:[#allocation2 + $0x33]]
        %v4205 = vstv %s4204
        %v4206 = vmul.f32 %v4185, %v4205
        %v4207 = vmul.f32 %v4182, %v4205
        %v4208 = vadd.f32 %v4202, %v4206
        %v4209 = vadd.f32 %v4203, %v4207
        %4210 = vrot.lane.b32.xlu0 %v2663, 14
        %v4211 = vpop.permute.xlu0 %4210
        %4212 = vrot.lane.b32.xlu0 %v2664, 14
        %v4213 = vpop.permute.xlu0 %4212
        %v4214 = vsel %vm1549, %v4211, %v4213
        %v4217 = vsel %vm1549, 0.0, %v4211
        %4218 = vrot.lane.b32.xlu0 %v2693, 14
        %v4219 = vpop.permute.xlu0 %4218
        %4220 = vrot.lane.b32.xlu0 %v2694, 14
        %v4221 = vpop.permute.xlu0 %4220
        %v4222 = vsel %vm1549, %v4219, %v4221
        %v4225 = vsel %vm1549, 0.0, %v4219
        %s4226 = sld [smem:[#allocation2 + $0x4c]]
        %v4227 = vstv %s4226
        %v4228 = vmul.f32 %v4217, %v4227
        %v4229 = vmul.f32 %v4214, %v4227
        %v4230 = vadd.f32 %v4196, %v4228
        %v4231 = vadd.f32 %v4197, %v4229
        %s4232 = sld [smem:[#allocation2 + $0x4e]]
        %v4233 = vstv %s4232
        %v4234 = vmul.f32 %v4225, %v4233
        %v4235 = vmul.f32 %v4222, %v4233
        %v4236 = vadd.f32 %v4230, %v4234
        %v4237 = vadd.f32 %v4231, %v4235
        %s4238 = sld [smem:[#allocation2 + $0x4d]]
        %v4239 = vstv %s4238
        %v4240 = vmul.f32 %v4217, %v4239
        %v4241 = vmul.f32 %v4214, %v4239
        %v4242 = vadd.f32 %v4208, %v4240
        %v4243 = vadd.f32 %v4209, %v4241
        %s4244 = sld [smem:[#allocation2 + $0x4f]]
        %v4245 = vstv %s4244
        %v4246 = vmul.f32 %v4225, %v4245
        %v4247 = vmul.f32 %v4222, %v4245
        %v4248 = vadd.f32 %v4242, %v4246
        %v4249 = vadd.f32 %v4243, %v4247
        %4250 = vrot.lane.b32.xlu0 %v2663, 126
        %v4251 = vpop.permute.xlu0 %4250
        %4252 = vrot.lane.b32.xlu0 %v2664, 126
        %v4253 = vpop.permute.xlu0 %4252
        %v4254 = vsel %vm1566, %v4251, %v4253
        %v4257 = vsel %vm1566, %v4253, 0.0
        %4258 = vrot.lane.b32.xlu0 %v2693, 126
        %v4259 = vpop.permute.xlu0 %4258
        %4260 = vrot.lane.b32.xlu0 %v2694, 126
        %v4261 = vpop.permute.xlu0 %4260
        %v4262 = vsel %vm1566, %v4259, %v4261
        %v4265 = vsel %vm1566, %v4261, 0.0
        %s4266 = sld [smem:[#allocation2 + $0x68]]
        %v4267 = vstv %s4266
        %v4268 = vmul.f32 %v4254, %v4267
        %v4269 = vmul.f32 %v4257, %v4267
        %v4270 = vadd.f32 %v4236, %v4268
        %v4271 = vadd.f32 %v4237, %v4269
        %s4272 = sld [smem:[#allocation2 + $0x6a]]
        %v4273 = vstv %s4272
        %v4274 = vmul.f32 %v4262, %v4273
        %v4275 = vmul.f32 %v4265, %v4273
        %v4276 = vadd.f32 %v4270, %v4274
        %v4277 = vadd.f32 %v4271, %v4275
        %s4278 = sld [smem:[#allocation2 + $0x69]]
        %v4279 = vstv %s4278
        %v4280 = vmul.f32 %v4254, %v4279
        %v4281 = vmul.f32 %v4257, %v4279
        %v4282 = vadd.f32 %v4248, %v4280
        %v4283 = vadd.f32 %v4249, %v4281
        %s4284 = sld [smem:[#allocation2 + $0x6b]]
        %v4285 = vstv %s4284
        %v4286 = vmul.f32 %v4262, %v4285
        %v4287 = vmul.f32 %v4265, %v4285
        %v4288 = vadd.f32 %v4282, %v4286
        %v4289 = vadd.f32 %v4283, %v4287
        %4290 = vrot.lane.b32.xlu0 %v2663, 110
        %v4291 = vpop.permute.xlu0 %4290
        %4292 = vrot.lane.b32.xlu0 %v2664, 110
        %v4293 = vpop.permute.xlu0 %4292
        %v4294 = vsel %vm1583, %v4291, %v4293
        %v4297 = vsel %vm1583, %v4293, 0.0
        %4298 = vrot.lane.b32.xlu0 %v2693, 110
        %v4299 = vpop.permute.xlu0 %4298
        %4300 = vrot.lane.b32.xlu0 %v2694, 110
        %v4301 = vpop.permute.xlu0 %4300
        %v4302 = vsel %vm1583, %v4299, %v4301
        %v4305 = vsel %vm1583, %v4301, 0.0
        %s4306 = sld [smem:[#allocation2 + $0x84]]
        %v4307 = vstv %s4306
        %v4308 = vmul.f32 %v4294, %v4307
        %v4309 = vmul.f32 %v4297, %v4307
        %v4310 = vadd.f32 %v4276, %v4308
        %v4311 = vadd.f32 %v4277, %v4309
        %s4312 = sld [smem:[#allocation2 + $0x86]]
        %v4313 = vstv %s4312
        %v4314 = vmul.f32 %v4302, %v4313
        %v4315 = vmul.f32 %v4305, %v4313
        %v4316 = vadd.f32 %v4310, %v4314
        %v4317 = vadd.f32 %v4311, %v4315
        %s4318 = sld [smem:[#allocation2 + $0x85]]
        %v4319 = vstv %s4318
        %v4320 = vmul.f32 %v4294, %v4319
        %v4321 = vmul.f32 %v4297, %v4319
        %v4322 = vadd.f32 %v4288, %v4320
        %v4323 = vadd.f32 %v4289, %v4321
        %s4324 = sld [smem:[#allocation2 + $0x87]]
        %v4325 = vstv %s4324
        %v4326 = vmul.f32 %v4302, %v4325
        %v4327 = vmul.f32 %v4305, %v4325
        %v4328 = vadd.f32 %v4322, %v4326
        %v4329 = vadd.f32 %v4323, %v4327
        %4330 = vrot.lane.b32.xlu0 %v2663, 94
        %v4331 = vpop.permute.xlu0 %4330
        %4332 = vrot.lane.b32.xlu0 %v2664, 94
        %v4333 = vpop.permute.xlu0 %4332
        %v4334 = vsel %vm1600, %v4331, %v4333
        %v4337 = vsel %vm1600, %v4333, 0.0
        %4338 = vrot.lane.b32.xlu0 %v2693, 94
        %v4339 = vpop.permute.xlu0 %4338
        %4340 = vrot.lane.b32.xlu0 %v2694, 94
        %v4341 = vpop.permute.xlu0 %4340
        %v4342 = vsel %vm1600, %v4339, %v4341
        %v4345 = vsel %vm1600, %v4341, 0.0
        %s4346 = sld [smem:[#allocation2 + $0xa0]]
        %v4347 = vstv %s4346
        %v4348 = vmul.f32 %v4334, %v4347
        %v4349 = vmul.f32 %v4337, %v4347
        %v4350 = vadd.f32 %v4316, %v4348
        %v4351 = vadd.f32 %v4317, %v4349
        %s4352 = sld [smem:[#allocation2 + $0xa2]]
        %v4353 = vstv %s4352
        %v4354 = vmul.f32 %v4342, %v4353
        %v4355 = vmul.f32 %v4345, %v4353
        %v4356 = vadd.f32 %v4350, %v4354
        %v4357 = vadd.f32 %v4351, %v4355
        %s4358 = sld [smem:[#allocation2 + $0xa1]]
        %v4359 = vstv %s4358
        %v4360 = vmul.f32 %v4334, %v4359
        %v4361 = vmul.f32 %v4337, %v4359
        %v4362 = vadd.f32 %v4328, %v4360
        %v4363 = vadd.f32 %v4329, %v4361
        %s4364 = sld [smem:[#allocation2 + $0xa3]]
        %v4365 = vstv %s4364
        %v4366 = vmul.f32 %v4342, %v4365
        %v4367 = vmul.f32 %v4345, %v4365
        %v4368 = vadd.f32 %v4362, %v4366
        %v4369 = vadd.f32 %v4363, %v4367
        %4370 = vrot.lane.b32.xlu0 %v2663, 78
        %v4371 = vpop.permute.xlu0 %4370
        %4372 = vrot.lane.b32.xlu0 %v2664, 78
        %v4373 = vpop.permute.xlu0 %4372
        %vm4374 = vcmask 637952
        %v4375 = vsel %vm4374, %v4371, %v4373
        %v4378 = vsel %vm4374, %v4373, 0.0
        %4379 = vrot.lane.b32.xlu0 %v2693, 78
        %v4380 = vpop.permute.xlu0 %4379
        %4381 = vrot.lane.b32.xlu0 %v2694, 78
        %v4382 = vpop.permute.xlu0 %4381
        %v4383 = vsel %vm4374, %v4380, %v4382
        %v4386 = vsel %vm4374, %v4382, 0.0
        %s4387 = sld [smem:[#allocation2 + $0xbc]]
        %v4388 = vstv %s4387
        %v4389 = vmul.f32 %v4375, %v4388
        %v4390 = vmul.f32 %v4378, %v4388
        %v4391 = vadd.f32 %v4356, %v4389
        %v4392 = vadd.f32 %v4357, %v4390
        %s4393 = sld [smem:[#allocation2 + $0xbe]]
        %v4394 = vstv %s4393
        %v4395 = vmul.f32 %v4383, %v4394
        %v4396 = vmul.f32 %v4386, %v4394
        %v4397 = vadd.f32 %v4391, %v4395
        %v4398 = vadd.f32 %v4392, %v4396
        %s4399 = sld [smem:[#allocation2 + $0xbd]]
        %v4400 = vstv %s4399
        %v4401 = vmul.f32 %v4375, %v4400
        %v4402 = vmul.f32 %v4378, %v4400
        %v4403 = vadd.f32 %v4368, %v4401
        %v4404 = vadd.f32 %v4369, %v4402
        %s4405 = sld [smem:[#allocation2 + $0xbf]]
        %v4406 = vstv %s4405
        %v4407 = vmul.f32 %v4383, %v4406
        %v4408 = vmul.f32 %v4386, %v4406
        %v4409 = vadd.f32 %v4403, %v4407
        %v4410 = vadd.f32 %v4404, %v4408
        %v4411 = vsel %vm1619, %v4397, 0.0
        %v4412 = vsel %vm1620, %v4398, 0.0
        %v4413 = vadd.f32 %v4123, %v4411
        %v4414 = vadd.f32 %v4124, %v4412
        %v4415 = vsel %vm1619, %v4409, 0.0
        %v4416 = vsel %vm1620, %v4410, 0.0
        %v4417 = vadd.f32 %v4127, %v4415
        %v4418 = vadd.f32 %v4128, %v4416
        %4419 = vrot.lane.b32.xlu0 %v2663, 45
        %v4420 = vpop.permute.xlu0 %4419
        %4421 = vrot.lane.b32.xlu0 %v2664, 45
        %v4422 = vpop.permute.xlu0 %4421
        %v4423 = vsel %vm2218, %v4420, %v4422
        %v4426 = vsel %vm2218, 0.0, %v4420
        %4427 = vrot.lane.b32.xlu0 %v2693, 45
        %v4428 = vpop.permute.xlu0 %4427
        %4429 = vrot.lane.b32.xlu0 %v2694, 45
        %v4430 = vpop.permute.xlu0 %4429
        %v4431 = vsel %vm2218, %v4428, %v4430
        %v4434 = vsel %vm2218, 0.0, %v4428
        %s4435 = sld [smem:[#allocation2 + $0x18]]
        %v4436 = vstv %s4435
        %v4437 = vmul.f32 %v4426, %v4436
        %v4438 = vmul.f32 %v4423, %v4436
        %v4439 = vadd.f32 %v4437, 0.0
        %v4440 = vadd.f32 %v4438, 0.0
        %s4441 = sld [smem:[#allocation2 + $0x1a]]
        %v4442 = vstv %s4441
        %v4443 = vmul.f32 %v4434, %v4442
        %v4444 = vmul.f32 %v4431, %v4442
        %v4445 = vadd.f32 %v4439, %v4443
        %v4446 = vadd.f32 %v4440, %v4444
        %s4447 = sld [smem:[#allocation2 + $0x19]]
        %v4448 = vstv %s4447
        %v4449 = vmul.f32 %v4426, %v4448
        %v4450 = vmul.f32 %v4423, %v4448
        %v4451 = vadd.f32 %v4449, 0.0
        %v4452 = vadd.f32 %v4450, 0.0
        %s4453 = sld [smem:[#allocation2 + $0x1b]]
        %v4454 = vstv %s4453
        %v4455 = vmul.f32 %v4434, %v4454
        %v4456 = vmul.f32 %v4431, %v4454
        %v4457 = vadd.f32 %v4451, %v4455
        %v4458 = vadd.f32 %v4452, %v4456
        %4459 = vrot.lane.b32.xlu0 %v2663, 29
        %v4460 = vpop.permute.xlu0 %4459
        %4461 = vrot.lane.b32.xlu0 %v2664, 29
        %v4462 = vpop.permute.xlu0 %4461
        %v4463 = vsel %vm2269, %v4460, %v4462
        %v4466 = vsel %vm2269, 0.0, %v4460
        %4467 = vrot.lane.b32.xlu0 %v2693, 29
        %v4468 = vpop.permute.xlu0 %4467
        %4469 = vrot.lane.b32.xlu0 %v2694, 29
        %v4470 = vpop.permute.xlu0 %4469
        %v4471 = vsel %vm2269, %v4468, %v4470
        %v4474 = vsel %vm2269, 0.0, %v4468
        %s4475 = sld [smem:[#allocation2 + $0x34]]
        %v4476 = vstv %s4475
        %v4477 = vmul.f32 %v4466, %v4476
        %v4478 = vmul.f32 %v4463, %v4476
        %v4479 = vadd.f32 %v4445, %v4477
        %v4480 = vadd.f32 %v4446, %v4478
        %s4481 = sld [smem:[#allocation2 + $0x36]]
        %v4482 = vstv %s4481
        %v4483 = vmul.f32 %v4474, %v4482
        %v4484 = vmul.f32 %v4471, %v4482
        %v4485 = vadd.f32 %v4479, %v4483
        %v4486 = vadd.f32 %v4480, %v4484
        %s4487 = sld [smem:[#allocation2 + $0x35]]
        %v4488 = vstv %s4487
        %v4489 = vmul.f32 %v4466, %v4488
        %v4490 = vmul.f32 %v4463, %v4488
        %v4491 = vadd.f32 %v4457, %v4489
        %v4492 = vadd.f32 %v4458, %v4490
        %s4493 = sld [smem:[#allocation2 + $0x37]]
        %v4494 = vstv %s4493
        %v4495 = vmul.f32 %v4474, %v4494
        %v4496 = vmul.f32 %v4471, %v4494
        %v4497 = vadd.f32 %v4491, %v4495
        %v4498 = vadd.f32 %v4492, %v4496
        %4499 = vrot.lane.b32.xlu0 %v2663, 13
        %v4500 = vpop.permute.xlu0 %4499
        %4501 = vrot.lane.b32.xlu0 %v2664, 13
        %v4502 = vpop.permute.xlu0 %4501
        %v4503 = vsel %vm2187, %v4500, %v4502
        %v4506 = vsel %vm2187, 0.0, %v4500
        %4507 = vrot.lane.b32.xlu0 %v2693, 13
        %v4508 = vpop.permute.xlu0 %4507
        %4509 = vrot.lane.b32.xlu0 %v2694, 13
        %v4510 = vpop.permute.xlu0 %4509
        %v4511 = vsel %vm2187, %v4508, %v4510
        %v4514 = vsel %vm2187, 0.0, %v4508
        %s4515 = sld [smem:[#allocation2 + $0x50]]
        %v4516 = vstv %s4515
        %v4517 = vmul.f32 %v4506, %v4516
        %v4518 = vmul.f32 %v4503, %v4516
        %v4519 = vadd.f32 %v4485, %v4517
        %v4520 = vadd.f32 %v4486, %v4518
        %s4521 = sld [smem:[#allocation2 + $0x52]]
        %v4522 = vstv %s4521
        %v4523 = vmul.f32 %v4514, %v4522
        %v4524 = vmul.f32 %v4511, %v4522
        %v4525 = vadd.f32 %v4519, %v4523
        %v4526 = vadd.f32 %v4520, %v4524
        %s4527 = sld [smem:[#allocation2 + $0x51]]
        %v4528 = vstv %s4527
        %v4529 = vmul.f32 %v4506, %v4528
        %v4530 = vmul.f32 %v4503, %v4528
        %v4531 = vadd.f32 %v4497, %v4529
        %v4532 = vadd.f32 %v4498, %v4530
        %s4533 = sld [smem:[#allocation2 + $0x53]]
        %v4534 = vstv %s4533
        %v4535 = vmul.f32 %v4514, %v4534
        %v4536 = vmul.f32 %v4511, %v4534
        %v4537 = vadd.f32 %v4531, %v4535
        %v4538 = vadd.f32 %v4532, %v4536
        %4539 = vrot.lane.b32.xlu0 %v2663, 125
        %v4540 = vpop.permute.xlu0 %4539
        %4541 = vrot.lane.b32.xlu0 %v2664, 125
        %v4542 = vpop.permute.xlu0 %4541
        %v4543 = vsel %vm2235, %v4540, %v4542
        %v4546 = vsel %vm2235, %v4542, 0.0
        %4547 = vrot.lane.b32.xlu0 %v2693, 125
        %v4548 = vpop.permute.xlu0 %4547
        %4549 = vrot.lane.b32.xlu0 %v2694, 125
        %v4550 = vpop.permute.xlu0 %4549
        %v4551 = vsel %vm2235, %v4548, %v4550
        %v4554 = vsel %vm2235, %v4550, 0.0
        %s4555 = sld [smem:[#allocation2 + $0x6c]]
        %v4556 = vstv %s4555
        %v4557 = vmul.f32 %v4543, %v4556
        %v4558 = vmul.f32 %v4546, %v4556
        %v4559 = vadd.f32 %v4525, %v4557
        %v4560 = vadd.f32 %v4526, %v4558
        %s4561 = sld [smem:[#allocation2 + $0x6e]]
        %v4562 = vstv %s4561
        %v4563 = vmul.f32 %v4551, %v4562
        %v4564 = vmul.f32 %v4554, %v4562
        %v4565 = vadd.f32 %v4559, %v4563
        %v4566 = vadd.f32 %v4560, %v4564
        %s4567 = sld [smem:[#allocation2 + $0x6d]]
        %v4568 = vstv %s4567
        %v4569 = vmul.f32 %v4543, %v4568
        %v4570 = vmul.f32 %v4546, %v4568
        %v4571 = vadd.f32 %v4537, %v4569
        %v4572 = vadd.f32 %v4538, %v4570
        %s4573 = sld [smem:[#allocation2 + $0x6f]]
        %v4574 = vstv %s4573
        %v4575 = vmul.f32 %v4551, %v4574
        %v4576 = vmul.f32 %v4554, %v4574
        %v4577 = vadd.f32 %v4571, %v4575
        %v4578 = vadd.f32 %v4572, %v4576
        %4579 = vrot.lane.b32.xlu0 %v2663, 109
        %v4580 = vpop.permute.xlu0 %4579
        %4581 = vrot.lane.b32.xlu0 %v2664, 109
        %v4582 = vpop.permute.xlu0 %4581
        %v4583 = vsel %vm2285, %v4580, %v4582
        %v4586 = vsel %vm2285, %v4582, 0.0
        %4587 = vrot.lane.b32.xlu0 %v2693, 109
        %v4588 = vpop.permute.xlu0 %4587
        %4589 = vrot.lane.b32.xlu0 %v2694, 109
        %v4590 = vpop.permute.xlu0 %4589
        %v4591 = vsel %vm2285, %v4588, %v4590
        %v4594 = vsel %vm2285, %v4590, 0.0
        %s4595 = sld [smem:[#allocation2 + $0x88]]
        %v4596 = vstv %s4595
        %v4597 = vmul.f32 %v4583, %v4596
        %v4598 = vmul.f32 %v4586, %v4596
        %v4599 = vadd.f32 %v4565, %v4597
        %v4600 = vadd.f32 %v4566, %v4598
        %s4601 = sld [smem:[#allocation2 + $0x8a]]
        %v4602 = vstv %s4601
        %v4603 = vmul.f32 %v4591, %v4602
        %v4604 = vmul.f32 %v4594, %v4602
        %v4605 = vadd.f32 %v4599, %v4603
        %v4606 = vadd.f32 %v4600, %v4604
        %s4607 = sld [smem:[#allocation2 + $0x89]]
        %v4608 = vstv %s4607
        %v4609 = vmul.f32 %v4583, %v4608
        %v4610 = vmul.f32 %v4586, %v4608
        %v4611 = vadd.f32 %v4577, %v4609
        %v4612 = vadd.f32 %v4578, %v4610
        %s4613 = sld [smem:[#allocation2 + $0x8b]]
        %v4614 = vstv %s4613
        %v4615 = vmul.f32 %v4591, %v4614
        %v4616 = vmul.f32 %v4594, %v4614
        %v4617 = vadd.f32 %v4611, %v4615
        %v4618 = vadd.f32 %v4612, %v4616
        %4619 = vrot.lane.b32.xlu0 %v2663, 93
        %v4620 = vpop.permute.xlu0 %4619
        %4621 = vrot.lane.b32.xlu0 %v2664, 93
        %v4622 = vpop.permute.xlu0 %4621
        %v4623 = vsel %vm2201, %v4620, %v4622
        %v4626 = vsel %vm2201, %v4622, 0.0
        %4627 = vrot.lane.b32.xlu0 %v2693, 93
        %v4628 = vpop.permute.xlu0 %4627
        %4629 = vrot.lane.b32.xlu0 %v2694, 93
        %v4630 = vpop.permute.xlu0 %4629
        %v4631 = vsel %vm2201, %v4628, %v4630
        %v4634 = vsel %vm2201, %v4630, 0.0
        %s4635 = sld [smem:[#allocation2 + $0xa4]]
        %v4636 = vstv %s4635
        %v4637 = vmul.f32 %v4623, %v4636
        %v4638 = vmul.f32 %v4626, %v4636
        %v4639 = vadd.f32 %v4605, %v4637
        %v4640 = vadd.f32 %v4606, %v4638
        %s4641 = sld [smem:[#allocation2 + $0xa6]]
        %v4642 = vstv %s4641
        %v4643 = vmul.f32 %v4631, %v4642
        %v4644 = vmul.f32 %v4634, %v4642
        %v4645 = vadd.f32 %v4639, %v4643
        %v4646 = vadd.f32 %v4640, %v4644
        %s4647 = sld [smem:[#allocation2 + $0xa5]]
        %v4648 = vstv %s4647
        %v4649 = vmul.f32 %v4623, %v4648
        %v4650 = vmul.f32 %v4626, %v4648
        %v4651 = vadd.f32 %v4617, %v4649
        %v4652 = vadd.f32 %v4618, %v4650
        %s4653 = sld [smem:[#allocation2 + $0xa7]]
        %v4654 = vstv %s4653
        %v4655 = vmul.f32 %v4631, %v4654
        %v4656 = vmul.f32 %v4634, %v4654
        %v4657 = vadd.f32 %v4651, %v4655
        %v4658 = vadd.f32 %v4652, %v4656
        %4659 = vrot.lane.b32.xlu0 %v2663, 77
        %v4660 = vpop.permute.xlu0 %4659
        %4661 = vrot.lane.b32.xlu0 %v2664, 77
        %v4662 = vpop.permute.xlu0 %4661
        %v4663 = vsel %vm2252, %v4660, %v4662
        %v4666 = vsel %vm2252, %v4662, 0.0
        %4667 = vrot.lane.b32.xlu0 %v2693, 77
        %v4668 = vpop.permute.xlu0 %4667
        %4669 = vrot.lane.b32.xlu0 %v2694, 77
        %v4670 = vpop.permute.xlu0 %4669
        %v4671 = vsel %vm2252, %v4668, %v4670
        %v4674 = vsel %vm2252, %v4670, 0.0
        %s4675 = sld [smem:[#allocation2 + $0xc0]]
        %v4676 = vstv %s4675
        %v4677 = vmul.f32 %v4663, %v4676
        %v4678 = vmul.f32 %v4666, %v4676
        %v4679 = vadd.f32 %v4645, %v4677
        %v4680 = vadd.f32 %v4646, %v4678
        %s4681 = sld [smem:[#allocation2 + $0xc2]]
        %v4682 = vstv %s4681
        %v4683 = vmul.f32 %v4671, %v4682
        %v4684 = vmul.f32 %v4674, %v4682
        %v4685 = vadd.f32 %v4679, %v4683
        %v4686 = vadd.f32 %v4680, %v4684
        %s4687 = sld [smem:[#allocation2 + $0xc1]]
        %v4688 = vstv %s4687
        %v4689 = vmul.f32 %v4663, %v4688
        %v4690 = vmul.f32 %v4666, %v4688
        %v4691 = vadd.f32 %v4657, %v4689
        %v4692 = vadd.f32 %v4658, %v4690
        %s4693 = sld [smem:[#allocation2 + $0xc3]]
        %v4694 = vstv %s4693
        %v4695 = vmul.f32 %v4671, %v4694
        %v4696 = vmul.f32 %v4674, %v4694
        %v4697 = vadd.f32 %v4691, %v4695
        %v4698 = vadd.f32 %v4692, %v4696
        %v4699 = vsel %vm2301, %v4685, 0.0
        %v4700 = vsel %vm2302, %v4686, 0.0
        %v4701 = vadd.f32 %v4413, %v4699
        %v4702 = vadd.f32 %v4414, %v4700
        %v4703 = vsel %vm2301, %v4697, 0.0
        %v4704 = vsel %vm2302, %v4698, 0.0
        %v4705 = vadd.f32 %v4417, %v4703
        %v4706 = vadd.f32 %v4418, %v4704
        %s4707 = sld [smem:[#allocation4]]
        %v4708 = vstv %s4707
        %v4709 = vadd.f32 %v4701, %v4708
        %v4710 = vadd.f32 %v4702, %v4708
        %v4711 = vand.u32 2147483647, %v4709
        %v4712 = vand.u32 2147483647, %v4710
        %v4713 = vsub.f32 0.0, %v4711
        %v4714 = vsub.f32 0.0, %v4712
        %v4715 = vmul.f32 %v4713, 1.442695
        %v4716 = vpow.pop %v4715
        %v4717 = vmul.f32 %v4714, 1.442695
        %v4718 = vpow.pop %v4717
        %vm4719 = vcmp.ge.f32.partialorder %v4709, 0.0
        %vm4720 = vcmp.ge.f32.partialorder %v4710, 0.0
        %v4721 = vadd.f32 %v4716, 1.0
        %v4722 = vadd.f32 %v4718, 1.0
        %v4723 = vrcp.pop %v4721
        %v4724 = vmul.f32 1.0, %v4723
        %v4725 = vrcp.pop %v4722
        %v4726 = vmul.f32 1.0, %v4725
        %v4727 = vmul.f32 %v4716, %v4723
        %v4728 = vmul.f32 %v4718, %v4725
        %v4729 = vsel %vm4719, %v4724, %v4727
        %v4730 = vsel %vm4720, %v4726, %v4728
        %s4731 = sld [smem:[#allocation4 + $0x1]]
        %v4732 = vstv %s4731
        %v4733 = vadd.f32 %v4705, %v4732
        %v4734 = vadd.f32 %v4706, %v4732
        %v4735 = vand.u32 2147483647, %v4733
        %v4736 = vand.u32 2147483647, %v4734
        %v4737 = vsub.f32 0.0, %v4735
        %v4738 = vsub.f32 0.0, %v4736
        %v4739 = vmul.f32 %v4737, 1.442695
        %v4740 = vpow.pop %v4739
        %v4741 = vmul.f32 %v4738, 1.442695
        %v4742 = vpow.pop %v4741
        %vm4743 = vcmp.ge.f32.partialorder %v4733, 0.0
        %vm4744 = vcmp.ge.f32.partialorder %v4734, 0.0
        %v4745 = vadd.f32 %v4740, 1.0
        %v4746 = vadd.f32 %v4742, 1.0
        %v4747 = vrcp.pop %v4745
        %v4748 = vmul.f32 1.0, %v4747
        %v4749 = vrcp.pop %v4746
        %v4750 = vmul.f32 1.0, %v4749
        %v4751 = vmul.f32 %v4740, %v4747
        %v4752 = vmul.f32 %v4742, %v4749
        %v4753 = vsel %vm4743, %v4748, %v4751
        %v4754 = vsel %vm4744, %v4750, %v4752
        %v4755 = vlaneseq
        %v4756 = vshrl.u32 %v4755, 7
        %v4757 = vsub.s32 0, %v4756
        %v4758 = vrot.slane %v4729, %v4757
        %v4759 = vlaneseq
        %v4760 = vshrl.u32 %v4759, 7
        %v4761 = vsub.s32 0, %v4760
        %v4762 = vrot.slane %v4730, %v4761
        %v4763 = vmul.f32 %v1691, %v4758
        %v4764 = vmul.f32 %v1693, %v4762
        %v4765 = vlaneseq
        %v4766 = vshrl.u32 %v4765, 7
        %v4767 = vsub.s32 0, %v4766
        %v4768 = vrot.slane %v4753, %v4767
        %v4769 = vlaneseq
        %v4770 = vshrl.u32 %v4769, 7
        %v4771 = vsub.s32 0, %v4770
        %v4772 = vrot.slane %v4754, %v4771
        %v4773 = vmul.f32 %v2627, %v4768
        %v4774 = vmul.f32 %v2629, %v4772
        %v4775 = vadd.f32 %v4763, %v4773
        %v4776 = vadd.f32 %v4764, %v4774
        %v4777 = vld [vmem:[%s31] sm:$0xff]
        %v4778 = vpack.c.bf16 %v4777, %v4777
        %v4779 = vpack.c.bf16 %v4775, %v4775
        %v4780 = vpack.c.bf16 %v4776, %v4776
        %v4781 = vld [vmem:[%s33] sm:$0xff]
        %4783 = vset.pattern.permute.xlu0 0
        %4784 = vperm.xlu0 %4783, %v4781
        %v4785 = vpop.permute.xlu0 %4784
        %vm4787 = vcmask 31744
        %v4789 = vsel %vm4787, %v4778, 0
        %vm4791 = vcmask 1041408
        %v4793 = vsel %vm4791, %v4779, 0
        %v4796 = vsel %vm4791, %v4780, 0
        %4798 = vmatprep.subr.bf16.mxu0 0
        %4799 = vmatpush1.bf16.msra.mxu0 0
        %4800 = vmatprep.subr.bf16.mxu0 0
        %4801 = vmatpush1.bf16.msra.mxu0 0
        %4802 = vmatprep.subr.bf16.mxu0 0
        %4803 = vmatpush1.bf16.msra.mxu0 0
        %4804 = vmatprep.subr.bf16.mxu0 0
        %4805 = vmatpush1.bf16.msra.mxu0 0
        %4806 = vmatprep.subr.bf16.mxu0 0
        %4807 = vmatpush1.bf16.msra.mxu0 0
        %4808 = vmatprep.subr.bf16.mxu0 0
        %4809 = vmatpush1.bf16.msra.mxu0 0
        %4810 = vmatprep.subr.bf16.mxu0 0
        %4811 = vmatpush1.bf16.msra.mxu0 0
        %4812 = vmatprep.subr.bf16.mxu0 %v4796
        %4813 = vmatpush1.bf16.msra.mxu0 %v4793
        %4814 = vmatprep.subr.bf16.mxu0 0
        %4815 = vmatpush2.bf16.msra.mxu0 0
        %4816 = vmatprep.subr.bf16.mxu0 0
        %4817 = vmatpush2.bf16.msra.mxu0 0
        %4818 = vmatprep.subr.bf16.mxu0 0
        %4819 = vmatpush2.bf16.msra.mxu0 0
        %4820 = vmatprep.subr.bf16.mxu0 0
        %4821 = vmatpush2.bf16.msra.mxu0 0
        %4822 = vmatprep.subr.bf16.mxu0 0
        %4823 = vmatpush2.bf16.msra.mxu0 0
        %4824 = vmatprep.subr.bf16.mxu0 0
        %4825 = vmatpush2.bf16.msra.mxu0 0
        %4826 = vmatprep.subr.bf16.mxu0 0
        %4827 = vmatpush2.bf16.msra.mxu0 0
        %4828 = vmatprep.subr.bf16.mxu0 0
        %4829 = vmatpush2.bf16.msra.mxu0 0
        %4830 = vmatprep.mubr.bf16.mxu0 0
        %4831 = vmatmul.mubr.bf16.gmra.mxu0 %v4789
        %v4832 = vpop.f32.mrf.mxu0
        %v4833 = vadd.f32 %v4785, %v4832
        %v4834 = vpop.f32.mrf.mxu0
        %v4835 = vadd.f32 %v4785, %v4834
        %v4836 = vpop.f32.mrf.mxu0
        %v4837 = vpop.f32.mrf.mxu0
        %4838 = vdwg.mxu0
        %v4839 = vld [vmem:[%s35] sm:$0xff]
        %v4840 = vpack.c.bf16 %v4839, %v4839
        %v4841 = vpack.c.bf16 %v4833, %v4833
        %v4842 = vpack.c.bf16 %v4835, %v4835
        %v4843 = vld [vmem:[%s37] sm:$0xff]
        %4845 = vset.pattern.permute.xlu0 0
        %4846 = vperm.xlu0 %4845, %v4843
        %v4847 = vpop.permute.xlu0 %4846
        %v4850 = vsel %vm1025, %v4840, 0
        %v4853 = vsel %vm1029, %v4841, 0
        %v4856 = vsel %vm1029, %v4842, 0
        %4858 = vmatprep.subr.bf16.mxu0 0
        %4859 = vmatpush1.bf16.msra.mxu0 0
        %4860 = vmatprep.subr.bf16.mxu0 0
        %4861 = vmatpush1.bf16.msra.mxu0 0
        %4862 = vmatprep.subr.bf16.mxu0 0
        %4863 = vmatpush1.bf16.msra.mxu0 0
        %4864 = vmatprep.subr.bf16.mxu0 0
        %4865 = vmatpush1.bf16.msra.mxu0 0
        %4866 = vmatprep.subr.bf16.mxu0 0
        %4867 = vmatpush1.bf16.msra.mxu0 0
        %4868 = vmatprep.subr.bf16.mxu0 0
        %4869 = vmatpush1.bf16.msra.mxu0 0
        %4870 = vmatprep.subr.bf16.mxu0 0
        %4871 = vmatpush1.bf16.msra.mxu0 0
        %4872 = vmatprep.subr.bf16.mxu0 %v4856
        %4873 = vmatpush1.bf16.msra.mxu0 %v4853
        %4874 = vmatprep.subr.bf16.mxu0 0
        %4875 = vmatpush2.bf16.msra.mxu0 0
        %4876 = vmatprep.subr.bf16.mxu0 0
        %4877 = vmatpush2.bf16.msra.mxu0 0
        %4878 = vmatprep.subr.bf16.mxu0 0
        %4879 = vmatpush2.bf16.msra.mxu0 0
        %4880 = vmatprep.subr.bf16.mxu0 0
        %4881 = vmatpush2.bf16.msra.mxu0 0
        %4882 = vmatprep.subr.bf16.mxu0 0
        %4883 = vmatpush2.bf16.msra.mxu0 0
        %4884 = vmatprep.subr.bf16.mxu0 0
        %4885 = vmatpush2.bf16.msra.mxu0 0
        %4886 = vmatprep.subr.bf16.mxu0 0
        %4887 = vmatpush2.bf16.msra.mxu0 0
        %4888 = vmatprep.subr.bf16.mxu0 0
        %4889 = vmatpush2.bf16.msra.mxu0 0
        %4890 = vmatprep.mubr.bf16.mxu0 0
        %4891 = vmatmul.mubr.bf16.gmra.mxu0 %v4850
        %v4892 = vpop.f32.mrf.mxu0
        %v4893 = vadd.f32 %v4847, %v4892
        %v4894 = vpop.f32.mrf.mxu0
        %v4895 = vadd.f32 %v4847, %v4894
        %v4896 = vpop.f32.mrf.mxu0
        %v4897 = vpop.f32.mrf.mxu0
        %4898 = vdwg.mxu0
        %v4899 = vld [vmem:[%s39] sm:$0xff]
        %4901 = vset.pattern.permute.xlu0 0
        %4902 = vperm.xlu0 %4901, %v4899
        %v4903 = vpop.permute.xlu0 %4902
        %v4905 = vmul.f32 %v4893, %v4903
        %v4906 = vmul.f32 %v4895, %v4903
        %v4907 = vadd.f32 %v4905, %v931
        %v4908 = vadd.f32 %v4906, %v932
        %v4909 = vld [vmem:[%s41] sm:$0xff]
        %v4910 = vld [vmem:[%s43] sm:$0xff]
        %v4911 = vrot.slane %v4907, 4
        %v4912 = vadd.f32 %v4907, %v4911
        %v4913 = vrot.slane %v4912, 2
        %v4914 = vadd.f32 %v4912, %v4913
        %v4915 = vrot.slane %v4914, 1
        %v4916 = vadd.f32 %v4914, %v4915
        %v4917 = vrot.slane %v4908, 4
        %v4918 = vadd.f32 %v4908, %v4917
        %v4919 = vrot.slane %v4918, 2
        %v4920 = vadd.f32 %v4918, %v4919
        %v4921 = vrot.slane %v4920, 1
        %v4922 = vadd.f32 %v4920, %v4921
        %v4923 = vmul.f32 %v4916, %v974
        %v4924 = vmul.f32 %v4922, %v974
        %v4925 = vsub.f32 %v4907, %v4923
        %v4926 = vsub.f32 %v4908, %v4924
        %v4927 = vmul.f32 %v4925, %v4925
        %v4928 = vmul.f32 %v4926, %v4926
        %v4929 = vrot.slane %v4927, 4
        %v4930 = vadd.f32 %v4927, %v4929
        %v4931 = vrot.slane %v4930, 2
        %v4932 = vadd.f32 %v4930, %v4931
        %v4933 = vrot.slane %v4932, 1
        %v4934 = vadd.f32 %v4932, %v4933
        %v4935 = vrot.slane %v4928, 4
        %v4936 = vadd.f32 %v4928, %v4935
        %v4937 = vrot.slane %v4936, 2
        %v4938 = vadd.f32 %v4936, %v4937
        %v4939 = vrot.slane %v4938, 1
        %v4940 = vadd.f32 %v4938, %v4939
        %v4941 = vmul.f32 %v4934, %v974
        %v4942 = vmul.f32 %v4940, %v974
        %v4943 = vadd.f32 %v4941, 1e-06
        %v4944 = vadd.f32 %v4942, 1e-06
        %v4945 = vrsqrt.pop %v4943
        %v4946 = vrsqrt.pop %v4944
        %v4947 = vmul.f32 %v4925, %v4945
        %v4948 = vmul.f32 %v4926, %v4946
        %4950 = vset.pattern.permute.xlu0 0
        %4951 = vperm.xlu0 %4950, %v4909
        %v4952 = vpop.permute.xlu0 %4951
        %v4954 = vmul.f32 %v4947, %v4952
        %v4955 = vmul.f32 %v4948, %v4952
        %4957 = vset.pattern.permute.xlu0 0
        %4958 = vperm.xlu0 %4957, %v4910
        %v4959 = vpop.permute.xlu0 %4958
        %v4961 = vadd.f32 %v4954, %v4959
        %v4962 = vadd.f32 %v4955, %v4959
        %v4963 = vld [vmem:[%s45] sm:$0xff]
        %v4964 = vpack.c.bf16 %v4963, %v4963
        %v4965 = vpack.c.bf16 %v4961, %v4961
        %v4966 = vpack.c.bf16 %v4962, %v4962
        %v4968 = vsel %vm1025, %v4964, 0
        %v4971 = vsel %vm1029, %v4965, 0
        %v4974 = vsel %vm1029, %v4966, 0
        %4976 = vmatprep.subr.bf16.mxu0 0
        %4977 = vmatpush1.bf16.msra.mxu0 0
        %4978 = vmatprep.subr.bf16.mxu0 0
        %4979 = vmatpush1.bf16.msra.mxu0 0
        %4980 = vmatprep.subr.bf16.mxu0 0
        %4981 = vmatpush1.bf16.msra.mxu0 0
        %4982 = vmatprep.subr.bf16.mxu0 0
        %4983 = vmatpush1.bf16.msra.mxu0 0
        %4984 = vmatprep.subr.bf16.mxu0 0
        %4985 = vmatpush1.bf16.msra.mxu0 0
        %4986 = vmatprep.subr.bf16.mxu0 0
        %4987 = vmatpush1.bf16.msra.mxu0 0
        %4988 = vmatprep.subr.bf16.mxu0 0
        %4989 = vmatpush1.bf16.msra.mxu0 0
        %4990 = vmatprep.subr.bf16.mxu0 %v4974
        %4991 = vmatpush1.bf16.msra.mxu0 %v4971
        %4992 = vmatprep.subr.bf16.mxu0 0
        %4993 = vmatpush2.bf16.msra.mxu0 0
        %4994 = vmatprep.subr.bf16.mxu0 0
        %4995 = vmatpush2.bf16.msra.mxu0 0
        %4996 = vmatprep.subr.bf16.mxu0 0
        %4997 = vmatpush2.bf16.msra.mxu0 0
        %4998 = vmatprep.subr.bf16.mxu0 0
        %4999 = vmatpush2.bf16.msra.mxu0 0
        %5000 = vmatprep.subr.bf16.mxu0 0
        %5001 = vmatpush2.bf16.msra.mxu0 0
        %5002 = vmatprep.subr.bf16.mxu0 0
        %5003 = vmatpush2.bf16.msra.mxu0 0
        %5004 = vmatprep.subr.bf16.mxu0 0
        %5005 = vmatpush2.bf16.msra.mxu0 0
        %5006 = vmatprep.subr.bf16.mxu0 0
        %5007 = vmatpush2.bf16.msra.mxu0 0
        %5008 = vmatprep.mubr.bf16.mxu0 0
        %5009 = vmatmul.mubr.bf16.gmra.mxu0 %v4968
        %v5010 = vpop.f32.mrf.mxu0
        %v5011 = vadd.f32 0.0, %v5010
        %v5012 = vpop.f32.mrf.mxu0
        %v5013 = vadd.f32 0.0, %v5012
        %v5014 = vpop.f32.mrf.mxu0
        %v5015 = vpop.f32.mrf.mxu0
        %5016 = vdwg.mxu0
        %s5017 = scalar_lea.vmem %s45, 8
        %v5018 = vld [vmem:[%s5017] sm:$0xff]
        %v5019 = vpack.c.bf16 %v5018, %v5018
        %s5020 = scalar_lea.vmem %s45, 16
        %v5021 = vld [vmem:[%s5020] sm:$0xff]
        %v5022 = vpack.c.bf16 %v5021, %v5021
        %v5024 = vsel %vm1025, %v5022, 0
        %5026 = vmatprep.subr.bf16.mxu0 0
        %5027 = vmatpush1.bf16.msra.mxu0 0
        %5028 = vmatprep.subr.bf16.mxu0 0
        %5029 = vmatpush1.bf16.msra.mxu0 0
        %5030 = vmatprep.subr.bf16.mxu0 0
        %5031 = vmatpush1.bf16.msra.mxu0 0
        %5032 = vmatprep.subr.bf16.mxu0 0
        %5033 = vmatpush1.bf16.msra.mxu0 0
        %5034 = vmatprep.subr.bf16.mxu0 0
        %5035 = vmatpush1.bf16.msra.mxu0 0
        %5036 = vmatprep.subr.bf16.mxu0 0
        %5037 = vmatpush1.bf16.msra.mxu0 0
        %5038 = vmatprep.subr.bf16.mxu0 0
        %5039 = vmatpush1.bf16.msra.mxu0 0
        %5040 = vmatprep.subr.bf16.mxu0 %v4974
        %5041 = vmatpush1.bf16.msra.mxu0 %v4971
        %5042 = vmatprep.subr.bf16.mxu0 0
        %5043 = vmatpush2.bf16.msra.mxu0 0
        %5044 = vmatprep.subr.bf16.mxu0 0
        %5045 = vmatpush2.bf16.msra.mxu0 0
        %5046 = vmatprep.subr.bf16.mxu0 0
        %5047 = vmatpush2.bf16.msra.mxu0 0
        %5048 = vmatprep.subr.bf16.mxu0 0
        %5049 = vmatpush2.bf16.msra.mxu0 0
        %5050 = vmatprep.subr.bf16.mxu0 0
        %5051 = vmatpush2.bf16.msra.mxu0 0
        %5052 = vmatprep.subr.bf16.mxu0 0
        %5053 = vmatpush2.bf16.msra.mxu0 0
        %5054 = vmatprep.subr.bf16.mxu0 0
        %5055 = vmatpush2.bf16.msra.mxu0 0
        %5056 = vmatprep.subr.bf16.mxu0 0
        %5057 = vmatpush2.bf16.msra.mxu0 0
        %5058 = vmatprep.mubr.bf16.mxu0 0
        %5059 = vmatmul.mubr.bf16.gmra.mxu0 %v5024
        %v5060 = vpop.f32.mrf.mxu0
        %v5061 = vadd.f32 0.0, %v5060
        %v5062 = vpop.f32.mrf.mxu0
        %v5063 = vadd.f32 0.0, %v5062
        %v5064 = vpop.f32.mrf.mxu0
        %v5065 = vpop.f32.mrf.mxu0
        %5066 = vdwg.mxu0
        %vm5067 = vcmp.ge.s32.totalorder %v958, 1
        %vm5068 = vcmp.ge.s32.totalorder %v959, 1
        %5071 = vrot.lane.b32.xlu0 %v5011, 1
        %v5072 = vpop.permute.xlu0 %5071
        %5073 = vrot.lane.b32.xlu0 %v5013, 1
        %v5074 = vpop.permute.xlu0 %5073
        %v5075 = vsel %vm1274, %v5072, %v5074
        %v5078 = vsel %vm1274, 0.0, %v5072
        %v5079 = vsel %vm5067, 1, 0
        %v5080 = vsel %vm5068, 1, 0
        %vm5081 = vcmp.eq.s32.totalorder %v5079, 1
        %vm5082 = vcmp.eq.s32.totalorder %v5080, 1
        %v5083 = vsel %vm5081, %v5078, 0.0
        %v5084 = vsel %vm5082, %v5075, 0.0
        %v5086 = vsel %vm1025, %v5019, 0
        %5088 = vmatprep.subr.bf16.mxu0 0
        %5089 = vmatpush1.bf16.msra.mxu0 0
        %5090 = vmatprep.subr.bf16.mxu0 0
        %5091 = vmatpush1.bf16.msra.mxu0 0
        %5092 = vmatprep.subr.bf16.mxu0 0
        %5093 = vmatpush1.bf16.msra.mxu0 0
        %5094 = vmatprep.subr.bf16.mxu0 0
        %5095 = vmatpush1.bf16.msra.mxu0 0
        %5096 = vmatprep.subr.bf16.mxu0 0
        %5097 = vmatpush1.bf16.msra.mxu0 0
        %5098 = vmatprep.subr.bf16.mxu0 0
        %5099 = vmatpush1.bf16.msra.mxu0 0
        %5100 = vmatprep.subr.bf16.mxu0 0
        %5101 = vmatpush1.bf16.msra.mxu0 0
        %5102 = vmatprep.subr.bf16.mxu0 %v4974
        %5103 = vmatpush1.bf16.msra.mxu0 %v4971
        %5104 = vmatprep.subr.bf16.mxu0 0
        %5105 = vmatpush2.bf16.msra.mxu0 0
        %5106 = vmatprep.subr.bf16.mxu0 0
        %5107 = vmatpush2.bf16.msra.mxu0 0
        %5108 = vmatprep.subr.bf16.mxu0 0
        %5109 = vmatpush2.bf16.msra.mxu0 0
        %5110 = vmatprep.subr.bf16.mxu0 0
        %5111 = vmatpush2.bf16.msra.mxu0 0
        %5112 = vmatprep.subr.bf16.mxu0 0
        %5113 = vmatpush2.bf16.msra.mxu0 0
        %5114 = vmatprep.subr.bf16.mxu0 0
        %5115 = vmatpush2.bf16.msra.mxu0 0
        %5116 = vmatprep.subr.bf16.mxu0 0
        %5117 = vmatpush2.bf16.msra.mxu0 0
        %5118 = vmatprep.subr.bf16.mxu0 0
        %5119 = vmatpush2.bf16.msra.mxu0 0
        %5120 = vmatprep.mubr.bf16.mxu0 0
        %5121 = vmatmul.mubr.bf16.gmra.mxu0 %v5086
        %v5122 = vpop.f32.mrf.mxu0
        %v5123 = vadd.f32 %v5083, %v5122
        %v5124 = vpop.f32.mrf.mxu0
        %v5125 = vadd.f32 %v5084, %v5124
        %v5126 = vpop.f32.mrf.mxu0
        %v5127 = vpop.f32.mrf.mxu0
        %5128 = vdwg.mxu0
        %vm5129 = vcmp.le.s32.totalorder %v958, 14
        %vm5130 = vcmp.le.s32.totalorder %v959, 14
        %5133 = vrot.lane.b32.xlu0 %v5061, 127
        %v5134 = vpop.permute.xlu0 %5133
        %5135 = vrot.lane.b32.xlu0 %v5063, 127
        %v5136 = vpop.permute.xlu0 %5135
        %v5137 = vsel %vm1465, %v5134, %v5136
        %v5140 = vsel %vm1465, %v5136, 0.0
        %v5141 = vsel %vm5129, 1, 0
        %v5142 = vsel %vm5130, 1, 0
        %vm5143 = vcmp.eq.s32.totalorder %v5141, 1
        %vm5144 = vcmp.eq.s32.totalorder %v5142, 1
        %v5145 = vsel %vm5143, %v5137, 0.0
        %v5146 = vsel %vm5144, %v5140, 0.0
        %v5147 = vadd.f32 %v5123, %v5145
        %v5148 = vadd.f32 %v5125, %v5146
        %v5149 = vld [vmem:[%s47] sm:$0xff]
        %5151 = vset.pattern.permute.xlu0 0
        %5152 = vperm.xlu0 %5151, %v5149
        %v5153 = vpop.permute.xlu0 %5152
        %v5155 = vadd.f32 %v5147, %v5153
        %v5156 = vadd.f32 %v5148, %v5153
        %v5157 = vld [vmem:[%s49] sm:$0xff]
        %v5158 = vld [vmem:[%s49 + $0x8] sm:$0xff]
        %v5159 = vpack.c.bf16 %v5158, %v5157
        %v5160 = vpack.c.bf16 %v5155, %v5155
        %v5161 = vpack.c.bf16 %v5156, %v5156
        %v5163 = vsel %vm1025, %v5159, 0
        %v5166 = vsel %vm1029, %v5160, 0
        %v5169 = vsel %vm1029, %v5161, 0
        %5171 = vmatprep.subr.bf16.mxu0 0
        %5172 = vmatpush1.bf16.msra.mxu0 0
        %5173 = vmatprep.subr.bf16.mxu0 0
        %5174 = vmatpush1.bf16.msra.mxu0 0
        %5175 = vmatprep.subr.bf16.mxu0 0
        %5176 = vmatpush1.bf16.msra.mxu0 0
        %5177 = vmatprep.subr.bf16.mxu0 0
        %5178 = vmatpush1.bf16.msra.mxu0 0
        %5179 = vmatprep.subr.bf16.mxu0 0
        %5180 = vmatpush1.bf16.msra.mxu0 0
        %5181 = vmatprep.subr.bf16.mxu0 0
        %5182 = vmatpush1.bf16.msra.mxu0 0
        %5183 = vmatprep.subr.bf16.mxu0 0
        %5184 = vmatpush1.bf16.msra.mxu0 0
        %5185 = vmatprep.subr.bf16.mxu0 %v5169
        %5186 = vmatpush1.bf16.msra.mxu0 %v5166
        %5187 = vmatprep.subr.bf16.mxu0 0
        %5188 = vmatpush2.bf16.msra.mxu0 0
        %5189 = vmatprep.subr.bf16.mxu0 0
        %5190 = vmatpush2.bf16.msra.mxu0 0
        %5191 = vmatprep.subr.bf16.mxu0 0
        %5192 = vmatpush2.bf16.msra.mxu0 0
        %5193 = vmatprep.subr.bf16.mxu0 0
        %5194 = vmatpush2.bf16.msra.mxu0 0
        %5195 = vmatprep.subr.bf16.mxu0 0
        %5196 = vmatpush2.bf16.msra.mxu0 0
        %5197 = vmatprep.subr.bf16.mxu0 0
        %5198 = vmatpush2.bf16.msra.mxu0 0
        %5199 = vmatprep.subr.bf16.mxu0 0
        %5200 = vmatpush2.bf16.msra.mxu0 0
        %5201 = vmatprep.subr.bf16.mxu0 0
        %5202 = vmatpush2.bf16.msra.mxu0 0
        %5203 = vmatprep.mubr.bf16.mxu0 0
        %5204 = vmatmul.mubr.bf16.gmra.mxu0 %v5163
        %v5205 = vpop.f32.mrf.mxu0
        %v5206 = vadd.f32 0.0, %v5205
        %v5207 = vpop.f32.mrf.mxu0
        %v5208 = vadd.f32 0.0, %v5207
        %v5209 = vpop.f32.mrf.mxu0
        %v5210 = vadd.f32 0.0, %v5209
        %v5211 = vpop.f32.mrf.mxu0
        %v5212 = vadd.f32 0.0, %v5211
        %5213 = vdwg.mxu0
        %s5214 = scalar_lea.vmem %s49, 16
        %v5215 = vld [vmem:[%s5214] sm:$0xff]
        %v5216 = vld [vmem:[%s5214 + $0x8] sm:$0xff]
        %v5217 = vpack.c.bf16 %v5216, %v5215
        %s5218 = scalar_lea.vmem %s49, 32
        %v5219 = vld [vmem:[%s5218] sm:$0xff]
        %v5220 = vld [vmem:[%s5218 + $0x8] sm:$0xff]
        %v5221 = vpack.c.bf16 %v5220, %v5219
        %v5223 = vsel %vm1025, %v5221, 0
        %5225 = vmatprep.subr.bf16.mxu0 0
        %5226 = vmatpush1.bf16.msra.mxu0 0
        %5227 = vmatprep.subr.bf16.mxu0 0
        %5228 = vmatpush1.bf16.msra.mxu0 0
        %5229 = vmatprep.subr.bf16.mxu0 0
        %5230 = vmatpush1.bf16.msra.mxu0 0
        %5231 = vmatprep.subr.bf16.mxu0 0
        %5232 = vmatpush1.bf16.msra.mxu0 0
        %5233 = vmatprep.subr.bf16.mxu0 0
        %5234 = vmatpush1.bf16.msra.mxu0 0
        %5235 = vmatprep.subr.bf16.mxu0 0
        %5236 = vmatpush1.bf16.msra.mxu0 0
        %5237 = vmatprep.subr.bf16.mxu0 0
        %5238 = vmatpush1.bf16.msra.mxu0 0
        %5239 = vmatprep.subr.bf16.mxu0 %v5169
        %5240 = vmatpush1.bf16.msra.mxu0 %v5166
        %5241 = vmatprep.subr.bf16.mxu0 0
        %5242 = vmatpush2.bf16.msra.mxu0 0
        %5243 = vmatprep.subr.bf16.mxu0 0
        %5244 = vmatpush2.bf16.msra.mxu0 0
        %5245 = vmatprep.subr.bf16.mxu0 0
        %5246 = vmatpush2.bf16.msra.mxu0 0
        %5247 = vmatprep.subr.bf16.mxu0 0
        %5248 = vmatpush2.bf16.msra.mxu0 0
        %5249 = vmatprep.subr.bf16.mxu0 0
        %5250 = vmatpush2.bf16.msra.mxu0 0
        %5251 = vmatprep.subr.bf16.mxu0 0
        %5252 = vmatpush2.bf16.msra.mxu0 0
        %5253 = vmatprep.subr.bf16.mxu0 0
        %5254 = vmatpush2.bf16.msra.mxu0 0
        %5255 = vmatprep.subr.bf16.mxu0 0
        %5256 = vmatpush2.bf16.msra.mxu0 0
        %5257 = vmatprep.mubr.bf16.mxu0 0
        %5258 = vmatmul.mubr.bf16.gmra.mxu0 %v5223
        %v5259 = vpop.f32.mrf.mxu0
        %v5260 = vadd.f32 0.0, %v5259
        %v5261 = vpop.f32.mrf.mxu0
        %v5262 = vadd.f32 0.0, %v5261
        %v5263 = vpop.f32.mrf.mxu0
        %v5264 = vadd.f32 0.0, %v5263
        %v5265 = vpop.f32.mrf.mxu0
        %v5266 = vadd.f32 0.0, %v5265
        %5267 = vdwg.mxu0
        %5272 = vrot.lane.b32.xlu0 %v5206, 16
        %v5273 = vpop.permute.xlu0 %5272
        %5274 = vrot.lane.b32.xlu0 %v5208, 16
        %v5275 = vpop.permute.xlu0 %5274
        %5276 = vrot.lane.b32.xlu0 %v5210, 16
        %v5277 = vpop.permute.xlu0 %5276
        %5278 = vrot.lane.b32.xlu0 %v5212, 16
        %v5279 = vpop.permute.xlu0 %5278
        %v5280 = vsel %vm1358, %v5273, %v5275
        %v5281 = vsel %vm1358, %v5277, %v5279
        %v5286 = vsel %vm1358, 0.0, %v5273
        %v5287 = vsel %vm1358, 0.0, %v5277
        %v5289 = vsel %vm1025, %v5217, 0
        %5291 = vmatprep.subr.bf16.mxu0 0
        %5292 = vmatpush1.bf16.msra.mxu0 0
        %5293 = vmatprep.subr.bf16.mxu0 0
        %5294 = vmatpush1.bf16.msra.mxu0 0
        %5295 = vmatprep.subr.bf16.mxu0 0
        %5296 = vmatpush1.bf16.msra.mxu0 0
        %5297 = vmatprep.subr.bf16.mxu0 0
        %5298 = vmatpush1.bf16.msra.mxu0 0
        %5299 = vmatprep.subr.bf16.mxu0 0
        %5300 = vmatpush1.bf16.msra.mxu0 0
        %5301 = vmatprep.subr.bf16.mxu0 0
        %5302 = vmatpush1.bf16.msra.mxu0 0
        %5303 = vmatprep.subr.bf16.mxu0 0
        %5304 = vmatpush1.bf16.msra.mxu0 0
        %5305 = vmatprep.subr.bf16.mxu0 %v5169
        %5306 = vmatpush1.bf16.msra.mxu0 %v5166
        %5307 = vmatprep.subr.bf16.mxu0 0
        %5308 = vmatpush2.bf16.msra.mxu0 0
        %5309 = vmatprep.subr.bf16.mxu0 0
        %5310 = vmatpush2.bf16.msra.mxu0 0
        %5311 = vmatprep.subr.bf16.mxu0 0
        %5312 = vmatpush2.bf16.msra.mxu0 0
        %5313 = vmatprep.subr.bf16.mxu0 0
        %5314 = vmatpush2.bf16.msra.mxu0 0
        %5315 = vmatprep.subr.bf16.mxu0 0
        %5316 = vmatpush2.bf16.msra.mxu0 0
        %5317 = vmatprep.subr.bf16.mxu0 0
        %5318 = vmatpush2.bf16.msra.mxu0 0
        %5319 = vmatprep.subr.bf16.mxu0 0
        %5320 = vmatpush2.bf16.msra.mxu0 0
        %5321 = vmatprep.subr.bf16.mxu0 0
        %5322 = vmatpush2.bf16.msra.mxu0 0
        %5323 = vmatprep.mubr.bf16.mxu0 0
        %5324 = vmatmul.mubr.bf16.gmra.mxu0 %v5289
        %v5325 = vpop.f32.mrf.mxu0
        %v5326 = vadd.f32 %v5286, %v5325
        %v5327 = vpop.f32.mrf.mxu0
        %v5328 = vadd.f32 %v5280, %v5327
        %v5329 = vpop.f32.mrf.mxu0
        %v5330 = vadd.f32 %v5287, %v5329
        %v5331 = vpop.f32.mrf.mxu0
        %v5332 = vadd.f32 %v5281, %v5331
        %5333 = vdwg.mxu0
        %5338 = vrot.lane.b32.xlu0 %v5260, 112
        %v5339 = vpop.permute.xlu0 %5338
        %5340 = vrot.lane.b32.xlu0 %v5262, 112
        %v5341 = vpop.permute.xlu0 %5340
        %5342 = vrot.lane.b32.xlu0 %v5264, 112
        %v5343 = vpop.permute.xlu0 %5342
        %5344 = vrot.lane.b32.xlu0 %v5266, 112
        %v5345 = vpop.permute.xlu0 %5344
        %v5346 = vsel %vm1383, %v5339, %v5341
        %v5347 = vsel %vm1383, %v5343, %v5345
        %v5352 = vsel %vm1383, %v5341, 0.0
        %v5353 = vsel %vm1383, %v5345, 0.0
        %v5354 = vadd.f32 %v5326, %v5346
        %v5355 = vadd.f32 %v5328, %v5352
        %v5356 = vadd.f32 %v5330, %v5347
        %v5357 = vadd.f32 %v5332, %v5353
        %v5358 = vld [vmem:[%s51] sm:$0xff]
        %v5359 = vld [vmem:[%s51 + $0x8] sm:$0xff]
        %5361 = vset.pattern.permute.xlu0 0
        %5362 = vperm.xlu0 %5361, %v5358
        %v5363 = vpop.permute.xlu0 %5362
        %5366 = vset.pattern.permute.xlu0 0
        %5367 = vperm.xlu0 %5366, %v5359
        %v5368 = vpop.permute.xlu0 %5367
        %v5370 = vadd.f32 %v5354, %v5363
        %v5371 = vadd.f32 %v5355, %v5363
        %v5372 = vadd.f32 %v5356, %v5368
        %v5373 = vadd.f32 %v5357, %v5368
        %v5374 = vmul.f32 %v5370, 0.5
        %v5375 = vmul.f32 %v5371, 0.5
        %v5376 = vmul.f32 %v5372, 0.5
        %v5377 = vmul.f32 %v5373, 0.5
        %v5378 = vmul.f32 %v5370, 0.70710677
        %v5379 = vmul.f32 %v5371, 0.70710677
        %v5380 = vmul.f32 %v5372, 0.70710677
        %v5381 = vmul.f32 %v5373, 0.70710677
        %vm5382 = vcmp.ge.f32.partialorder %v5378, 0.0
        %vm5383 = vcmp.ge.f32.partialorder %v5379, 0.0
        %vm5384 = vcmp.ge.f32.partialorder %v5380, 0.0
        %vm5385 = vcmp.ge.f32.partialorder %v5381, 0.0
        %v5386 = vsel %vm5382, 1.0, -1.0
        %v5387 = vsel %vm5383, 1.0, -1.0
        %v5388 = vsel %vm5384, 1.0, -1.0
        %v5389 = vsel %vm5385, 1.0, -1.0
        %v5390 = vand.u32 2147483647, %v5378
        %v5391 = vand.u32 2147483647, %v5379
        %v5392 = vand.u32 2147483647, %v5380
        %v5393 = vand.u32 2147483647, %v5381
        %v5394 = vmul.f32 %v5390, 0.3275911
        %v5395 = vmul.f32 %v5391, 0.3275911
        %v5396 = vmul.f32 %v5392, 0.3275911
        %v5397 = vmul.f32 %v5393, 0.3275911
        %v5398 = vadd.f32 %v5394, 1.0
        %v5399 = vadd.f32 %v5395, 1.0
        %v5400 = vadd.f32 %v5396, 1.0
        %v5401 = vadd.f32 %v5397, 1.0
        %v5402 = vrcp.pop %v5398
        %v5403 = vmul.f32 1.0, %v5402
        %v5404 = vrcp.pop %v5399
        %v5405 = vmul.f32 1.0, %v5404
        %v5406 = vrcp.pop %v5400
        %v5407 = vmul.f32 1.0, %v5406
        %v5408 = vrcp.pop %v5401
        %v5409 = vmul.f32 1.0, %v5408
        %v5410 = vmul.f32 %v5403, 1.0614054
        %v5411 = vmul.f32 %v5405, 1.0614054
        %v5412 = vmul.f32 %v5407, 1.0614054
        %v5413 = vmul.f32 %v5409, 1.0614054
        %v5414 = vadd.f32 %v5410, -1.4531521
        %v5415 = vadd.f32 %v5411, -1.4531521
        %v5416 = vadd.f32 %v5412, -1.4531521
        %v5417 = vadd.f32 %v5413, -1.4531521
        %v5418 = vmul.f32 %v5414, %v5403
        %v5419 = vmul.f32 %v5415, %v5405
        %v5420 = vmul.f32 %v5416, %v5407
        %v5421 = vmul.f32 %v5417, %v5409
        %v5422 = vadd.f32 %v5418, 1.4214138
        %v5423 = vadd.f32 %v5419, 1.4214138
        %v5424 = vadd.f32 %v5420, 1.4214138
        %v5425 = vadd.f32 %v5421, 1.4214138
        %v5426 = vmul.f32 %v5422, %v5403
        %v5427 = vmul.f32 %v5423, %v5405
        %v5428 = vmul.f32 %v5424, %v5407
        %v5429 = vmul.f32 %v5425, %v5409
        %v5430 = vadd.f32 %v5426, -0.28449672
        %v5431 = vadd.f32 %v5427, -0.28449672
        %v5432 = vadd.f32 %v5428, -0.28449672
        %v5433 = vadd.f32 %v5429, -0.28449672
        %v5434 = vmul.f32 %v5430, %v5403
        %v5435 = vmul.f32 %v5431, %v5405
        %v5436 = vmul.f32 %v5432, %v5407
        %v5437 = vmul.f32 %v5433, %v5409
        %v5438 = vadd.f32 %v5434, 0.2548296
        %v5439 = vadd.f32 %v5435, 0.2548296
        %v5440 = vadd.f32 %v5436, 0.2548296
        %v5441 = vadd.f32 %v5437, 0.2548296
        %v5442 = vmul.f32 %v5438, %v5403
        %v5443 = vmul.f32 %v5439, %v5405
        %v5444 = vmul.f32 %v5440, %v5407
        %v5445 = vmul.f32 %v5441, %v5409
        %v5446 = vsub.f32 0.0, %v5390
        %v5447 = vsub.f32 0.0, %v5391
        %v5448 = vsub.f32 0.0, %v5392
        %v5449 = vsub.f32 0.0, %v5393
        %v5450 = vmul.f32 %v5446, %v5390
        %v5451 = vmul.f32 %v5447, %v5391
        %v5452 = vmul.f32 %v5448, %v5392
        %v5453 = vmul.f32 %v5449, %v5393
        %v5454 = vmul.f32 %v5450, 1.442695
        %v5455 = vpow.pop %v5454
        %v5456 = vmul.f32 %v5451, 1.442695
        %v5457 = vpow.pop %v5456
        %v5458 = vmul.f32 %v5452, 1.442695
        %v5459 = vpow.pop %v5458
        %v5460 = vmul.f32 %v5453, 1.442695
        %v5461 = vpow.pop %v5460
        %v5462 = vmul.f32 %v5442, %v5455
        %v5463 = vmul.f32 %v5443, %v5457
        %v5464 = vmul.f32 %v5444, %v5459
        %v5465 = vmul.f32 %v5445, %v5461
        %v5466 = vsub.f32 1.0, %v5462
        %v5467 = vsub.f32 1.0, %v5463
        %v5468 = vsub.f32 1.0, %v5464
        %v5469 = vsub.f32 1.0, %v5465
        %v5470 = vmul.f32 %v5386, %v5466
        %v5471 = vmul.f32 %v5387, %v5467
        %v5472 = vmul.f32 %v5388, %v5468
        %v5473 = vmul.f32 %v5389, %v5469
        %v5474 = vadd.f32 %v5470, 1.0
        %v5475 = vadd.f32 %v5471, 1.0
        %v5476 = vadd.f32 %v5472, 1.0
        %v5477 = vadd.f32 %v5473, 1.0
        %v5478 = vmul.f32 %v5374, %v5474
        %v5479 = vmul.f32 %v5375, %v5475
        %v5480 = vmul.f32 %v5376, %v5476
        %v5481 = vmul.f32 %v5377, %v5477
        %v5482 = vld [vmem:[%s53] sm:$0xff]
        %v5483 = vpack.c.bf16 %v5482, %v5482
        %v5484 = vpack.c.bf16 %v5480, %v5478
        %v5485 = vpack.c.bf16 %v5481, %v5479
        %v5486 = vld [vmem:[%s55] sm:$0xff]
        %5488 = vset.pattern.permute.xlu0 0
        %5489 = vperm.xlu0 %5488, %v5486
        %v5490 = vpop.permute.xlu0 %5489
        %v5493 = vsel %vm1358, %v5483, 0
        %5495 = vmatprep.subr.bf16.mxu0 0
        %5496 = vmatpush1.bf16.msra.mxu0 0
        %5497 = vmatprep.subr.bf16.mxu0 0
        %5498 = vmatpush1.bf16.msra.mxu0 0
        %5499 = vmatprep.subr.bf16.mxu0 0
        %5500 = vmatpush1.bf16.msra.mxu0 0
        %5501 = vmatprep.subr.bf16.mxu0 0
        %5502 = vmatpush1.bf16.msra.mxu0 0
        %5503 = vmatprep.subr.bf16.mxu0 0
        %5504 = vmatpush1.bf16.msra.mxu0 0
        %5505 = vmatprep.subr.bf16.mxu0 0
        %5506 = vmatpush1.bf16.msra.mxu0 0
        %5507 = vmatprep.subr.bf16.mxu0 0
        %5508 = vmatpush1.bf16.msra.mxu0 0
        %5509 = vmatprep.subr.bf16.mxu0 %v5485
        %5510 = vmatpush1.bf16.msra.mxu0 %v5484
        %5511 = vmatprep.subr.bf16.mxu0 0
        %5512 = vmatpush2.bf16.msra.mxu0 0
        %5513 = vmatprep.subr.bf16.mxu0 0
        %5514 = vmatpush2.bf16.msra.mxu0 0
        %5515 = vmatprep.subr.bf16.mxu0 0
        %5516 = vmatpush2.bf16.msra.mxu0 0
        %5517 = vmatprep.subr.bf16.mxu0 0
        %5518 = vmatpush2.bf16.msra.mxu0 0
        %5519 = vmatprep.subr.bf16.mxu0 0
        %5520 = vmatpush2.bf16.msra.mxu0 0
        %5521 = vmatprep.subr.bf16.mxu0 0
        %5522 = vmatpush2.bf16.msra.mxu0 0
        %5523 = vmatprep.subr.bf16.mxu0 0
        %5524 = vmatpush2.bf16.msra.mxu0 0
        %5525 = vmatprep.subr.bf16.mxu0 0
        %5526 = vmatpush2.bf16.msra.mxu0 0
        %5527 = vmatprep.mubr.bf16.mxu0 0
        %5528 = vmatmul.mubr.bf16.gmra.mxu0 %v5493
        %v5529 = vpop.f32.mrf.mxu0
        %v5530 = vadd.f32 %v5490, %v5529
        %v5531 = vpop.f32.mrf.mxu0
        %v5532 = vadd.f32 %v5490, %v5531
        %v5533 = vpop.f32.mrf.mxu0
        %v5534 = vpop.f32.mrf.mxu0
        %5535 = vdwg.mxu0
        %v5536 = vld [vmem:[%s57] sm:$0xff]
        %5538 = vset.pattern.permute.xlu0 0
        %5539 = vperm.xlu0 %5538, %v5536
        %v5540 = vpop.permute.xlu0 %5539
        %v5542 = vmul.f32 %v5530, %v5540
        %v5543 = vmul.f32 %v5532, %v5540
        %v5544 = vadd.f32 %v5542, %v4907
        %v5545 = vadd.f32 %v5543, %v4908
        %5546 = vst [vmem:[%s929] sm:$0xff] %v5544
        %5547 = vst [vmem:[%s929 + $0x8] sm:$0xff] %v5545
        %p5548 = scmp.lt.s32.totalorder %s72, 1
        %s5549 = scalar_select %p5548, %s72, 1
        %s5550 = smul.addr %s5549, 2
        %s5551 = smul.addr %s5550, 8
        %s5552 = scalar_lea.vmem %s59, %s5551
        // Predicated region
        $region145: #{resgroup_forward.2} parent=135 // pred_check
          %p5553 = pneg %p704
        $region146: #{resgroup_forward.2} parent=135 // pred_check_branch
          %5555 = sbr.rel (%p5553) target = $region148
        $region147: #{resgroup_forward.2} parent=135 // pred_region
          _
        $region148: #{resgroup_forward.2} parent=135 // pred_fallthru
          _
      $region136: #{resgroup_forward.2} parent=5 // pred_fallthru
        _
      %p5556 = scmp.le.s32.totalorder 2, %s67
      // Predicated region
      $region149: #{resgroup_forward.2} parent=5 // pred_check
        %p5557 = pneg %p5556
      $region150: #{resgroup_forward.2} parent=5 // pred_check_branch
        %5559 = sbr.rel (%p5557) target = $region152
      $region151: #{resgroup_forward.2} parent=5 // pred_region
        %s5560 = ssub.s32 %s67, 2
        // Predicated region
        $region153: #{resgroup_forward.2} parent=151 // pred_check
          %p5561 = pneg %p710
        $region154: #{resgroup_forward.2} parent=151 // pred_check_branch
          %5563 = sbr.rel (%p5561) target = $region156
        $region155: #{resgroup_forward.2} parent=151 // pred_region
          %p5564 = scmp.lt.s32.totalorder %s73, 1
          %s5565 = scalar_select %p5564, %s73, 1
          %s5566 = smul.addr %s5565, 2
          %s5567 = smul.addr %s5566, 8
          %s5568 = scalar_lea.vmem %s59, %s5567
        $region156: #{resgroup_forward.2} parent=151 // pred_fallthru
          _
      $region152: #{resgroup_forward.2} parent=5 // pred_fallthru
        _
    $region6: #{resgroup_forward.2} parent=1 // loop_footer
      %s71 = sadd.s32 1, %s67
    $region7: #{resgroup_forward.2} parent=1 // loop_footer_branch
      %66 = sbr.rel target = $region3
    $region8: #{resgroup_forward.2} parent=1 // loop_exit
      _
    %5569 = vsyncpa [#allocation3], 1
    %s5570 = scalar_lea.sflag [#allocation3], 1
    %5571 = vsyncpa %s5570, 1
    %5572 = vsyncpa [#allocation5], 1

</llo_original>
